<compile_context>
chip_gen: v5e
topology: v5e:2x2
jax: 0.10.0
libtpu: 0.0.40
codegen_flags: <defaults>
</compile_context>

<pallas_src>
import jax
import jax.numpy as jnp
from jax.experimental import pallas as pl
from jax.experimental.pallas import tpu as pltpu

LANE = 128


def _round_up(n, m=LANE):
    return ((n + m - 1) // m) * m


def _pad2d(w, rows, cols):
    r, c = w.shape
    return jnp.pad(w, ((0, rows - r), (0, cols - c)))


# ------------------------------ fused kernel ------------------------------- #
def _make_dualgcn_kernel(layer_kinds, K, n_layers, has_cheb):
    """Builds the fused per-branch kernel (static unroll over layers)."""

    def kernel(*refs):
        x_ref, l_ref = refs[0], refs[1]
        w_refs = refs[2:2 + n_layers]
        wfin_ref = refs[2 + n_layers]       # this branch's half of the final Linear
        y_ref = refs[3 + n_layers]          # forward_one output (padded, f32)
        p_ref = refs[4 + n_layers]          # partial final output (padded, f32)
        tslab_ref = refs[5 + n_layers] if has_cheb else None   # bf16 T_k slab

        x = x_ref[...]                      # (N, pad_in) bf16 activations
        lap = l_ref[...]                    # (N, N) bf16 dense Laplacian

        for kind, w_ref in zip(layer_kinds, w_refs):
            if kind == "linear":
                x = jnp.dot(x.astype(jnp.bfloat16), w_ref[...],
                            preferred_element_type=jnp.float32)
            else:
                pin = w_ref.shape[0] // K
                # Chebyshev recurrence kept in f32; matmul operands in bf16.
                # Each T_k is stored straight into its 128-aligned lane slice
                # of the bf16 VMEM slab (no concatenate copy), then ONE
                # stacked matmul contracts over K*pin.
                t_prev2 = x
                tslab_ref[:, 0:pin] = t_prev2.astype(jnp.bfloat16)
                t_prev1 = None
                if K > 1:
                    t_prev1 = jnp.dot(lap, t_prev2.astype(jnp.bfloat16),
                                      preferred_element_type=jnp.float32)
                    tslab_ref[:, pin:2 * pin] = t_prev1.astype(jnp.bfloat16)
                for k in range(2, K):
                    t_k = (2.0 * jnp.dot(lap, t_prev1.astype(jnp.bfloat16),
                                         preferred_element_type=jnp.float32)
                           - t_prev2)
                    tslab_ref[:, k * pin:(k + 1) * pin] = t_k.astype(jnp.bfloat16)
                    t_prev2, t_prev1 = t_prev1, t_k
                x = jnp.dot(tslab_ref[:, 0:K * pin], w_ref[...],
                            preferred_element_type=jnp.float32)
                x = jnp.maximum(x, 0.0)     # ReLU fused (follows every ChebConv)
                # TODO(synk): droprate=None in this config, so nn.Dropout is a
                # no-op; stochastic training-mode dropout is not implemented.

        y_ref[...] = x.astype(jnp.float32)
        # This branch's half of Linear(2*size_in, size_out) over cat(y1, y2):
        # full output = (y1 @ W_top) + (y2 @ W_bot), summed outside the kernel.
        p_ref[...] = jnp.dot(x.astype(jnp.bfloat16), wfin_ref[...],
                             preferred_element_type=jnp.float32)

    return kernel


# --------------------------- parameter construction ------------------------ #
def init_dualgcn_params(key, size_in, size_out, hidden_dim, nb_layers, K):
    """Mirrors DualGCN.__init__; stores raw f32 weights plus padded bf16 kernels."""
    raw_layers = []
    h = hidden_dim

    def nkey():
        nonlocal key
        key, sub = jax.random.split(key)
        return sub

    if size_in != h:
        # nn.Linear(size_in, hidden, bias=False); stored transposed (in, out).
        raw_layers.append(("linear",
                           0.1 * jax.random.normal(nkey(), (size_in, h), jnp.float32)))
    for _ in range(nb_layers):
        new = h // 2
        raw_layers.append(("cheb",
                           0.1 * jax.random.normal(nkey(), (K, h, new), jnp.float32)))
        h = new
    for _ in range(nb_layers):
        new = h * 2
        raw_layers.append(("cheb",
                           0.1 * jax.random.normal(nkey(), (K, h, new), jnp.float32)))
        h = new
    if size_in != h:
        # Matches PyTorch exactly: gated on size_in != hidden_dim,
        # projecting hidden_dim -> size_out.
        raw_layers.append(("linear",
                           0.1 * jax.random.normal(nkey(), (h, size_out), jnp.float32)))
        y_width = size_out
    else:
        y_width = h

    # PyTorch re-creates nn.Linear(2*size_in, size_out) randomly on every call;
    # here it is initialized once, deterministically.
    raw_final = 0.1 * jax.random.normal(nkey(), (2 * size_in, size_out), jnp.float32)
    assert y_width == size_in, (
        "cat(y1, y2) must have width 2*size_in for the final Linear")

    # ---- pad to lane-dense (multiples of 128), cast matmul operands to bf16 ----
    kinds, padded_ws, cheb_pins = [], [], []
    for kind, w in raw_layers:
        kinds.append(kind)
        if kind == "linear":
            f_in, f_out = w.shape
            padded_ws.append(
                _pad2d(w, _round_up(f_in), _round_up(f_out)).astype(jnp.bfloat16))
        else:
            _, f_in, f_out = w.shape
            pin, pout = _round_up(f_in), _round_up(f_out)
            cheb_pins.append(pin)
            wp = jnp.pad(w, ((0, 0), (0, pin - f_in), (0, pout - f_out)))
            padded_ws.append(wp.reshape(K * pin, pout).astype(jnp.bfloat16))

    # Final Linear split into the two branch halves, padded, stacked on branch dim.
    py, pout = _round_up(y_width), _round_up(size_out)
    wfin_stacked = jnp.stack([_pad2d(raw_final[:size_in, :], py, pout),
                              _pad2d(raw_final[size_in:, :], py, pout)]
                             ).astype(jnp.bfloat16)

    return dict(kinds=tuple(kinds), K=K, layer_ws=padded_ws,
                wfin_stacked=wfin_stacked,
                raw_layers=raw_layers, raw_final=raw_final,
                size_in=size_in, size_out=size_out, y_width=y_width,
                pad_in=_round_up(size_in), pad_y=py, pad_out=pout,
                max_cheb_pin=(max(cheb_pins) if cheb_pins else 0))


# ---------------------------- pallas_call builder --------------------------- #
def _physical_vmem_bytes():
    try:
        return int(pltpu.get_tpu_info().vmem_capacity_bytes)
    except Exception:
        return 64 * 1024 * 1024     # conservative (v7x per-TC) fallback


def _vmem_needed_bytes(params, n, single_buffer_weights):
    """Rough per-core VMEM requirement from actual block sizes + buffer counts."""
    wbuf = 1 if single_buffer_weights else 2
    need = 0
    need += 2 * n * params["pad_in"] * 2                       # x block (bf16, 2-buf)
    need += 2 * n * n * 2                                      # lap block (bf16, 2-buf)
    need += wbuf * sum(int(w.size) for w in params["layer_ws"]) * 2
    need += 2 * params["pad_y"] * params["pad_out"] * 2        # wfin branch block
    need += 2 * n * params["pad_y"] * 4                        # y output (f32, 2-buf)
    need += 2 * n * params["pad_out"] * 4                      # partial out (f32, 2-buf)
    if params["max_cheb_pin"]:
        need += n * params["K"] * params["max_cheb_pin"] * 2   # T_k scratch slab
    return need


def _build_pallas_call(params, n, semantics, single_buffer_weights):
    pad_in, pad_y, pad_out = params["pad_in"], params["pad_y"], params["pad_out"]
    layer_ws = params["layer_ws"]
    n_layers = len(layer_ws)
    has_cheb = params["max_cheb_pin"] > 0

    def branch_spec(mid, last):   # leading branch dim squeezed, indexed by grid b
        return pl.BlockSpec((None, mid, last), lambda b: (b, 0, 0))

    def const_spec(shape):        # grid-invariant weight block (no re-DMA per branch)
        if single_buffer_weights:
            # Identical for both branches -> a second pipeline buffer is pure
            # VMEM waste; single-buffer it.
            return pl.BlockSpec(shape, lambda b: (0, 0),
                                pipeline_mode=pl.Buffered(1))
        return pl.BlockSpec(shape, lambda b: (0, 0))

    kernel = _make_dualgcn_kernel(params["kinds"], params["K"], n_layers, has_cheb)

    scratch = ([pltpu.VMEM((n, params["K"] * params["max_cheb_pin"]), jnp.bfloat16)]
               if has_cheb else [])

    physical = _physical_vmem_bytes()
    needed = _vmem_needed_bytes(params, n, single_buffer_weights)
    vmem_limit = int(min(0.85 * physical,
                         max(1.5 * needed + (8 << 20), 32 << 20)))

    return pl.pallas_call(
        kernel,
        out_shape=(jax.ShapeDtypeStruct((2, n, pad_y), jnp.float32),
                   jax.ShapeDtypeStruct((2, n, pad_out), jnp.float32)),
        grid=(2,),
        in_specs=([branch_spec(n, pad_in), branch_spec(n, n)]
                  + [const_spec(w.shape) for w in layer_ws]
                  + [branch_spec(pad_y, pad_out)]),
        out_specs=(branch_spec(n, pad_y), branch_spec(n, pad_out)),
        scratch_shapes=scratch,
        compiler_params=pltpu.CompilerParams(
            dimension_semantics=semantics,
            vmem_limit_bytes=vmem_limit),
    )


# Config attempts, best-first.  CORE_PARALLEL guarantees the branch axis lands
# on both TensorCores on v7x; if the toolchain / chip rejects it (or rejects
# single-buffered invariant weights) we fall back gracefully.
_CORE_PARALLEL = getattr(pltpu, "CORE_PARALLEL", "parallel")
_ATTEMPTS = (
    ((_CORE_PARALLEL,), True),
    (("parallel",), True),
    (("parallel",), False),
    (("arbitrary",), False),
)


# --------------------------------- forward --------------------------------- #
def dualgcn_forward(x1, x2, l1, l2, params):
    n = x1.shape[0]
    pad_in = params["pad_in"]

    xs = jnp.stack([jnp.pad(x1, ((0, 0), (0, pad_in - x1.shape[1]))),
                    jnp.pad(x2, ((0, 0), (0, pad_in - x2.shape[1])))]
                   ).astype(jnp.bfloat16)                       # (2, N, pad_in)
    ls = jnp.stack([l1, l2]).astype(jnp.bfloat16)               # (2, N, N)

    last_err = None
    for semantics, single_buf in _ATTEMPTS:
        try:
            fn = _build_pallas_call(params, n, semantics, single_buf)
            y_stacked, partial = fn(xs, ls, *params["layer_ws"],
                                    params["wfin_stacked"])
            y_stacked, partial = jax.block_until_ready((y_stacked, partial))
            break
        except Exception as err:   # lowering/compile rejection -> next config
            last_err = err
    else:
        raise last_err

    y1 = y_stacked[0, :, :params["y_width"]]
    y2 = y_stacked[1, :, :params["y_width"]]
    out = (partial[0] + partial[1])[:, :params["size_out"]]     # tiny XLA add + slice
    return y1, y2, out


# ------------------------- pure-JAX reference (check) ----------------------- #
def _reference_forward(x1, x2, l1, l2, params):
    def one(x, lap):
        for kind, w in params["raw_layers"]:
            if kind == "linear":
                x = x @ w
            else:
                K = w.shape[0]
                t_prev2 = x
                out = t_prev2 @ w[0]
                if K > 1:
                    t_prev1 = lap @ x
                    out = out + t_prev1 @ w[1]
                    for k in range(2, K):
                        t_k = 2.0 * (lap @ t_prev1) - t_prev2
                        out = out + t_k @ w[k]
                        t_prev2, t_prev1 = t_prev1, t_k
                x = jnp.maximum(out, 0.0)
        return x

    y1, y2 = one(x1, l1), one(x2, l2)
    y = jnp.concatenate((y1, y2), axis=1)
    return y1, y2, y @ params["raw_final"]


# ----------------------------------- main ----------------------------------- #
if __name__ == "__main__":
    # Small shapes consistent with the module.  cat(dim=1) followed by
    # Linear(2*size_in, size_out) requires size_out == size_in.
    N = 16
    SIZE_IN = 16
    SIZE_OUT = 16
    HIDDEN = 32
    NB_LAYERS = 2
    K = 3

    key = jax.random.PRNGKey(0)
    k1, k2, k3, k4, kp = jax.random.split(key, 5)
    x1 = jax.random.normal(k1, (N, SIZE_IN), jnp.float32)
    x2 = jax.random.normal(k2, (N, SIZE_IN), jnp.float32)
    # Symmetric "Laplacian-like" matrices, scaled to keep magnitudes sane.
    # (Real ChebConv expects the rescaled Laplacian 2L/lambda_max - I; supply
    #  that here if matching a real-graph PyTorch ChebConv.)
    a1 = jax.random.normal(k3, (N, N), jnp.float32)
    a2 = jax.random.normal(k4, (N, N), jnp.float32)
    L1 = 0.1 * (a1 + a1.T)
    L2 = 0.1 * (a2 + a2.T)

    params = init_dualgcn_params(kp, SIZE_IN, SIZE_OUT, HIDDEN, NB_LAYERS, K)

    y1, y2, y = dualgcn_forward(x1, x2, L1, L2, params)
    jax.block_until_ready((y1, y2, y))

    assert y1.shape == (N, SIZE_OUT)
    assert y2.shape == (N, SIZE_OUT)
    assert y.shape == (N, SIZE_OUT)

    # f32 ground-truth reference; tolerance loosened for bf16 MXU operands.
    r1, r2, r = _reference_forward(x1, x2, L1, L2, params)
    assert bool(jnp.allclose(y1, r1, atol=3e-2, rtol=3e-2))
    assert bool(jnp.allclose(y2, r2, atol=3e-2, rtol=3e-2))
    assert bool(jnp.allclose(y, r, atol=3e-2, rtol=3e-2))

    print("KERNEL_OK")
</pallas_src>

<mosaic_0001>
module attributes {stable_mosaic.version = 11 : i64} {
  func.func @kernel(%arg0: i32, %arg1: memref<1x16x128xbf16, #tpu.memory_space<vmem>>, %arg2: memref<1x16x16xbf16, #tpu.memory_space<vmem>>, %arg3: memref<128x128xbf16, #tpu.memory_space<vmem>>, %arg4: memref<384x128xbf16, #tpu.memory_space<vmem>>, %arg5: memref<384x128xbf16, #tpu.memory_space<vmem>>, %arg6: memref<384x128xbf16, #tpu.memory_space<vmem>>, %arg7: memref<384x128xbf16, #tpu.memory_space<vmem>>, %arg8: memref<128x128xbf16, #tpu.memory_space<vmem>>, %arg9: memref<1x128x128xbf16, #tpu.memory_space<vmem>>, %arg10: memref<1x16x128xf32, #tpu.memory_space<vmem>>, %arg11: memref<1x16x128xf32, #tpu.memory_space<vmem>>, %arg12: memref<16x384xbf16, #tpu.memory_space<vmem>>) attributes {dimension_semantics = [#tpu.dimension_semantics<core_parallel>], iteration_bounds = array<i64: 2>, scalar_prefetch = 0 : i64, scratch_operands = 1 : i64, tpu.core_type = #tpu.core_type<tc>, window_params = [{transform_indices = @transform_0, window_bounds = array<i64: 1, 16, 128>}, {transform_indices = @transform_1, window_bounds = array<i64: 1, 16, 16>}, {pipeline_mode = #tpu.pipeline_mode<synchronous>, transform_indices = @transform_2, window_bounds = array<i64: 128, 128>}, {pipeline_mode = #tpu.pipeline_mode<synchronous>, transform_indices = @transform_3, window_bounds = array<i64: 384, 128>}, {pipeline_mode = #tpu.pipeline_mode<synchronous>, transform_indices = @transform_4, window_bounds = array<i64: 384, 128>}, {pipeline_mode = #tpu.pipeline_mode<synchronous>, transform_indices = @transform_5, window_bounds = array<i64: 384, 128>}, {pipeline_mode = #tpu.pipeline_mode<synchronous>, transform_indices = @transform_6, window_bounds = array<i64: 384, 128>}, {pipeline_mode = #tpu.pipeline_mode<synchronous>, transform_indices = @transform_7, window_bounds = array<i64: 128, 128>}, {transform_indices = @transform_8, window_bounds = array<i64: 1, 128, 128>}, {transform_indices = @transform_9, window_bounds = array<i64: 1, 16, 128>}, {transform_indices = @transform_10, window_bounds = array<i64: 1, 16, 128>}]} {
    %c0 = arith.constant 0 : index
    %c0_0 = arith.constant 0 : index
    %c0_1 = arith.constant 0 : index
    %0 = vector.load %arg1[%c0, %c0_0, %c0_1] : memref<1x16x128xbf16, #tpu.memory_space<vmem>>, vector<1x16x128xbf16>
    %1 = vector.shape_cast %0 : vector<1x16x128xbf16> to vector<16x128xbf16>
    %c0_2 = arith.constant 0 : index
    %c0_3 = arith.constant 0 : index
    %c0_4 = arith.constant 0 : index
    %2 = vector.load %arg2[%c0_2, %c0_3, %c0_4] : memref<1x16x16xbf16, #tpu.memory_space<vmem>>, vector<1x16x16xbf16>
    %3 = vector.shape_cast %2 : vector<1x16x16xbf16> to vector<16x16xbf16>
    %c0_5 = arith.constant 0 : index
    %c0_6 = arith.constant 0 : index
    %4 = vector.load %arg3[%c0_5, %c0_6] : memref<128x128xbf16, #tpu.memory_space<vmem>>, vector<128x128xbf16>
    %cst = arith.constant dense<0.000000e+00> : vector<16x128xf32>
    %5 = tpu.matmul %1, %4, %cst {dimension_numbers = #tpu.dot_dimension_numbers<[1], [0], [0], [1], [0, 0, 1, 1], [], []>} : vector<16x128xbf16>, vector<128x128xbf16>, vector<16x128xf32> -> vector<16x128xf32>
    %6 = arith.truncf %5 : vector<16x128xf32> to vector<16x128xbf16>
    %c0_7 = arith.constant 0 : index
    %c0_8 = arith.constant 0 : index
    %7 = vector.load %arg12[%c0_7, %c0_8] : memref<16x384xbf16, #tpu.memory_space<vmem>>, vector<16x128xbf16>
    tpu.vector_store %arg12[%c0_7, %c0_8], %6 {strides = array<i32>} : memref<16x384xbf16, #tpu.memory_space<vmem>>, vector<16x128xbf16>,
    %8 = arith.truncf %5 : vector<16x128xf32> to vector<16x128xbf16>
    %cst_9 = arith.constant dense<0.000000e+00> : vector<16x128xf32>
    %9 = tpu.matmul %3, %8, %cst_9 {dimension_numbers = #tpu.dot_dimension_numbers<[1], [0], [0], [1], [0, 0, 1, 1], [], []>} : vector<16x16xbf16>, vector<16x128xbf16>, vector<16x128xf32> -> vector<16x128xf32>
    %10 = arith.truncf %9 : vector<16x128xf32> to vector<16x128xbf16>
    %c0_10 = arith.constant 0 : index
    %c128 = arith.constant 128 : index
    %11 = vector.load %arg12[%c0_10, %c128] : memref<16x384xbf16, #tpu.memory_space<vmem>>, vector<16x128xbf16>
    tpu.vector_store %arg12[%c0_10, %c128], %10 {strides = array<i32>} : memref<16x384xbf16, #tpu.memory_space<vmem>>, vector<16x128xbf16>,
    %12 = arith.truncf %9 : vector<16x128xf32> to vector<16x128xbf16>
    %cst_11 = arith.constant dense<0.000000e+00> : vector<16x128xf32>
    %13 = tpu.matmul %3, %12, %cst_11 {dimension_numbers = #tpu.dot_dimension_numbers<[1], [0], [0], [1], [0, 0, 1, 1], [], []>} : vector<16x16xbf16>, vector<16x128xbf16>, vector<16x128xf32> -> vector<16x128xf32>
    %cst_12 = arith.constant 2.000000e+00 : f32
    %14 = vector.broadcast %cst_12 : f32 to vector<16x128xf32>
    %15 = arith.mulf %14, %13 : vector<16x128xf32>
    %16 = arith.subf %15, %5 : vector<16x128xf32>
    %17 = arith.truncf %16 : vector<16x128xf32> to vector<16x128xbf16>
    %c0_13 = arith.constant 0 : index
    %c256 = arith.constant 256 : index
    %18 = vector.load %arg12[%c0_13, %c256] : memref<16x384xbf16, #tpu.memory_space<vmem>>, vector<16x128xbf16>
    tpu.vector_store %arg12[%c0_13, %c256], %17 {strides = array<i32>} : memref<16x384xbf16, #tpu.memory_space<vmem>>, vector<16x128xbf16>,
    %c0_14 = arith.constant 0 : index
    %c0_15 = arith.constant 0 : index
    %19 = vector.load %arg12[%c0_14, %c0_15] : memref<16x384xbf16, #tpu.memory_space<vmem>>, vector<16x384xbf16>
    %c0_16 = arith.constant 0 : index
    %c0_17 = arith.constant 0 : index
    %20 = vector.load %arg4[%c0_16, %c0_17] : memref<384x128xbf16, #tpu.memory_space<vmem>>, vector<384x128xbf16>
    %cst_18 = arith.constant dense<0.000000e+00> : vector<16x128xf32>
    %21 = tpu.matmul %19, %20, %cst_18 {dimension_numbers = #tpu.dot_dimension_numbers<[1], [0], [0], [1], [0, 0, 1, 1], [], []>} : vector<16x384xbf16>, vector<384x128xbf16>, vector<16x128xf32> -> vector<16x128xf32>
    %cst_19 = arith.constant 0.000000e+00 : f32
    %22 = vector.broadcast %cst_19 : f32 to vector<16x128xf32>
    %23 = arith.maximumf %21, %22 : vector<16x128xf32>
    %24 = arith.truncf %23 : vector<16x128xf32> to vector<16x128xbf16>
    %c0_20 = arith.constant 0 : index
    %c0_21 = arith.constant 0 : index
    %25 = vector.load %arg12[%c0_20, %c0_21] : memref<16x384xbf16, #tpu.memory_space<vmem>>, vector<16x128xbf16>
    tpu.vector_store %arg12[%c0_20, %c0_21], %24 {strides = array<i32>} : memref<16x384xbf16, #tpu.memory_space<vmem>>, vector<16x128xbf16>,
    %26 = arith.truncf %23 : vector<16x128xf32> to vector<16x128xbf16>
    %cst_22 = arith.constant dense<0.000000e+00> : vector<16x128xf32>
    %27 = tpu.matmul %3, %26, %cst_22 {dimension_numbers = #tpu.dot_dimension_numbers<[1], [0], [0], [1], [0, 0, 1, 1], [], []>} : vector<16x16xbf16>, vector<16x128xbf16>, vector<16x128xf32> -> vector<16x128xf32>
    %28 = arith.truncf %27 : vector<16x128xf32> to vector<16x128xbf16>
    %c0_23 = arith.constant 0 : index
    %c128_24 = arith.constant 128 : index
    %29 = vector.load %arg12[%c0_23, %c128_24] : memref<16x384xbf16, #tpu.memory_space<vmem>>, vector<16x128xbf16>
    tpu.vector_store %arg12[%c0_23, %c128_24], %28 {strides = array<i32>} : memref<16x384xbf16, #tpu.memory_space<vmem>>, vector<16x128xbf16>,
    %30 = arith.truncf %27 : vector<16x128xf32> to vector<16x128xbf16>
    %cst_25 = arith.constant dense<0.000000e+00> : vector<16x128xf32>
    %31 = tpu.matmul %3, %30, %cst_25 {dimension_numbers = #tpu.dot_dimension_numbers<[1], [0], [0], [1], [0, 0, 1, 1], [], []>} : vector<16x16xbf16>, vector<16x128xbf16>, vector<16x128xf32> -> vector<16x128xf32>
    %cst_26 = arith.constant 2.000000e+00 : f32
    %32 = vector.broadcast %cst_26 : f32 to vector<16x128xf32>
    %33 = arith.mulf %32, %31 : vector<16x128xf32>
    %34 = arith.subf %33, %23 : vector<16x128xf32>
    %35 = arith.truncf %34 : vector<16x128xf32> to vector<16x128xbf16>
    %c0_27 = arith.constant 0 : index
    %c256_28 = arith.constant 256 : index
    %36 = vector.load %arg12[%c0_27, %c256_28] : memref<16x384xbf16, #tpu.memory_space<vmem>>, vector<16x128xbf16>
    tpu.vector_store %arg12[%c0_27, %c256_28], %35 {strides = array<i32>} : memref<16x384xbf16, #tpu.memory_space<vmem>>, vector<16x128xbf16>,
    %c0_29 = arith.constant 0 : index
    %c0_30 = arith.constant 0 : index
    %37 = vector.load %arg12[%c0_29, %c0_30] : memref<16x384xbf16, #tpu.memory_space<vmem>>, vector<16x384xbf16>
    %c0_31 = arith.constant 0 : index
    %c0_32 = arith.constant 0 : index
    %38 = vector.load %arg5[%c0_31, %c0_32] : memref<384x128xbf16, #tpu.memory_space<vmem>>, vector<384x128xbf16>
    %cst_33 = arith.constant dense<0.000000e+00> : vector<16x128xf32>
    %39 = tpu.matmul %37, %38, %cst_33 {dimension_numbers = #tpu.dot_dimension_numbers<[1], [0], [0], [1], [0, 0, 1, 1], [], []>} : vector<16x384xbf16>, vector<384x128xbf16>, vector<16x128xf32> -> vector<16x128xf32>
    %cst_34 = arith.constant 0.000000e+00 : f32
    %40 = vector.broadcast %cst_34 : f32 to vector<16x128xf32>
    %41 = arith.maximumf %39, %40 : vector<16x128xf32>
    %42 = arith.truncf %41 : vector<16x128xf32> to vector<16x128xbf16>
    %c0_35 = arith.constant 0 : index
    %c0_36 = arith.constant 0 : index
    %43 = vector.load %arg12[%c0_35, %c0_36] : memref<16x384xbf16, #tpu.memory_space<vmem>>, vector<16x128xbf16>
    tpu.vector_store %arg12[%c0_35, %c0_36], %42 {strides = array<i32>} : memref<16x384xbf16, #tpu.memory_space<vmem>>, vector<16x128xbf16>,
    %44 = arith.truncf %41 : vector<16x128xf32> to vector<16x128xbf16>
    %cst_37 = arith.constant dense<0.000000e+00> : vector<16x128xf32>
    %45 = tpu.matmul %3, %44, %cst_37 {dimension_numbers = #tpu.dot_dimension_numbers<[1], [0], [0], [1], [0, 0, 1, 1], [], []>} : vector<16x16xbf16>, vector<16x128xbf16>, vector<16x128xf32> -> vector<16x128xf32>
    %46 = arith.truncf %45 : vector<16x128xf32> to vector<16x128xbf16>
    %c0_38 = arith.constant 0 : index
    %c128_39 = arith.constant 128 : index
    %47 = vector.load %arg12[%c0_38, %c128_39] : memref<16x384xbf16, #tpu.memory_space<vmem>>, vector<16x128xbf16>
    tpu.vector_store %arg12[%c0_38, %c128_39], %46 {strides = array<i32>} : memref<16x384xbf16, #tpu.memory_space<vmem>>, vector<16x128xbf16>,
    %48 = arith.truncf %45 : vector<16x128xf32> to vector<16x128xbf16>
    %cst_40 = arith.constant dense<0.000000e+00> : vector<16x128xf32>
    %49 = tpu.matmul %3, %48, %cst_40 {dimension_numbers = #tpu.dot_dimension_numbers<[1], [0], [0], [1], [0, 0, 1, 1], [], []>} : vector<16x16xbf16>, vector<16x128xbf16>, vector<16x128xf32> -> vector<16x128xf32>
    %cst_41 = arith.constant 2.000000e+00 : f32
    %50 = vector.broadcast %cst_41 : f32 to vector<16x128xf32>
    %51 = arith.mulf %50, %49 : vector<16x128xf32>
    %52 = arith.subf %51, %41 : vector<16x128xf32>
    %53 = arith.truncf %52 : vector<16x128xf32> to vector<16x128xbf16>
    %c0_42 = arith.constant 0 : index
    %c256_43 = arith.constant 256 : index
    %54 = vector.load %arg12[%c0_42, %c256_43] : memref<16x384xbf16, #tpu.memory_space<vmem>>, vector<16x128xbf16>
    tpu.vector_store %arg12[%c0_42, %c256_43], %53 {strides = array<i32>} : memref<16x384xbf16, #tpu.memory_space<vmem>>, vector<16x128xbf16>,
    %c0_44 = arith.constant 0 : index
    %c0_45 = arith.constant 0 : index
    %55 = vector.load %arg12[%c0_44, %c0_45] : memref<16x384xbf16, #tpu.memory_space<vmem>>, vector<16x384xbf16>
    %c0_46 = arith.constant 0 : index
    %c0_47 = arith.constant 0 : index
    %56 = vector.load %arg6[%c0_46, %c0_47] : memref<384x128xbf16, #tpu.memory_space<vmem>>, vector<384x128xbf16>
    %cst_48 = arith.constant dense<0.000000e+00> : vector<16x128xf32>
    %57 = tpu.matmul %55, %56, %cst_48 {dimension_numbers = #tpu.dot_dimension_numbers<[1], [0], [0], [1], [0, 0, 1, 1], [], []>} : vector<16x384xbf16>, vector<384x128xbf16>, vector<16x128xf32> -> vector<16x128xf32>
    %cst_49 = arith.constant 0.000000e+00 : f32
    %58 = vector.broadcast %cst_49 : f32 to vector<16x128xf32>
    %59 = arith.maximumf %57, %58 : vector<16x128xf32>
    %60 = arith.truncf %59 : vector<16x128xf32> to vector<16x128xbf16>
    %c0_50 = arith.constant 0 : index
    %c0_51 = arith.constant 0 : index
    %61 = vector.load %arg12[%c0_50, %c0_51] : memref<16x384xbf16, #tpu.memory_space<vmem>>, vector<16x128xbf16>
    tpu.vector_store %arg12[%c0_50, %c0_51], %60 {strides = array<i32>} : memref<16x384xbf16, #tpu.memory_space<vmem>>, vector<16x128xbf16>,
    %62 = arith.truncf %59 : vector<16x128xf32> to vector<16x128xbf16>
    %cst_52 = arith.constant dense<0.000000e+00> : vector<16x128xf32>
    %63 = tpu.matmul %3, %62, %cst_52 {dimension_numbers = #tpu.dot_dimension_numbers<[1], [0], [0], [1], [0, 0, 1, 1], [], []>} : vector<16x16xbf16>, vector<16x128xbf16>, vector<16x128xf32> -> vector<16x128xf32>
    %64 = arith.truncf %63 : vector<16x128xf32> to vector<16x128xbf16>
    %c0_53 = arith.constant 0 : index
    %c128_54 = arith.constant 128 : index
    %65 = vector.load %arg12[%c0_53, %c128_54] : memref<16x384xbf16, #tpu.memory_space<vmem>>, vector<16x128xbf16>
    tpu.vector_store %arg12[%c0_53, %c128_54], %64 {strides = array<i32>} : memref<16x384xbf16, #tpu.memory_space<vmem>>, vector<16x128xbf16>,
    %66 = arith.truncf %63 : vector<16x128xf32> to vector<16x128xbf16>
    %cst_55 = arith.constant dense<0.000000e+00> : vector<16x128xf32>
    %67 = tpu.matmul %3, %66, %cst_55 {dimension_numbers = #tpu.dot_dimension_numbers<[1], [0], [0], [1], [0, 0, 1, 1], [], []>} : vector<16x16xbf16>, vector<16x128xbf16>, vector<16x128xf32> -> vector<16x128xf32>
    %cst_56 = arith.constant 2.000000e+00 : f32
    %68 = vector.broadcast %cst_56 : f32 to vector<16x128xf32>
    %69 = arith.mulf %68, %67 : vector<16x128xf32>
    %70 = arith.subf %69, %59 : vector<16x128xf32>
    %71 = arith.truncf %70 : vector<16x128xf32> to vector<16x128xbf16>
    %c0_57 = arith.constant 0 : index
    %c256_58 = arith.constant 256 : index
    %72 = vector.load %arg12[%c0_57, %c256_58] : memref<16x384xbf16, #tpu.memory_space<vmem>>, vector<16x128xbf16>
    tpu.vector_store %arg12[%c0_57, %c256_58], %71 {strides = array<i32>} : memref<16x384xbf16, #tpu.memory_space<vmem>>, vector<16x128xbf16>,
    %c0_59 = arith.constant 0 : index
    %c0_60 = arith.constant 0 : index
    %73 = vector.load %arg12[%c0_59, %c0_60] : memref<16x384xbf16, #tpu.memory_space<vmem>>, vector<16x384xbf16>
    %c0_61 = arith.constant 0 : index
    %c0_62 = arith.constant 0 : index
    %74 = vector.load %arg7[%c0_61, %c0_62] : memref<384x128xbf16, #tpu.memory_space<vmem>>, vector<384x128xbf16>
    %cst_63 = arith.constant dense<0.000000e+00> : vector<16x128xf32>
    %75 = tpu.matmul %73, %74, %cst_63 {dimension_numbers = #tpu.dot_dimension_numbers<[1], [0], [0], [1], [0, 0, 1, 1], [], []>} : vector<16x384xbf16>, vector<384x128xbf16>, vector<16x128xf32> -> vector<16x128xf32>
    %cst_64 = arith.constant 0.000000e+00 : f32
    %76 = vector.broadcast %cst_64 : f32 to vector<16x128xf32>
    %77 = arith.maximumf %75, %76 : vector<16x128xf32>
    %78 = arith.truncf %77 : vector<16x128xf32> to vector<16x128xbf16>
    %c0_65 = arith.constant 0 : index
    %c0_66 = arith.constant 0 : index
    %79 = vector.load %arg8[%c0_65, %c0_66] : memref<128x128xbf16, #tpu.memory_space<vmem>>, vector<128x128xbf16>
    %cst_67 = arith.constant dense<0.000000e+00> : vector<16x128xf32>
    %80 = tpu.matmul %78, %79, %cst_67 {dimension_numbers = #tpu.dot_dimension_numbers<[1], [0], [0], [1], [0, 0, 1, 1], [], []>} : vector<16x128xbf16>, vector<128x128xbf16>, vector<16x128xf32> -> vector<16x128xf32>
    %c0_68 = arith.constant 0 : index
    %c0_69 = arith.constant 0 : index
    %c0_70 = arith.constant 0 : index
    %81 = vector.load %arg10[%c0_68, %c0_69, %c0_70] : memref<1x16x128xf32, #tpu.memory_space<vmem>>, vector<1x16x128xf32>
    %82 = vector.shape_cast %81 : vector<1x16x128xf32> to vector<16x128xf32>
    %83 = vector.shape_cast %80 : vector<16x128xf32> to vector<1x16x128xf32>
    tpu.vector_store %arg10[%c0_68, %c0_69, %c0_70], %83 {strides = array<i32>} : memref<1x16x128xf32, #tpu.memory_space<vmem>>, vector<1x16x128xf32>,
    %84 = arith.truncf %80 : vector<16x128xf32> to vector<16x128xbf16>
    %c0_71 = arith.constant 0 : index
    %c0_72 = arith.constant 0 : index
    %c0_73 = arith.constant 0 : index
    %85 = vector.load %arg9[%c0_71, %c0_72, %c0_73] : memref<1x128x128xbf16, #tpu.memory_space<vmem>>, vector<1x128x128xbf16>
    %86 = vector.shape_cast %85 : vector<1x128x128xbf16> to vector<128x128xbf16>
    %cst_74 = arith.constant dense<0.000000e+00> : vector<16x128xf32>
    %87 = tpu.matmul %84, %86, %cst_74 {dimension_numbers = #tpu.dot_dimension_numbers<[1], [0], [0], [1], [0, 0, 1, 1], [], []>} : vector<16x128xbf16>, vector<128x128xbf16>, vector<16x128xf32> -> vector<16x128xf32>
    %c0_75 = arith.constant 0 : index
    %c0_76 = arith.constant 0 : index
    %c0_77 = arith.constant 0 : index
    %88 = vector.load %arg11[%c0_75, %c0_76, %c0_77] : memref<1x16x128xf32, #tpu.memory_space<vmem>>, vector<1x16x128xf32>
    %89 = vector.shape_cast %88 : vector<1x16x128xf32> to vector<16x128xf32>
    %90 = vector.shape_cast %87 : vector<16x128xf32> to vector<1x16x128xf32>
    tpu.vector_store %arg11[%c0_75, %c0_76, %c0_77], %90 {strides = array<i32>} : memref<1x16x128xf32, #tpu.memory_space<vmem>>, vector<1x16x128xf32>,
    return
  }
  func.func @transform_0(%arg0: i32) -> (i32, i32, i32) {
    %c0_i32 = arith.constant 0 : i32
    %c0_i32_0 = arith.constant 0 : i32
    %c0_i32_1 = arith.constant 0 : i32
    return %arg0, %c0_i32, %c0_i32_0 : i32, i32, i32
  }
  func.func @transform_1(%arg0: i32) -> (i32, i32, i32) {
    %c0_i32 = arith.constant 0 : i32
    %c0_i32_0 = arith.constant 0 : i32
    %c0_i32_1 = arith.constant 0 : i32
    return %arg0, %c0_i32, %c0_i32_0 : i32, i32, i32
  }
  func.func @transform_2(%arg0: i32) -> (i32, i32) {
    %c0_i32 = arith.constant 0 : i32
    %c0_i32_0 = arith.constant 0 : i32
    %c0_i32_1 = arith.constant 0 : i32
    return %c0_i32, %c0_i32_0 : i32, i32
  }
  func.func @transform_3(%arg0: i32) -> (i32, i32) {
    %c0_i32 = arith.constant 0 : i32
    %c0_i32_0 = arith.constant 0 : i32
    %c0_i32_1 = arith.constant 0 : i32
    return %c0_i32, %c0_i32_0 : i32, i32
  }
  func.func @transform_4(%arg0: i32) -> (i32, i32) {
    %c0_i32 = arith.constant 0 : i32
    %c0_i32_0 = arith.constant 0 : i32
    %c0_i32_1 = arith.constant 0 : i32
    return %c0_i32, %c0_i32_0 : i32, i32
  }
  func.func @transform_5(%arg0: i32) -> (i32, i32) {
    %c0_i32 = arith.constant 0 : i32
    %c0_i32_0 = arith.constant 0 : i32
    %c0_i32_1 = arith.constant 0 : i32
    return %c0_i32, %c0_i32_0 : i32, i32
  }
  func.func @transform_6(%arg0: i32) -> (i32, i32) {
    %c0_i32 = arith.constant 0 : i32
    %c0_i32_0 = arith.constant 0 : i32
    %c0_i32_1 = arith.constant 0 : i32
    return %c0_i32, %c0_i32_0 : i32, i32
  }
  func.func @transform_7(%arg0: i32) -> (i32, i32) {
    %c0_i32 = arith.constant 0 : i32
    %c0_i32_0 = arith.constant 0 : i32
    %c0_i32_1 = arith.constant 0 : i32
    return %c0_i32, %c0_i32_0 : i32, i32
  }
  func.func @transform_8(%arg0: i32) -> (i32, i32, i32) {
    %c0_i32 = arith.constant 0 : i32
    %c0_i32_0 = arith.constant 0 : i32
    %c0_i32_1 = arith.constant 0 : i32
    return %arg0, %c0_i32, %c0_i32_0 : i32, i32, i32
  }
  func.func @transform_9(%arg0: i32) -> (i32, i32, i32) {
    %c0_i32 = arith.constant 0 : i32
    %c0_i32_0 = arith.constant 0 : i32
    %c0_i32_1 = arith.constant 0 : i32
    return %arg0, %c0_i32, %c0_i32_0 : i32, i32, i32
  }
  func.func @transform_10(%arg0: i32) -> (i32, i32, i32) {
    %c0_i32 = arith.constant 0 : i32
    %c0_i32_0 = arith.constant 0 : i32
    %c0_i32_1 = arith.constant 0 : i32
    return %arg0, %c0_i32, %c0_i32_0 : i32, i32, i32
  }
}

module attributes {stable_mosaic.version = 11 : i64} {
  func.func @kernel(%arg0: i32, %arg1: memref<1x16x128xbf16, #tpu.memory_space<vmem>>, %arg2: memref<1x16x16xbf16, #tpu.memory_space<vmem>>, %arg3: memref<128x128xbf16, #tpu.memory_space<vmem>>, %arg4: memref<384x128xbf16, #tpu.memory_space<vmem>>, %arg5: memref<384x128xbf16, #tpu.memory_space<vmem>>, %arg6: memref<384x128xbf16, #tpu.memory_space<vmem>>, %arg7: memref<384x128xbf16, #tpu.memory_space<vmem>>, %arg8: memref<128x128xbf16, #tpu.memory_space<vmem>>, %arg9: memref<1x128x128xbf16, #tpu.memory_space<vmem>>, %arg10: memref<1x16x128xf32, #tpu.memory_space<vmem>>, %arg11: memref<1x16x128xf32, #tpu.memory_space<vmem>>, %arg12: memref<16x384xbf16, #tpu.memory_space<vmem>>) attributes {dimension_semantics = [#tpu.dimension_semantics<parallel>], iteration_bounds = array<i64: 2>, scalar_prefetch = 0 : i64, scratch_operands = 1 : i64, tpu.core_type = #tpu.core_type<tc>, window_params = [{transform_indices = @transform_0, window_bounds = array<i64: 1, 16, 128>}, {transform_indices = @transform_1, window_bounds = array<i64: 1, 16, 16>}, {pipeline_mode = #tpu.pipeline_mode<synchronous>, transform_indices = @transform_2, window_bounds = array<i64: 128, 128>}, {pipeline_mode = #tpu.pipeline_mode<synchronous>, transform_indices = @transform_3, window_bounds = array<i64: 384, 128>}, {pipeline_mode = #tpu.pipeline_mode<synchronous>, transform_indices = @transform_4, window_bounds = array<i64: 384, 128>}, {pipeline_mode = #tpu.pipeline_mode<synchronous>, transform_indices = @transform_5, window_bounds = array<i64: 384, 128>}, {pipeline_mode = #tpu.pipeline_mode<synchronous>, transform_indices = @transform_6, window_bounds = array<i64: 384, 128>}, {pipeline_mode = #tpu.pipeline_mode<synchronous>, transform_indices = @transform_7, window_bounds = array<i64: 128, 128>}, {transform_indices = @transform_8, window_bounds = array<i64: 1, 128, 128>}, {transform_indices = @transform_9, window_bounds = array<i64: 1, 16, 128>}, {transform_indices = @transform_10, window_bounds = array<i64: 1, 16, 128>}]} {
    %c0 = arith.constant 0 : index
    %c0_0 = arith.constant 0 : index
    %c0_1 = arith.constant 0 : index
    %0 = vector.load %arg1[%c0, %c0_0, %c0_1] : memref<1x16x128xbf16, #tpu.memory_space<vmem>>, vector<1x16x128xbf16>
    %1 = vector.shape_cast %0 : vector<1x16x128xbf16> to vector<16x128xbf16>
    %c0_2 = arith.constant 0 : index
    %c0_3 = arith.constant 0 : index
    %c0_4 = arith.constant 0 : index
    %2 = vector.load %arg2[%c0_2, %c0_3, %c0_4] : memref<1x16x16xbf16, #tpu.memory_space<vmem>>, vector<1x16x16xbf16>
    %3 = vector.shape_cast %2 : vector<1x16x16xbf16> to vector<16x16xbf16>
    %c0_5 = arith.constant 0 : index
    %c0_6 = arith.constant 0 : index
    %4 = vector.load %arg3[%c0_5, %c0_6] : memref<128x128xbf16, #tpu.memory_space<vmem>>, vector<128x128xbf16>
    %cst = arith.constant dense<0.000000e+00> : vector<16x128xf32>
    %5 = tpu.matmul %1, %4, %cst {dimension_numbers = #tpu.dot_dimension_numbers<[1], [0], [0], [1], [0, 0, 1, 1], [], []>} : vector<16x128xbf16>, vector<128x128xbf16>, vector<16x128xf32> -> vector<16x128xf32>
    %6 = arith.truncf %5 : vector<16x128xf32> to vector<16x128xbf16>
    %c0_7 = arith.constant 0 : index
    %c0_8 = arith.constant 0 : index
    %7 = vector.load %arg12[%c0_7, %c0_8] : memref<16x384xbf16, #tpu.memory_space<vmem>>, vector<16x128xbf16>
    tpu.vector_store %arg12[%c0_7, %c0_8], %6 {strides = array<i32>} : memref<16x384xbf16, #tpu.memory_space<vmem>>, vector<16x128xbf16>,
    %8 = arith.truncf %5 : vector<16x128xf32> to vector<16x128xbf16>
    %cst_9 = arith.constant dense<0.000000e+00> : vector<16x128xf32>
    %9 = tpu.matmul %3, %8, %cst_9 {dimension_numbers = #tpu.dot_dimension_numbers<[1], [0], [0], [1], [0, 0, 1, 1], [], []>} : vector<16x16xbf16>, vector<16x128xbf16>, vector<16x128xf32> -> vector<16x128xf32>
    %10 = arith.truncf %9 : vector<16x128xf32> to vector<16x128xbf16>
    %c0_10 = arith.constant 0 : index
    %c128 = arith.constant 128 : index
    %11 = vector.load %arg12[%c0_10, %c128] : memref<16x384xbf16, #tpu.memory_space<vmem>>, vector<16x128xbf16>
    tpu.vector_store %arg12[%c0_10, %c128], %10 {strides = array<i32>} : memref<16x384xbf16, #tpu.memory_space<vmem>>, vector<16x128xbf16>,
    %12 = arith.truncf %9 : vector<16x128xf32> to vector<16x128xbf16>
    %cst_11 = arith.constant dense<0.000000e+00> : vector<16x128xf32>
    %13 = tpu.matmul %3, %12, %cst_11 {dimension_numbers = #tpu.dot_dimension_numbers<[1], [0], [0], [1], [0, 0, 1, 1], [], []>} : vector<16x16xbf16>, vector<16x128xbf16>, vector<16x128xf32> -> vector<16x128xf32>
    %cst_12 = arith.constant 2.000000e+00 : f32
    %14 = vector.broadcast %cst_12 : f32 to vector<16x128xf32>
    %15 = arith.mulf %14, %13 : vector<16x128xf32>
    %16 = arith.subf %15, %5 : vector<16x128xf32>
    %17 = arith.truncf %16 : vector<16x128xf32> to vector<16x128xbf16>
    %c0_13 = arith.constant 0 : index
    %c256 = arith.constant 256 : index
    %18 = vector.load %arg12[%c0_13, %c256] : memref<16x384xbf16, #tpu.memory_space<vmem>>, vector<16x128xbf16>
    tpu.vector_store %arg12[%c0_13, %c256], %17 {strides = array<i32>} : memref<16x384xbf16, #tpu.memory_space<vmem>>, vector<16x128xbf16>,
    %c0_14 = arith.constant 0 : index
    %c0_15 = arith.constant 0 : index
    %19 = vector.load %arg12[%c0_14, %c0_15] : memref<16x384xbf16, #tpu.memory_space<vmem>>, vector<16x384xbf16>
    %c0_16 = arith.constant 0 : index
    %c0_17 = arith.constant 0 : index
    %20 = vector.load %arg4[%c0_16, %c0_17] : memref<384x128xbf16, #tpu.memory_space<vmem>>, vector<384x128xbf16>
    %cst_18 = arith.constant dense<0.000000e+00> : vector<16x128xf32>
    %21 = tpu.matmul %19, %20, %cst_18 {dimension_numbers = #tpu.dot_dimension_numbers<[1], [0], [0], [1], [0, 0, 1, 1], [], []>} : vector<16x384xbf16>, vector<384x128xbf16>, vector<16x128xf32> -> vector<16x128xf32>
    %cst_19 = arith.constant 0.000000e+00 : f32
    %22 = vector.broadcast %cst_19 : f32 to vector<16x128xf32>
    %23 = arith.maximumf %21, %22 : vector<16x128xf32>
    %24 = arith.truncf %23 : vector<16x128xf32> to vector<16x128xbf16>
    %c0_20 = arith.constant 0 : index
    %c0_21 = arith.constant 0 : index
    %25 = vector.load %arg12[%c0_20, %c0_21] : memref<16x384xbf16, #tpu.memory_space<vmem>>, vector<16x128xbf16>
    tpu.vector_store %arg12[%c0_20, %c0_21], %24 {strides = array<i32>} : memref<16x384xbf16, #tpu.memory_space<vmem>>, vector<16x128xbf16>,
    %26 = arith.truncf %23 : vector<16x128xf32> to vector<16x128xbf16>
    %cst_22 = arith.constant dense<0.000000e+00> : vector<16x128xf32>
    %27 = tpu.matmul %3, %26, %cst_22 {dimension_numbers = #tpu.dot_dimension_numbers<[1], [0], [0], [1], [0, 0, 1, 1], [], []>} : vector<16x16xbf16>, vector<16x128xbf16>, vector<16x128xf32> -> vector<16x128xf32>
    %28 = arith.truncf %27 : vector<16x128xf32> to vector<16x128xbf16>
    %c0_23 = arith.constant 0 : index
    %c128_24 = arith.constant 128 : index
    %29 = vector.load %arg12[%c0_23, %c128_24] : memref<16x384xbf16, #tpu.memory_space<vmem>>, vector<16x128xbf16>
    tpu.vector_store %arg12[%c0_23, %c128_24], %28 {strides = array<i32>} : memref<16x384xbf16, #tpu.memory_space<vmem>>, vector<16x128xbf16>,
    %30 = arith.truncf %27 : vector<16x128xf32> to vector<16x128xbf16>
    %cst_25 = arith.constant dense<0.000000e+00> : vector<16x128xf32>
    %31 = tpu.matmul %3, %30, %cst_25 {dimension_numbers = #tpu.dot_dimension_numbers<[1], [0], [0], [1], [0, 0, 1, 1], [], []>} : vector<16x16xbf16>, vector<16x128xbf16>, vector<16x128xf32> -> vector<16x128xf32>
    %cst_26 = arith.constant 2.000000e+00 : f32
    %32 = vector.broadcast %cst_26 : f32 to vector<16x128xf32>
    %33 = arith.mulf %32, %31 : vector<16x128xf32>
    %34 = arith.subf %33, %23 : vector<16x128xf32>
    %35 = arith.truncf %34 : vector<16x128xf32> to vector<16x128xbf16>
    %c0_27 = arith.constant 0 : index
    %c256_28 = arith.constant 256 : index
    %36 = vector.load %arg12[%c0_27, %c256_28] : memref<16x384xbf16, #tpu.memory_space<vmem>>, vector<16x128xbf16>
    tpu.vector_store %arg12[%c0_27, %c256_28], %35 {strides = array<i32>} : memref<16x384xbf16, #tpu.memory_space<vmem>>, vector<16x128xbf16>,
    %c0_29 = arith.constant 0 : index
    %c0_30 = arith.constant 0 : index
    %37 = vector.load %arg12[%c0_29, %c0_30] : memref<16x384xbf16, #tpu.memory_space<vmem>>, vector<16x384xbf16>
    %c0_31 = arith.constant 0 : index
    %c0_32 = arith.constant 0 : index
    %38 = vector.load %arg5[%c0_31, %c0_32] : memref<384x128xbf16, #tpu.memory_space<vmem>>, vector<384x128xbf16>
    %cst_33 = arith.constant dense<0.000000e+00> : vector<16x128xf32>
    %39 = tpu.matmul %37, %38, %cst_33 {dimension_numbers = #tpu.dot_dimension_numbers<[1], [0], [0], [1], [0, 0, 1, 1], [], []>} : vector<16x384xbf16>, vector<384x128xbf16>, vector<16x128xf32> -> vector<16x128xf32>
    %cst_34 = arith.constant 0.000000e+00 : f32
    %40 = vector.broadcast %cst_34 : f32 to vector<16x128xf32>
    %41 = arith.maximumf %39, %40 : vector<16x128xf32>
    %42 = arith.truncf %41 : vector<16x128xf32> to vector<16x128xbf16>
    %c0_35 = arith.constant 0 : index
    %c0_36 = arith.constant 0 : index
    %43 = vector.load %arg12[%c0_35, %c0_36] : memref<16x384xbf16, #tpu.memory_space<vmem>>, vector<16x128xbf16>
    tpu.vector_store %arg12[%c0_35, %c0_36], %42 {strides = array<i32>} : memref<16x384xbf16, #tpu.memory_space<vmem>>, vector<16x128xbf16>,
    %44 = arith.truncf %41 : vector<16x128xf32> to vector<16x128xbf16>
    %cst_37 = arith.constant dense<0.000000e+00> : vector<16x128xf32>
    %45 = tpu.matmul %3, %44, %cst_37 {dimension_numbers = #tpu.dot_dimension_numbers<[1], [0], [0], [1], [0, 0, 1, 1], [], []>} : vector<16x16xbf16>, vector<16x128xbf16>, vector<16x128xf32> -> vector<16x128xf32>
    %46 = arith.truncf %45 : vector<16x128xf32> to vector<16x128xbf16>
    %c0_38 = arith.constant 0 : index
    %c128_39 = arith.constant 128 : index
    %47 = vector.load %arg12[%c0_38, %c128_39] : memref<16x384xbf16, #tpu.memory_space<vmem>>, vector<16x128xbf16>
    tpu.vector_store %arg12[%c0_38, %c128_39], %46 {strides = array<i32>} : memref<16x384xbf16, #tpu.memory_space<vmem>>, vector<16x128xbf16>,
    %48 = arith.truncf %45 : vector<16x128xf32> to vector<16x128xbf16>
    %cst_40 = arith.constant dense<0.000000e+00> : vector<16x128xf32>
    %49 = tpu.matmul %3, %48, %cst_40 {dimension_numbers = #tpu.dot_dimension_numbers<[1], [0], [0], [1], [0, 0, 1, 1], [], []>} : vector<16x16xbf16>, vector<16x128xbf16>, vector<16x128xf32> -> vector<16x128xf32>
    %cst_41 = arith.constant 2.000000e+00 : f32
    %50 = vector.broadcast %cst_41 : f32 to vector<16x128xf32>
    %51 = arith.mulf %50, %49 : vector<16x128xf32>
    %52 = arith.subf %51, %41 : vector<16x128xf32>
    %53 = arith.truncf %52 : vector<16x128xf32> to vector<16x128xbf16>
    %c0_42 = arith.constant 0 : index
    %c256_43 = arith.constant 256 : index
    %54 = vector.load %arg12[%c0_42, %c256_43] : memref<16x384xbf16, #tpu.memory_space<vmem>>, vector<16x128xbf16>
    tpu.vector_store %arg12[%c0_42, %c256_43], %53 {strides = array<i32>} : memref<16x384xbf16, #tpu.memory_space<vmem>>, vector<16x128xbf16>,
    %c0_44 = arith.constant 0 : index
    %c0_45 = arith.constant 0 : index
    %55 = vector.load %arg12[%c0_44, %c0_45] : memref<16x384xbf16, #tpu.memory_space<vmem>>, vector<16x384xbf16>
    %c0_46 = arith.constant 0 : index
    %c0_47 = arith.constant 0 : index
    %56 = vector.load %arg6[%c0_46, %c0_47] : memref<384x128xbf16, #tpu.memory_space<vmem>>, vector<384x128xbf16>
    %cst_48 = arith.constant dense<0.000000e+00> : vector<16x128xf32>
    %57 = tpu.matmul %55, %56, %cst_48 {dimension_numbers = #tpu.dot_dimension_numbers<[1], [0], [0], [1], [0, 0, 1, 1], [], []>} : vector<16x384xbf16>, vector<384x128xbf16>, vector<16x128xf32> -> vector<16x128xf32>
    %cst_49 = arith.constant 0.000000e+00 : f32
    %58 = vector.broadcast %cst_49 : f32 to vector<16x128xf32>
    %59 = arith.maximumf %57, %58 : vector<16x128xf32>
    %60 = arith.truncf %59 : vector<16x128xf32> to vector<16x128xbf16>
    %c0_50 = arith.constant 0 : index
    %c0_51 = arith.constant 0 : index
    %61 = vector.load %arg12[%c0_50, %c0_51] : memref<16x384xbf16, #tpu.memory_space<vmem>>, vector<16x128xbf16>
    tpu.vector_store %arg12[%c0_50, %c0_51], %60 {strides = array<i32>} : memref<16x384xbf16, #tpu.memory_space<vmem>>, vector<16x128xbf16>,
    %62 = arith.truncf %59 : vector<16x128xf32> to vector<16x128xbf16>
    %cst_52 = arith.constant dense<0.000000e+00> : vector<16x128xf32>
    %63 = tpu.matmul %3, %62, %cst_52 {dimension_numbers = #tpu.dot_dimension_numbers<[1], [0], [0], [1], [0, 0, 1, 1], [], []>} : vector<16x16xbf16>, vector<16x128xbf16>, vector<16x128xf32> -> vector<16x128xf32>
    %64 = arith.truncf %63 : vector<16x128xf32> to vector<16x128xbf16>
    %c0_53 = arith.constant 0 : index
    %c128_54 = arith.constant 128 : index
    %65 = vector.load %arg12[%c0_53, %c128_54] : memref<16x384xbf16, #tpu.memory_space<vmem>>, vector<16x128xbf16>
    tpu.vector_store %arg12[%c0_53, %c128_54], %64 {strides = array<i32>} : memref<16x384xbf16, #tpu.memory_space<vmem>>, vector<16x128xbf16>,
    %66 = arith.truncf %63 : vector<16x128xf32> to vector<16x128xbf16>
    %cst_55 = arith.constant dense<0.000000e+00> : vector<16x128xf32>
    %67 = tpu.matmul %3, %66, %cst_55 {dimension_numbers = #tpu.dot_dimension_numbers<[1], [0], [0], [1], [0, 0, 1, 1], [], []>} : vector<16x16xbf16>, vector<16x128xbf16>, vector<16x128xf32> -> vector<16x128xf32>
    %cst_56 = arith.constant 2.000000e+00 : f32
    %68 = vector.broadcast %cst_56 : f32 to vector<16x128xf32>
    %69 = arith.mulf %68, %67 : vector<16x128xf32>
    %70 = arith.subf %69, %59 : vector<16x128xf32>
    %71 = arith.truncf %70 : vector<16x128xf32> to vector<16x128xbf16>
    %c0_57 = arith.constant 0 : index
    %c256_58 = arith.constant 256 : index
    %72 = vector.load %arg12[%c0_57, %c256_58] : memref<16x384xbf16, #tpu.memory_space<vmem>>, vector<16x128xbf16>
    tpu.vector_store %arg12[%c0_57, %c256_58], %71 {strides = array<i32>} : memref<16x384xbf16, #tpu.memory_space<vmem>>, vector<16x128xbf16>,
    %c0_59 = arith.constant 0 : index
    %c0_60 = arith.constant 0 : index
    %73 = vector.load %arg12[%c0_59, %c0_60] : memref<16x384xbf16, #tpu.memory_space<vmem>>, vector<16x384xbf16>
    %c0_61 = arith.constant 0 : index
    %c0_62 = arith.constant 0 : index
    %74 = vector.load %arg7[%c0_61, %c0_62] : memref<384x128xbf16, #tpu.memory_space<vmem>>, vector<384x128xbf16>
    %cst_63 = arith.constant dense<0.000000e+00> : vector<16x128xf32>
    %75 = tpu.matmul %73, %74, %cst_63 {dimension_numbers = #tpu.dot_dimension_numbers<[1], [0], [0], [1], [0, 0, 1, 1], [], []>} : vector<16x384xbf16>, vector<384x128xbf16>, vector<16x128xf32> -> vector<16x128xf32>
    %cst_64 = arith.constant 0.000000e+00 : f32
    %76 = vector.broadcast %cst_64 : f32 to vector<16x128xf32>
    %77 = arith.maximumf %75, %76 : vector<16x128xf32>
    %78 = arith.truncf %77 : vector<16x128xf32> to vector<16x128xbf16>
    %c0_65 = arith.constant 0 : index
    %c0_66 = arith.constant 0 : index
    %79 = vector.load %arg8[%c0_65, %c0_66] : memref<128x128xbf16, #tpu.memory_space<vmem>>, vector<128x128xbf16>
    %cst_67 = arith.constant dense<0.000000e+00> : vector<16x128xf32>
    %80 = tpu.matmul %78, %79, %cst_67 {dimension_numbers = #tpu.dot_dimension_numbers<[1], [0], [0], [1], [0, 0, 1, 1], [], []>} : vector<16x128xbf16>, vector<128x128xbf16>, vector<16x128xf32> -> vector<16x128xf32>
    %c0_68 = arith.constant 0 : index
    %c0_69 = arith.constant 0 : index
    %c0_70 = arith.constant 0 : index
    %81 = vector.load %arg10[%c0_68, %c0_69, %c0_70] : memref<1x16x128xf32, #tpu.memory_space<vmem>>, vector<1x16x128xf32>
    %82 = vector.shape_cast %81 : vector<1x16x128xf32> to vector<16x128xf32>
    %83 = vector.shape_cast %80 : vector<16x128xf32> to vector<1x16x128xf32>
    tpu.vector_store %arg10[%c0_68, %c0_69, %c0_70], %83 {strides = array<i32>} : memref<1x16x128xf32, #tpu.memory_space<vmem>>, vector<1x16x128xf32>,
    %84 = arith.truncf %80 : vector<16x128xf32> to vector<16x128xbf16>
    %c0_71 = arith.constant 0 : index
    %c0_72 = arith.constant 0 : index
    %c0_73 = arith.constant 0 : index
    %85 = vector.load %arg9[%c0_71, %c0_72, %c0_73] : memref<1x128x128xbf16, #tpu.memory_space<vmem>>, vector<1x128x128xbf16>
    %86 = vector.shape_cast %85 : vector<1x128x128xbf16> to vector<128x128xbf16>
    %cst_74 = arith.constant dense<0.000000e+00> : vector<16x128xf32>
    %87 = tpu.matmul %84, %86, %cst_74 {dimension_numbers = #tpu.dot_dimension_numbers<[1], [0], [0], [1], [0, 0, 1, 1], [], []>} : vector<16x128xbf16>, vector<128x128xbf16>, vector<16x128xf32> -> vector<16x128xf32>
    %c0_75 = arith.constant 0 : index
    %c0_76 = arith.constant 0 : index
    %c0_77 = arith.constant 0 : index
    %88 = vector.load %arg11[%c0_75, %c0_76, %c0_77] : memref<1x16x128xf32, #tpu.memory_space<vmem>>, vector<1x16x128xf32>
    %89 = vector.shape_cast %88 : vector<1x16x128xf32> to vector<16x128xf32>
    %90 = vector.shape_cast %87 : vector<16x128xf32> to vector<1x16x128xf32>
    tpu.vector_store %arg11[%c0_75, %c0_76, %c0_77], %90 {strides = array<i32>} : memref<1x16x128xf32, #tpu.memory_space<vmem>>, vector<1x16x128xf32>,
    return
  }
  func.func @transform_0(%arg0: i32) -> (i32, i32, i32) {
    %c0_i32 = arith.constant 0 : i32
    %c0_i32_0 = arith.constant 0 : i32
    %c0_i32_1 = arith.constant 0 : i32
    return %arg0, %c0_i32, %c0_i32_0 : i32, i32, i32
  }
  func.func @transform_1(%arg0: i32) -> (i32, i32, i32) {
    %c0_i32 = arith.constant 0 : i32
    %c0_i32_0 = arith.constant 0 : i32
    %c0_i32_1 = arith.constant 0 : i32
    return %arg0, %c0_i32, %c0_i32_0 : i32, i32, i32
  }
  func.func @transform_2(%arg0: i32) -> (i32, i32) {
    %c0_i32 = arith.constant 0 : i32
    %c0_i32_0 = arith.constant 0 : i32
    %c0_i32_1 = arith.constant 0 : i32
    return %c0_i32, %c0_i32_0 : i32, i32
  }
  func.func @transform_3(%arg0: i32) -> (i32, i32) {
    %c0_i32 = arith.constant 0 : i32
    %c0_i32_0 = arith.constant 0 : i32
    %c0_i32_1 = arith.constant 0 : i32
    return %c0_i32, %c0_i32_0 : i32, i32
  }
  func.func @transform_4(%arg0: i32) -> (i32, i32) {
    %c0_i32 = arith.constant 0 : i32
    %c0_i32_0 = arith.constant 0 : i32
    %c0_i32_1 = arith.constant 0 : i32
    return %c0_i32, %c0_i32_0 : i32, i32
  }
  func.func @transform_5(%arg0: i32) -> (i32, i32) {
    %c0_i32 = arith.constant 0 : i32
    %c0_i32_0 = arith.constant 0 : i32
    %c0_i32_1 = arith.constant 0 : i32
    return %c0_i32, %c0_i32_0 : i32, i32
  }
  func.func @transform_6(%arg0: i32) -> (i32, i32) {
    %c0_i32 = arith.constant 0 : i32
    %c0_i32_0 = arith.constant 0 : i32
    %c0_i32_1 = arith.constant 0 : i32
    return %c0_i32, %c0_i32_0 : i32, i32
  }
  func.func @transform_7(%arg0: i32) -> (i32, i32) {
    %c0_i32 = arith.constant 0 : i32
    %c0_i32_0 = arith.constant 0 : i32
    %c0_i32_1 = arith.constant 0 : i32
    return %c0_i32, %c0_i32_0 : i32, i32
  }
  func.func @transform_8(%arg0: i32) -> (i32, i32, i32) {
    %c0_i32 = arith.constant 0 : i32
    %c0_i32_0 = arith.constant 0 : i32
    %c0_i32_1 = arith.constant 0 : i32
    return %arg0, %c0_i32, %c0_i32_0 : i32, i32, i32
  }
  func.func @transform_9(%arg0: i32) -> (i32, i32, i32) {
    %c0_i32 = arith.constant 0 : i32
    %c0_i32_0 = arith.constant 0 : i32
    %c0_i32_1 = arith.constant 0 : i32
    return %arg0, %c0_i32, %c0_i32_0 : i32, i32, i32
  }
  func.func @transform_10(%arg0: i32) -> (i32, i32, i32) {
    %c0_i32 = arith.constant 0 : i32
    %c0_i32_0 = arith.constant 0 : i32
    %c0_i32_1 = arith.constant 0 : i32
    return %arg0, %c0_i32, %c0_i32_0 : i32, i32, i32
  }
}

module attributes {stable_mosaic.version = 11 : i64} {
  func.func @kernel(%arg0: i32, %arg1: memref<1x16x128xbf16, #tpu.memory_space<vmem>>, %arg2: memref<1x16x16xbf16, #tpu.memory_space<vmem>>, %arg3: memref<128x128xbf16, #tpu.memory_space<vmem>>, %arg4: memref<384x128xbf16, #tpu.memory_space<vmem>>, %arg5: memref<384x128xbf16, #tpu.memory_space<vmem>>, %arg6: memref<384x128xbf16, #tpu.memory_space<vmem>>, %arg7: memref<384x128xbf16, #tpu.memory_space<vmem>>, %arg8: memref<128x128xbf16, #tpu.memory_space<vmem>>, %arg9: memref<1x128x128xbf16, #tpu.memory_space<vmem>>, %arg10: memref<1x16x128xf32, #tpu.memory_space<vmem>>, %arg11: memref<1x16x128xf32, #tpu.memory_space<vmem>>, %arg12: memref<16x384xbf16, #tpu.memory_space<vmem>>) attributes {dimension_semantics = [#tpu.dimension_semantics<parallel>], iteration_bounds = array<i64: 2>, scalar_prefetch = 0 : i64, scratch_operands = 1 : i64, tpu.core_type = #tpu.core_type<tc>, window_params = [{transform_indices = @transform_0, window_bounds = array<i64: 1, 16, 128>}, {transform_indices = @transform_1, window_bounds = array<i64: 1, 16, 16>}, {pipeline_mode = #tpu.pipeline_mode<synchronous>, transform_indices = @transform_2, window_bounds = array<i64: 128, 128>}, {pipeline_mode = #tpu.pipeline_mode<synchronous>, transform_indices = @transform_3, window_bounds = array<i64: 384, 128>}, {pipeline_mode = #tpu.pipeline_mode<synchronous>, transform_indices = @transform_4, window_bounds = array<i64: 384, 128>}, {pipeline_mode = #tpu.pipeline_mode<synchronous>, transform_indices = @transform_5, window_bounds = array<i64: 384, 128>}, {pipeline_mode = #tpu.pipeline_mode<synchronous>, transform_indices = @transform_6, window_bounds = array<i64: 384, 128>}, {pipeline_mode = #tpu.pipeline_mode<synchronous>, transform_indices = @transform_7, window_bounds = array<i64: 128, 128>}, {transform_indices = @transform_8, window_bounds = array<i64: 1, 128, 128>}, {transform_indices = @transform_9, window_bounds = array<i64: 1, 16, 128>}, {transform_indices = @transform_10, window_bounds = array<i64: 1, 16, 128>}]} {
    %c0 = arith.constant 0 : index
    %c0_0 = arith.constant 0 : index
    %c0_1 = arith.constant 0 : index
    %0 = vector.load %arg1[%c0, %c0_0, %c0_1] : memref<1x16x128xbf16, #tpu.memory_space<vmem>>, vector<1x16x128xbf16>
    %1 = vector.shape_cast %0 : vector<1x16x128xbf16> to vector<16x128xbf16>
    %c0_2 = arith.constant 0 : index
    %c0_3 = arith.constant 0 : index
    %c0_4 = arith.constant 0 : index
    %2 = vector.load %arg2[%c0_2, %c0_3, %c0_4] : memref<1x16x16xbf16, #tpu.memory_space<vmem>>, vector<1x16x16xbf16>
    %3 = vector.shape_cast %2 : vector<1x16x16xbf16> to vector<16x16xbf16>
    %c0_5 = arith.constant 0 : index
    %c0_6 = arith.constant 0 : index
    %4 = vector.load %arg3[%c0_5, %c0_6] : memref<128x128xbf16, #tpu.memory_space<vmem>>, vector<128x128xbf16>
    %cst = arith.constant dense<0.000000e+00> : vector<16x128xf32>
    %5 = tpu.matmul %1, %4, %cst {dimension_numbers = #tpu.dot_dimension_numbers<[1], [0], [0], [1], [0, 0, 1, 1], [], []>} : vector<16x128xbf16>, vector<128x128xbf16>, vector<16x128xf32> -> vector<16x128xf32>
    %6 = arith.truncf %5 : vector<16x128xf32> to vector<16x128xbf16>
    %c0_7 = arith.constant 0 : index
    %c0_8 = arith.constant 0 : index
    %7 = vector.load %arg12[%c0_7, %c0_8] : memref<16x384xbf16, #tpu.memory_space<vmem>>, vector<16x128xbf16>
    tpu.vector_store %arg12[%c0_7, %c0_8], %6 {strides = array<i32>} : memref<16x384xbf16, #tpu.memory_space<vmem>>, vector<16x128xbf16>,
    %8 = arith.truncf %5 : vector<16x128xf32> to vector<16x128xbf16>
    %cst_9 = arith.constant dense<0.000000e+00> : vector<16x128xf32>
    %9 = tpu.matmul %3, %8, %cst_9 {dimension_numbers = #tpu.dot_dimension_numbers<[1], [0], [0], [1], [0, 0, 1, 1], [], []>} : vector<16x16xbf16>, vector<16x128xbf16>, vector<16x128xf32> -> vector<16x128xf32>
    %10 = arith.truncf %9 : vector<16x128xf32> to vector<16x128xbf16>
    %c0_10 = arith.constant 0 : index
    %c128 = arith.constant 128 : index
    %11 = vector.load %arg12[%c0_10, %c128] : memref<16x384xbf16, #tpu.memory_space<vmem>>, vector<16x128xbf16>
    tpu.vector_store %arg12[%c0_10, %c128], %10 {strides = array<i32>} : memref<16x384xbf16, #tpu.memory_space<vmem>>, vector<16x128xbf16>,
    %12 = arith.truncf %9 : vector<16x128xf32> to vector<16x128xbf16>
    %cst_11 = arith.constant dense<0.000000e+00> : vector<16x128xf32>
    %13 = tpu.matmul %3, %12, %cst_11 {dimension_numbers = #tpu.dot_dimension_numbers<[1], [0], [0], [1], [0, 0, 1, 1], [], []>} : vector<16x16xbf16>, vector<16x128xbf16>, vector<16x128xf32> -> vector<16x128xf32>
    %cst_12 = arith.constant 2.000000e+00 : f32
    %14 = vector.broadcast %cst_12 : f32 to vector<16x128xf32>
    %15 = arith.mulf %14, %13 : vector<16x128xf32>
    %16 = arith.subf %15, %5 : vector<16x128xf32>
    %17 = arith.truncf %16 : vector<16x128xf32> to vector<16x128xbf16>
    %c0_13 = arith.constant 0 : index
    %c256 = arith.constant 256 : index
    %18 = vector.load %arg12[%c0_13, %c256] : memref<16x384xbf16, #tpu.memory_space<vmem>>, vector<16x128xbf16>
    tpu.vector_store %arg12[%c0_13, %c256], %17 {strides = array<i32>} : memref<16x384xbf16, #tpu.memory_space<vmem>>, vector<16x128xbf16>,
    %c0_14 = arith.constant 0 : index
    %c0_15 = arith.constant 0 : index
    %19 = vector.load %arg12[%c0_14, %c0_15] : memref<16x384xbf16, #tpu.memory_space<vmem>>, vector<16x384xbf16>
    %c0_16 = arith.constant 0 : index
    %c0_17 = arith.constant 0 : index
    %20 = vector.load %arg4[%c0_16, %c0_17] : memref<384x128xbf16, #tpu.memory_space<vmem>>, vector<384x128xbf16>
    %cst_18 = arith.constant dense<0.000000e+00> : vector<16x128xf32>
    %21 = tpu.matmul %19, %20, %cst_18 {dimension_numbers = #tpu.dot_dimension_numbers<[1], [0], [0], [1], [0, 0, 1, 1], [], []>} : vector<16x384xbf16>, vector<384x128xbf16>, vector<16x128xf32> -> vector<16x128xf32>
    %cst_19 = arith.constant 0.000000e+00 : f32
    %22 = vector.broadcast %cst_19 : f32 to vector<16x128xf32>
    %23 = arith.maximumf %21, %22 : vector<16x128xf32>
    %24 = arith.truncf %23 : vector<16x128xf32> to vector<16x128xbf16>
    %c0_20 = arith.constant 0 : index
    %c0_21 = arith.constant 0 : index
    %25 = vector.load %arg12[%c0_20, %c0_21] : memref<16x384xbf16, #tpu.memory_space<vmem>>, vector<16x128xbf16>
    tpu.vector_store %arg12[%c0_20, %c0_21], %24 {strides = array<i32>} : memref<16x384xbf16, #tpu.memory_space<vmem>>, vector<16x128xbf16>,
    %26 = arith.truncf %23 : vector<16x128xf32> to vector<16x128xbf16>
    %cst_22 = arith.constant dense<0.000000e+00> : vector<16x128xf32>
    %27 = tpu.matmul %3, %26, %cst_22 {dimension_numbers = #tpu.dot_dimension_numbers<[1], [0], [0], [1], [0, 0, 1, 1], [], []>} : vector<16x16xbf16>, vector<16x128xbf16>, vector<16x128xf32> -> vector<16x128xf32>
    %28 = arith.truncf %27 : vector<16x128xf32> to vector<16x128xbf16>
    %c0_23 = arith.constant 0 : index
    %c128_24 = arith.constant 128 : index
    %29 = vector.load %arg12[%c0_23, %c128_24] : memref<16x384xbf16, #tpu.memory_space<vmem>>, vector<16x128xbf16>
    tpu.vector_store %arg12[%c0_23, %c128_24], %28 {strides = array<i32>} : memref<16x384xbf16, #tpu.memory_space<vmem>>, vector<16x128xbf16>,
    %30 = arith.truncf %27 : vector<16x128xf32> to vector<16x128xbf16>
    %cst_25 = arith.constant dense<0.000000e+00> : vector<16x128xf32>
    %31 = tpu.matmul %3, %30, %cst_25 {dimension_numbers = #tpu.dot_dimension_numbers<[1], [0], [0], [1], [0, 0, 1, 1], [], []>} : vector<16x16xbf16>, vector<16x128xbf16>, vector<16x128xf32> -> vector<16x128xf32>
    %cst_26 = arith.constant 2.000000e+00 : f32
    %32 = vector.broadcast %cst_26 : f32 to vector<16x128xf32>
    %33 = arith.mulf %32, %31 : vector<16x128xf32>
    %34 = arith.subf %33, %23 : vector<16x128xf32>
    %35 = arith.truncf %34 : vector<16x128xf32> to vector<16x128xbf16>
    %c0_27 = arith.constant 0 : index
    %c256_28 = arith.constant 256 : index
    %36 = vector.load %arg12[%c0_27, %c256_28] : memref<16x384xbf16, #tpu.memory_space<vmem>>, vector<16x128xbf16>
    tpu.vector_store %arg12[%c0_27, %c256_28], %35 {strides = array<i32>} : memref<16x384xbf16, #tpu.memory_space<vmem>>, vector<16x128xbf16>,
    %c0_29 = arith.constant 0 : index
    %c0_30 = arith.constant 0 : index
    %37 = vector.load %arg12[%c0_29, %c0_30] : memref<16x384xbf16, #tpu.memory_space<vmem>>, vector<16x384xbf16>
    %c0_31 = arith.constant 0 : index
    %c0_32 = arith.constant 0 : index
    %38 = vector.load %arg5[%c0_31, %c0_32] : memref<384x128xbf16, #tpu.memory_space<vmem>>, vector<384x128xbf16>
    %cst_33 = arith.constant dense<0.000000e+00> : vector<16x128xf32>
    %39 = tpu.matmul %37, %38, %cst_33 {dimension_numbers = #tpu.dot_dimension_numbers<[1], [0], [0], [1], [0, 0, 1, 1], [], []>} : vector<16x384xbf16>, vector<384x128xbf16>, vector<16x128xf32> -> vector<16x128xf32>
    %cst_34 = arith.constant 0.000000e+00 : f32
    %40 = vector.broadcast %cst_34 : f32 to vector<16x128xf32>
    %41 = arith.maximumf %39, %40 : vector<16x128xf32>
    %42 = arith.truncf %41 : vector<16x128xf32> to vector<16x128xbf16>
    %c0_35 = arith.constant 0 : index
    %c0_36 = arith.constant 0 : index
    %43 = vector.load %arg12[%c0_35, %c0_36] : memref<16x384xbf16, #tpu.memory_space<vmem>>, vector<16x128xbf16>
    tpu.vector_store %arg12[%c0_35, %c0_36], %42 {strides = array<i32>} : memref<16x384xbf16, #tpu.memory_space<vmem>>, vector<16x128xbf16>,
    %44 = arith.truncf %41 : vector<16x128xf32> to vector<16x128xbf16>
    %cst_37 = arith.constant dense<0.000000e+00> : vector<16x128xf32>
    %45 = tpu.matmul %3, %44, %cst_37 {dimension_numbers = #tpu.dot_dimension_numbers<[1], [0], [0], [1], [0, 0, 1, 1], [], []>} : vector<16x16xbf16>, vector<16x128xbf16>, vector<16x128xf32> -> vector<16x128xf32>
    %46 = arith.truncf %45 : vector<16x128xf32> to vector<16x128xbf16>
    %c0_38 = arith.constant 0 : index
    %c128_39 = arith.constant 128 : index
    %47 = vector.load %arg12[%c0_38, %c128_39] : memref<16x384xbf16, #tpu.memory_space<vmem>>, vector<16x128xbf16>
    tpu.vector_store %arg12[%c0_38, %c128_39], %46 {strides = array<i32>} : memref<16x384xbf16, #tpu.memory_space<vmem>>, vector<16x128xbf16>,
    %48 = arith.truncf %45 : vector<16x128xf32> to vector<16x128xbf16>
    %cst_40 = arith.constant dense<0.000000e+00> : vector<16x128xf32>
    %49 = tpu.matmul %3, %48, %cst_40 {dimension_numbers = #tpu.dot_dimension_numbers<[1], [0], [0], [1], [0, 0, 1, 1], [], []>} : vector<16x16xbf16>, vector<16x128xbf16>, vector<16x128xf32> -> vector<16x128xf32>
    %cst_41 = arith.constant 2.000000e+00 : f32
    %50 = vector.broadcast %cst_41 : f32 to vector<16x128xf32>
    %51 = arith.mulf %50, %49 : vector<16x128xf32>
    %52 = arith.subf %51, %41 : vector<16x128xf32>
    %53 = arith.truncf %52 : vector<16x128xf32> to vector<16x128xbf16>
    %c0_42 = arith.constant 0 : index
    %c256_43 = arith.constant 256 : index
    %54 = vector.load %arg12[%c0_42, %c256_43] : memref<16x384xbf16, #tpu.memory_space<vmem>>, vector<16x128xbf16>
    tpu.vector_store %arg12[%c0_42, %c256_43], %53 {strides = array<i32>} : memref<16x384xbf16, #tpu.memory_space<vmem>>, vector<16x128xbf16>,
    %c0_44 = arith.constant 0 : index
    %c0_45 = arith.constant 0 : index
    %55 = vector.load %arg12[%c0_44, %c0_45] : memref<16x384xbf16, #tpu.memory_space<vmem>>, vector<16x384xbf16>
    %c0_46 = arith.constant 0 : index
    %c0_47 = arith.constant 0 : index
    %56 = vector.load %arg6[%c0_46, %c0_47] : memref<384x128xbf16, #tpu.memory_space<vmem>>, vector<384x128xbf16>
    %cst_48 = arith.constant dense<0.000000e+00> : vector<16x128xf32>
    %57 = tpu.matmul %55, %56, %cst_48 {dimension_numbers = #tpu.dot_dimension_numbers<[1], [0], [0], [1], [0, 0, 1, 1], [], []>} : vector<16x384xbf16>, vector<384x128xbf16>, vector<16x128xf32> -> vector<16x128xf32>
    %cst_49 = arith.constant 0.000000e+00 : f32
    %58 = vector.broadcast %cst_49 : f32 to vector<16x128xf32>
    %59 = arith.maximumf %57, %58 : vector<16x128xf32>
    %60 = arith.truncf %59 : vector<16x128xf32> to vector<16x128xbf16>
    %c0_50 = arith.constant 0 : index
    %c0_51 = arith.constant 0 : index
    %61 = vector.load %arg12[%c0_50, %c0_51] : memref<16x384xbf16, #tpu.memory_space<vmem>>, vector<16x128xbf16>
    tpu.vector_store %arg12[%c0_50, %c0_51], %60 {strides = array<i32>} : memref<16x384xbf16, #tpu.memory_space<vmem>>, vector<16x128xbf16>,
    %62 = arith.truncf %59 : vector<16x128xf32> to vector<16x128xbf16>
    %cst_52 = arith.constant dense<0.000000e+00> : vector<16x128xf32>
    %63 = tpu.matmul %3, %62, %cst_52 {dimension_numbers = #tpu.dot_dimension_numbers<[1], [0], [0], [1], [0, 0, 1, 1], [], []>} : vector<16x16xbf16>, vector<16x128xbf16>, vector<16x128xf32> -> vector<16x128xf32>
    %64 = arith.truncf %63 : vector<16x128xf32> to vector<16x128xbf16>
    %c0_53 = arith.constant 0 : index
    %c128_54 = arith.constant 128 : index
    %65 = vector.load %arg12[%c0_53, %c128_54] : memref<16x384xbf16, #tpu.memory_space<vmem>>, vector<16x128xbf16>
    tpu.vector_store %arg12[%c0_53, %c128_54], %64 {strides = array<i32>} : memref<16x384xbf16, #tpu.memory_space<vmem>>, vector<16x128xbf16>,
    %66 = arith.truncf %63 : vector<16x128xf32> to vector<16x128xbf16>
    %cst_55 = arith.constant dense<0.000000e+00> : vector<16x128xf32>
    %67 = tpu.matmul %3, %66, %cst_55 {dimension_numbers = #tpu.dot_dimension_numbers<[1], [0], [0], [1], [0, 0, 1, 1], [], []>} : vector<16x16xbf16>, vector<16x128xbf16>, vector<16x128xf32> -> vector<16x128xf32>
    %cst_56 = arith.constant 2.000000e+00 : f32
    %68 = vector.broadcast %cst_56 : f32 to vector<16x128xf32>
    %69 = arith.mulf %68, %67 : vector<16x128xf32>
    %70 = arith.subf %69, %59 : vector<16x128xf32>
    %71 = arith.truncf %70 : vector<16x128xf32> to vector<16x128xbf16>
    %c0_57 = arith.constant 0 : index
    %c256_58 = arith.constant 256 : index
    %72 = vector.load %arg12[%c0_57, %c256_58] : memref<16x384xbf16, #tpu.memory_space<vmem>>, vector<16x128xbf16>
    tpu.vector_store %arg12[%c0_57, %c256_58], %71 {strides = array<i32>} : memref<16x384xbf16, #tpu.memory_space<vmem>>, vector<16x128xbf16>,
    %c0_59 = arith.constant 0 : index
    %c0_60 = arith.constant 0 : index
    %73 = vector.load %arg12[%c0_59, %c0_60] : memref<16x384xbf16, #tpu.memory_space<vmem>>, vector<16x384xbf16>
    %c0_61 = arith.constant 0 : index
    %c0_62 = arith.constant 0 : index
    %74 = vector.load %arg7[%c0_61, %c0_62] : memref<384x128xbf16, #tpu.memory_space<vmem>>, vector<384x128xbf16>
    %cst_63 = arith.constant dense<0.000000e+00> : vector<16x128xf32>
    %75 = tpu.matmul %73, %74, %cst_63 {dimension_numbers = #tpu.dot_dimension_numbers<[1], [0], [0], [1], [0, 0, 1, 1], [], []>} : vector<16x384xbf16>, vector<384x128xbf16>, vector<16x128xf32> -> vector<16x128xf32>
    %cst_64 = arith.constant 0.000000e+00 : f32
    %76 = vector.broadcast %cst_64 : f32 to vector<16x128xf32>
    %77 = arith.maximumf %75, %76 : vector<16x128xf32>
    %78 = arith.truncf %77 : vector<16x128xf32> to vector<16x128xbf16>
    %c0_65 = arith.constant 0 : index
    %c0_66 = arith.constant 0 : index
    %79 = vector.load %arg8[%c0_65, %c0_66] : memref<128x128xbf16, #tpu.memory_space<vmem>>, vector<128x128xbf16>
    %cst_67 = arith.constant dense<0.000000e+00> : vector<16x128xf32>
    %80 = tpu.matmul %78, %79, %cst_67 {dimension_numbers = #tpu.dot_dimension_numbers<[1], [0], [0], [1], [0, 0, 1, 1], [], []>} : vector<16x128xbf16>, vector<128x128xbf16>, vector<16x128xf32> -> vector<16x128xf32>
    %c0_68 = arith.constant 0 : index
    %c0_69 = arith.constant 0 : index
    %c0_70 = arith.constant 0 : index
    %81 = vector.load %arg10[%c0_68, %c0_69, %c0_70] : memref<1x16x128xf32, #tpu.memory_space<vmem>>, vector<1x16x128xf32>
    %82 = vector.shape_cast %81 : vector<1x16x128xf32> to vector<16x128xf32>
    %83 = vector.shape_cast %80 : vector<16x128xf32> to vector<1x16x128xf32>
    tpu.vector_store %arg10[%c0_68, %c0_69, %c0_70], %83 {strides = array<i32>} : memref<1x16x128xf32, #tpu.memory_space<vmem>>, vector<1x16x128xf32>,
    %84 = arith.truncf %80 : vector<16x128xf32> to vector<16x128xbf16>
    %c0_71 = arith.constant 0 : index
    %c0_72 = arith.constant 0 : index
    %c0_73 = arith.constant 0 : index
    %85 = vector.load %arg9[%c0_71, %c0_72, %c0_73] : memref<1x128x128xbf16, #tpu.memory_space<vmem>>, vector<1x128x128xbf16>
    %86 = vector.shape_cast %85 : vector<1x128x128xbf16> to vector<128x128xbf16>
    %cst_74 = arith.constant dense<0.000000e+00> : vector<16x128xf32>
    %87 = tpu.matmul %84, %86, %cst_74 {dimension_numbers = #tpu.dot_dimension_numbers<[1], [0], [0], [1], [0, 0, 1, 1], [], []>} : vector<16x128xbf16>, vector<128x128xbf16>, vector<16x128xf32> -> vector<16x128xf32>
    %c0_75 = arith.constant 0 : index
    %c0_76 = arith.constant 0 : index
    %c0_77 = arith.constant 0 : index
    %88 = vector.load %arg11[%c0_75, %c0_76, %c0_77] : memref<1x16x128xf32, #tpu.memory_space<vmem>>, vector<1x16x128xf32>
    %89 = vector.shape_cast %88 : vector<1x16x128xf32> to vector<16x128xf32>
    %90 = vector.shape_cast %87 : vector<16x128xf32> to vector<1x16x128xf32>
    tpu.vector_store %arg11[%c0_75, %c0_76, %c0_77], %90 {strides = array<i32>} : memref<1x16x128xf32, #tpu.memory_space<vmem>>, vector<1x16x128xf32>,
    return
  }
  func.func @transform_0(%arg0: i32) -> (i32, i32, i32) {
    %c0_i32 = arith.constant 0 : i32
    %c0_i32_0 = arith.constant 0 : i32
    %c0_i32_1 = arith.constant 0 : i32
    return %arg0, %c0_i32, %c0_i32_0 : i32, i32, i32
  }
  func.func @transform_1(%arg0: i32) -> (i32, i32, i32) {
    %c0_i32 = arith.constant 0 : i32
    %c0_i32_0 = arith.constant 0 : i32
    %c0_i32_1 = arith.constant 0 : i32
    return %arg0, %c0_i32, %c0_i32_0 : i32, i32, i32
  }
  func.func @transform_2(%arg0: i32) -> (i32, i32) {
    %c0_i32 = arith.constant 0 : i32
    %c0_i32_0 = arith.constant 0 : i32
    %c0_i32_1 = arith.constant 0 : i32
    return %c0_i32, %c0_i32_0 : i32, i32
  }
  func.func @transform_3(%arg0: i32) -> (i32, i32) {
    %c0_i32 = arith.constant 0 : i32
    %c0_i32_0 = arith.constant 0 : i32
    %c0_i32_1 = arith.constant 0 : i32
    return %c0_i32, %c0_i32_0 : i32, i32
  }
  func.func @transform_4(%arg0: i32) -> (i32, i32) {
    %c0_i32 = arith.constant 0 : i32
    %c0_i32_0 = arith.constant 0 : i32
    %c0_i32_1 = arith.constant 0 : i32
    return %c0_i32, %c0_i32_0 : i32, i32
  }
  func.func @transform_5(%arg0: i32) -> (i32, i32) {
    %c0_i32 = arith.constant 0 : i32
    %c0_i32_0 = arith.constant 0 : i32
    %c0_i32_1 = arith.constant 0 : i32
    return %c0_i32, %c0_i32_0 : i32, i32
  }
  func.func @transform_6(%arg0: i32) -> (i32, i32) {
    %c0_i32 = arith.constant 0 : i32
    %c0_i32_0 = arith.constant 0 : i32
    %c0_i32_1 = arith.constant 0 : i32
    return %c0_i32, %c0_i32_0 : i32, i32
  }
  func.func @transform_7(%arg0: i32) -> (i32, i32) {
    %c0_i32 = arith.constant 0 : i32
    %c0_i32_0 = arith.constant 0 : i32
    %c0_i32_1 = arith.constant 0 : i32
    return %c0_i32, %c0_i32_0 : i32, i32
  }
  func.func @transform_8(%arg0: i32) -> (i32, i32, i32) {
    %c0_i32 = arith.constant 0 : i32
    %c0_i32_0 = arith.constant 0 : i32
    %c0_i32_1 = arith.constant 0 : i32
    return %arg0, %c0_i32, %c0_i32_0 : i32, i32, i32
  }
  func.func @transform_9(%arg0: i32) -> (i32, i32, i32) {
    %c0_i32 = arith.constant 0 : i32
    %c0_i32_0 = arith.constant 0 : i32
    %c0_i32_1 = arith.constant 0 : i32
    return %arg0, %c0_i32, %c0_i32_0 : i32, i32, i32
  }
  func.func @transform_10(%arg0: i32) -> (i32, i32, i32) {
    %c0_i32 = arith.constant 0 : i32
    %c0_i32_0 = arith.constant 0 : i32
    %c0_i32_1 = arith.constant 0 : i32
    return %arg0, %c0_i32, %c0_i32_0 : i32, i32, i32
  }
}

module attributes {stable_mosaic.version = 11 : i64} {
  func.func @kernel(%arg0: i32, %arg1: memref<1x16x128xbf16, #tpu.memory_space<vmem>>, %arg2: memref<1x16x16xbf16, #tpu.memory_space<vmem>>, %arg3: memref<128x128xbf16, #tpu.memory_space<vmem>>, %arg4: memref<384x128xbf16, #tpu.memory_space<vmem>>, %arg5: memref<384x128xbf16, #tpu.memory_space<vmem>>, %arg6: memref<384x128xbf16, #tpu.memory_space<vmem>>, %arg7: memref<384x128xbf16, #tpu.memory_space<vmem>>, %arg8: memref<128x128xbf16, #tpu.memory_space<vmem>>, %arg9: memref<1x128x128xbf16, #tpu.memory_space<vmem>>, %arg10: memref<1x16x128xf32, #tpu.memory_space<vmem>>, %arg11: memref<1x16x128xf32, #tpu.memory_space<vmem>>, %arg12: memref<16x384xbf16, #tpu.memory_space<vmem>>) attributes {dimension_semantics = [#tpu.dimension_semantics<arbitrary>], iteration_bounds = array<i64: 2>, scalar_prefetch = 0 : i64, scratch_operands = 1 : i64, tpu.core_type = #tpu.core_type<tc>, window_params = [{transform_indices = @transform_0, window_bounds = array<i64: 1, 16, 128>}, {transform_indices = @transform_1, window_bounds = array<i64: 1, 16, 16>}, {pipeline_mode = #tpu.pipeline_mode<synchronous>, transform_indices = @transform_2, window_bounds = array<i64: 128, 128>}, {pipeline_mode = #tpu.pipeline_mode<synchronous>, transform_indices = @transform_3, window_bounds = array<i64: 384, 128>}, {pipeline_mode = #tpu.pipeline_mode<synchronous>, transform_indices = @transform_4, window_bounds = array<i64: 384, 128>}, {pipeline_mode = #tpu.pipeline_mode<synchronous>, transform_indices = @transform_5, window_bounds = array<i64: 384, 128>}, {pipeline_mode = #tpu.pipeline_mode<synchronous>, transform_indices = @transform_6, window_bounds = array<i64: 384, 128>}, {pipeline_mode = #tpu.pipeline_mode<synchronous>, transform_indices = @transform_7, window_bounds = array<i64: 128, 128>}, {transform_indices = @transform_8, window_bounds = array<i64: 1, 128, 128>}, {transform_indices = @transform_9, window_bounds = array<i64: 1, 16, 128>}, {transform_indices = @transform_10, window_bounds = array<i64: 1, 16, 128>}]} {
    %c0 = arith.constant 0 : index
    %c0_0 = arith.constant 0 : index
    %c0_1 = arith.constant 0 : index
    %0 = vector.load %arg1[%c0, %c0_0, %c0_1] : memref<1x16x128xbf16, #tpu.memory_space<vmem>>, vector<1x16x128xbf16>
    %1 = vector.shape_cast %0 : vector<1x16x128xbf16> to vector<16x128xbf16>
    %c0_2 = arith.constant 0 : index
    %c0_3 = arith.constant 0 : index
    %c0_4 = arith.constant 0 : index
    %2 = vector.load %arg2[%c0_2, %c0_3, %c0_4] : memref<1x16x16xbf16, #tpu.memory_space<vmem>>, vector<1x16x16xbf16>
    %3 = vector.shape_cast %2 : vector<1x16x16xbf16> to vector<16x16xbf16>
    %c0_5 = arith.constant 0 : index
    %c0_6 = arith.constant 0 : index
    %4 = vector.load %arg3[%c0_5, %c0_6] : memref<128x128xbf16, #tpu.memory_space<vmem>>, vector<128x128xbf16>
    %cst = arith.constant dense<0.000000e+00> : vector<16x128xf32>
    %5 = tpu.matmul %1, %4, %cst {dimension_numbers = #tpu.dot_dimension_numbers<[1], [0], [0], [1], [0, 0, 1, 1], [], []>} : vector<16x128xbf16>, vector<128x128xbf16>, vector<16x128xf32> -> vector<16x128xf32>
    %6 = arith.truncf %5 : vector<16x128xf32> to vector<16x128xbf16>
    %c0_7 = arith.constant 0 : index
    %c0_8 = arith.constant 0 : index
    %7 = vector.load %arg12[%c0_7, %c0_8] : memref<16x384xbf16, #tpu.memory_space<vmem>>, vector<16x128xbf16>
    tpu.vector_store %arg12[%c0_7, %c0_8], %6 {strides = array<i32>} : memref<16x384xbf16, #tpu.memory_space<vmem>>, vector<16x128xbf16>,
    %8 = arith.truncf %5 : vector<16x128xf32> to vector<16x128xbf16>
    %cst_9 = arith.constant dense<0.000000e+00> : vector<16x128xf32>
    %9 = tpu.matmul %3, %8, %cst_9 {dimension_numbers = #tpu.dot_dimension_numbers<[1], [0], [0], [1], [0, 0, 1, 1], [], []>} : vector<16x16xbf16>, vector<16x128xbf16>, vector<16x128xf32> -> vector<16x128xf32>
    %10 = arith.truncf %9 : vector<16x128xf32> to vector<16x128xbf16>
    %c0_10 = arith.constant 0 : index
    %c128 = arith.constant 128 : index
    %11 = vector.load %arg12[%c0_10, %c128] : memref<16x384xbf16, #tpu.memory_space<vmem>>, vector<16x128xbf16>
    tpu.vector_store %arg12[%c0_10, %c128], %10 {strides = array<i32>} : memref<16x384xbf16, #tpu.memory_space<vmem>>, vector<16x128xbf16>,
    %12 = arith.truncf %9 : vector<16x128xf32> to vector<16x128xbf16>
    %cst_11 = arith.constant dense<0.000000e+00> : vector<16x128xf32>
    %13 = tpu.matmul %3, %12, %cst_11 {dimension_numbers = #tpu.dot_dimension_numbers<[1], [0], [0], [1], [0, 0, 1, 1], [], []>} : vector<16x16xbf16>, vector<16x128xbf16>, vector<16x128xf32> -> vector<16x128xf32>
    %cst_12 = arith.constant 2.000000e+00 : f32
    %14 = vector.broadcast %cst_12 : f32 to vector<16x128xf32>
    %15 = arith.mulf %14, %13 : vector<16x128xf32>
    %16 = arith.subf %15, %5 : vector<16x128xf32>
    %17 = arith.truncf %16 : vector<16x128xf32> to vector<16x128xbf16>
    %c0_13 = arith.constant 0 : index
    %c256 = arith.constant 256 : index
    %18 = vector.load %arg12[%c0_13, %c256] : memref<16x384xbf16, #tpu.memory_space<vmem>>, vector<16x128xbf16>
    tpu.vector_store %arg12[%c0_13, %c256], %17 {strides = array<i32>} : memref<16x384xbf16, #tpu.memory_space<vmem>>, vector<16x128xbf16>,
    %c0_14 = arith.constant 0 : index
    %c0_15 = arith.constant 0 : index
    %19 = vector.load %arg12[%c0_14, %c0_15] : memref<16x384xbf16, #tpu.memory_space<vmem>>, vector<16x384xbf16>
    %c0_16 = arith.constant 0 : index
    %c0_17 = arith.constant 0 : index
    %20 = vector.load %arg4[%c0_16, %c0_17] : memref<384x128xbf16, #tpu.memory_space<vmem>>, vector<384x128xbf16>
    %cst_18 = arith.constant dense<0.000000e+00> : vector<16x128xf32>
    %21 = tpu.matmul %19, %20, %cst_18 {dimension_numbers = #tpu.dot_dimension_numbers<[1], [0], [0], [1], [0, 0, 1, 1], [], []>} : vector<16x384xbf16>, vector<384x128xbf16>, vector<16x128xf32> -> vector<16x128xf32>
    %cst_19 = arith.constant 0.000000e+00 : f32
    %22 = vector.broadcast %cst_19 : f32 to vector<16x128xf32>
    %23 = arith.maximumf %21, %22 : vector<16x128xf32>
    %24 = arith.truncf %23 : vector<16x128xf32> to vector<16x128xbf16>
    %c0_20 = arith.constant 0 : index
    %c0_21 = arith.constant 0 : index
    %25 = vector.load %arg12[%c0_20, %c0_21] : memref<16x384xbf16, #tpu.memory_space<vmem>>, vector<16x128xbf16>
    tpu.vector_store %arg12[%c0_20, %c0_21], %24 {strides = array<i32>} : memref<16x384xbf16, #tpu.memory_space<vmem>>, vector<16x128xbf16>,
    %26 = arith.truncf %23 : vector<16x128xf32> to vector<16x128xbf16>
    %cst_22 = arith.constant dense<0.000000e+00> : vector<16x128xf32>
    %27 = tpu.matmul %3, %26, %cst_22 {dimension_numbers = #tpu.dot_dimension_numbers<[1], [0], [0], [1], [0, 0, 1, 1], [], []>} : vector<16x16xbf16>, vector<16x128xbf16>, vector<16x128xf32> -> vector<16x128xf32>
    %28 = arith.truncf %27 : vector<16x128xf32> to vector<16x128xbf16>
    %c0_23 = arith.constant 0 : index
    %c128_24 = arith.constant 128 : index
    %29 = vector.load %arg12[%c0_23, %c128_24] : memref<16x384xbf16, #tpu.memory_space<vmem>>, vector<16x128xbf16>
    tpu.vector_store %arg12[%c0_23, %c128_24], %28 {strides = array<i32>} : memref<16x384xbf16, #tpu.memory_space<vmem>>, vector<16x128xbf16>,
    %30 = arith.truncf %27 : vector<16x128xf32> to vector<16x128xbf16>
    %cst_25 = arith.constant dense<0.000000e+00> : vector<16x128xf32>
    %31 = tpu.matmul %3, %30, %cst_25 {dimension_numbers = #tpu.dot_dimension_numbers<[1], [0], [0], [1], [0, 0, 1, 1], [], []>} : vector<16x16xbf16>, vector<16x128xbf16>, vector<16x128xf32> -> vector<16x128xf32>
    %cst_26 = arith.constant 2.000000e+00 : f32
    %32 = vector.broadcast %cst_26 : f32 to vector<16x128xf32>
    %33 = arith.mulf %32, %31 : vector<16x128xf32>
    %34 = arith.subf %33, %23 : vector<16x128xf32>
    %35 = arith.truncf %34 : vector<16x128xf32> to vector<16x128xbf16>
    %c0_27 = arith.constant 0 : index
    %c256_28 = arith.constant 256 : index
    %36 = vector.load %arg12[%c0_27, %c256_28] : memref<16x384xbf16, #tpu.memory_space<vmem>>, vector<16x128xbf16>
    tpu.vector_store %arg12[%c0_27, %c256_28], %35 {strides = array<i32>} : memref<16x384xbf16, #tpu.memory_space<vmem>>, vector<16x128xbf16>,
    %c0_29 = arith.constant 0 : index
    %c0_30 = arith.constant 0 : index
    %37 = vector.load %arg12[%c0_29, %c0_30] : memref<16x384xbf16, #tpu.memory_space<vmem>>, vector<16x384xbf16>
    %c0_31 = arith.constant 0 : index
    %c0_32 = arith.constant 0 : index
    %38 = vector.load %arg5[%c0_31, %c0_32] : memref<384x128xbf16, #tpu.memory_space<vmem>>, vector<384x128xbf16>
    %cst_33 = arith.constant dense<0.000000e+00> : vector<16x128xf32>
    %39 = tpu.matmul %37, %38, %cst_33 {dimension_numbers = #tpu.dot_dimension_numbers<[1], [0], [0], [1], [0, 0, 1, 1], [], []>} : vector<16x384xbf16>, vector<384x128xbf16>, vector<16x128xf32> -> vector<16x128xf32>
    %cst_34 = arith.constant 0.000000e+00 : f32
    %40 = vector.broadcast %cst_34 : f32 to vector<16x128xf32>
    %41 = arith.maximumf %39, %40 : vector<16x128xf32>
    %42 = arith.truncf %41 : vector<16x128xf32> to vector<16x128xbf16>
    %c0_35 = arith.constant 0 : index
    %c0_36 = arith.constant 0 : index
    %43 = vector.load %arg12[%c0_35, %c0_36] : memref<16x384xbf16, #tpu.memory_space<vmem>>, vector<16x128xbf16>
    tpu.vector_store %arg12[%c0_35, %c0_36], %42 {strides = array<i32>} : memref<16x384xbf16, #tpu.memory_space<vmem>>, vector<16x128xbf16>,
    %44 = arith.truncf %41 : vector<16x128xf32> to vector<16x128xbf16>
    %cst_37 = arith.constant dense<0.000000e+00> : vector<16x128xf32>
    %45 = tpu.matmul %3, %44, %cst_37 {dimension_numbers = #tpu.dot_dimension_numbers<[1], [0], [0], [1], [0, 0, 1, 1], [], []>} : vector<16x16xbf16>, vector<16x128xbf16>, vector<16x128xf32> -> vector<16x128xf32>
    %46 = arith.truncf %45 : vector<16x128xf32> to vector<16x128xbf16>
    %c0_38 = arith.constant 0 : index
    %c128_39 = arith.constant 128 : index
    %47 = vector.load %arg12[%c0_38, %c128_39] : memref<16x384xbf16, #tpu.memory_space<vmem>>, vector<16x128xbf16>
    tpu.vector_store %arg12[%c0_38, %c128_39], %46 {strides = array<i32>} : memref<16x384xbf16, #tpu.memory_space<vmem>>, vector<16x128xbf16>,
    %48 = arith.truncf %45 : vector<16x128xf32> to vector<16x128xbf16>
    %cst_40 = arith.constant dense<0.000000e+00> : vector<16x128xf32>
    %49 = tpu.matmul %3, %48, %cst_40 {dimension_numbers = #tpu.dot_dimension_numbers<[1], [0], [0], [1], [0, 0, 1, 1], [], []>} : vector<16x16xbf16>, vector<16x128xbf16>, vector<16x128xf32> -> vector<16x128xf32>
    %cst_41 = arith.constant 2.000000e+00 : f32
    %50 = vector.broadcast %cst_41 : f32 to vector<16x128xf32>
    %51 = arith.mulf %50, %49 : vector<16x128xf32>
    %52 = arith.subf %51, %41 : vector<16x128xf32>
    %53 = arith.truncf %52 : vector<16x128xf32> to vector<16x128xbf16>
    %c0_42 = arith.constant 0 : index
    %c256_43 = arith.constant 256 : index
    %54 = vector.load %arg12[%c0_42, %c256_43] : memref<16x384xbf16, #tpu.memory_space<vmem>>, vector<16x128xbf16>
    tpu.vector_store %arg12[%c0_42, %c256_43], %53 {strides = array<i32>} : memref<16x384xbf16, #tpu.memory_space<vmem>>, vector<16x128xbf16>,
    %c0_44 = arith.constant 0 : index
    %c0_45 = arith.constant 0 : index
    %55 = vector.load %arg12[%c0_44, %c0_45] : memref<16x384xbf16, #tpu.memory_space<vmem>>, vector<16x384xbf16>
    %c0_46 = arith.constant 0 : index
    %c0_47 = arith.constant 0 : index
    %56 = vector.load %arg6[%c0_46, %c0_47] : memref<384x128xbf16, #tpu.memory_space<vmem>>, vector<384x128xbf16>
    %cst_48 = arith.constant dense<0.000000e+00> : vector<16x128xf32>
    %57 = tpu.matmul %55, %56, %cst_48 {dimension_numbers = #tpu.dot_dimension_numbers<[1], [0], [0], [1], [0, 0, 1, 1], [], []>} : vector<16x384xbf16>, vector<384x128xbf16>, vector<16x128xf32> -> vector<16x128xf32>
    %cst_49 = arith.constant 0.000000e+00 : f32
    %58 = vector.broadcast %cst_49 : f32 to vector<16x128xf32>
    %59 = arith.maximumf %57, %58 : vector<16x128xf32>
    %60 = arith.truncf %59 : vector<16x128xf32> to vector<16x128xbf16>
    %c0_50 = arith.constant 0 : index
    %c0_51 = arith.constant 0 : index
    %61 = vector.load %arg12[%c0_50, %c0_51] : memref<16x384xbf16, #tpu.memory_space<vmem>>, vector<16x128xbf16>
    tpu.vector_store %arg12[%c0_50, %c0_51], %60 {strides = array<i32>} : memref<16x384xbf16, #tpu.memory_space<vmem>>, vector<16x128xbf16>,
    %62 = arith.truncf %59 : vector<16x128xf32> to vector<16x128xbf16>
    %cst_52 = arith.constant dense<0.000000e+00> : vector<16x128xf32>
    %63 = tpu.matmul %3, %62, %cst_52 {dimension_numbers = #tpu.dot_dimension_numbers<[1], [0], [0], [1], [0, 0, 1, 1], [], []>} : vector<16x16xbf16>, vector<16x128xbf16>, vector<16x128xf32> -> vector<16x128xf32>
    %64 = arith.truncf %63 : vector<16x128xf32> to vector<16x128xbf16>
    %c0_53 = arith.constant 0 : index
    %c128_54 = arith.constant 128 : index
    %65 = vector.load %arg12[%c0_53, %c128_54] : memref<16x384xbf16, #tpu.memory_space<vmem>>, vector<16x128xbf16>
    tpu.vector_store %arg12[%c0_53, %c128_54], %64 {strides = array<i32>} : memref<16x384xbf16, #tpu.memory_space<vmem>>, vector<16x128xbf16>,
    %66 = arith.truncf %63 : vector<16x128xf32> to vector<16x128xbf16>
    %cst_55 = arith.constant dense<0.000000e+00> : vector<16x128xf32>
    %67 = tpu.matmul %3, %66, %cst_55 {dimension_numbers = #tpu.dot_dimension_numbers<[1], [0], [0], [1], [0, 0, 1, 1], [], []>} : vector<16x16xbf16>, vector<16x128xbf16>, vector<16x128xf32> -> vector<16x128xf32>
    %cst_56 = arith.constant 2.000000e+00 : f32
    %68 = vector.broadcast %cst_56 : f32 to vector<16x128xf32>
    %69 = arith.mulf %68, %67 : vector<16x128xf32>
    %70 = arith.subf %69, %59 : vector<16x128xf32>
    %71 = arith.truncf %70 : vector<16x128xf32> to vector<16x128xbf16>
    %c0_57 = arith.constant 0 : index
    %c256_58 = arith.constant 256 : index
    %72 = vector.load %arg12[%c0_57, %c256_58] : memref<16x384xbf16, #tpu.memory_space<vmem>>, vector<16x128xbf16>
    tpu.vector_store %arg12[%c0_57, %c256_58], %71 {strides = array<i32>} : memref<16x384xbf16, #tpu.memory_space<vmem>>, vector<16x128xbf16>,
    %c0_59 = arith.constant 0 : index
    %c0_60 = arith.constant 0 : index
    %73 = vector.load %arg12[%c0_59, %c0_60] : memref<16x384xbf16, #tpu.memory_space<vmem>>, vector<16x384xbf16>
    %c0_61 = arith.constant 0 : index
    %c0_62 = arith.constant 0 : index
    %74 = vector.load %arg7[%c0_61, %c0_62] : memref<384x128xbf16, #tpu.memory_space<vmem>>, vector<384x128xbf16>
    %cst_63 = arith.constant dense<0.000000e+00> : vector<16x128xf32>
    %75 = tpu.matmul %73, %74, %cst_63 {dimension_numbers = #tpu.dot_dimension_numbers<[1], [0], [0], [1], [0, 0, 1, 1], [], []>} : vector<16x384xbf16>, vector<384x128xbf16>, vector<16x128xf32> -> vector<16x128xf32>
    %cst_64 = arith.constant 0.000000e+00 : f32
    %76 = vector.broadcast %cst_64 : f32 to vector<16x128xf32>
    %77 = arith.maximumf %75, %76 : vector<16x128xf32>
    %78 = arith.truncf %77 : vector<16x128xf32> to vector<16x128xbf16>
    %c0_65 = arith.constant 0 : index
    %c0_66 = arith.constant 0 : index
    %79 = vector.load %arg8[%c0_65, %c0_66] : memref<128x128xbf16, #tpu.memory_space<vmem>>, vector<128x128xbf16>
    %cst_67 = arith.constant dense<0.000000e+00> : vector<16x128xf32>
    %80 = tpu.matmul %78, %79, %cst_67 {dimension_numbers = #tpu.dot_dimension_numbers<[1], [0], [0], [1], [0, 0, 1, 1], [], []>} : vector<16x128xbf16>, vector<128x128xbf16>, vector<16x128xf32> -> vector<16x128xf32>
    %c0_68 = arith.constant 0 : index
    %c0_69 = arith.constant 0 : index
    %c0_70 = arith.constant 0 : index
    %81 = vector.load %arg10[%c0_68, %c0_69, %c0_70] : memref<1x16x128xf32, #tpu.memory_space<vmem>>, vector<1x16x128xf32>
    %82 = vector.shape_cast %81 : vector<1x16x128xf32> to vector<16x128xf32>
    %83 = vector.shape_cast %80 : vector<16x128xf32> to vector<1x16x128xf32>
    tpu.vector_store %arg10[%c0_68, %c0_69, %c0_70], %83 {strides = array<i32>} : memref<1x16x128xf32, #tpu.memory_space<vmem>>, vector<1x16x128xf32>,
    %84 = arith.truncf %80 : vector<16x128xf32> to vector<16x128xbf16>
    %c0_71 = arith.constant 0 : index
    %c0_72 = arith.constant 0 : index
    %c0_73 = arith.constant 0 : index
    %85 = vector.load %arg9[%c0_71, %c0_72, %c0_73] : memref<1x128x128xbf16, #tpu.memory_space<vmem>>, vector<1x128x128xbf16>
    %86 = vector.shape_cast %85 : vector<1x128x128xbf16> to vector<128x128xbf16>
    %cst_74 = arith.constant dense<0.000000e+00> : vector<16x128xf32>
    %87 = tpu.matmul %84, %86, %cst_74 {dimension_numbers = #tpu.dot_dimension_numbers<[1], [0], [0], [1], [0, 0, 1, 1], [], []>} : vector<16x128xbf16>, vector<128x128xbf16>, vector<16x128xf32> -> vector<16x128xf32>
    %c0_75 = arith.constant 0 : index
    %c0_76 = arith.constant 0 : index
    %c0_77 = arith.constant 0 : index
    %88 = vector.load %arg11[%c0_75, %c0_76, %c0_77] : memref<1x16x128xf32, #tpu.memory_space<vmem>>, vector<1x16x128xf32>
    %89 = vector.shape_cast %88 : vector<1x16x128xf32> to vector<16x128xf32>
    %90 = vector.shape_cast %87 : vector<16x128xf32> to vector<1x16x128xf32>
    tpu.vector_store %arg11[%c0_75, %c0_76, %c0_77], %90 {strides = array<i32>} : memref<1x16x128xf32, #tpu.memory_space<vmem>>, vector<1x16x128xf32>,
    return
  }
  func.func @transform_0(%arg0: i32) -> (i32, i32, i32) {
    %c0_i32 = arith.constant 0 : i32
    %c0_i32_0 = arith.constant 0 : i32
    %c0_i32_1 = arith.constant 0 : i32
    return %arg0, %c0_i32, %c0_i32_0 : i32, i32, i32
  }
  func.func @transform_1(%arg0: i32) -> (i32, i32, i32) {
    %c0_i32 = arith.constant 0 : i32
    %c0_i32_0 = arith.constant 0 : i32
    %c0_i32_1 = arith.constant 0 : i32
    return %arg0, %c0_i32, %c0_i32_0 : i32, i32, i32
  }
  func.func @transform_2(%arg0: i32) -> (i32, i32) {
    %c0_i32 = arith.constant 0 : i32
    %c0_i32_0 = arith.constant 0 : i32
    %c0_i32_1 = arith.constant 0 : i32
    return %c0_i32, %c0_i32_0 : i32, i32
  }
  func.func @transform_3(%arg0: i32) -> (i32, i32) {
    %c0_i32 = arith.constant 0 : i32
    %c0_i32_0 = arith.constant 0 : i32
    %c0_i32_1 = arith.constant 0 : i32
    return %c0_i32, %c0_i32_0 : i32, i32
  }
  func.func @transform_4(%arg0: i32) -> (i32, i32) {
    %c0_i32 = arith.constant 0 : i32
    %c0_i32_0 = arith.constant 0 : i32
    %c0_i32_1 = arith.constant 0 : i32
    return %c0_i32, %c0_i32_0 : i32, i32
  }
  func.func @transform_5(%arg0: i32) -> (i32, i32) {
    %c0_i32 = arith.constant 0 : i32
    %c0_i32_0 = arith.constant 0 : i32
    %c0_i32_1 = arith.constant 0 : i32
    return %c0_i32, %c0_i32_0 : i32, i32
  }
  func.func @transform_6(%arg0: i32) -> (i32, i32) {
    %c0_i32 = arith.constant 0 : i32
    %c0_i32_0 = arith.constant 0 : i32
    %c0_i32_1 = arith.constant 0 : i32
    return %c0_i32, %c0_i32_0 : i32, i32
  }
  func.func @transform_7(%arg0: i32) -> (i32, i32) {
    %c0_i32 = arith.constant 0 : i32
    %c0_i32_0 = arith.constant 0 : i32
    %c0_i32_1 = arith.constant 0 : i32
    return %c0_i32, %c0_i32_0 : i32, i32
  }
  func.func @transform_8(%arg0: i32) -> (i32, i32, i32) {
    %c0_i32 = arith.constant 0 : i32
    %c0_i32_0 = arith.constant 0 : i32
    %c0_i32_1 = arith.constant 0 : i32
    return %arg0, %c0_i32, %c0_i32_0 : i32, i32, i32
  }
  func.func @transform_9(%arg0: i32) -> (i32, i32, i32) {
    %c0_i32 = arith.constant 0 : i32
    %c0_i32_0 = arith.constant 0 : i32
    %c0_i32_1 = arith.constant 0 : i32
    return %arg0, %c0_i32, %c0_i32_0 : i32, i32, i32
  }
  func.func @transform_10(%arg0: i32) -> (i32, i32, i32) {
    %c0_i32 = arith.constant 0 : i32
    %c0_i32_0 = arith.constant 0 : i32
    %c0_i32_1 = arith.constant 0 : i32
    return %arg0, %c0_i32, %c0_i32_0 : i32, i32, i32
  }
}

</mosaic_0001>

<llo_original>
// kernel: tpu_custom_call.1
$region0: #{tpu_custom_call.1}
  #allocation0 [shape = 'u32[]', space=smem, size = 0x4, offset = 0x4, fixed_abs, tag = 'smem constant byte address 0x4 - core index']
  #allocation1 [shape = 'u32[72,128]{1,0:T(1,128)}', space=vmem, size = 0x9000, scoped, tag = 'internal scratch']
  #allocation2 [shape = 'bf16[16,384]{1,0:T(8,128)(2,1)}', space=vmem, size = 0x3000, scoped, tag = 'scratch operand']
  %s0 = inlined_call_operand.hbm [shape: bf16[2,16,128], index: 0, kind: input, shape index: {}]
  %s1 = inlined_call_operand.hbm [shape: bf16[2,16,16], index: 1, kind: input, shape index: {}]
  %s2 = inlined_call_operand.hbm [shape: bf16[128,128], index: 2, kind: input, shape index: {}]
  %s3 = inlined_call_operand.hbm [shape: bf16[384,128], index: 3, kind: input, shape index: {}]
  %s4 = inlined_call_operand.hbm [shape: bf16[384,128], index: 4, kind: input, shape index: {}]
  %s5 = inlined_call_operand.hbm [shape: bf16[384,128], index: 5, kind: input, shape index: {}]
  %s6 = inlined_call_operand.hbm [shape: bf16[384,128], index: 6, kind: input, shape index: {}]
  %s7 = inlined_call_operand.hbm [shape: bf16[128,128], index: 7, kind: input, shape index: {}]
  %s8 = inlined_call_operand.hbm [shape: bf16[2,128,128], index: 8, kind: input, shape index: {}]
  %s9 = inlined_call_operand.hbm [shape: f32[2,16,128], index: 9, kind: output, shape index: {0}]
  %s10 = inlined_call_operand.hbm [shape: f32[2,16,128], index: 10, kind: output, shape index: {1}]
  %11 = xla_tuple %s9, %s10
  %s12 = sld [smem:[#allocation0]]
  $region113: #{tpu_custom_call.1} parent=0
    _
  %s14 = ssub.s32 1, %s12
  %s15 = scalar_select 0, %s14, %s12
  $region1: #{tpu_custom_call.1} parent=0
    #allocation3 [shape = 'u8[8192]{0}', space=vmem, size = 0x2000, scoped, tag = 'input window, operand 0']
    #allocation4 [shape = 's32[2]{0}', space=sflag, size = 0x8, scoped, tag = 'scoped memory for tpu_custom_call.1']
    #allocation5 [shape = 's32[2]{0}', space=sflag, size = 0x8, scoped, tag = 'scoped memory for tpu_custom_call.1']
    #allocation6 [shape = 'u8[8192]{0}', space=vmem, size = 0x2000, scoped, tag = 'input window, operand 1']
    #allocation7 [shape = 's32[2]{0}', space=sflag, size = 0x8, scoped, tag = 'scoped memory for tpu_custom_call.1']
    #allocation8 [shape = 'u8[32768]{0}', space=vmem, size = 0x8000, scoped, tag = 'input window, operand 2, single buffered']
    #allocation9 [shape = 'u8[98304]{0}', space=vmem, size = 0x18000, scoped, tag = 'input window, operand 3, single buffered']
    #allocation10 [shape = 's32[1]{0}', space=sflag, size = 0x4, scoped, tag = 'scoped memory for tpu_custom_call.1']
    #allocation11 [shape = 'u8[98304]{0}', space=vmem, size = 0x18000, scoped, tag = 'input window, operand 4, single buffered']
    #allocation12 [shape = 'u8[98304]{0}', space=vmem, size = 0x18000, scoped, tag = 'input window, operand 5, single buffered']
    #allocation13 [shape = 's32[1]{0}', space=sflag, size = 0x4, scoped, tag = 'scoped memory for tpu_custom_call.1']
    #allocation14 [shape = 'u8[98304]{0}', space=vmem, size = 0x18000, scoped, tag = 'input window, operand 6, single buffered']
    #allocation15 [shape = 'u8[32768]{0}', space=vmem, size = 0x8000, scoped, tag = 'input window, operand 7, single buffered']
    #allocation16 [shape = 's32[1]{0}', space=sflag, size = 0x4, scoped, tag = 'scoped memory for tpu_custom_call.1']
    #allocation17 [shape = 'u8[65536]{0}', space=vmem, size = 0x10000, scoped, tag = 'input window, operand 8']
    #allocation18 [shape = 'u8[16384]{0}', space=vmem, size = 0x4000, scoped, tag = 'output window, operand 0']
    #allocation19 [shape = 'u8[16384]{0}', space=vmem, size = 0x4000, scoped, tag = 'output window, operand 1']
    #allocation20 [shape = 's32[2]{0}', space=sflag, size = 0x8, scoped, tag = 'scoped memory for tpu_custom_call.1']
    %16 = vsyncpa [#allocation4], 0
    %s17 = scalar_lea.sflag [#allocation4], 1
    %18 = vsyncpa %s17, 0
    %19 = vsyncpa [#allocation7], 0
    %s20 = scalar_lea.sflag [#allocation7], 1
    %21 = vsyncpa %s20, 0
    %22 = vsyncpa [#allocation10], 0
    %23 = vsyncpa [#allocation13], 0
    %24 = vsyncpa [#allocation16], 0
    %25 = vsyncpa [#allocation5], 0
    %s26 = scalar_lea.sflag [#allocation5], 1
    %27 = vsyncpa %s26, 0
    %28 = vsyncpa [#allocation20], 0
    %s29 = scalar_lea.sflag [#allocation20], 1
    %30 = vsyncpa %s29, 0
    loop: start=0, step=1, limit=4
    $region2: #{tpu_custom_call.1} parent=1 // loop_pre_header
      _
    $region3: #{tpu_custom_call.1} parent=1 // loop_header
      %s32 = sphi 0, %s36
      %p33 = scmp.ge.s32.totalorder %s32, 4
      %s42 = sphi 0, %s44
      %s45 = sphi 0, %s42
      %s46 = sphi 0, %s45
      %s62 = sphi 0, %s46
      %s68 = sphi 0, %s70
      %s71 = sphi 0, %s68
      %s72 = sphi 0, %s71
      %s88 = sphi 0, %s72
      %s92 = sphi 0, %s92
      %s94 = sphi 0, %s92
      %s95 = sphi 0, %s94
      %s109 = sphi 0, %s95
      %s113 = sphi 0, %s113
      %s115 = sphi 0, %s113
      %s116 = sphi 0, %s115
      %s130 = sphi 0, %s116
      %s134 = sphi 0, %s134
      %s136 = sphi 0, %s134
      %s137 = sphi 0, %s136
      %s151 = sphi 0, %s137
      %s155 = sphi 0, %s155
      %s157 = sphi 0, %s155
      %s158 = sphi 0, %s157
      %s172 = sphi 0, %s158
      %s176 = sphi 0, %s176
      %s178 = sphi 0, %s176
      %s179 = sphi 0, %s178
      %s193 = sphi 0, %s179
      %s197 = sphi 0, %s197
      %s199 = sphi 0, %s197
      %s200 = sphi 0, %s199
      %s214 = sphi 0, %s200
      %s220 = sphi 0, %s222
      %s223 = sphi 0, %s220
      %s224 = sphi 0, %s223
      %s240 = sphi 0, %s224
      %s246 = sphi 0, %s248
      %s249 = sphi 0, %s246
      %s250 = sphi 0, %s249
      %s266 = sphi 0, %s250
      %s272 = sphi 0, %s274
      %s275 = sphi 0, %s272
      %s276 = sphi 0, %s275
      %s292 = sphi 0, %s276
    $region4: #{tpu_custom_call.1} parent=1 // loop_header_branch
      %35 = sbr.rel (%p33) target = $region8
    $region5: #{tpu_custom_call.1} parent=1 // loop_body
      %s37 = ssub.s32 %s32, 1
      %s38 = ssub.s32 %s32, 2
      %s39 = sadd.s32 %s32, 1
      %s40 = ssub.s32 %s32, %s39
      %p41 = scmp.eq.s32.totalorder %s40, 0
      %s43 = sadd.s32 %s42, 1
      %s44 = scalar_select %p41, %s42, %s43
      %p47 = pneg %p41
      %p48 = scmp.eq.s32.totalorder %s32, 1
      %p49 = por %p47, %p48
      %p50 = scmp.ne.s32.totalorder %s42, %s45
      %p51 = scmp.eq.s32.totalorder %s32, 0
      %p52 = por %p50, %p51
      %p53 = scmp.ne.s32.totalorder %s42, %s45
      %p54 = scmp.eq.s32.totalorder %s37, 1
      %p55 = por %p53, %p54
      %p56 = scmp.ne.s32.totalorder %s45, %s46
      %p57 = scmp.eq.s32.totalorder %s37, 0
      %p58 = por %p56, %p57
      %p59 = scmp.ne.s32.totalorder %s45, %s46
      %p60 = scmp.eq.s32.totalorder %s38, 1
      %p61 = por %p59, %p60
      %p63 = scmp.ne.s32.totalorder %s46, %s62
      %p64 = scmp.eq.s32.totalorder %s38, 0
      %p65 = por %p63, %p64
      %s66 = ssub.s32 %s32, %s39
      %p67 = scmp.eq.s32.totalorder %s66, 0
      %s69 = sadd.s32 %s68, 1
      %s70 = scalar_select %p67, %s68, %s69
      %p73 = pneg %p67
      %p74 = scmp.eq.s32.totalorder %s32, 1
      %p75 = por %p73, %p74
      %p76 = scmp.ne.s32.totalorder %s68, %s71
      %p77 = scmp.eq.s32.totalorder %s32, 0
      %p78 = por %p76, %p77
      %p79 = scmp.ne.s32.totalorder %s68, %s71
      %p80 = scmp.eq.s32.totalorder %s37, 1
      %p81 = por %p79, %p80
      %p82 = scmp.ne.s32.totalorder %s71, %s72
      %p83 = scmp.eq.s32.totalorder %s37, 0
      %p84 = por %p82, %p83
      %p85 = scmp.ne.s32.totalorder %s71, %s72
      %p86 = scmp.eq.s32.totalorder %s38, 1
      %p87 = por %p85, %p86
      %p89 = scmp.ne.s32.totalorder %s72, %s88
      %p90 = scmp.eq.s32.totalorder %s38, 0
      %p91 = por %p89, %p90
      %s93 = sadd.s32 %s92, 1
      %p96 = scmp.eq.s32.totalorder %s32, 1
      %p97 = scmp.ne.s32.totalorder %s92, %s94
      %p98 = scmp.eq.s32.totalorder %s32, 0
      %p99 = por %p97, %p98
      %p100 = scmp.ne.s32.totalorder %s92, %s94
      %p101 = scmp.eq.s32.totalorder %s37, 1
      %p102 = por %p100, %p101
      %p103 = scmp.ne.s32.totalorder %s94, %s95
      %p104 = scmp.eq.s32.totalorder %s37, 0
      %p105 = por %p103, %p104
      %p106 = scmp.ne.s32.totalorder %s94, %s95
      %p107 = scmp.eq.s32.totalorder %s38, 1
      %p108 = por %p106, %p107
      %p110 = scmp.ne.s32.totalorder %s95, %s109
      %p111 = scmp.eq.s32.totalorder %s38, 0
      %p112 = por %p110, %p111
      %s114 = sadd.s32 %s113, 1
      %p117 = scmp.eq.s32.totalorder %s32, 1
      %p118 = scmp.ne.s32.totalorder %s113, %s115
      %p119 = scmp.eq.s32.totalorder %s32, 0
      %p120 = por %p118, %p119
      %p121 = scmp.ne.s32.totalorder %s113, %s115
      %p122 = scmp.eq.s32.totalorder %s37, 1
      %p123 = por %p121, %p122
      %p124 = scmp.ne.s32.totalorder %s115, %s116
      %p125 = scmp.eq.s32.totalorder %s37, 0
      %p126 = por %p124, %p125
      %p127 = scmp.ne.s32.totalorder %s115, %s116
      %p128 = scmp.eq.s32.totalorder %s38, 1
      %p129 = por %p127, %p128
      %p131 = scmp.ne.s32.totalorder %s116, %s130
      %p132 = scmp.eq.s32.totalorder %s38, 0
      %p133 = por %p131, %p132
      %s135 = sadd.s32 %s134, 1
      %p138 = scmp.eq.s32.totalorder %s32, 1
      %p139 = scmp.ne.s32.totalorder %s134, %s136
      %p140 = scmp.eq.s32.totalorder %s32, 0
      %p141 = por %p139, %p140
      %p142 = scmp.ne.s32.totalorder %s134, %s136
      %p143 = scmp.eq.s32.totalorder %s37, 1
      %p144 = por %p142, %p143
      %p145 = scmp.ne.s32.totalorder %s136, %s137
      %p146 = scmp.eq.s32.totalorder %s37, 0
      %p147 = por %p145, %p146
      %p148 = scmp.ne.s32.totalorder %s136, %s137
      %p149 = scmp.eq.s32.totalorder %s38, 1
      %p150 = por %p148, %p149
      %p152 = scmp.ne.s32.totalorder %s137, %s151
      %p153 = scmp.eq.s32.totalorder %s38, 0
      %p154 = por %p152, %p153
      %s156 = sadd.s32 %s155, 1
      %p159 = scmp.eq.s32.totalorder %s32, 1
      %p160 = scmp.ne.s32.totalorder %s155, %s157
      %p161 = scmp.eq.s32.totalorder %s32, 0
      %p162 = por %p160, %p161
      %p163 = scmp.ne.s32.totalorder %s155, %s157
      %p164 = scmp.eq.s32.totalorder %s37, 1
      %p165 = por %p163, %p164
      %p166 = scmp.ne.s32.totalorder %s157, %s158
      %p167 = scmp.eq.s32.totalorder %s37, 0
      %p168 = por %p166, %p167
      %p169 = scmp.ne.s32.totalorder %s157, %s158
      %p170 = scmp.eq.s32.totalorder %s38, 1
      %p171 = por %p169, %p170
      %p173 = scmp.ne.s32.totalorder %s158, %s172
      %p174 = scmp.eq.s32.totalorder %s38, 0
      %p175 = por %p173, %p174
      %s177 = sadd.s32 %s176, 1
      %p180 = scmp.eq.s32.totalorder %s32, 1
      %p181 = scmp.ne.s32.totalorder %s176, %s178
      %p182 = scmp.eq.s32.totalorder %s32, 0
      %p183 = por %p181, %p182
      %p184 = scmp.ne.s32.totalorder %s176, %s178
      %p185 = scmp.eq.s32.totalorder %s37, 1
      %p186 = por %p184, %p185
      %p187 = scmp.ne.s32.totalorder %s178, %s179
      %p188 = scmp.eq.s32.totalorder %s37, 0
      %p189 = por %p187, %p188
      %p190 = scmp.ne.s32.totalorder %s178, %s179
      %p191 = scmp.eq.s32.totalorder %s38, 1
      %p192 = por %p190, %p191
      %p194 = scmp.ne.s32.totalorder %s179, %s193
      %p195 = scmp.eq.s32.totalorder %s38, 0
      %p196 = por %p194, %p195
      %s198 = sadd.s32 %s197, 1
      %p201 = scmp.eq.s32.totalorder %s32, 1
      %p202 = scmp.ne.s32.totalorder %s197, %s199
      %p203 = scmp.eq.s32.totalorder %s32, 0
      %p204 = por %p202, %p203
      %p205 = scmp.ne.s32.totalorder %s197, %s199
      %p206 = scmp.eq.s32.totalorder %s37, 1
      %p207 = por %p205, %p206
      %p208 = scmp.ne.s32.totalorder %s199, %s200
      %p209 = scmp.eq.s32.totalorder %s37, 0
      %p210 = por %p208, %p209
      %p211 = scmp.ne.s32.totalorder %s199, %s200
      %p212 = scmp.eq.s32.totalorder %s38, 1
      %p213 = por %p211, %p212
      %p215 = scmp.ne.s32.totalorder %s200, %s214
      %p216 = scmp.eq.s32.totalorder %s38, 0
      %p217 = por %p215, %p216
      %s218 = ssub.s32 %s32, %s39
      %p219 = scmp.eq.s32.totalorder %s218, 0
      %s221 = sadd.s32 %s220, 1
      %s222 = scalar_select %p219, %s220, %s221
      %p225 = pneg %p219
      %p226 = scmp.eq.s32.totalorder %s32, 1
      %p227 = por %p225, %p226
      %p228 = scmp.ne.s32.totalorder %s220, %s223
      %p229 = scmp.eq.s32.totalorder %s32, 0
      %p230 = por %p228, %p229
      %p231 = scmp.ne.s32.totalorder %s220, %s223
      %p232 = scmp.eq.s32.totalorder %s37, 1
      %p233 = por %p231, %p232
      %p234 = scmp.ne.s32.totalorder %s223, %s224
      %p235 = scmp.eq.s32.totalorder %s37, 0
      %p236 = por %p234, %p235
      %p237 = scmp.ne.s32.totalorder %s223, %s224
      %p238 = scmp.eq.s32.totalorder %s38, 1
      %p239 = por %p237, %p238
      %p241 = scmp.ne.s32.totalorder %s224, %s240
      %p242 = scmp.eq.s32.totalorder %s38, 0
      %p243 = por %p241, %p242
      %s244 = ssub.s32 %s32, %s39
      %p245 = scmp.eq.s32.totalorder %s244, 0
      %s247 = sadd.s32 %s246, 1
      %s248 = scalar_select %p245, %s246, %s247
      %p251 = pneg %p245
      %p252 = scmp.eq.s32.totalorder %s32, 1
      %p253 = por %p251, %p252
      %p254 = scmp.ne.s32.totalorder %s246, %s249
      %p255 = scmp.eq.s32.totalorder %s32, 0
      %p256 = por %p254, %p255
      %p257 = scmp.ne.s32.totalorder %s246, %s249
      %p258 = scmp.eq.s32.totalorder %s37, 1
      %p259 = por %p257, %p258
      %p260 = scmp.ne.s32.totalorder %s249, %s250
      %p261 = scmp.eq.s32.totalorder %s37, 0
      %p262 = por %p260, %p261
      %p263 = scmp.ne.s32.totalorder %s249, %s250
      %p264 = scmp.eq.s32.totalorder %s38, 1
      %p265 = por %p263, %p264
      %p267 = scmp.ne.s32.totalorder %s250, %s266
      %p268 = scmp.eq.s32.totalorder %s38, 0
      %p269 = por %p267, %p268
      %s270 = ssub.s32 %s32, %s39
      %p271 = scmp.eq.s32.totalorder %s270, 0
      %s273 = sadd.s32 %s272, 1
      %s274 = scalar_select %p271, %s272, %s273
      %p277 = pneg %p271
      %p278 = scmp.eq.s32.totalorder %s32, 1
      %p279 = por %p277, %p278
      %p280 = scmp.ne.s32.totalorder %s272, %s275
      %p281 = scmp.eq.s32.totalorder %s32, 0
      %p282 = por %p280, %p281
      %p283 = scmp.ne.s32.totalorder %s272, %s275
      %p284 = scmp.eq.s32.totalorder %s37, 1
      %p285 = por %p283, %p284
      %p286 = scmp.ne.s32.totalorder %s275, %s276
      %p287 = scmp.eq.s32.totalorder %s37, 0
      %p288 = por %p286, %p287
      %p289 = scmp.ne.s32.totalorder %s275, %s276
      %p290 = scmp.eq.s32.totalorder %s38, 1
      %p291 = por %p289, %p290
      %p293 = scmp.ne.s32.totalorder %s276, %s292
      %p294 = scmp.eq.s32.totalorder %s38, 0
      %p295 = por %p293, %p294
      %p296 = scmp.le.s32.totalorder 1, %s32
      %p297 = scmp.lt.s32.totalorder %s32, 3
      %p298 = pnand %p296, %p297
      %p299 = pneg %p298
      // Predicated region
      $region9: #{tpu_custom_call.1} parent=5 // pred_check
        _
      $region10: #{tpu_custom_call.1} parent=5 // pred_check_branch
        %301 = sbr.rel (%p298) target = $region12
      $region11: #{tpu_custom_call.1} parent=5 // pred_region
        %s302 = ssub.s32 %s32, 1
        // Predicated region
        $region13: #{tpu_custom_call.1} parent=11 // pred_check
          %p303 = pneg %p105
        $region14: #{tpu_custom_call.1} parent=11 // pred_check_branch
          %305 = sbr.rel (%p303) target = $region16
        $region15: #{tpu_custom_call.1} parent=11 // pred_region
          %307 = vsyncadd [#allocation7], 0
          %s308 = sshll.u32 %s2, 4
          %s309 = int_to_ptr.hbm [resolvable:$true] %s308
          %s310 = sshll.u32 [#allocation8], 4
          %s311 = int_to_ptr.vmem [resolvable:$true] %s310
          %316 = dma.hbm_to_vmem [thread:$0]  %s309, 1024, %s311, [#allocation7], 64, 64, 4
        $region16: #{tpu_custom_call.1} parent=11 // pred_fallthru
          _
        // Predicated region
        $region17: #{tpu_custom_call.1} parent=11 // pred_check
          %p317 = pneg %p126
        $region18: #{tpu_custom_call.1} parent=11 // pred_check_branch
          %319 = sbr.rel (%p317) target = $region20
        $region19: #{tpu_custom_call.1} parent=11 // pred_region
          %321 = vsyncadd [#allocation10], 0
          %s322 = sshll.u32 %s3, 4
          %s323 = int_to_ptr.hbm [resolvable:$true] %s322
          %s324 = sshll.u32 [#allocation9], 4
          %s325 = int_to_ptr.vmem [resolvable:$true] %s324
          %330 = dma.hbm_to_vmem [thread:$0]  %s323, 3072, %s325, [#allocation10], 64, 64, 4
        $region20: #{tpu_custom_call.1} parent=11 // pred_fallthru
          _
        // Predicated region
        $region21: #{tpu_custom_call.1} parent=11 // pred_check
          %p331 = pneg %p147
        $region22: #{tpu_custom_call.1} parent=11 // pred_check_branch
          %333 = sbr.rel (%p331) target = $region24
        $region23: #{tpu_custom_call.1} parent=11 // pred_region
          %335 = vsyncadd [#allocation10], 0
          %s336 = sshll.u32 %s4, 4
          %s337 = int_to_ptr.hbm [resolvable:$true] %s336
          %s338 = sshll.u32 [#allocation11], 4
          %s339 = int_to_ptr.vmem [resolvable:$true] %s338
          %344 = dma.hbm_to_vmem [thread:$0]  %s337, 3072, %s339, [#allocation10], 64, 64, 4
        $region24: #{tpu_custom_call.1} parent=11 // pred_fallthru
          _
        // Predicated region
        $region25: #{tpu_custom_call.1} parent=11 // pred_check
          %p345 = pneg %p168
        $region26: #{tpu_custom_call.1} parent=11 // pred_check_branch
          %347 = sbr.rel (%p345) target = $region28
        $region27: #{tpu_custom_call.1} parent=11 // pred_region
          %349 = vsyncadd [#allocation13], 0
          %s350 = sshll.u32 %s5, 4
          %s351 = int_to_ptr.hbm [resolvable:$true] %s350
          %s352 = sshll.u32 [#allocation12], 4
          %s353 = int_to_ptr.vmem [resolvable:$true] %s352
          %358 = dma.hbm_to_vmem [thread:$0]  %s351, 3072, %s353, [#allocation13], 64, 64, 4
        $region28: #{tpu_custom_call.1} parent=11 // pred_fallthru
          _
        // Predicated region
        $region29: #{tpu_custom_call.1} parent=11 // pred_check
          %p359 = pneg %p189
        $region30: #{tpu_custom_call.1} parent=11 // pred_check_branch
          %361 = sbr.rel (%p359) target = $region32
        $region31: #{tpu_custom_call.1} parent=11 // pred_region
          %363 = vsyncadd [#allocation13], 0
          %s364 = sshll.u32 %s6, 4
          %s365 = int_to_ptr.hbm [resolvable:$true] %s364
          %s366 = sshll.u32 [#allocation14], 4
          %s367 = int_to_ptr.vmem [resolvable:$true] %s366
          %372 = dma.hbm_to_vmem [thread:$0]  %s365, 3072, %s367, [#allocation13], 64, 64, 4
        $region32: #{tpu_custom_call.1} parent=11 // pred_fallthru
          _
        // Predicated region
        $region33: #{tpu_custom_call.1} parent=11 // pred_check
          %p373 = pneg %p210
        $region34: #{tpu_custom_call.1} parent=11 // pred_check_branch
          %375 = sbr.rel (%p373) target = $region36
        $region35: #{tpu_custom_call.1} parent=11 // pred_region
          %377 = vsyncadd [#allocation16], 0
          %s378 = sshll.u32 %s7, 4
          %s379 = int_to_ptr.hbm [resolvable:$true] %s378
          %s380 = sshll.u32 [#allocation15], 4
          %s381 = int_to_ptr.vmem [resolvable:$true] %s380
          %386 = dma.hbm_to_vmem [thread:$0]  %s379, 1024, %s381, [#allocation16], 64, 64, 4
        $region36: #{tpu_custom_call.1} parent=11 // pred_fallthru
          _
      $region12: #{tpu_custom_call.1} parent=5 // pred_fallthru
        _
      %p387 = scmp.lt.s32.totalorder %s32, 2
      // Predicated region
      $region37: #{tpu_custom_call.1} parent=5 // pred_check
        %p388 = pneg %p387
      $region38: #{tpu_custom_call.1} parent=5 // pred_check_branch
        %390 = sbr.rel (%p388) target = $region40
      $region39: #{tpu_custom_call.1} parent=5 // pred_region
        // Predicated region
        $region41: #{tpu_custom_call.1} parent=39 // pred_check
          %p391 = pneg %p52
        $region42: #{tpu_custom_call.1} parent=39 // pred_check_branch
          %393 = sbr.rel (%p391) target = $region44
        $region43: #{tpu_custom_call.1} parent=39 // pred_region
          %s394 = sand.u32 %s32, 1
          %s395 = scalar_lea.sflag [#allocation4], %s394
          %s396 = sand.u32 %s42, 1
          %s397 = smul.addr %s396, 8
          %s398 = scalar_lea.vmem [#allocation3], %s397
          %400 = vsyncadd %s395, 0
          %s401 = smul.addr %s32, 2
          %s402 = smul.addr %s401, 4
          %s403 = scalar_lea.hbm %s0, %s402
          %s404 = sshll.u32 %s403, 4
          %s405 = int_to_ptr.hbm [resolvable:$true] %s404
          %s406 = sshll.u32 %s398, 4
          %s407 = int_to_ptr.vmem [resolvable:$true] %s406
          %412 = dma.hbm_to_vmem [thread:$0]  %s405, 128, %s407, %s395, 64, 64, 4
        $region44: #{tpu_custom_call.1} parent=39 // pred_fallthru
          _
        // Predicated region
        $region45: #{tpu_custom_call.1} parent=39 // pred_check
          %p413 = pneg %p78
        $region46: #{tpu_custom_call.1} parent=39 // pred_check_branch
          %415 = sbr.rel (%p413) target = $region48
        $region47: #{tpu_custom_call.1} parent=39 // pred_region
          %s416 = sand.u32 %s32, 1
          %s417 = scalar_lea.sflag [#allocation7], %s416
          %s418 = sand.u32 %s68, 1
          %s419 = smul.addr %s418, 8
          %s420 = scalar_lea.vmem [#allocation6], %s419
          %422 = vsyncadd %s417, 0
          %s423 = smul.addr %s32, 2
          %s424 = smul.addr %s423, 4
          %s425 = scalar_lea.hbm %s1, %s424
          %s426 = sshll.u32 %s425, 4
          %s427 = int_to_ptr.hbm [resolvable:$true] %s426
          %s428 = sshll.u32 %s420, 4
          %s429 = int_to_ptr.vmem [resolvable:$true] %s428
          %434 = dma.hbm_to_vmem [thread:$0]  %s427, 128, %s429, %s417, 64, 64, 4
        $region48: #{tpu_custom_call.1} parent=39 // pred_fallthru
          _
        // Predicated region
        $region49: #{tpu_custom_call.1} parent=39 // pred_check
          %p435 = pneg %p230
        $region50: #{tpu_custom_call.1} parent=39 // pred_check_branch
          %437 = sbr.rel (%p435) target = $region52
        $region51: #{tpu_custom_call.1} parent=39 // pred_region
          %s438 = sand.u32 %s32, 1
          %s439 = scalar_lea.sflag [#allocation4], %s438
          %s440 = sand.u32 %s220, 1
          %s441 = smul.addr %s440, 64
          %s442 = scalar_lea.vmem [#allocation17], %s441
          %444 = vsyncadd %s439, 0
          %s445 = smul.addr %s32, 16
          %s446 = smul.addr %s445, 4
          %s447 = scalar_lea.hbm %s8, %s446
          %s448 = sshll.u32 %s447, 4
          %s449 = int_to_ptr.hbm [resolvable:$true] %s448
          %s450 = sshll.u32 %s442, 4
          %s451 = int_to_ptr.vmem [resolvable:$true] %s450
          %456 = dma.hbm_to_vmem [thread:$0]  %s449, 1024, %s451, %s439, 64, 64, 4
        $region52: #{tpu_custom_call.1} parent=39 // pred_fallthru
          _
      $region40: #{tpu_custom_call.1} parent=5 // pred_fallthru
        _
      %p457 = scmp.le.s32.totalorder 1, %s32
      %p458 = scmp.lt.s32.totalorder %s32, 3
      %p459 = pnand %p457, %p458
      %p460 = pneg %p459
      // Predicated region
      $region53: #{tpu_custom_call.1} parent=5 // pred_check
        _
      $region54: #{tpu_custom_call.1} parent=5 // pred_check_branch
        %462 = sbr.rel (%p459) target = $region56
      $region55: #{tpu_custom_call.1} parent=5 // pred_region
        %s463 = ssub.s32 %s32, 1
        %s464 = sand.u32 %s37, 1
        %s465 = scalar_lea.sflag [#allocation4], %s464
        %s466 = sand.u32 %s45, 1
        %s467 = smul.addr %s466, 8
        %s468 = scalar_lea.vmem [#allocation3], %s467
        // Predicated region
        $region57: #{tpu_custom_call.1} parent=55 // pred_check
          %p469 = pneg %p58
        $region58: #{tpu_custom_call.1} parent=55 // pred_check_branch
          %471 = sbr.rel (%p469) target = $region60
        $region59: #{tpu_custom_call.1} parent=55 // pred_region
          %473 = dma.done %s465, 128
        $region60: #{tpu_custom_call.1} parent=55 // pred_fallthru
          _
        %s474 = sand.u32 %s37, 1
        %s475 = scalar_lea.sflag [#allocation7], %s474
        %s476 = sand.u32 %s71, 1
        %s477 = smul.addr %s476, 8
        %s478 = scalar_lea.vmem [#allocation6], %s477
        // Predicated region
        $region61: #{tpu_custom_call.1} parent=55 // pred_check
          %p479 = pneg %p84
        $region62: #{tpu_custom_call.1} parent=55 // pred_check_branch
          %481 = sbr.rel (%p479) target = $region64
        $region63: #{tpu_custom_call.1} parent=55 // pred_region
          %483 = dma.done %s475, 128
        $region64: #{tpu_custom_call.1} parent=55 // pred_fallthru
          _
        // Predicated region
        $region65: #{tpu_custom_call.1} parent=55 // pred_check
          %p484 = pneg %p105
        $region66: #{tpu_custom_call.1} parent=55 // pred_check_branch
          %486 = sbr.rel (%p484) target = $region68
        $region67: #{tpu_custom_call.1} parent=55 // pred_region
          %488 = dma.done [#allocation7], 1024
        $region68: #{tpu_custom_call.1} parent=55 // pred_fallthru
          _
        // Predicated region
        $region69: #{tpu_custom_call.1} parent=55 // pred_check
          %p489 = pneg %p126
        $region70: #{tpu_custom_call.1} parent=55 // pred_check_branch
          %491 = sbr.rel (%p489) target = $region72
        $region71: #{tpu_custom_call.1} parent=55 // pred_region
          %493 = dma.done [#allocation10], 3072
        $region72: #{tpu_custom_call.1} parent=55 // pred_fallthru
          _
        // Predicated region
        $region73: #{tpu_custom_call.1} parent=55 // pred_check
          %p494 = pneg %p147
        $region74: #{tpu_custom_call.1} parent=55 // pred_check_branch
          %496 = sbr.rel (%p494) target = $region76
        $region75: #{tpu_custom_call.1} parent=55 // pred_region
          %498 = dma.done [#allocation10], 3072
        $region76: #{tpu_custom_call.1} parent=55 // pred_fallthru
          _
        // Predicated region
        $region77: #{tpu_custom_call.1} parent=55 // pred_check
          %p499 = pneg %p168
        $region78: #{tpu_custom_call.1} parent=55 // pred_check_branch
          %501 = sbr.rel (%p499) target = $region80
        $region79: #{tpu_custom_call.1} parent=55 // pred_region
          %503 = dma.done [#allocation13], 3072
        $region80: #{tpu_custom_call.1} parent=55 // pred_fallthru
          _
        // Predicated region
        $region81: #{tpu_custom_call.1} parent=55 // pred_check
          %p504 = pneg %p189
        $region82: #{tpu_custom_call.1} parent=55 // pred_check_branch
          %506 = sbr.rel (%p504) target = $region84
        $region83: #{tpu_custom_call.1} parent=55 // pred_region
          %508 = dma.done [#allocation13], 3072
        $region84: #{tpu_custom_call.1} parent=55 // pred_fallthru
          _
        // Predicated region
        $region85: #{tpu_custom_call.1} parent=55 // pred_check
          %p509 = pneg %p210
        $region86: #{tpu_custom_call.1} parent=55 // pred_check_branch
          %511 = sbr.rel (%p509) target = $region88
        $region87: #{tpu_custom_call.1} parent=55 // pred_region
          %513 = dma.done [#allocation16], 1024
        $region88: #{tpu_custom_call.1} parent=55 // pred_fallthru
          _
        %s514 = sand.u32 %s37, 1
        %s515 = scalar_lea.sflag [#allocation4], %s514
        %s516 = sand.u32 %s223, 1
        %s517 = smul.addr %s516, 64
        %s518 = scalar_lea.vmem [#allocation17], %s517
        // Predicated region
        $region89: #{tpu_custom_call.1} parent=55 // pred_check
          %p519 = pneg %p236
        $region90: #{tpu_custom_call.1} parent=55 // pred_check_branch
          %521 = sbr.rel (%p519) target = $region92
        $region91: #{tpu_custom_call.1} parent=55 // pred_region
          %523 = dma.done %s515, 1024
        $region92: #{tpu_custom_call.1} parent=55 // pred_fallthru
          _
        %s524 = sand.u32 %s37, 1
        %s525 = scalar_lea.sflag [#allocation4], %s524
        %s526 = sand.u32 %s45, 1
        %s527 = smul.addr %s526, 8
        %s528 = scalar_lea.vmem [#allocation3], %s527
        %p529 = pneg %p58
        %p530 = pneg %p55
        %s531 = sand.u32 %s37, 1
        %s532 = scalar_lea.sflag [#allocation7], %s531
        %s533 = sand.u32 %s71, 1
        %s534 = smul.addr %s533, 8
        %s535 = scalar_lea.vmem [#allocation6], %s534
        %p536 = pneg %p84
        %p537 = pneg %p81
        %p538 = pneg %p105
        %p539 = pneg %p102
        %p540 = pneg %p126
        %p541 = pneg %p123
        %p542 = pneg %p147
        %p543 = pneg %p144
        %p544 = pneg %p168
        %p545 = pneg %p165
        %p546 = pneg %p189
        %p547 = pneg %p186
        %p548 = pneg %p210
        %p549 = pneg %p207
        %s550 = sand.u32 %s37, 1
        %s551 = scalar_lea.sflag [#allocation4], %s550
        %s552 = sand.u32 %s223, 1
        %s553 = smul.addr %s552, 64
        %s554 = scalar_lea.vmem [#allocation17], %s553
        %p555 = pneg %p236
        %p556 = pneg %p233
        %p557 = pneg %p262
        %p558 = pneg %p259
        %s559 = sand.u32 %s249, 1
        %s560 = scalar_lea.sflag [#allocation5], %s559
        %s561 = sand.u32 %s249, 1
        %s562 = smul.addr %s561, 16
        %s563 = scalar_lea.vmem [#allocation18], %s562
        %p564 = pneg %p288
        %p565 = pneg %p285
        %s566 = sand.u32 %s275, 1
        %s567 = scalar_lea.sflag [#allocation20], %s566
        %s568 = sand.u32 %s275, 1
        %s569 = smul.addr %s568, 16
        %s570 = scalar_lea.vmem [#allocation19], %s569
        %v572 = vld [vmem:[%s468] sm:$0xf]
        %v573 = vld [vmem:[%s468 + $0x4] sm:$0xf]
        %v574 = vld [vmem:[%s478] sm:$0xf]
        %v575 = vld [vmem:[%s478 + $0x4] sm:$0xf]
        %v576 = vld [vmem:[#allocation8] sm:$0xf]
        %v577 = vld [vmem:[#allocation8 + $0x4] sm:$0xf]
        %v578 = vld [vmem:[#allocation8 + $0x8] sm:$0xf]
        %v579 = vld [vmem:[#allocation8 + $0xc] sm:$0xf]
        %v580 = vld [vmem:[#allocation8 + $0x10] sm:$0xf]
        %v581 = vld [vmem:[#allocation8 + $0x14] sm:$0xf]
        %v582 = vld [vmem:[#allocation8 + $0x18] sm:$0xf]
        %v583 = vld [vmem:[#allocation8 + $0x1c] sm:$0xf]
        %v584 = vld [vmem:[#allocation8 + $0x20] sm:$0xf]
        %v585 = vld [vmem:[#allocation8 + $0x24] sm:$0xf]
        %v586 = vld [vmem:[#allocation8 + $0x28] sm:$0xf]
        %v587 = vld [vmem:[#allocation8 + $0x2c] sm:$0xf]
        %v588 = vld [vmem:[#allocation8 + $0x30] sm:$0xf]
        %v589 = vld [vmem:[#allocation8 + $0x34] sm:$0xf]
        %v590 = vld [vmem:[#allocation8 + $0x38] sm:$0xf]
        %v591 = vld [vmem:[#allocation8 + $0x3c] sm:$0xf]
        %v594 = vunpack.c.l.b16 %v572
        %v595 = vunpack.c.l.b16 %v573
        %v596 = vpack.c.b16 %v595, %v594
        %v614 = vunpack.c.l.b16 %v576
        %v615 = vunpack.c.l.b16 %v577
        %v616 = vunpack.c.l.b16 %v578
        %v617 = vunpack.c.l.b16 %v579
        %v618 = vunpack.c.l.b16 %v580
        %v619 = vunpack.c.l.b16 %v581
        %v620 = vunpack.c.l.b16 %v582
        %v621 = vunpack.c.l.b16 %v583
        %v622 = vunpack.c.l.b16 %v584
        %v623 = vunpack.c.l.b16 %v585
        %v624 = vunpack.c.l.b16 %v586
        %v625 = vunpack.c.l.b16 %v587
        %v626 = vunpack.c.l.b16 %v588
        %v627 = vunpack.c.l.b16 %v589
        %v628 = vunpack.c.l.b16 %v590
        %v629 = vunpack.c.l.b16 %v591
        %v630 = vpack.c.b16 %v615, %v614
        %v631 = vpack.c.b16 %v617, %v616
        %v632 = vpack.c.b16 %v619, %v618
        %v633 = vpack.c.b16 %v621, %v620
        %v634 = vpack.c.b16 %v623, %v622
        %v635 = vpack.c.b16 %v625, %v624
        %v636 = vpack.c.b16 %v627, %v626
        %v637 = vpack.c.b16 %v629, %v628
        %646 = vmatpush.bf16.msra.mxu0 %v637
        %647 = vmatpush.bf16.msra.mxu0 %v636
        %648 = vmatpush.bf16.msra.mxu0 %v635
        %649 = vmatpush.bf16.msra.mxu0 %v634
        %650 = vmatpush.bf16.msra.mxu0 %v633
        %651 = vmatpush.bf16.msra.mxu0 %v632
        %652 = vmatpush.bf16.msra.mxu0 %v631
        %653 = vmatpush.bf16.msra.mxu0 %v630
        %654 = vmatmul.bf16.gmra.mxu0 %v596
        %v655 = vpop.f32.mrf.mxu0
        %v656 = vadd.f32 0.0, %v655
        %v657 = vpop.f32.mrf.mxu0
        %v658 = vadd.f32 0.0, %v657
        %659 = vdwg.mxu0
        %v660 = vpack.c.bf16 %v656, %v656
        %v661 = vpack.c.bf16 %v658, %v658
        %662 = vst [vmem:[#allocation2] sm:$0xf] %v660
        %663 = vst [vmem:[#allocation2 + $0xc] sm:$0xf] %v661
        %v666 = vunpack.c.l.b16 %v574
        %v667 = vunpack.c.l.b16 %v575
        %v668 = vpack.c.b16 %v667, %v666
        %v671 = vunpack.c.l.b16 %v660
        %v672 = vunpack.c.l.b16 %v661
        %v673 = vpack.c.b16 %v672, %v671
        %vm675 = vcmask 130048
        %v677 = vsel %vm675, %v668, 0
        %679 = vmatpush.bf16.msra.mxu0 0
        %680 = vmatpush.bf16.msra.mxu0 0
        %681 = vmatpush.bf16.msra.mxu0 0
        %682 = vmatpush.bf16.msra.mxu0 0
        %683 = vmatpush.bf16.msra.mxu0 0
        %684 = vmatpush.bf16.msra.mxu0 0
        %685 = vmatpush.bf16.msra.mxu0 0
        %686 = vmatpush.bf16.msra.mxu0 %v673
        %687 = vmatmul.bf16.gmra.mxu0 %v677
        %v688 = vpop.f32.mrf.mxu0
        %v689 = vadd.f32 0.0, %v688
        %v690 = vpop.f32.mrf.mxu0
        %v691 = vadd.f32 0.0, %v690
        %692 = vdwg.mxu0
        %v693 = vpack.c.bf16 %v689, %v689
        %v694 = vpack.c.bf16 %v691, %v691
        %695 = vst [vmem:[#allocation2 + $0x4] sm:$0xf] %v693
        %696 = vst [vmem:[#allocation2 + $0x10] sm:$0xf] %v694
        %v699 = vunpack.c.l.b16 %v693
        %v700 = vunpack.c.l.b16 %v694
        %v701 = vpack.c.b16 %v700, %v699
        %703 = vmatpush.bf16.msra.mxu0 0
        %704 = vmatpush.bf16.msra.mxu0 0
        %705 = vmatpush.bf16.msra.mxu0 0
        %706 = vmatpush.bf16.msra.mxu0 0
        %707 = vmatpush.bf16.msra.mxu0 0
        %708 = vmatpush.bf16.msra.mxu0 0
        %709 = vmatpush.bf16.msra.mxu0 0
        %710 = vmatpush.bf16.msra.mxu0 %v701
        %711 = vmatmul.bf16.gmra.mxu0 %v677
        %v712 = vpop.f32.mrf.mxu0
        %v713 = vadd.f32 0.0, %v712
        %v714 = vpop.f32.mrf.mxu0
        %v715 = vadd.f32 0.0, %v714
        %716 = vdwg.mxu0
        %v717 = vmul.f32 %v713, 2.0
        %v718 = vmul.f32 %v715, 2.0
        %v719 = vsub.f32 %v717, %v656
        %v720 = vsub.f32 %v718, %v658
        %v721 = vpack.c.bf16 %v719, %v719
        %v722 = vpack.c.bf16 %v720, %v720
        %723 = vst [vmem:[#allocation2 + $0x8] sm:$0xf] %v721
        %724 = vst [vmem:[#allocation2 + $0x14] sm:$0xf] %v722
        %v725 = vld [vmem:[#allocation2] sm:$0xff]
        %v726 = vld [vmem:[#allocation2 + $0x8] sm:$0xf]
        %v727 = vld [vmem:[#allocation2 + $0xc] sm:$0xff]
        %v728 = vld [vmem:[#allocation2 + $0x14] sm:$0xf]
        %v729 = vld [vmem:[#allocation9] sm:$0xf]
        %v730 = vld [vmem:[#allocation9 + $0x4] sm:$0xf]
        %v731 = vld [vmem:[#allocation9 + $0x8] sm:$0xf]
        %v732 = vld [vmem:[#allocation9 + $0xc] sm:$0xf]
        %v733 = vld [vmem:[#allocation9 + $0x10] sm:$0xf]
        %v734 = vld [vmem:[#allocation9 + $0x14] sm:$0xf]
        %v735 = vld [vmem:[#allocation9 + $0x18] sm:$0xf]
        %v736 = vld [vmem:[#allocation9 + $0x1c] sm:$0xf]
        %v737 = vld [vmem:[#allocation9 + $0x20] sm:$0xf]
        %v738 = vld [vmem:[#allocation9 + $0x24] sm:$0xf]
        %v739 = vld [vmem:[#allocation9 + $0x28] sm:$0xf]
        %v740 = vld [vmem:[#allocation9 + $0x2c] sm:$0xf]
        %v741 = vld [vmem:[#allocation9 + $0x30] sm:$0xf]
        %v742 = vld [vmem:[#allocation9 + $0x34] sm:$0xf]
        %v743 = vld [vmem:[#allocation9 + $0x38] sm:$0xf]
        %v744 = vld [vmem:[#allocation9 + $0x3c] sm:$0xf]
        %v745 = vld [vmem:[#allocation9 + $0x40] sm:$0xf]
        %v746 = vld [vmem:[#allocation9 + $0x44] sm:$0xf]
        %v747 = vld [vmem:[#allocation9 + $0x48] sm:$0xf]
        %v748 = vld [vmem:[#allocation9 + $0x4c] sm:$0xf]
        %v749 = vld [vmem:[#allocation9 + $0x50] sm:$0xf]
        %v750 = vld [vmem:[#allocation9 + $0x54] sm:$0xf]
        %v751 = vld [vmem:[#allocation9 + $0x58] sm:$0xf]
        %v752 = vld [vmem:[#allocation9 + $0x5c] sm:$0xf]
        %v753 = vld [vmem:[#allocation9 + $0x60] sm:$0xf]
        %v754 = vld [vmem:[#allocation9 + $0x64] sm:$0xf]
        %v755 = vld [vmem:[#allocation9 + $0x68] sm:$0xf]
        %v756 = vld [vmem:[#allocation9 + $0x6c] sm:$0xf]
        %v757 = vld [vmem:[#allocation9 + $0x70] sm:$0xf]
        %v758 = vld [vmem:[#allocation9 + $0x74] sm:$0xf]
        %v759 = vld [vmem:[#allocation9 + $0x78] sm:$0xf]
        %v760 = vld [vmem:[#allocation9 + $0x7c] sm:$0xf]
        %v761 = vld [vmem:[#allocation9 + $0x80] sm:$0xf]
        %v762 = vld [vmem:[#allocation9 + $0x84] sm:$0xf]
        %v763 = vld [vmem:[#allocation9 + $0x88] sm:$0xf]
        %v764 = vld [vmem:[#allocation9 + $0x8c] sm:$0xf]
        %v765 = vld [vmem:[#allocation9 + $0x90] sm:$0xf]
        %v766 = vld [vmem:[#allocation9 + $0x94] sm:$0xf]
        %v767 = vld [vmem:[#allocation9 + $0x98] sm:$0xf]
        %v768 = vld [vmem:[#allocation9 + $0x9c] sm:$0xf]
        %v769 = vld [vmem:[#allocation9 + $0xa0] sm:$0xf]
        %v770 = vld [vmem:[#allocation9 + $0xa4] sm:$0xf]
        %v771 = vld [vmem:[#allocation9 + $0xa8] sm:$0xf]
        %v772 = vld [vmem:[#allocation9 + $0xac] sm:$0xf]
        %v773 = vld [vmem:[#allocation9 + $0xb0] sm:$0xf]
        %v774 = vld [vmem:[#allocation9 + $0xb4] sm:$0xf]
        %v775 = vld [vmem:[#allocation9 + $0xb8] sm:$0xf]
        %v776 = vld [vmem:[#allocation9 + $0xbc] sm:$0xf]
        %v781 = vunpack.c.l.b16 %v725
        %v782 = vunpack.c.h.b16 %v725
        %v783 = vunpack.c.l.b16 %v726
        %v784 = vunpack.c.l.b16 %v727
        %v785 = vunpack.c.h.b16 %v727
        %v786 = vunpack.c.l.b16 %v728
        %v787 = vpack.c.b16 %v784, %v781
        %v788 = vpack.c.b16 %v785, %v782
        %v789 = vpack.c.b16 %v786, %v783
        %v841 = vunpack.c.l.b16 %v729
        %v842 = vunpack.c.l.b16 %v730
        %v843 = vunpack.c.l.b16 %v731
        %v844 = vunpack.c.l.b16 %v732
        %v845 = vunpack.c.l.b16 %v733
        %v846 = vunpack.c.l.b16 %v734
        %v847 = vunpack.c.l.b16 %v735
        %v848 = vunpack.c.l.b16 %v736
        %v849 = vunpack.c.l.b16 %v737
        %v850 = vunpack.c.l.b16 %v738
        %v851 = vunpack.c.l.b16 %v739
        %v852 = vunpack.c.l.b16 %v740
        %v853 = vunpack.c.l.b16 %v741
        %v854 = vunpack.c.l.b16 %v742
        %v855 = vunpack.c.l.b16 %v743
        %v856 = vunpack.c.l.b16 %v744
        %v857 = vunpack.c.l.b16 %v745
        %v858 = vunpack.c.l.b16 %v746
        %v859 = vunpack.c.l.b16 %v747
        %v860 = vunpack.c.l.b16 %v748
        %v861 = vunpack.c.l.b16 %v749
        %v862 = vunpack.c.l.b16 %v750
        %v863 = vunpack.c.l.b16 %v751
        %v864 = vunpack.c.l.b16 %v752
        %v865 = vunpack.c.l.b16 %v753
        %v866 = vunpack.c.l.b16 %v754
        %v867 = vunpack.c.l.b16 %v755
        %v868 = vunpack.c.l.b16 %v756
        %v869 = vunpack.c.l.b16 %v757
        %v870 = vunpack.c.l.b16 %v758
        %v871 = vunpack.c.l.b16 %v759
        %v872 = vunpack.c.l.b16 %v760
        %v873 = vunpack.c.l.b16 %v761
        %v874 = vunpack.c.l.b16 %v762
        %v875 = vunpack.c.l.b16 %v763
        %v876 = vunpack.c.l.b16 %v764
        %v877 = vunpack.c.l.b16 %v765
        %v878 = vunpack.c.l.b16 %v766
        %v879 = vunpack.c.l.b16 %v767
        %v880 = vunpack.c.l.b16 %v768
        %v881 = vunpack.c.l.b16 %v769
        %v882 = vunpack.c.l.b16 %v770
        %v883 = vunpack.c.l.b16 %v771
        %v884 = vunpack.c.l.b16 %v772
        %v885 = vunpack.c.l.b16 %v773
        %v886 = vunpack.c.l.b16 %v774
        %v887 = vunpack.c.l.b16 %v775
        %v888 = vunpack.c.l.b16 %v776
        %v889 = vpack.c.b16 %v842, %v841
        %v890 = vpack.c.b16 %v844, %v843
        %v891 = vpack.c.b16 %v846, %v845
        %v892 = vpack.c.b16 %v848, %v847
        %v893 = vpack.c.b16 %v850, %v849
        %v894 = vpack.c.b16 %v852, %v851
        %v895 = vpack.c.b16 %v854, %v853
        %v896 = vpack.c.b16 %v856, %v855
        %v897 = vpack.c.b16 %v858, %v857
        %v898 = vpack.c.b16 %v860, %v859
        %v899 = vpack.c.b16 %v862, %v861
        %v900 = vpack.c.b16 %v864, %v863
        %v901 = vpack.c.b16 %v866, %v865
        %v902 = vpack.c.b16 %v868, %v867
        %v903 = vpack.c.b16 %v870, %v869
        %v904 = vpack.c.b16 %v872, %v871
        %v905 = vpack.c.b16 %v874, %v873
        %v906 = vpack.c.b16 %v876, %v875
        %v907 = vpack.c.b16 %v878, %v877
        %v908 = vpack.c.b16 %v880, %v879
        %v909 = vpack.c.b16 %v882, %v881
        %v910 = vpack.c.b16 %v884, %v883
        %v911 = vpack.c.b16 %v886, %v885
        %v912 = vpack.c.b16 %v888, %v887
        %937 = vmatpush.bf16.msra.mxu0 %v896
        %938 = vmatpush.bf16.msra.mxu0 %v895
        %939 = vmatpush.bf16.msra.mxu0 %v894
        %940 = vmatpush.bf16.msra.mxu0 %v893
        %941 = vmatpush.bf16.msra.mxu0 %v892
        %942 = vmatpush.bf16.msra.mxu0 %v891
        %943 = vmatpush.bf16.msra.mxu0 %v890
        %944 = vmatpush.bf16.msra.mxu0 %v889
        %945 = vmatmul.bf16.gmra.mxu0 %v787
        %v946 = vpop.f32.mrf.mxu0
        %v947 = vadd.f32 0.0, %v946
        %v948 = vpop.f32.mrf.mxu0
        %v949 = vadd.f32 0.0, %v948
        %950 = vdwg.mxu0
        %951 = vmatpush.bf16.msra.mxu0 %v904
        %952 = vmatpush.bf16.msra.mxu0 %v903
        %953 = vmatpush.bf16.msra.mxu0 %v902
        %954 = vmatpush.bf16.msra.mxu0 %v901
        %955 = vmatpush.bf16.msra.mxu0 %v900
        %956 = vmatpush.bf16.msra.mxu0 %v899
        %957 = vmatpush.bf16.msra.mxu0 %v898
        %958 = vmatpush.bf16.msra.mxu0 %v897
        %959 = vmatmul.bf16.gmra.mxu0 %v788
        %v960 = vpop.f32.mrf.mxu0
        %v961 = vadd.f32 %v947, %v960
        %v962 = vpop.f32.mrf.mxu0
        %v963 = vadd.f32 %v949, %v962
        %964 = vdwg.mxu0
        %965 = vmatpush.bf16.msra.mxu0 %v912
        %966 = vmatpush.bf16.msra.mxu0 %v911
        %967 = vmatpush.bf16.msra.mxu0 %v910
        %968 = vmatpush.bf16.msra.mxu0 %v909
        %969 = vmatpush.bf16.msra.mxu0 %v908
        %970 = vmatpush.bf16.msra.mxu0 %v907
        %971 = vmatpush.bf16.msra.mxu0 %v906
        %972 = vmatpush.bf16.msra.mxu0 %v905
        %973 = vmatmul.bf16.gmra.mxu0 %v789
        %v974 = vpop.f32.mrf.mxu0
        %v975 = vadd.f32 %v961, %v974
        %v976 = vpop.f32.mrf.mxu0
        %v977 = vadd.f32 %v963, %v976
        %978 = vdwg.mxu0
        %v979 = vmax.f32 %v975, 0.0
        %v980 = vmax.f32 %v977, 0.0
        %v981 = vpack.c.bf16 %v979, %v979
        %v982 = vpack.c.bf16 %v980, %v980
        %983 = vst [vmem:[#allocation2] sm:$0xf] %v981
        %984 = vst [vmem:[#allocation2 + $0xc] sm:$0xf] %v982
        %v987 = vunpack.c.l.b16 %v981
        %v988 = vunpack.c.l.b16 %v982
        %v989 = vpack.c.b16 %v988, %v987
        %991 = vmatpush.bf16.msra.mxu0 0
        %992 = vmatpush.bf16.msra.mxu0 0
        %993 = vmatpush.bf16.msra.mxu0 0
        %994 = vmatpush.bf16.msra.mxu0 0
        %995 = vmatpush.bf16.msra.mxu0 0
        %996 = vmatpush.bf16.msra.mxu0 0
        %997 = vmatpush.bf16.msra.mxu0 0
        %998 = vmatpush.bf16.msra.mxu0 %v989
        %999 = vmatmul.bf16.gmra.mxu0 %v677
        %v1000 = vpop.f32.mrf.mxu0
        %v1001 = vadd.f32 0.0, %v1000
        %v1002 = vpop.f32.mrf.mxu0
        %v1003 = vadd.f32 0.0, %v1002
        %1004 = vdwg.mxu0
        %v1005 = vpack.c.bf16 %v1001, %v1001
        %v1006 = vpack.c.bf16 %v1003, %v1003
        %1007 = vst [vmem:[#allocation2 + $0x4] sm:$0xf] %v1005
        %1008 = vst [vmem:[#allocation2 + $0x10] sm:$0xf] %v1006
        %v1011 = vunpack.c.l.b16 %v1005
        %v1012 = vunpack.c.l.b16 %v1006
        %v1013 = vpack.c.b16 %v1012, %v1011
        %1015 = vmatpush.bf16.msra.mxu0 0
        %1016 = vmatpush.bf16.msra.mxu0 0
        %1017 = vmatpush.bf16.msra.mxu0 0
        %1018 = vmatpush.bf16.msra.mxu0 0
        %1019 = vmatpush.bf16.msra.mxu0 0
        %1020 = vmatpush.bf16.msra.mxu0 0
        %1021 = vmatpush.bf16.msra.mxu0 0
        %1022 = vmatpush.bf16.msra.mxu0 %v1013
        %1023 = vmatmul.bf16.gmra.mxu0 %v677
        %v1024 = vpop.f32.mrf.mxu0
        %v1025 = vadd.f32 0.0, %v1024
        %v1026 = vpop.f32.mrf.mxu0
        %v1027 = vadd.f32 0.0, %v1026
        %1028 = vdwg.mxu0
        %v1029 = vmul.f32 %v1025, 2.0
        %v1030 = vmul.f32 %v1027, 2.0
        %v1031 = vsub.f32 %v1029, %v979
        %v1032 = vsub.f32 %v1030, %v980
        %v1033 = vpack.c.bf16 %v1031, %v1031
        %v1034 = vpack.c.bf16 %v1032, %v1032
        %1035 = vst [vmem:[#allocation2 + $0x8] sm:$0xf] %v1033
        %1036 = vst [vmem:[#allocation2 + $0x14] sm:$0xf] %v1034
        %v1037 = vld [vmem:[#allocation2] sm:$0xff]
        %v1038 = vld [vmem:[#allocation2 + $0x8] sm:$0xf]
        %v1039 = vld [vmem:[#allocation2 + $0xc] sm:$0xff]
        %v1040 = vld [vmem:[#allocation2 + $0x14] sm:$0xf]
        %v1041 = vld [vmem:[#allocation11] sm:$0xf]
        %v1042 = vld [vmem:[#allocation11 + $0x4] sm:$0xf]
        %v1043 = vld [vmem:[#allocation11 + $0x8] sm:$0xf]
        %v1044 = vld [vmem:[#allocation11 + $0xc] sm:$0xf]
        %v1045 = vld [vmem:[#allocation11 + $0x10] sm:$0xf]
        %v1046 = vld [vmem:[#allocation11 + $0x14] sm:$0xf]
        %v1047 = vld [vmem:[#allocation11 + $0x18] sm:$0xf]
        %v1048 = vld [vmem:[#allocation11 + $0x1c] sm:$0xf]
        %v1049 = vld [vmem:[#allocation11 + $0x20] sm:$0xf]
        %v1050 = vld [vmem:[#allocation11 + $0x24] sm:$0xf]
        %v1051 = vld [vmem:[#allocation11 + $0x28] sm:$0xf]
        %v1052 = vld [vmem:[#allocation11 + $0x2c] sm:$0xf]
        %v1053 = vld [vmem:[#allocation11 + $0x30] sm:$0xf]
        %v1054 = vld [vmem:[#allocation11 + $0x34] sm:$0xf]
        %v1055 = vld [vmem:[#allocation11 + $0x38] sm:$0xf]
        %v1056 = vld [vmem:[#allocation11 + $0x3c] sm:$0xf]
        %v1057 = vld [vmem:[#allocation11 + $0x40] sm:$0xf]
        %v1058 = vld [vmem:[#allocation11 + $0x44] sm:$0xf]
        %v1059 = vld [vmem:[#allocation11 + $0x48] sm:$0xf]
        %v1060 = vld [vmem:[#allocation11 + $0x4c] sm:$0xf]
        %v1061 = vld [vmem:[#allocation11 + $0x50] sm:$0xf]
        %v1062 = vld [vmem:[#allocation11 + $0x54] sm:$0xf]
        %v1063 = vld [vmem:[#allocation11 + $0x58] sm:$0xf]
        %v1064 = vld [vmem:[#allocation11 + $0x5c] sm:$0xf]
        %v1065 = vld [vmem:[#allocation11 + $0x60] sm:$0xf]
        %v1066 = vld [vmem:[#allocation11 + $0x64] sm:$0xf]
        %v1067 = vld [vmem:[#allocation11 + $0x68] sm:$0xf]
        %v1068 = vld [vmem:[#allocation11 + $0x6c] sm:$0xf]
        %v1069 = vld [vmem:[#allocation11 + $0x70] sm:$0xf]
        %v1070 = vld [vmem:[#allocation11 + $0x74] sm:$0xf]
        %v1071 = vld [vmem:[#allocation11 + $0x78] sm:$0xf]
        %v1072 = vld [vmem:[#allocation11 + $0x7c] sm:$0xf]
        %v1073 = vld [vmem:[#allocation11 + $0x80] sm:$0xf]
        %v1074 = vld [vmem:[#allocation11 + $0x84] sm:$0xf]
        %v1075 = vld [vmem:[#allocation11 + $0x88] sm:$0xf]
        %v1076 = vld [vmem:[#allocation11 + $0x8c] sm:$0xf]
        %v1077 = vld [vmem:[#allocation11 + $0x90] sm:$0xf]
        %v1078 = vld [vmem:[#allocation11 + $0x94] sm:$0xf]
        %v1079 = vld [vmem:[#allocation11 + $0x98] sm:$0xf]
        %v1080 = vld [vmem:[#allocation11 + $0x9c] sm:$0xf]
        %v1081 = vld [vmem:[#allocation11 + $0xa0] sm:$0xf]
        %v1082 = vld [vmem:[#allocation11 + $0xa4] sm:$0xf]
        %v1083 = vld [vmem:[#allocation11 + $0xa8] sm:$0xf]
        %v1084 = vld [vmem:[#allocation11 + $0xac] sm:$0xf]
        %v1085 = vld [vmem:[#allocation11 + $0xb0] sm:$0xf]
        %v1086 = vld [vmem:[#allocation11 + $0xb4] sm:$0xf]
        %v1087 = vld [vmem:[#allocation11 + $0xb8] sm:$0xf]
        %v1088 = vld [vmem:[#allocation11 + $0xbc] sm:$0xf]
        %v1093 = vunpack.c.l.b16 %v1037
        %v1094 = vunpack.c.h.b16 %v1037
        %v1095 = vunpack.c.l.b16 %v1038
        %v1096 = vunpack.c.l.b16 %v1039
        %v1097 = vunpack.c.h.b16 %v1039
        %v1098 = vunpack.c.l.b16 %v1040
        %v1099 = vpack.c.b16 %v1096, %v1093
        %v1100 = vpack.c.b16 %v1097, %v1094
        %v1101 = vpack.c.b16 %v1098, %v1095
        %v1153 = vunpack.c.l.b16 %v1041
        %v1154 = vunpack.c.l.b16 %v1042
        %v1155 = vunpack.c.l.b16 %v1043
        %v1156 = vunpack.c.l.b16 %v1044
        %v1157 = vunpack.c.l.b16 %v1045
        %v1158 = vunpack.c.l.b16 %v1046
        %v1159 = vunpack.c.l.b16 %v1047
        %v1160 = vunpack.c.l.b16 %v1048
        %v1161 = vunpack.c.l.b16 %v1049
        %v1162 = vunpack.c.l.b16 %v1050
        %v1163 = vunpack.c.l.b16 %v1051
        %v1164 = vunpack.c.l.b16 %v1052
        %v1165 = vunpack.c.l.b16 %v1053
        %v1166 = vunpack.c.l.b16 %v1054
        %v1167 = vunpack.c.l.b16 %v1055
        %v1168 = vunpack.c.l.b16 %v1056
        %v1169 = vunpack.c.l.b16 %v1057
        %v1170 = vunpack.c.l.b16 %v1058
        %v1171 = vunpack.c.l.b16 %v1059
        %v1172 = vunpack.c.l.b16 %v1060
        %v1173 = vunpack.c.l.b16 %v1061
        %v1174 = vunpack.c.l.b16 %v1062
        %v1175 = vunpack.c.l.b16 %v1063
        %v1176 = vunpack.c.l.b16 %v1064
        %v1177 = vunpack.c.l.b16 %v1065
        %v1178 = vunpack.c.l.b16 %v1066
        %v1179 = vunpack.c.l.b16 %v1067
        %v1180 = vunpack.c.l.b16 %v1068
        %v1181 = vunpack.c.l.b16 %v1069
        %v1182 = vunpack.c.l.b16 %v1070
        %v1183 = vunpack.c.l.b16 %v1071
        %v1184 = vunpack.c.l.b16 %v1072
        %v1185 = vunpack.c.l.b16 %v1073
        %v1186 = vunpack.c.l.b16 %v1074
        %v1187 = vunpack.c.l.b16 %v1075
        %v1188 = vunpack.c.l.b16 %v1076
        %v1189 = vunpack.c.l.b16 %v1077
        %v1190 = vunpack.c.l.b16 %v1078
        %v1191 = vunpack.c.l.b16 %v1079
        %v1192 = vunpack.c.l.b16 %v1080
        %v1193 = vunpack.c.l.b16 %v1081
        %v1194 = vunpack.c.l.b16 %v1082
        %v1195 = vunpack.c.l.b16 %v1083
        %v1196 = vunpack.c.l.b16 %v1084
        %v1197 = vunpack.c.l.b16 %v1085
        %v1198 = vunpack.c.l.b16 %v1086
        %v1199 = vunpack.c.l.b16 %v1087
        %v1200 = vunpack.c.l.b16 %v1088
        %v1201 = vpack.c.b16 %v1154, %v1153
        %v1202 = vpack.c.b16 %v1156, %v1155
        %v1203 = vpack.c.b16 %v1158, %v1157
        %v1204 = vpack.c.b16 %v1160, %v1159
        %v1205 = vpack.c.b16 %v1162, %v1161
        %v1206 = vpack.c.b16 %v1164, %v1163
        %v1207 = vpack.c.b16 %v1166, %v1165
        %v1208 = vpack.c.b16 %v1168, %v1167
        %v1209 = vpack.c.b16 %v1170, %v1169
        %v1210 = vpack.c.b16 %v1172, %v1171
        %v1211 = vpack.c.b16 %v1174, %v1173
        %v1212 = vpack.c.b16 %v1176, %v1175
        %v1213 = vpack.c.b16 %v1178, %v1177
        %v1214 = vpack.c.b16 %v1180, %v1179
        %v1215 = vpack.c.b16 %v1182, %v1181
        %v1216 = vpack.c.b16 %v1184, %v1183
        %v1217 = vpack.c.b16 %v1186, %v1185
        %v1218 = vpack.c.b16 %v1188, %v1187
        %v1219 = vpack.c.b16 %v1190, %v1189
        %v1220 = vpack.c.b16 %v1192, %v1191
        %v1221 = vpack.c.b16 %v1194, %v1193
        %v1222 = vpack.c.b16 %v1196, %v1195
        %v1223 = vpack.c.b16 %v1198, %v1197
        %v1224 = vpack.c.b16 %v1200, %v1199
        %1249 = vmatpush.bf16.msra.mxu0 %v1208
        %1250 = vmatpush.bf16.msra.mxu0 %v1207
        %1251 = vmatpush.bf16.msra.mxu0 %v1206
        %1252 = vmatpush.bf16.msra.mxu0 %v1205
        %1253 = vmatpush.bf16.msra.mxu0 %v1204
        %1254 = vmatpush.bf16.msra.mxu0 %v1203
        %1255 = vmatpush.bf16.msra.mxu0 %v1202
        %1256 = vmatpush.bf16.msra.mxu0 %v1201
        %1257 = vmatmul.bf16.gmra.mxu0 %v1099
        %v1258 = vpop.f32.mrf.mxu0
        %v1259 = vadd.f32 0.0, %v1258
        %v1260 = vpop.f32.mrf.mxu0
        %v1261 = vadd.f32 0.0, %v1260
        %1262 = vdwg.mxu0
        %1263 = vmatpush.bf16.msra.mxu0 %v1216
        %1264 = vmatpush.bf16.msra.mxu0 %v1215
        %1265 = vmatpush.bf16.msra.mxu0 %v1214
        %1266 = vmatpush.bf16.msra.mxu0 %v1213
        %1267 = vmatpush.bf16.msra.mxu0 %v1212
        %1268 = vmatpush.bf16.msra.mxu0 %v1211
        %1269 = vmatpush.bf16.msra.mxu0 %v1210
        %1270 = vmatpush.bf16.msra.mxu0 %v1209
        %1271 = vmatmul.bf16.gmra.mxu0 %v1100
        %v1272 = vpop.f32.mrf.mxu0
        %v1273 = vadd.f32 %v1259, %v1272
        %v1274 = vpop.f32.mrf.mxu0
        %v1275 = vadd.f32 %v1261, %v1274
        %1276 = vdwg.mxu0
        %1277 = vmatpush.bf16.msra.mxu0 %v1224
        %1278 = vmatpush.bf16.msra.mxu0 %v1223
        %1279 = vmatpush.bf16.msra.mxu0 %v1222
        %1280 = vmatpush.bf16.msra.mxu0 %v1221
        %1281 = vmatpush.bf16.msra.mxu0 %v1220
        %1282 = vmatpush.bf16.msra.mxu0 %v1219
        %1283 = vmatpush.bf16.msra.mxu0 %v1218
        %1284 = vmatpush.bf16.msra.mxu0 %v1217
        %1285 = vmatmul.bf16.gmra.mxu0 %v1101
        %v1286 = vpop.f32.mrf.mxu0
        %v1287 = vadd.f32 %v1273, %v1286
        %v1288 = vpop.f32.mrf.mxu0
        %v1289 = vadd.f32 %v1275, %v1288
        %1290 = vdwg.mxu0
        %v1291 = vmax.f32 %v1287, 0.0
        %v1292 = vmax.f32 %v1289, 0.0
        %v1293 = vpack.c.bf16 %v1291, %v1291
        %v1294 = vpack.c.bf16 %v1292, %v1292
        %1295 = vst [vmem:[#allocation2] sm:$0xf] %v1293
        %1296 = vst [vmem:[#allocation2 + $0xc] sm:$0xf] %v1294
        %v1299 = vunpack.c.l.b16 %v1293
        %v1300 = vunpack.c.l.b16 %v1294
        %v1301 = vpack.c.b16 %v1300, %v1299
        %1303 = vmatpush.bf16.msra.mxu0 0
        %1304 = vmatpush.bf16.msra.mxu0 0
        %1305 = vmatpush.bf16.msra.mxu0 0
        %1306 = vmatpush.bf16.msra.mxu0 0
        %1307 = vmatpush.bf16.msra.mxu0 0
        %1308 = vmatpush.bf16.msra.mxu0 0
        %1309 = vmatpush.bf16.msra.mxu0 0
        %1310 = vmatpush.bf16.msra.mxu0 %v1301
        %1311 = vmatmul.bf16.gmra.mxu0 %v677
        %v1312 = vpop.f32.mrf.mxu0
        %v1313 = vadd.f32 0.0, %v1312
        %v1314 = vpop.f32.mrf.mxu0
        %v1315 = vadd.f32 0.0, %v1314
        %1316 = vdwg.mxu0
        %v1317 = vpack.c.bf16 %v1313, %v1313
        %v1318 = vpack.c.bf16 %v1315, %v1315
        %1319 = vst [vmem:[#allocation2 + $0x4] sm:$0xf] %v1317
        %1320 = vst [vmem:[#allocation2 + $0x10] sm:$0xf] %v1318
        %v1323 = vunpack.c.l.b16 %v1317
        %v1324 = vunpack.c.l.b16 %v1318
        %v1325 = vpack.c.b16 %v1324, %v1323
        %1327 = vmatpush.bf16.msra.mxu0 0
        %1328 = vmatpush.bf16.msra.mxu0 0
        %1329 = vmatpush.bf16.msra.mxu0 0
        %1330 = vmatpush.bf16.msra.mxu0 0
        %1331 = vmatpush.bf16.msra.mxu0 0
        %1332 = vmatpush.bf16.msra.mxu0 0
        %1333 = vmatpush.bf16.msra.mxu0 0
        %1334 = vmatpush.bf16.msra.mxu0 %v1325
        %1335 = vmatmul.bf16.gmra.mxu0 %v677
        %v1336 = vpop.f32.mrf.mxu0
        %v1337 = vadd.f32 0.0, %v1336
        %v1338 = vpop.f32.mrf.mxu0
        %v1339 = vadd.f32 0.0, %v1338
        %1340 = vdwg.mxu0
        %v1341 = vmul.f32 %v1337, 2.0
        %v1342 = vmul.f32 %v1339, 2.0
        %v1343 = vsub.f32 %v1341, %v1291
        %v1344 = vsub.f32 %v1342, %v1292
        %v1345 = vpack.c.bf16 %v1343, %v1343
        %v1346 = vpack.c.bf16 %v1344, %v1344
        %1347 = vst [vmem:[#allocation2 + $0x8] sm:$0xf] %v1345
        %1348 = vst [vmem:[#allocation2 + $0x14] sm:$0xf] %v1346
        %v1349 = vld [vmem:[#allocation2] sm:$0xff]
        %v1350 = vld [vmem:[#allocation2 + $0x8] sm:$0xf]
        %v1351 = vld [vmem:[#allocation2 + $0xc] sm:$0xff]
        %v1352 = vld [vmem:[#allocation2 + $0x14] sm:$0xf]
        %v1353 = vld [vmem:[#allocation12] sm:$0xf]
        %v1354 = vld [vmem:[#allocation12 + $0x4] sm:$0xf]
        %v1355 = vld [vmem:[#allocation12 + $0x8] sm:$0xf]
        %v1356 = vld [vmem:[#allocation12 + $0xc] sm:$0xf]
        %v1357 = vld [vmem:[#allocation12 + $0x10] sm:$0xf]
        %v1358 = vld [vmem:[#allocation12 + $0x14] sm:$0xf]
        %v1359 = vld [vmem:[#allocation12 + $0x18] sm:$0xf]
        %v1360 = vld [vmem:[#allocation12 + $0x1c] sm:$0xf]
        %v1361 = vld [vmem:[#allocation12 + $0x20] sm:$0xf]
        %v1362 = vld [vmem:[#allocation12 + $0x24] sm:$0xf]
        %v1363 = vld [vmem:[#allocation12 + $0x28] sm:$0xf]
        %v1364 = vld [vmem:[#allocation12 + $0x2c] sm:$0xf]
        %v1365 = vld [vmem:[#allocation12 + $0x30] sm:$0xf]
        %v1366 = vld [vmem:[#allocation12 + $0x34] sm:$0xf]
        %v1367 = vld [vmem:[#allocation12 + $0x38] sm:$0xf]
        %v1368 = vld [vmem:[#allocation12 + $0x3c] sm:$0xf]
        %v1369 = vld [vmem:[#allocation12 + $0x40] sm:$0xf]
        %v1370 = vld [vmem:[#allocation12 + $0x44] sm:$0xf]
        %v1371 = vld [vmem:[#allocation12 + $0x48] sm:$0xf]
        %v1372 = vld [vmem:[#allocation12 + $0x4c] sm:$0xf]
        %v1373 = vld [vmem:[#allocation12 + $0x50] sm:$0xf]
        %v1374 = vld [vmem:[#allocation12 + $0x54] sm:$0xf]
        %v1375 = vld [vmem:[#allocation12 + $0x58] sm:$0xf]
        %v1376 = vld [vmem:[#allocation12 + $0x5c] sm:$0xf]
        %v1377 = vld [vmem:[#allocation12 + $0x60] sm:$0xf]
        %v1378 = vld [vmem:[#allocation12 + $0x64] sm:$0xf]
        %v1379 = vld [vmem:[#allocation12 + $0x68] sm:$0xf]
        %v1380 = vld [vmem:[#allocation12 + $0x6c] sm:$0xf]
        %v1381 = vld [vmem:[#allocation12 + $0x70] sm:$0xf]
        %v1382 = vld [vmem:[#allocation12 + $0x74] sm:$0xf]
        %v1383 = vld [vmem:[#allocation12 + $0x78] sm:$0xf]
        %v1384 = vld [vmem:[#allocation12 + $0x7c] sm:$0xf]
        %v1385 = vld [vmem:[#allocation12 + $0x80] sm:$0xf]
        %v1386 = vld [vmem:[#allocation12 + $0x84] sm:$0xf]
        %v1387 = vld [vmem:[#allocation12 + $0x88] sm:$0xf]
        %v1388 = vld [vmem:[#allocation12 + $0x8c] sm:$0xf]
        %v1389 = vld [vmem:[#allocation12 + $0x90] sm:$0xf]
        %v1390 = vld [vmem:[#allocation12 + $0x94] sm:$0xf]
        %v1391 = vld [vmem:[#allocation12 + $0x98] sm:$0xf]
        %v1392 = vld [vmem:[#allocation12 + $0x9c] sm:$0xf]
        %v1393 = vld [vmem:[#allocation12 + $0xa0] sm:$0xf]
        %v1394 = vld [vmem:[#allocation12 + $0xa4] sm:$0xf]
        %v1395 = vld [vmem:[#allocation12 + $0xa8] sm:$0xf]
        %v1396 = vld [vmem:[#allocation12 + $0xac] sm:$0xf]
        %v1397 = vld [vmem:[#allocation12 + $0xb0] sm:$0xf]
        %v1398 = vld [vmem:[#allocation12 + $0xb4] sm:$0xf]
        %v1399 = vld [vmem:[#allocation12 + $0xb8] sm:$0xf]
        %v1400 = vld [vmem:[#allocation12 + $0xbc] sm:$0xf]
        %v1405 = vunpack.c.l.b16 %v1349
        %v1406 = vunpack.c.h.b16 %v1349
        %v1407 = vunpack.c.l.b16 %v1350
        %v1408 = vunpack.c.l.b16 %v1351
        %v1409 = vunpack.c.h.b16 %v1351
        %v1410 = vunpack.c.l.b16 %v1352
        %v1411 = vpack.c.b16 %v1408, %v1405
        %v1412 = vpack.c.b16 %v1409, %v1406
        %v1413 = vpack.c.b16 %v1410, %v1407
        %v1465 = vunpack.c.l.b16 %v1353
        %v1466 = vunpack.c.l.b16 %v1354
        %v1467 = vunpack.c.l.b16 %v1355
        %v1468 = vunpack.c.l.b16 %v1356
        %v1469 = vunpack.c.l.b16 %v1357
        %v1470 = vunpack.c.l.b16 %v1358
        %v1471 = vunpack.c.l.b16 %v1359
        %v1472 = vunpack.c.l.b16 %v1360
        %v1473 = vunpack.c.l.b16 %v1361
        %v1474 = vunpack.c.l.b16 %v1362
        %v1475 = vunpack.c.l.b16 %v1363
        %v1476 = vunpack.c.l.b16 %v1364
        %v1477 = vunpack.c.l.b16 %v1365
        %v1478 = vunpack.c.l.b16 %v1366
        %v1479 = vunpack.c.l.b16 %v1367
        %v1480 = vunpack.c.l.b16 %v1368
        %v1481 = vunpack.c.l.b16 %v1369
        %v1482 = vunpack.c.l.b16 %v1370
        %v1483 = vunpack.c.l.b16 %v1371
        %v1484 = vunpack.c.l.b16 %v1372
        %v1485 = vunpack.c.l.b16 %v1373
        %v1486 = vunpack.c.l.b16 %v1374
        %v1487 = vunpack.c.l.b16 %v1375
        %v1488 = vunpack.c.l.b16 %v1376
        %v1489 = vunpack.c.l.b16 %v1377
        %v1490 = vunpack.c.l.b16 %v1378
        %v1491 = vunpack.c.l.b16 %v1379
        %v1492 = vunpack.c.l.b16 %v1380
        %v1493 = vunpack.c.l.b16 %v1381
        %v1494 = vunpack.c.l.b16 %v1382
        %v1495 = vunpack.c.l.b16 %v1383
        %v1496 = vunpack.c.l.b16 %v1384
        %v1497 = vunpack.c.l.b16 %v1385
        %v1498 = vunpack.c.l.b16 %v1386
        %v1499 = vunpack.c.l.b16 %v1387
        %v1500 = vunpack.c.l.b16 %v1388
        %v1501 = vunpack.c.l.b16 %v1389
        %v1502 = vunpack.c.l.b16 %v1390
        %v1503 = vunpack.c.l.b16 %v1391
        %v1504 = vunpack.c.l.b16 %v1392
        %v1505 = vunpack.c.l.b16 %v1393
        %v1506 = vunpack.c.l.b16 %v1394
        %v1507 = vunpack.c.l.b16 %v1395
        %v1508 = vunpack.c.l.b16 %v1396
        %v1509 = vunpack.c.l.b16 %v1397
        %v1510 = vunpack.c.l.b16 %v1398
        %v1511 = vunpack.c.l.b16 %v1399
        %v1512 = vunpack.c.l.b16 %v1400
        %v1513 = vpack.c.b16 %v1466, %v1465
        %v1514 = vpack.c.b16 %v1468, %v1467
        %v1515 = vpack.c.b16 %v1470, %v1469
        %v1516 = vpack.c.b16 %v1472, %v1471
        %v1517 = vpack.c.b16 %v1474, %v1473
        %v1518 = vpack.c.b16 %v1476, %v1475
        %v1519 = vpack.c.b16 %v1478, %v1477
        %v1520 = vpack.c.b16 %v1480, %v1479
        %v1521 = vpack.c.b16 %v1482, %v1481
        %v1522 = vpack.c.b16 %v1484, %v1483
        %v1523 = vpack.c.b16 %v1486, %v1485
        %v1524 = vpack.c.b16 %v1488, %v1487
        %v1525 = vpack.c.b16 %v1490, %v1489
        %v1526 = vpack.c.b16 %v1492, %v1491
        %v1527 = vpack.c.b16 %v1494, %v1493
        %v1528 = vpack.c.b16 %v1496, %v1495
        %v1529 = vpack.c.b16 %v1498, %v1497
        %v1530 = vpack.c.b16 %v1500, %v1499
        %v1531 = vpack.c.b16 %v1502, %v1501
        %v1532 = vpack.c.b16 %v1504, %v1503
        %v1533 = vpack.c.b16 %v1506, %v1505
        %v1534 = vpack.c.b16 %v1508, %v1507
        %v1535 = vpack.c.b16 %v1510, %v1509
        %v1536 = vpack.c.b16 %v1512, %v1511
        %1561 = vmatpush.bf16.msra.mxu0 %v1520
        %1562 = vmatpush.bf16.msra.mxu0 %v1519
        %1563 = vmatpush.bf16.msra.mxu0 %v1518
        %1564 = vmatpush.bf16.msra.mxu0 %v1517
        %1565 = vmatpush.bf16.msra.mxu0 %v1516
        %1566 = vmatpush.bf16.msra.mxu0 %v1515
        %1567 = vmatpush.bf16.msra.mxu0 %v1514
        %1568 = vmatpush.bf16.msra.mxu0 %v1513
        %1569 = vmatmul.bf16.gmra.mxu0 %v1411
        %v1570 = vpop.f32.mrf.mxu0
        %v1571 = vadd.f32 0.0, %v1570
        %v1572 = vpop.f32.mrf.mxu0
        %v1573 = vadd.f32 0.0, %v1572
        %1574 = vdwg.mxu0
        %1575 = vmatpush.bf16.msra.mxu0 %v1528
        %1576 = vmatpush.bf16.msra.mxu0 %v1527
        %1577 = vmatpush.bf16.msra.mxu0 %v1526
        %1578 = vmatpush.bf16.msra.mxu0 %v1525
        %1579 = vmatpush.bf16.msra.mxu0 %v1524
        %1580 = vmatpush.bf16.msra.mxu0 %v1523
        %1581 = vmatpush.bf16.msra.mxu0 %v1522
        %1582 = vmatpush.bf16.msra.mxu0 %v1521
        %1583 = vmatmul.bf16.gmra.mxu0 %v1412
        %v1584 = vpop.f32.mrf.mxu0
        %v1585 = vadd.f32 %v1571, %v1584
        %v1586 = vpop.f32.mrf.mxu0
        %v1587 = vadd.f32 %v1573, %v1586
        %1588 = vdwg.mxu0
        %1589 = vmatpush.bf16.msra.mxu0 %v1536
        %1590 = vmatpush.bf16.msra.mxu0 %v1535
        %1591 = vmatpush.bf16.msra.mxu0 %v1534
        %1592 = vmatpush.bf16.msra.mxu0 %v1533
        %1593 = vmatpush.bf16.msra.mxu0 %v1532
        %1594 = vmatpush.bf16.msra.mxu0 %v1531
        %1595 = vmatpush.bf16.msra.mxu0 %v1530
        %1596 = vmatpush.bf16.msra.mxu0 %v1529
        %1597 = vmatmul.bf16.gmra.mxu0 %v1413
        %v1598 = vpop.f32.mrf.mxu0
        %v1599 = vadd.f32 %v1585, %v1598
        %v1600 = vpop.f32.mrf.mxu0
        %v1601 = vadd.f32 %v1587, %v1600
        %1602 = vdwg.mxu0
        %v1603 = vmax.f32 %v1599, 0.0
        %v1604 = vmax.f32 %v1601, 0.0
        %v1605 = vpack.c.bf16 %v1603, %v1603
        %v1606 = vpack.c.bf16 %v1604, %v1604
        %1607 = vst [vmem:[#allocation2] sm:$0xf] %v1605
        %1608 = vst [vmem:[#allocation2 + $0xc] sm:$0xf] %v1606
        %v1611 = vunpack.c.l.b16 %v1605
        %v1612 = vunpack.c.l.b16 %v1606
        %v1613 = vpack.c.b16 %v1612, %v1611
        %1615 = vmatpush.bf16.msra.mxu0 0
        %1616 = vmatpush.bf16.msra.mxu0 0
        %1617 = vmatpush.bf16.msra.mxu0 0
        %1618 = vmatpush.bf16.msra.mxu0 0
        %1619 = vmatpush.bf16.msra.mxu0 0
        %1620 = vmatpush.bf16.msra.mxu0 0
        %1621 = vmatpush.bf16.msra.mxu0 0
        %1622 = vmatpush.bf16.msra.mxu0 %v1613
        %1623 = vmatmul.bf16.gmra.mxu0 %v677
        %v1624 = vpop.f32.mrf.mxu0
        %v1625 = vadd.f32 0.0, %v1624
        %v1626 = vpop.f32.mrf.mxu0
        %v1627 = vadd.f32 0.0, %v1626
        %1628 = vdwg.mxu0
        %v1629 = vpack.c.bf16 %v1625, %v1625
        %v1630 = vpack.c.bf16 %v1627, %v1627
        %1631 = vst [vmem:[#allocation2 + $0x4] sm:$0xf] %v1629
        %1632 = vst [vmem:[#allocation2 + $0x10] sm:$0xf] %v1630
        %v1635 = vunpack.c.l.b16 %v1629
        %v1636 = vunpack.c.l.b16 %v1630
        %v1637 = vpack.c.b16 %v1636, %v1635
        %1639 = vmatpush.bf16.msra.mxu0 0
        %1640 = vmatpush.bf16.msra.mxu0 0
        %1641 = vmatpush.bf16.msra.mxu0 0
        %1642 = vmatpush.bf16.msra.mxu0 0
        %1643 = vmatpush.bf16.msra.mxu0 0
        %1644 = vmatpush.bf16.msra.mxu0 0
        %1645 = vmatpush.bf16.msra.mxu0 0
        %1646 = vmatpush.bf16.msra.mxu0 %v1637
        %1647 = vmatmul.bf16.gmra.mxu0 %v677
        %v1648 = vpop.f32.mrf.mxu0
        %v1649 = vadd.f32 0.0, %v1648
        %v1650 = vpop.f32.mrf.mxu0
        %v1651 = vadd.f32 0.0, %v1650
        %1652 = vdwg.mxu0
        %v1653 = vmul.f32 %v1649, 2.0
        %v1654 = vmul.f32 %v1651, 2.0
        %v1655 = vsub.f32 %v1653, %v1603
        %v1656 = vsub.f32 %v1654, %v1604
        %v1657 = vpack.c.bf16 %v1655, %v1655
        %v1658 = vpack.c.bf16 %v1656, %v1656
        %1659 = vst [vmem:[#allocation2 + $0x8] sm:$0xf] %v1657
        %1660 = vst [vmem:[#allocation2 + $0x14] sm:$0xf] %v1658
        %v1661 = vld [vmem:[#allocation2] sm:$0xff]
        %v1662 = vld [vmem:[#allocation2 + $0x8] sm:$0xf]
        %v1663 = vld [vmem:[#allocation2 + $0xc] sm:$0xff]
        %v1664 = vld [vmem:[#allocation2 + $0x14] sm:$0xf]
        %v1665 = vld [vmem:[#allocation14] sm:$0xf]
        %v1666 = vld [vmem:[#allocation14 + $0x4] sm:$0xf]
        %v1667 = vld [vmem:[#allocation14 + $0x8] sm:$0xf]
        %v1668 = vld [vmem:[#allocation14 + $0xc] sm:$0xf]
        %v1669 = vld [vmem:[#allocation14 + $0x10] sm:$0xf]
        %v1670 = vld [vmem:[#allocation14 + $0x14] sm:$0xf]
        %v1671 = vld [vmem:[#allocation14 + $0x18] sm:$0xf]
        %v1672 = vld [vmem:[#allocation14 + $0x1c] sm:$0xf]
        %v1673 = vld [vmem:[#allocation14 + $0x20] sm:$0xf]
        %v1674 = vld [vmem:[#allocation14 + $0x24] sm:$0xf]
        %v1675 = vld [vmem:[#allocation14 + $0x28] sm:$0xf]
        %v1676 = vld [vmem:[#allocation14 + $0x2c] sm:$0xf]
        %v1677 = vld [vmem:[#allocation14 + $0x30] sm:$0xf]
        %v1678 = vld [vmem:[#allocation14 + $0x34] sm:$0xf]
        %v1679 = vld [vmem:[#allocation14 + $0x38] sm:$0xf]
        %v1680 = vld [vmem:[#allocation14 + $0x3c] sm:$0xf]
        %v1681 = vld [vmem:[#allocation14 + $0x40] sm:$0xf]
        %v1682 = vld [vmem:[#allocation14 + $0x44] sm:$0xf]
        %v1683 = vld [vmem:[#allocation14 + $0x48] sm:$0xf]
        %v1684 = vld [vmem:[#allocation14 + $0x4c] sm:$0xf]
        %v1685 = vld [vmem:[#allocation14 + $0x50] sm:$0xf]
        %v1686 = vld [vmem:[#allocation14 + $0x54] sm:$0xf]
        %v1687 = vld [vmem:[#allocation14 + $0x58] sm:$0xf]
        %v1688 = vld [vmem:[#allocation14 + $0x5c] sm:$0xf]
        %v1689 = vld [vmem:[#allocation14 + $0x60] sm:$0xf]
        %v1690 = vld [vmem:[#allocation14 + $0x64] sm:$0xf]
        %v1691 = vld [vmem:[#allocation14 + $0x68] sm:$0xf]
        %v1692 = vld [vmem:[#allocation14 + $0x6c] sm:$0xf]
        %v1693 = vld [vmem:[#allocation14 + $0x70] sm:$0xf]
        %v1694 = vld [vmem:[#allocation14 + $0x74] sm:$0xf]
        %v1695 = vld [vmem:[#allocation14 + $0x78] sm:$0xf]
        %v1696 = vld [vmem:[#allocation14 + $0x7c] sm:$0xf]
        %v1697 = vld [vmem:[#allocation14 + $0x80] sm:$0xf]
        %v1698 = vld [vmem:[#allocation14 + $0x84] sm:$0xf]
        %v1699 = vld [vmem:[#allocation14 + $0x88] sm:$0xf]
        %v1700 = vld [vmem:[#allocation14 + $0x8c] sm:$0xf]
        %v1701 = vld [vmem:[#allocation14 + $0x90] sm:$0xf]
        %v1702 = vld [vmem:[#allocation14 + $0x94] sm:$0xf]
        %v1703 = vld [vmem:[#allocation14 + $0x98] sm:$0xf]
        %v1704 = vld [vmem:[#allocation14 + $0x9c] sm:$0xf]
        %v1705 = vld [vmem:[#allocation14 + $0xa0] sm:$0xf]
        %v1706 = vld [vmem:[#allocation14 + $0xa4] sm:$0xf]
        %v1707 = vld [vmem:[#allocation14 + $0xa8] sm:$0xf]
        %v1708 = vld [vmem:[#allocation14 + $0xac] sm:$0xf]
        %v1709 = vld [vmem:[#allocation14 + $0xb0] sm:$0xf]
        %v1710 = vld [vmem:[#allocation14 + $0xb4] sm:$0xf]
        %v1711 = vld [vmem:[#allocation14 + $0xb8] sm:$0xf]
        %v1712 = vld [vmem:[#allocation14 + $0xbc] sm:$0xf]
        %v1717 = vunpack.c.l.b16 %v1661
        %v1718 = vunpack.c.h.b16 %v1661
        %v1719 = vunpack.c.l.b16 %v1662
        %v1720 = vunpack.c.l.b16 %v1663
        %v1721 = vunpack.c.h.b16 %v1663
        %v1722 = vunpack.c.l.b16 %v1664
        %v1723 = vpack.c.b16 %v1720, %v1717
        %v1724 = vpack.c.b16 %v1721, %v1718
        %v1725 = vpack.c.b16 %v1722, %v1719
        %v1777 = vunpack.c.l.b16 %v1665
        %v1778 = vunpack.c.l.b16 %v1666
        %v1779 = vunpack.c.l.b16 %v1667
        %v1780 = vunpack.c.l.b16 %v1668
        %v1781 = vunpack.c.l.b16 %v1669
        %v1782 = vunpack.c.l.b16 %v1670
        %v1783 = vunpack.c.l.b16 %v1671
        %v1784 = vunpack.c.l.b16 %v1672
        %v1785 = vunpack.c.l.b16 %v1673
        %v1786 = vunpack.c.l.b16 %v1674
        %v1787 = vunpack.c.l.b16 %v1675
        %v1788 = vunpack.c.l.b16 %v1676
        %v1789 = vunpack.c.l.b16 %v1677
        %v1790 = vunpack.c.l.b16 %v1678
        %v1791 = vunpack.c.l.b16 %v1679
        %v1792 = vunpack.c.l.b16 %v1680
        %v1793 = vunpack.c.l.b16 %v1681
        %v1794 = vunpack.c.l.b16 %v1682
        %v1795 = vunpack.c.l.b16 %v1683
        %v1796 = vunpack.c.l.b16 %v1684
        %v1797 = vunpack.c.l.b16 %v1685
        %v1798 = vunpack.c.l.b16 %v1686
        %v1799 = vunpack.c.l.b16 %v1687
        %v1800 = vunpack.c.l.b16 %v1688
        %v1801 = vunpack.c.l.b16 %v1689
        %v1802 = vunpack.c.l.b16 %v1690
        %v1803 = vunpack.c.l.b16 %v1691
        %v1804 = vunpack.c.l.b16 %v1692
        %v1805 = vunpack.c.l.b16 %v1693
        %v1806 = vunpack.c.l.b16 %v1694
        %v1807 = vunpack.c.l.b16 %v1695
        %v1808 = vunpack.c.l.b16 %v1696
        %v1809 = vunpack.c.l.b16 %v1697
        %v1810 = vunpack.c.l.b16 %v1698
        %v1811 = vunpack.c.l.b16 %v1699
        %v1812 = vunpack.c.l.b16 %v1700
        %v1813 = vunpack.c.l.b16 %v1701
        %v1814 = vunpack.c.l.b16 %v1702
        %v1815 = vunpack.c.l.b16 %v1703
        %v1816 = vunpack.c.l.b16 %v1704
        %v1817 = vunpack.c.l.b16 %v1705
        %v1818 = vunpack.c.l.b16 %v1706
        %v1819 = vunpack.c.l.b16 %v1707
        %v1820 = vunpack.c.l.b16 %v1708
        %v1821 = vunpack.c.l.b16 %v1709
        %v1822 = vunpack.c.l.b16 %v1710
        %v1823 = vunpack.c.l.b16 %v1711
        %v1824 = vunpack.c.l.b16 %v1712
        %v1825 = vpack.c.b16 %v1778, %v1777
        %v1826 = vpack.c.b16 %v1780, %v1779
        %v1827 = vpack.c.b16 %v1782, %v1781
        %v1828 = vpack.c.b16 %v1784, %v1783
        %v1829 = vpack.c.b16 %v1786, %v1785
        %v1830 = vpack.c.b16 %v1788, %v1787
        %v1831 = vpack.c.b16 %v1790, %v1789
        %v1832 = vpack.c.b16 %v1792, %v1791
        %v1833 = vpack.c.b16 %v1794, %v1793
        %v1834 = vpack.c.b16 %v1796, %v1795
        %v1835 = vpack.c.b16 %v1798, %v1797
        %v1836 = vpack.c.b16 %v1800, %v1799
        %v1837 = vpack.c.b16 %v1802, %v1801
        %v1838 = vpack.c.b16 %v1804, %v1803
        %v1839 = vpack.c.b16 %v1806, %v1805
        %v1840 = vpack.c.b16 %v1808, %v1807
        %v1841 = vpack.c.b16 %v1810, %v1809
        %v1842 = vpack.c.b16 %v1812, %v1811
        %v1843 = vpack.c.b16 %v1814, %v1813
        %v1844 = vpack.c.b16 %v1816, %v1815
        %v1845 = vpack.c.b16 %v1818, %v1817
        %v1846 = vpack.c.b16 %v1820, %v1819
        %v1847 = vpack.c.b16 %v1822, %v1821
        %v1848 = vpack.c.b16 %v1824, %v1823
        %1873 = vmatpush.bf16.msra.mxu0 %v1832
        %1874 = vmatpush.bf16.msra.mxu0 %v1831
        %1875 = vmatpush.bf16.msra.mxu0 %v1830
        %1876 = vmatpush.bf16.msra.mxu0 %v1829
        %1877 = vmatpush.bf16.msra.mxu0 %v1828
        %1878 = vmatpush.bf16.msra.mxu0 %v1827
        %1879 = vmatpush.bf16.msra.mxu0 %v1826
        %1880 = vmatpush.bf16.msra.mxu0 %v1825
        %1881 = vmatmul.bf16.gmra.mxu0 %v1723
        %v1882 = vpop.f32.mrf.mxu0
        %v1883 = vadd.f32 0.0, %v1882
        %v1884 = vpop.f32.mrf.mxu0
        %v1885 = vadd.f32 0.0, %v1884
        %1886 = vdwg.mxu0
        %1887 = vmatpush.bf16.msra.mxu0 %v1840
        %1888 = vmatpush.bf16.msra.mxu0 %v1839
        %1889 = vmatpush.bf16.msra.mxu0 %v1838
        %1890 = vmatpush.bf16.msra.mxu0 %v1837
        %1891 = vmatpush.bf16.msra.mxu0 %v1836
        %1892 = vmatpush.bf16.msra.mxu0 %v1835
        %1893 = vmatpush.bf16.msra.mxu0 %v1834
        %1894 = vmatpush.bf16.msra.mxu0 %v1833
        %1895 = vmatmul.bf16.gmra.mxu0 %v1724
        %v1896 = vpop.f32.mrf.mxu0
        %v1897 = vadd.f32 %v1883, %v1896
        %v1898 = vpop.f32.mrf.mxu0
        %v1899 = vadd.f32 %v1885, %v1898
        %1900 = vdwg.mxu0
        %1901 = vmatpush.bf16.msra.mxu0 %v1848
        %1902 = vmatpush.bf16.msra.mxu0 %v1847
        %1903 = vmatpush.bf16.msra.mxu0 %v1846
        %1904 = vmatpush.bf16.msra.mxu0 %v1845
        %1905 = vmatpush.bf16.msra.mxu0 %v1844
        %1906 = vmatpush.bf16.msra.mxu0 %v1843
        %1907 = vmatpush.bf16.msra.mxu0 %v1842
        %1908 = vmatpush.bf16.msra.mxu0 %v1841
        %1909 = vmatmul.bf16.gmra.mxu0 %v1725
        %v1910 = vpop.f32.mrf.mxu0
        %v1911 = vadd.f32 %v1897, %v1910
        %v1912 = vpop.f32.mrf.mxu0
        %v1913 = vadd.f32 %v1899, %v1912
        %1914 = vdwg.mxu0
        %v1915 = vmax.f32 %v1911, 0.0
        %v1916 = vmax.f32 %v1913, 0.0
        %v1917 = vpack.c.bf16 %v1916, %v1915
        %v1918 = vld [vmem:[#allocation15] sm:$0xf]
        %v1919 = vld [vmem:[#allocation15 + $0x4] sm:$0xf]
        %v1920 = vld [vmem:[#allocation15 + $0x8] sm:$0xf]
        %v1921 = vld [vmem:[#allocation15 + $0xc] sm:$0xf]
        %v1922 = vld [vmem:[#allocation15 + $0x10] sm:$0xf]
        %v1923 = vld [vmem:[#allocation15 + $0x14] sm:$0xf]
        %v1924 = vld [vmem:[#allocation15 + $0x18] sm:$0xf]
        %v1925 = vld [vmem:[#allocation15 + $0x1c] sm:$0xf]
        %v1926 = vld [vmem:[#allocation15 + $0x20] sm:$0xf]
        %v1927 = vld [vmem:[#allocation15 + $0x24] sm:$0xf]
        %v1928 = vld [vmem:[#allocation15 + $0x28] sm:$0xf]
        %v1929 = vld [vmem:[#allocation15 + $0x2c] sm:$0xf]
        %v1930 = vld [vmem:[#allocation15 + $0x30] sm:$0xf]
        %v1931 = vld [vmem:[#allocation15 + $0x34] sm:$0xf]
        %v1932 = vld [vmem:[#allocation15 + $0x38] sm:$0xf]
        %v1933 = vld [vmem:[#allocation15 + $0x3c] sm:$0xf]
        %v1950 = vunpack.c.l.b16 %v1918
        %v1951 = vunpack.c.l.b16 %v1919
        %v1952 = vunpack.c.l.b16 %v1920
        %v1953 = vunpack.c.l.b16 %v1921
        %v1954 = vunpack.c.l.b16 %v1922
        %v1955 = vunpack.c.l.b16 %v1923
        %v1956 = vunpack.c.l.b16 %v1924
        %v1957 = vunpack.c.l.b16 %v1925
        %v1958 = vunpack.c.l.b16 %v1926
        %v1959 = vunpack.c.l.b16 %v1927
        %v1960 = vunpack.c.l.b16 %v1928
        %v1961 = vunpack.c.l.b16 %v1929
        %v1962 = vunpack.c.l.b16 %v1930
        %v1963 = vunpack.c.l.b16 %v1931
        %v1964 = vunpack.c.l.b16 %v1932
        %v1965 = vunpack.c.l.b16 %v1933
        %v1966 = vpack.c.b16 %v1951, %v1950
        %v1967 = vpack.c.b16 %v1953, %v1952
        %v1968 = vpack.c.b16 %v1955, %v1954
        %v1969 = vpack.c.b16 %v1957, %v1956
        %v1970 = vpack.c.b16 %v1959, %v1958
        %v1971 = vpack.c.b16 %v1961, %v1960
        %v1972 = vpack.c.b16 %v1963, %v1962
        %v1973 = vpack.c.b16 %v1965, %v1964
        %1982 = vmatpush.bf16.msra.mxu0 %v1973
        %1983 = vmatpush.bf16.msra.mxu0 %v1972
        %1984 = vmatpush.bf16.msra.mxu0 %v1971
        %1985 = vmatpush.bf16.msra.mxu0 %v1970
        %1986 = vmatpush.bf16.msra.mxu0 %v1969
        %1987 = vmatpush.bf16.msra.mxu0 %v1968
        %1988 = vmatpush.bf16.msra.mxu0 %v1967
        %1989 = vmatpush.bf16.msra.mxu0 %v1966
        %1990 = vmatmul.bf16.gmra.mxu0 %v1917
        %v1991 = vpop.f32.mrf.mxu0
        %v1992 = vadd.f32 0.0, %v1991
        %v1993 = vpop.f32.mrf.mxu0
        %v1994 = vadd.f32 0.0, %v1993
        %1995 = vdwg.mxu0
        %1996 = vst [vmem:[%s563] sm:$0xff] %v1992
        %1997 = vst [vmem:[%s563 + $0x8] sm:$0xff] %v1994
        %v1998 = vpack.c.bf16 %v1994, %v1992
        %v1999 = vld [vmem:[%s518] sm:$0xf]
        %v2000 = vld [vmem:[%s518 + $0x4] sm:$0xf]
        %v2001 = vld [vmem:[%s518 + $0x8] sm:$0xf]
        %v2002 = vld [vmem:[%s518 + $0xc] sm:$0xf]
        %v2003 = vld [vmem:[%s518 + $0x10] sm:$0xf]
        %v2004 = vld [vmem:[%s518 + $0x14] sm:$0xf]
        %v2005 = vld [vmem:[%s518 + $0x18] sm:$0xf]
        %v2006 = vld [vmem:[%s518 + $0x1c] sm:$0xf]
        %v2007 = vld [vmem:[%s518 + $0x20] sm:$0xf]
        %v2008 = vld [vmem:[%s518 + $0x24] sm:$0xf]
        %v2009 = vld [vmem:[%s518 + $0x28] sm:$0xf]
        %v2010 = vld [vmem:[%s518 + $0x2c] sm:$0xf]
        %v2011 = vld [vmem:[%s518 + $0x30] sm:$0xf]
        %v2012 = vld [vmem:[%s518 + $0x34] sm:$0xf]
        %v2013 = vld [vmem:[%s518 + $0x38] sm:$0xf]
        %v2014 = vld [vmem:[%s518 + $0x3c] sm:$0xf]
        %v2031 = vunpack.c.l.b16 %v1999
        %v2032 = vunpack.c.l.b16 %v2000
        %v2033 = vunpack.c.l.b16 %v2001
        %v2034 = vunpack.c.l.b16 %v2002
        %v2035 = vunpack.c.l.b16 %v2003
        %v2036 = vunpack.c.l.b16 %v2004
        %v2037 = vunpack.c.l.b16 %v2005
        %v2038 = vunpack.c.l.b16 %v2006
        %v2039 = vunpack.c.l.b16 %v2007
        %v2040 = vunpack.c.l.b16 %v2008
        %v2041 = vunpack.c.l.b16 %v2009
        %v2042 = vunpack.c.l.b16 %v2010
        %v2043 = vunpack.c.l.b16 %v2011
        %v2044 = vunpack.c.l.b16 %v2012
        %v2045 = vunpack.c.l.b16 %v2013
        %v2046 = vunpack.c.l.b16 %v2014
        %v2047 = vpack.c.b16 %v2032, %v2031
        %v2048 = vpack.c.b16 %v2034, %v2033
        %v2049 = vpack.c.b16 %v2036, %v2035
        %v2050 = vpack.c.b16 %v2038, %v2037
        %v2051 = vpack.c.b16 %v2040, %v2039
        %v2052 = vpack.c.b16 %v2042, %v2041
        %v2053 = vpack.c.b16 %v2044, %v2043
        %v2054 = vpack.c.b16 %v2046, %v2045
        %2063 = vmatpush.bf16.msra.mxu0 %v2054
        %2064 = vmatpush.bf16.msra.mxu0 %v2053
        %2065 = vmatpush.bf16.msra.mxu0 %v2052
        %2066 = vmatpush.bf16.msra.mxu0 %v2051
        %2067 = vmatpush.bf16.msra.mxu0 %v2050
        %2068 = vmatpush.bf16.msra.mxu0 %v2049
        %2069 = vmatpush.bf16.msra.mxu0 %v2048
        %2070 = vmatpush.bf16.msra.mxu0 %v2047
        %2071 = vmatmul.bf16.gmra.mxu0 %v1998
        %v2072 = vpop.f32.mrf.mxu0
        %v2073 = vadd.f32 0.0, %v2072
        %v2074 = vpop.f32.mrf.mxu0
        %v2075 = vadd.f32 0.0, %v2074
        %2076 = vdwg.mxu0
        %2077 = vst [vmem:[%s570] sm:$0xff] %v2073
        %2078 = vst [vmem:[%s570 + $0x8] sm:$0xff] %v2075
        %s2079 = sand.u32 %s249, 1
        %s2080 = scalar_lea.sflag [#allocation5], %s2079
        %s2081 = sand.u32 %s249, 1
        %s2082 = smul.addr %s2081, 16
        %s2083 = scalar_lea.vmem [#allocation18], %s2082
        %s2084 = sand.u32 %s275, 1
        %s2085 = scalar_lea.sflag [#allocation20], %s2084
        %s2086 = sand.u32 %s275, 1
        %s2087 = smul.addr %s2086, 16
        %s2088 = scalar_lea.vmem [#allocation19], %s2087
        // Predicated region
        $region93: #{tpu_custom_call.1} parent=55 // pred_check
          %p2089 = pneg %p259
        $region94: #{tpu_custom_call.1} parent=55 // pred_check_branch
          %2091 = sbr.rel (%p2089) target = $region96
        $region95: #{tpu_custom_call.1} parent=55 // pred_region
          %2093 = vsyncadd %s2080, 0
          %s2094 = smul.addr %s37, 2
          %s2095 = smul.addr %s2094, 8
          %s2096 = scalar_lea.hbm %s9, %s2095
          %s2097 = sshll.u32 %s2083, 4
          %s2098 = int_to_ptr.vmem [resolvable:$true] %s2097
          %s2099 = sshll.u32 %s2096, 4
          %s2100 = int_to_ptr.hbm [resolvable:$true] %s2099
          %2105 = dma.vmem_to_hbm [thread:$0]  %s2098, 256, %s2100, %s2080, 128, 128, 8
        $region96: #{tpu_custom_call.1} parent=55 // pred_fallthru
          _
        // Predicated region
        $region97: #{tpu_custom_call.1} parent=55 // pred_check
          %p2106 = pneg %p285
        $region98: #{tpu_custom_call.1} parent=55 // pred_check_branch
          %2108 = sbr.rel (%p2106) target = $region100
        $region99: #{tpu_custom_call.1} parent=55 // pred_region
          %2110 = vsyncadd %s2085, 0
          %s2111 = smul.addr %s37, 2
          %s2112 = smul.addr %s2111, 8
          %s2113 = scalar_lea.hbm %s10, %s2112
          %s2114 = sshll.u32 %s2088, 4
          %s2115 = int_to_ptr.vmem [resolvable:$true] %s2114
          %s2116 = sshll.u32 %s2113, 4
          %s2117 = int_to_ptr.hbm [resolvable:$true] %s2116
          %2122 = dma.vmem_to_hbm [thread:$0]  %s2115, 256, %s2117, %s2085, 128, 128, 8
        $region100: #{tpu_custom_call.1} parent=55 // pred_fallthru
          _
      $region56: #{tpu_custom_call.1} parent=5 // pred_fallthru
        _
      %p2123 = scmp.le.s32.totalorder 2, %s32
      // Predicated region
      $region101: #{tpu_custom_call.1} parent=5 // pred_check
        %p2124 = pneg %p2123
      $region102: #{tpu_custom_call.1} parent=5 // pred_check_branch
        %2126 = sbr.rel (%p2124) target = $region104
      $region103: #{tpu_custom_call.1} parent=5 // pred_region
        %s2127 = ssub.s32 %s32, 2
        // Predicated region
        $region105: #{tpu_custom_call.1} parent=103 // pred_check
          %p2128 = pneg %p265
        $region106: #{tpu_custom_call.1} parent=103 // pred_check_branch
          %2130 = sbr.rel (%p2128) target = $region108
        $region107: #{tpu_custom_call.1} parent=103 // pred_region
          %s2131 = sand.u32 %s250, 1
          %s2132 = scalar_lea.sflag [#allocation5], %s2131
          %s2133 = sand.u32 %s250, 1
          %s2134 = smul.addr %s2133, 16
          %s2135 = scalar_lea.vmem [#allocation18], %s2134
          %2137 = dma.done %s2132, 256
        $region108: #{tpu_custom_call.1} parent=103 // pred_fallthru
          _
        // Predicated region
        $region109: #{tpu_custom_call.1} parent=103 // pred_check
          %p2138 = pneg %p291
        $region110: #{tpu_custom_call.1} parent=103 // pred_check_branch
          %2140 = sbr.rel (%p2138) target = $region112
        $region111: #{tpu_custom_call.1} parent=103 // pred_region
          %s2141 = sand.u32 %s276, 1
          %s2142 = scalar_lea.sflag [#allocation20], %s2141
          %s2143 = sand.u32 %s276, 1
          %s2144 = smul.addr %s2143, 16
          %s2145 = scalar_lea.vmem [#allocation19], %s2144
          %2147 = dma.done %s2142, 256
        $region112: #{tpu_custom_call.1} parent=103 // pred_fallthru
          _
      $region104: #{tpu_custom_call.1} parent=5 // pred_fallthru
        _
    $region6: #{tpu_custom_call.1} parent=1 // loop_footer
      %s36 = sadd.s32 1, %s32
    $region7: #{tpu_custom_call.1} parent=1 // loop_footer_branch
      %31 = sbr.rel target = $region3
    $region8: #{tpu_custom_call.1} parent=1 // loop_exit
      _
    %2148 = vsyncpa [#allocation4], 1
    %s2149 = scalar_lea.sflag [#allocation4], 1
    %2150 = vsyncpa %s2149, 1
    %2151 = vsyncpa [#allocation7], 1
    %s2152 = scalar_lea.sflag [#allocation7], 1
    %2153 = vsyncpa %s2152, 1
    %2154 = vsyncpa [#allocation10], 1
    %2155 = vsyncpa [#allocation13], 1
    %2156 = vsyncpa [#allocation16], 1
    %2157 = vsyncpa [#allocation5], 1
    %s2158 = scalar_lea.sflag [#allocation5], 1
    %2159 = vsyncpa %s2158, 1
    %2160 = vsyncpa [#allocation20], 1
    %s2161 = scalar_lea.sflag [#allocation20], 1
    %2162 = vsyncpa %s2161, 1

// kernel: tpu_custom_call.1
$region0: #{tpu_custom_call.1}
  #allocation0 [shape = 'u32[]', space=smem, size = 0x4, offset = 0x4, fixed_abs, tag = 'smem constant byte address 0x4 - core index']
  #allocation1 [shape = 'u32[72,128]{1,0:T(1,128)}', space=vmem, size = 0x9000, scoped, tag = 'internal scratch']
  #allocation2 [shape = 'bf16[16,384]{1,0:T(8,128)(2,1)}', space=vmem, size = 0x3000, scoped, tag = 'scratch operand']
  %s0 = inlined_call_operand.hbm [shape: bf16[2,16,128], index: 0, kind: input, shape index: {}]
  %s1 = inlined_call_operand.hbm [shape: bf16[2,16,16], index: 1, kind: input, shape index: {}]
  %s2 = inlined_call_operand.hbm [shape: bf16[128,128], index: 2, kind: input, shape index: {}]
  %s3 = inlined_call_operand.hbm [shape: bf16[384,128], index: 3, kind: input, shape index: {}]
  %s4 = inlined_call_operand.hbm [shape: bf16[384,128], index: 4, kind: input, shape index: {}]
  %s5 = inlined_call_operand.hbm [shape: bf16[384,128], index: 5, kind: input, shape index: {}]
  %s6 = inlined_call_operand.hbm [shape: bf16[384,128], index: 6, kind: input, shape index: {}]
  %s7 = inlined_call_operand.hbm [shape: bf16[128,128], index: 7, kind: input, shape index: {}]
  %s8 = inlined_call_operand.hbm [shape: bf16[2,128,128], index: 8, kind: input, shape index: {}]
  %s9 = inlined_call_operand.hbm [shape: f32[2,16,128], index: 9, kind: output, shape index: {0}]
  %s10 = inlined_call_operand.hbm [shape: f32[2,16,128], index: 10, kind: output, shape index: {1}]
  %11 = xla_tuple %s9, %s10
  %s12 = sld [smem:[#allocation0]]
  $region113: #{tpu_custom_call.1} parent=0
    _
  %s14 = ssub.s32 1, %s12
  %s15 = scalar_select 0, %s14, %s12
  $region1: #{tpu_custom_call.1} parent=0
    #allocation3 [shape = 'u8[8192]{0}', space=vmem, size = 0x2000, scoped, tag = 'input window, operand 0']
    #allocation4 [shape = 's32[2]{0}', space=sflag, size = 0x8, scoped, tag = 'scoped memory for tpu_custom_call.1']
    #allocation5 [shape = 's32[2]{0}', space=sflag, size = 0x8, scoped, tag = 'scoped memory for tpu_custom_call.1']
    #allocation6 [shape = 'u8[8192]{0}', space=vmem, size = 0x2000, scoped, tag = 'input window, operand 1']
    #allocation7 [shape = 's32[2]{0}', space=sflag, size = 0x8, scoped, tag = 'scoped memory for tpu_custom_call.1']
    #allocation8 [shape = 'u8[32768]{0}', space=vmem, size = 0x8000, scoped, tag = 'input window, operand 2, single buffered']
    #allocation9 [shape = 'u8[98304]{0}', space=vmem, size = 0x18000, scoped, tag = 'input window, operand 3, single buffered']
    #allocation10 [shape = 's32[1]{0}', space=sflag, size = 0x4, scoped, tag = 'scoped memory for tpu_custom_call.1']
    #allocation11 [shape = 'u8[98304]{0}', space=vmem, size = 0x18000, scoped, tag = 'input window, operand 4, single buffered']
    #allocation12 [shape = 'u8[98304]{0}', space=vmem, size = 0x18000, scoped, tag = 'input window, operand 5, single buffered']
    #allocation13 [shape = 's32[1]{0}', space=sflag, size = 0x4, scoped, tag = 'scoped memory for tpu_custom_call.1']
    #allocation14 [shape = 'u8[98304]{0}', space=vmem, size = 0x18000, scoped, tag = 'input window, operand 6, single buffered']
    #allocation15 [shape = 'u8[32768]{0}', space=vmem, size = 0x8000, scoped, tag = 'input window, operand 7, single buffered']
    #allocation16 [shape = 's32[1]{0}', space=sflag, size = 0x4, scoped, tag = 'scoped memory for tpu_custom_call.1']
    #allocation17 [shape = 'u8[65536]{0}', space=vmem, size = 0x10000, scoped, tag = 'input window, operand 8']
    #allocation18 [shape = 'u8[16384]{0}', space=vmem, size = 0x4000, scoped, tag = 'output window, operand 0']
    #allocation19 [shape = 'u8[16384]{0}', space=vmem, size = 0x4000, scoped, tag = 'output window, operand 1']
    #allocation20 [shape = 's32[2]{0}', space=sflag, size = 0x8, scoped, tag = 'scoped memory for tpu_custom_call.1']
    %16 = vsyncpa [#allocation4], 0
    %s17 = scalar_lea.sflag [#allocation4], 1
    %18 = vsyncpa %s17, 0
    %19 = vsyncpa [#allocation7], 0
    %s20 = scalar_lea.sflag [#allocation7], 1
    %21 = vsyncpa %s20, 0
    %22 = vsyncpa [#allocation10], 0
    %23 = vsyncpa [#allocation13], 0
    %24 = vsyncpa [#allocation16], 0
    %25 = vsyncpa [#allocation5], 0
    %s26 = scalar_lea.sflag [#allocation5], 1
    %27 = vsyncpa %s26, 0
    %28 = vsyncpa [#allocation20], 0
    %s29 = scalar_lea.sflag [#allocation20], 1
    %30 = vsyncpa %s29, 0
    loop: start=0, step=1, limit=4
    $region2: #{tpu_custom_call.1} parent=1 // loop_pre_header
      _
    $region3: #{tpu_custom_call.1} parent=1 // loop_header
      %s32 = sphi 0, %s36
      %p33 = scmp.ge.s32.totalorder %s32, 4
      %s42 = sphi 0, %s44
      %s45 = sphi 0, %s42
      %s46 = sphi 0, %s45
      %s62 = sphi 0, %s46
      %s68 = sphi 0, %s70
      %s71 = sphi 0, %s68
      %s72 = sphi 0, %s71
      %s88 = sphi 0, %s72
      %s92 = sphi 0, %s92
      %s94 = sphi 0, %s92
      %s95 = sphi 0, %s94
      %s109 = sphi 0, %s95
      %s113 = sphi 0, %s113
      %s115 = sphi 0, %s113
      %s116 = sphi 0, %s115
      %s130 = sphi 0, %s116
      %s134 = sphi 0, %s134
      %s136 = sphi 0, %s134
      %s137 = sphi 0, %s136
      %s151 = sphi 0, %s137
      %s155 = sphi 0, %s155
      %s157 = sphi 0, %s155
      %s158 = sphi 0, %s157
      %s172 = sphi 0, %s158
      %s176 = sphi 0, %s176
      %s178 = sphi 0, %s176
      %s179 = sphi 0, %s178
      %s193 = sphi 0, %s179
      %s197 = sphi 0, %s197
      %s199 = sphi 0, %s197
      %s200 = sphi 0, %s199
      %s214 = sphi 0, %s200
      %s220 = sphi 0, %s222
      %s223 = sphi 0, %s220
      %s224 = sphi 0, %s223
      %s240 = sphi 0, %s224
      %s246 = sphi 0, %s248
      %s249 = sphi 0, %s246
      %s250 = sphi 0, %s249
      %s266 = sphi 0, %s250
      %s272 = sphi 0, %s274
      %s275 = sphi 0, %s272
      %s276 = sphi 0, %s275
      %s292 = sphi 0, %s276
    $region4: #{tpu_custom_call.1} parent=1 // loop_header_branch
      %35 = sbr.rel (%p33) target = $region8
    $region5: #{tpu_custom_call.1} parent=1 // loop_body
      %s37 = ssub.s32 %s32, 1
      %s38 = ssub.s32 %s32, 2
      %s39 = sadd.s32 %s32, 1
      %s40 = ssub.s32 %s32, %s39
      %p41 = scmp.eq.s32.totalorder %s40, 0
      %s43 = sadd.s32 %s42, 1
      %s44 = scalar_select %p41, %s42, %s43
      %p47 = pneg %p41
      %p48 = scmp.eq.s32.totalorder %s32, 1
      %p49 = por %p47, %p48
      %p50 = scmp.ne.s32.totalorder %s42, %s45
      %p51 = scmp.eq.s32.totalorder %s32, 0
      %p52 = por %p50, %p51
      %p53 = scmp.ne.s32.totalorder %s42, %s45
      %p54 = scmp.eq.s32.totalorder %s37, 1
      %p55 = por %p53, %p54
      %p56 = scmp.ne.s32.totalorder %s45, %s46
      %p57 = scmp.eq.s32.totalorder %s37, 0
      %p58 = por %p56, %p57
      %p59 = scmp.ne.s32.totalorder %s45, %s46
      %p60 = scmp.eq.s32.totalorder %s38, 1
      %p61 = por %p59, %p60
      %p63 = scmp.ne.s32.totalorder %s46, %s62
      %p64 = scmp.eq.s32.totalorder %s38, 0
      %p65 = por %p63, %p64
      %s66 = ssub.s32 %s32, %s39
      %p67 = scmp.eq.s32.totalorder %s66, 0
      %s69 = sadd.s32 %s68, 1
      %s70 = scalar_select %p67, %s68, %s69
      %p73 = pneg %p67
      %p74 = scmp.eq.s32.totalorder %s32, 1
      %p75 = por %p73, %p74
      %p76 = scmp.ne.s32.totalorder %s68, %s71
      %p77 = scmp.eq.s32.totalorder %s32, 0
      %p78 = por %p76, %p77
      %p79 = scmp.ne.s32.totalorder %s68, %s71
      %p80 = scmp.eq.s32.totalorder %s37, 1
      %p81 = por %p79, %p80
      %p82 = scmp.ne.s32.totalorder %s71, %s72
      %p83 = scmp.eq.s32.totalorder %s37, 0
      %p84 = por %p82, %p83
      %p85 = scmp.ne.s32.totalorder %s71, %s72
      %p86 = scmp.eq.s32.totalorder %s38, 1
      %p87 = por %p85, %p86
      %p89 = scmp.ne.s32.totalorder %s72, %s88
      %p90 = scmp.eq.s32.totalorder %s38, 0
      %p91 = por %p89, %p90
      %s93 = sadd.s32 %s92, 1
      %p96 = scmp.eq.s32.totalorder %s32, 1
      %p97 = scmp.ne.s32.totalorder %s92, %s94
      %p98 = scmp.eq.s32.totalorder %s32, 0
      %p99 = por %p97, %p98
      %p100 = scmp.ne.s32.totalorder %s92, %s94
      %p101 = scmp.eq.s32.totalorder %s37, 1
      %p102 = por %p100, %p101
      %p103 = scmp.ne.s32.totalorder %s94, %s95
      %p104 = scmp.eq.s32.totalorder %s37, 0
      %p105 = por %p103, %p104
      %p106 = scmp.ne.s32.totalorder %s94, %s95
      %p107 = scmp.eq.s32.totalorder %s38, 1
      %p108 = por %p106, %p107
      %p110 = scmp.ne.s32.totalorder %s95, %s109
      %p111 = scmp.eq.s32.totalorder %s38, 0
      %p112 = por %p110, %p111
      %s114 = sadd.s32 %s113, 1
      %p117 = scmp.eq.s32.totalorder %s32, 1
      %p118 = scmp.ne.s32.totalorder %s113, %s115
      %p119 = scmp.eq.s32.totalorder %s32, 0
      %p120 = por %p118, %p119
      %p121 = scmp.ne.s32.totalorder %s113, %s115
      %p122 = scmp.eq.s32.totalorder %s37, 1
      %p123 = por %p121, %p122
      %p124 = scmp.ne.s32.totalorder %s115, %s116
      %p125 = scmp.eq.s32.totalorder %s37, 0
      %p126 = por %p124, %p125
      %p127 = scmp.ne.s32.totalorder %s115, %s116
      %p128 = scmp.eq.s32.totalorder %s38, 1
      %p129 = por %p127, %p128
      %p131 = scmp.ne.s32.totalorder %s116, %s130
      %p132 = scmp.eq.s32.totalorder %s38, 0
      %p133 = por %p131, %p132
      %s135 = sadd.s32 %s134, 1
      %p138 = scmp.eq.s32.totalorder %s32, 1
      %p139 = scmp.ne.s32.totalorder %s134, %s136
      %p140 = scmp.eq.s32.totalorder %s32, 0
      %p141 = por %p139, %p140
      %p142 = scmp.ne.s32.totalorder %s134, %s136
      %p143 = scmp.eq.s32.totalorder %s37, 1
      %p144 = por %p142, %p143
      %p145 = scmp.ne.s32.totalorder %s136, %s137
      %p146 = scmp.eq.s32.totalorder %s37, 0
      %p147 = por %p145, %p146
      %p148 = scmp.ne.s32.totalorder %s136, %s137
      %p149 = scmp.eq.s32.totalorder %s38, 1
      %p150 = por %p148, %p149
      %p152 = scmp.ne.s32.totalorder %s137, %s151
      %p153 = scmp.eq.s32.totalorder %s38, 0
      %p154 = por %p152, %p153
      %s156 = sadd.s32 %s155, 1
      %p159 = scmp.eq.s32.totalorder %s32, 1
      %p160 = scmp.ne.s32.totalorder %s155, %s157
      %p161 = scmp.eq.s32.totalorder %s32, 0
      %p162 = por %p160, %p161
      %p163 = scmp.ne.s32.totalorder %s155, %s157
      %p164 = scmp.eq.s32.totalorder %s37, 1
      %p165 = por %p163, %p164
      %p166 = scmp.ne.s32.totalorder %s157, %s158
      %p167 = scmp.eq.s32.totalorder %s37, 0
      %p168 = por %p166, %p167
      %p169 = scmp.ne.s32.totalorder %s157, %s158
      %p170 = scmp.eq.s32.totalorder %s38, 1
      %p171 = por %p169, %p170
      %p173 = scmp.ne.s32.totalorder %s158, %s172
      %p174 = scmp.eq.s32.totalorder %s38, 0
      %p175 = por %p173, %p174
      %s177 = sadd.s32 %s176, 1
      %p180 = scmp.eq.s32.totalorder %s32, 1
      %p181 = scmp.ne.s32.totalorder %s176, %s178
      %p182 = scmp.eq.s32.totalorder %s32, 0
      %p183 = por %p181, %p182
      %p184 = scmp.ne.s32.totalorder %s176, %s178
      %p185 = scmp.eq.s32.totalorder %s37, 1
      %p186 = por %p184, %p185
      %p187 = scmp.ne.s32.totalorder %s178, %s179
      %p188 = scmp.eq.s32.totalorder %s37, 0
      %p189 = por %p187, %p188
      %p190 = scmp.ne.s32.totalorder %s178, %s179
      %p191 = scmp.eq.s32.totalorder %s38, 1
      %p192 = por %p190, %p191
      %p194 = scmp.ne.s32.totalorder %s179, %s193
      %p195 = scmp.eq.s32.totalorder %s38, 0
      %p196 = por %p194, %p195
      %s198 = sadd.s32 %s197, 1
      %p201 = scmp.eq.s32.totalorder %s32, 1
      %p202 = scmp.ne.s32.totalorder %s197, %s199
      %p203 = scmp.eq.s32.totalorder %s32, 0
      %p204 = por %p202, %p203
      %p205 = scmp.ne.s32.totalorder %s197, %s199
      %p206 = scmp.eq.s32.totalorder %s37, 1
      %p207 = por %p205, %p206
      %p208 = scmp.ne.s32.totalorder %s199, %s200
      %p209 = scmp.eq.s32.totalorder %s37, 0
      %p210 = por %p208, %p209
      %p211 = scmp.ne.s32.totalorder %s199, %s200
      %p212 = scmp.eq.s32.totalorder %s38, 1
      %p213 = por %p211, %p212
      %p215 = scmp.ne.s32.totalorder %s200, %s214
      %p216 = scmp.eq.s32.totalorder %s38, 0
      %p217 = por %p215, %p216
      %s218 = ssub.s32 %s32, %s39
      %p219 = scmp.eq.s32.totalorder %s218, 0
      %s221 = sadd.s32 %s220, 1
      %s222 = scalar_select %p219, %s220, %s221
      %p225 = pneg %p219
      %p226 = scmp.eq.s32.totalorder %s32, 1
      %p227 = por %p225, %p226
      %p228 = scmp.ne.s32.totalorder %s220, %s223
      %p229 = scmp.eq.s32.totalorder %s32, 0
      %p230 = por %p228, %p229
      %p231 = scmp.ne.s32.totalorder %s220, %s223
      %p232 = scmp.eq.s32.totalorder %s37, 1
      %p233 = por %p231, %p232
      %p234 = scmp.ne.s32.totalorder %s223, %s224
      %p235 = scmp.eq.s32.totalorder %s37, 0
      %p236 = por %p234, %p235
      %p237 = scmp.ne.s32.totalorder %s223, %s224
      %p238 = scmp.eq.s32.totalorder %s38, 1
      %p239 = por %p237, %p238
      %p241 = scmp.ne.s32.totalorder %s224, %s240
      %p242 = scmp.eq.s32.totalorder %s38, 0
      %p243 = por %p241, %p242
      %s244 = ssub.s32 %s32, %s39
      %p245 = scmp.eq.s32.totalorder %s244, 0
      %s247 = sadd.s32 %s246, 1
      %s248 = scalar_select %p245, %s246, %s247
      %p251 = pneg %p245
      %p252 = scmp.eq.s32.totalorder %s32, 1
      %p253 = por %p251, %p252
      %p254 = scmp.ne.s32.totalorder %s246, %s249
      %p255 = scmp.eq.s32.totalorder %s32, 0
      %p256 = por %p254, %p255
      %p257 = scmp.ne.s32.totalorder %s246, %s249
      %p258 = scmp.eq.s32.totalorder %s37, 1
      %p259 = por %p257, %p258
      %p260 = scmp.ne.s32.totalorder %s249, %s250
      %p261 = scmp.eq.s32.totalorder %s37, 0
      %p262 = por %p260, %p261
      %p263 = scmp.ne.s32.totalorder %s249, %s250
      %p264 = scmp.eq.s32.totalorder %s38, 1
      %p265 = por %p263, %p264
      %p267 = scmp.ne.s32.totalorder %s250, %s266
      %p268 = scmp.eq.s32.totalorder %s38, 0
      %p269 = por %p267, %p268
      %s270 = ssub.s32 %s32, %s39
      %p271 = scmp.eq.s32.totalorder %s270, 0
      %s273 = sadd.s32 %s272, 1
      %s274 = scalar_select %p271, %s272, %s273
      %p277 = pneg %p271
      %p278 = scmp.eq.s32.totalorder %s32, 1
      %p279 = por %p277, %p278
      %p280 = scmp.ne.s32.totalorder %s272, %s275
      %p281 = scmp.eq.s32.totalorder %s32, 0
      %p282 = por %p280, %p281
      %p283 = scmp.ne.s32.totalorder %s272, %s275
      %p284 = scmp.eq.s32.totalorder %s37, 1
      %p285 = por %p283, %p284
      %p286 = scmp.ne.s32.totalorder %s275, %s276
      %p287 = scmp.eq.s32.totalorder %s37, 0
      %p288 = por %p286, %p287
      %p289 = scmp.ne.s32.totalorder %s275, %s276
      %p290 = scmp.eq.s32.totalorder %s38, 1
      %p291 = por %p289, %p290
      %p293 = scmp.ne.s32.totalorder %s276, %s292
      %p294 = scmp.eq.s32.totalorder %s38, 0
      %p295 = por %p293, %p294
      %p296 = scmp.le.s32.totalorder 1, %s32
      %p297 = scmp.lt.s32.totalorder %s32, 3
      %p298 = pnand %p296, %p297
      %p299 = pneg %p298
      // Predicated region
      $region9: #{tpu_custom_call.1} parent=5 // pred_check
        _
      $region10: #{tpu_custom_call.1} parent=5 // pred_check_branch
        %301 = sbr.rel (%p298) target = $region12
      $region11: #{tpu_custom_call.1} parent=5 // pred_region
        %s302 = ssub.s32 %s32, 1
        // Predicated region
        $region13: #{tpu_custom_call.1} parent=11 // pred_check
          %p303 = pneg %p105
        $region14: #{tpu_custom_call.1} parent=11 // pred_check_branch
          %305 = sbr.rel (%p303) target = $region16
        $region15: #{tpu_custom_call.1} parent=11 // pred_region
          %307 = vsyncadd [#allocation7], 0
          %s308 = sshll.u32 %s2, 4
          %s309 = int_to_ptr.hbm [resolvable:$true] %s308
          %s310 = sshll.u32 [#allocation8], 4
          %s311 = int_to_ptr.vmem [resolvable:$true] %s310
          %316 = dma.hbm_to_vmem [thread:$0]  %s309, 1024, %s311, [#allocation7], 64, 64, 4
        $region16: #{tpu_custom_call.1} parent=11 // pred_fallthru
          _
        // Predicated region
        $region17: #{tpu_custom_call.1} parent=11 // pred_check
          %p317 = pneg %p126
        $region18: #{tpu_custom_call.1} parent=11 // pred_check_branch
          %319 = sbr.rel (%p317) target = $region20
        $region19: #{tpu_custom_call.1} parent=11 // pred_region
          %321 = vsyncadd [#allocation10], 0
          %s322 = sshll.u32 %s3, 4
          %s323 = int_to_ptr.hbm [resolvable:$true] %s322
          %s324 = sshll.u32 [#allocation9], 4
          %s325 = int_to_ptr.vmem [resolvable:$true] %s324
          %330 = dma.hbm_to_vmem [thread:$0]  %s323, 3072, %s325, [#allocation10], 64, 64, 4
        $region20: #{tpu_custom_call.1} parent=11 // pred_fallthru
          _
        // Predicated region
        $region21: #{tpu_custom_call.1} parent=11 // pred_check
          %p331 = pneg %p147
        $region22: #{tpu_custom_call.1} parent=11 // pred_check_branch
          %333 = sbr.rel (%p331) target = $region24
        $region23: #{tpu_custom_call.1} parent=11 // pred_region
          %335 = vsyncadd [#allocation10], 0
          %s336 = sshll.u32 %s4, 4
          %s337 = int_to_ptr.hbm [resolvable:$true] %s336
          %s338 = sshll.u32 [#allocation11], 4
          %s339 = int_to_ptr.vmem [resolvable:$true] %s338
          %344 = dma.hbm_to_vmem [thread:$0]  %s337, 3072, %s339, [#allocation10], 64, 64, 4
        $region24: #{tpu_custom_call.1} parent=11 // pred_fallthru
          _
        // Predicated region
        $region25: #{tpu_custom_call.1} parent=11 // pred_check
          %p345 = pneg %p168
        $region26: #{tpu_custom_call.1} parent=11 // pred_check_branch
          %347 = sbr.rel (%p345) target = $region28
        $region27: #{tpu_custom_call.1} parent=11 // pred_region
          %349 = vsyncadd [#allocation13], 0
          %s350 = sshll.u32 %s5, 4
          %s351 = int_to_ptr.hbm [resolvable:$true] %s350
          %s352 = sshll.u32 [#allocation12], 4
          %s353 = int_to_ptr.vmem [resolvable:$true] %s352
          %358 = dma.hbm_to_vmem [thread:$0]  %s351, 3072, %s353, [#allocation13], 64, 64, 4
        $region28: #{tpu_custom_call.1} parent=11 // pred_fallthru
          _
        // Predicated region
        $region29: #{tpu_custom_call.1} parent=11 // pred_check
          %p359 = pneg %p189
        $region30: #{tpu_custom_call.1} parent=11 // pred_check_branch
          %361 = sbr.rel (%p359) target = $region32
        $region31: #{tpu_custom_call.1} parent=11 // pred_region
          %363 = vsyncadd [#allocation13], 0
          %s364 = sshll.u32 %s6, 4
          %s365 = int_to_ptr.hbm [resolvable:$true] %s364
          %s366 = sshll.u32 [#allocation14], 4
          %s367 = int_to_ptr.vmem [resolvable:$true] %s366
          %372 = dma.hbm_to_vmem [thread:$0]  %s365, 3072, %s367, [#allocation13], 64, 64, 4
        $region32: #{tpu_custom_call.1} parent=11 // pred_fallthru
          _
        // Predicated region
        $region33: #{tpu_custom_call.1} parent=11 // pred_check
          %p373 = pneg %p210
        $region34: #{tpu_custom_call.1} parent=11 // pred_check_branch
          %375 = sbr.rel (%p373) target = $region36
        $region35: #{tpu_custom_call.1} parent=11 // pred_region
          %377 = vsyncadd [#allocation16], 0
          %s378 = sshll.u32 %s7, 4
          %s379 = int_to_ptr.hbm [resolvable:$true] %s378
          %s380 = sshll.u32 [#allocation15], 4
          %s381 = int_to_ptr.vmem [resolvable:$true] %s380
          %386 = dma.hbm_to_vmem [thread:$0]  %s379, 1024, %s381, [#allocation16], 64, 64, 4
        $region36: #{tpu_custom_call.1} parent=11 // pred_fallthru
          _
      $region12: #{tpu_custom_call.1} parent=5 // pred_fallthru
        _
      %p387 = scmp.lt.s32.totalorder %s32, 2
      // Predicated region
      $region37: #{tpu_custom_call.1} parent=5 // pred_check
        %p388 = pneg %p387
      $region38: #{tpu_custom_call.1} parent=5 // pred_check_branch
        %390 = sbr.rel (%p388) target = $region40
      $region39: #{tpu_custom_call.1} parent=5 // pred_region
        // Predicated region
        $region41: #{tpu_custom_call.1} parent=39 // pred_check
          %p391 = pneg %p52
        $region42: #{tpu_custom_call.1} parent=39 // pred_check_branch
          %393 = sbr.rel (%p391) target = $region44
        $region43: #{tpu_custom_call.1} parent=39 // pred_region
          %s394 = sand.u32 %s32, 1
          %s395 = scalar_lea.sflag [#allocation4], %s394
          %s396 = sand.u32 %s42, 1
          %s397 = smul.addr %s396, 8
          %s398 = scalar_lea.vmem [#allocation3], %s397
          %400 = vsyncadd %s395, 0
          %s401 = smul.addr %s32, 2
          %s402 = smul.addr %s401, 4
          %s403 = scalar_lea.hbm %s0, %s402
          %s404 = sshll.u32 %s403, 4
          %s405 = int_to_ptr.hbm [resolvable:$true] %s404
          %s406 = sshll.u32 %s398, 4
          %s407 = int_to_ptr.vmem [resolvable:$true] %s406
          %412 = dma.hbm_to_vmem [thread:$0]  %s405, 128, %s407, %s395, 64, 64, 4
        $region44: #{tpu_custom_call.1} parent=39 // pred_fallthru
          _
        // Predicated region
        $region45: #{tpu_custom_call.1} parent=39 // pred_check
          %p413 = pneg %p78
        $region46: #{tpu_custom_call.1} parent=39 // pred_check_branch
          %415 = sbr.rel (%p413) target = $region48
        $region47: #{tpu_custom_call.1} parent=39 // pred_region
          %s416 = sand.u32 %s32, 1
          %s417 = scalar_lea.sflag [#allocation7], %s416
          %s418 = sand.u32 %s68, 1
          %s419 = smul.addr %s418, 8
          %s420 = scalar_lea.vmem [#allocation6], %s419
          %422 = vsyncadd %s417, 0
          %s423 = smul.addr %s32, 2
          %s424 = smul.addr %s423, 4
          %s425 = scalar_lea.hbm %s1, %s424
          %s426 = sshll.u32 %s425, 4
          %s427 = int_to_ptr.hbm [resolvable:$true] %s426
          %s428 = sshll.u32 %s420, 4
          %s429 = int_to_ptr.vmem [resolvable:$true] %s428
          %434 = dma.hbm_to_vmem [thread:$0]  %s427, 128, %s429, %s417, 64, 64, 4
        $region48: #{tpu_custom_call.1} parent=39 // pred_fallthru
          _
        // Predicated region
        $region49: #{tpu_custom_call.1} parent=39 // pred_check
          %p435 = pneg %p230
        $region50: #{tpu_custom_call.1} parent=39 // pred_check_branch
          %437 = sbr.rel (%p435) target = $region52
        $region51: #{tpu_custom_call.1} parent=39 // pred_region
          %s438 = sand.u32 %s32, 1
          %s439 = scalar_lea.sflag [#allocation4], %s438
          %s440 = sand.u32 %s220, 1
          %s441 = smul.addr %s440, 64
          %s442 = scalar_lea.vmem [#allocation17], %s441
          %444 = vsyncadd %s439, 0
          %s445 = smul.addr %s32, 16
          %s446 = smul.addr %s445, 4
          %s447 = scalar_lea.hbm %s8, %s446
          %s448 = sshll.u32 %s447, 4
          %s449 = int_to_ptr.hbm [resolvable:$true] %s448
          %s450 = sshll.u32 %s442, 4
          %s451 = int_to_ptr.vmem [resolvable:$true] %s450
          %456 = dma.hbm_to_vmem [thread:$0]  %s449, 1024, %s451, %s439, 64, 64, 4
        $region52: #{tpu_custom_call.1} parent=39 // pred_fallthru
          _
      $region40: #{tpu_custom_call.1} parent=5 // pred_fallthru
        _
      %p457 = scmp.le.s32.totalorder 1, %s32
      %p458 = scmp.lt.s32.totalorder %s32, 3
      %p459 = pnand %p457, %p458
      %p460 = pneg %p459
      // Predicated region
      $region53: #{tpu_custom_call.1} parent=5 // pred_check
        _
      $region54: #{tpu_custom_call.1} parent=5 // pred_check_branch
        %462 = sbr.rel (%p459) target = $region56
      $region55: #{tpu_custom_call.1} parent=5 // pred_region
        %s463 = ssub.s32 %s32, 1
        %s464 = sand.u32 %s37, 1
        %s465 = scalar_lea.sflag [#allocation4], %s464
        %s466 = sand.u32 %s45, 1
        %s467 = smul.addr %s466, 8
        %s468 = scalar_lea.vmem [#allocation3], %s467
        // Predicated region
        $region57: #{tpu_custom_call.1} parent=55 // pred_check
          %p469 = pneg %p58
        $region58: #{tpu_custom_call.1} parent=55 // pred_check_branch
          %471 = sbr.rel (%p469) target = $region60
        $region59: #{tpu_custom_call.1} parent=55 // pred_region
          %473 = dma.done %s465, 128
        $region60: #{tpu_custom_call.1} parent=55 // pred_fallthru
          _
        %s474 = sand.u32 %s37, 1
        %s475 = scalar_lea.sflag [#allocation7], %s474
        %s476 = sand.u32 %s71, 1
        %s477 = smul.addr %s476, 8
        %s478 = scalar_lea.vmem [#allocation6], %s477
        // Predicated region
        $region61: #{tpu_custom_call.1} parent=55 // pred_check
          %p479 = pneg %p84
        $region62: #{tpu_custom_call.1} parent=55 // pred_check_branch
          %481 = sbr.rel (%p479) target = $region64
        $region63: #{tpu_custom_call.1} parent=55 // pred_region
          %483 = dma.done %s475, 128
        $region64: #{tpu_custom_call.1} parent=55 // pred_fallthru
          _
        // Predicated region
        $region65: #{tpu_custom_call.1} parent=55 // pred_check
          %p484 = pneg %p105
        $region66: #{tpu_custom_call.1} parent=55 // pred_check_branch
          %486 = sbr.rel (%p484) target = $region68
        $region67: #{tpu_custom_call.1} parent=55 // pred_region
          %488 = dma.done [#allocation7], 1024
        $region68: #{tpu_custom_call.1} parent=55 // pred_fallthru
          _
        // Predicated region
        $region69: #{tpu_custom_call.1} parent=55 // pred_check
          %p489 = pneg %p126
        $region70: #{tpu_custom_call.1} parent=55 // pred_check_branch
          %491 = sbr.rel (%p489) target = $region72
        $region71: #{tpu_custom_call.1} parent=55 // pred_region
          %493 = dma.done [#allocation10], 3072
        $region72: #{tpu_custom_call.1} parent=55 // pred_fallthru
          _
        // Predicated region
        $region73: #{tpu_custom_call.1} parent=55 // pred_check
          %p494 = pneg %p147
        $region74: #{tpu_custom_call.1} parent=55 // pred_check_branch
          %496 = sbr.rel (%p494) target = $region76
        $region75: #{tpu_custom_call.1} parent=55 // pred_region
          %498 = dma.done [#allocation10], 3072
        $region76: #{tpu_custom_call.1} parent=55 // pred_fallthru
          _
        // Predicated region
        $region77: #{tpu_custom_call.1} parent=55 // pred_check
          %p499 = pneg %p168
        $region78: #{tpu_custom_call.1} parent=55 // pred_check_branch
          %501 = sbr.rel (%p499) target = $region80
        $region79: #{tpu_custom_call.1} parent=55 // pred_region
          %503 = dma.done [#allocation13], 3072
        $region80: #{tpu_custom_call.1} parent=55 // pred_fallthru
          _
        // Predicated region
        $region81: #{tpu_custom_call.1} parent=55 // pred_check
          %p504 = pneg %p189
        $region82: #{tpu_custom_call.1} parent=55 // pred_check_branch
          %506 = sbr.rel (%p504) target = $region84
        $region83: #{tpu_custom_call.1} parent=55 // pred_region
          %508 = dma.done [#allocation13], 3072
        $region84: #{tpu_custom_call.1} parent=55 // pred_fallthru
          _
        // Predicated region
        $region85: #{tpu_custom_call.1} parent=55 // pred_check
          %p509 = pneg %p210
        $region86: #{tpu_custom_call.1} parent=55 // pred_check_branch
          %511 = sbr.rel (%p509) target = $region88
        $region87: #{tpu_custom_call.1} parent=55 // pred_region
          %513 = dma.done [#allocation16], 1024
        $region88: #{tpu_custom_call.1} parent=55 // pred_fallthru
          _
        %s514 = sand.u32 %s37, 1
        %s515 = scalar_lea.sflag [#allocation4], %s514
        %s516 = sand.u32 %s223, 1
        %s517 = smul.addr %s516, 64
        %s518 = scalar_lea.vmem [#allocation17], %s517
        // Predicated region
        $region89: #{tpu_custom_call.1} parent=55 // pred_check
          %p519 = pneg %p236
        $region90: #{tpu_custom_call.1} parent=55 // pred_check_branch
          %521 = sbr.rel (%p519) target = $region92
        $region91: #{tpu_custom_call.1} parent=55 // pred_region
          %523 = dma.done %s515, 1024
        $region92: #{tpu_custom_call.1} parent=55 // pred_fallthru
          _
        %s524 = sand.u32 %s37, 1
        %s525 = scalar_lea.sflag [#allocation4], %s524
        %s526 = sand.u32 %s45, 1
        %s527 = smul.addr %s526, 8
        %s528 = scalar_lea.vmem [#allocation3], %s527
        %p529 = pneg %p58
        %p530 = pneg %p55
        %s531 = sand.u32 %s37, 1
        %s532 = scalar_lea.sflag [#allocation7], %s531
        %s533 = sand.u32 %s71, 1
        %s534 = smul.addr %s533, 8
        %s535 = scalar_lea.vmem [#allocation6], %s534
        %p536 = pneg %p84
        %p537 = pneg %p81
        %p538 = pneg %p105
        %p539 = pneg %p102
        %p540 = pneg %p126
        %p541 = pneg %p123
        %p542 = pneg %p147
        %p543 = pneg %p144
        %p544 = pneg %p168
        %p545 = pneg %p165
        %p546 = pneg %p189
        %p547 = pneg %p186
        %p548 = pneg %p210
        %p549 = pneg %p207
        %s550 = sand.u32 %s37, 1
        %s551 = scalar_lea.sflag [#allocation4], %s550
        %s552 = sand.u32 %s223, 1
        %s553 = smul.addr %s552, 64
        %s554 = scalar_lea.vmem [#allocation17], %s553
        %p555 = pneg %p236
        %p556 = pneg %p233
        %p557 = pneg %p262
        %p558 = pneg %p259
        %s559 = sand.u32 %s249, 1
        %s560 = scalar_lea.sflag [#allocation5], %s559
        %s561 = sand.u32 %s249, 1
        %s562 = smul.addr %s561, 16
        %s563 = scalar_lea.vmem [#allocation18], %s562
        %p564 = pneg %p288
        %p565 = pneg %p285
        %s566 = sand.u32 %s275, 1
        %s567 = scalar_lea.sflag [#allocation20], %s566
        %s568 = sand.u32 %s275, 1
        %s569 = smul.addr %s568, 16
        %s570 = scalar_lea.vmem [#allocation19], %s569
        %v572 = vld [vmem:[%s468] sm:$0xf]
        %v573 = vld [vmem:[%s468 + $0x4] sm:$0xf]
        %v574 = vld [vmem:[%s478] sm:$0xf]
        %v575 = vld [vmem:[%s478 + $0x4] sm:$0xf]
        %v576 = vld [vmem:[#allocation8] sm:$0xf]
        %v577 = vld [vmem:[#allocation8 + $0x4] sm:$0xf]
        %v578 = vld [vmem:[#allocation8 + $0x8] sm:$0xf]
        %v579 = vld [vmem:[#allocation8 + $0xc] sm:$0xf]
        %v580 = vld [vmem:[#allocation8 + $0x10] sm:$0xf]
        %v581 = vld [vmem:[#allocation8 + $0x14] sm:$0xf]
        %v582 = vld [vmem:[#allocation8 + $0x18] sm:$0xf]
        %v583 = vld [vmem:[#allocation8 + $0x1c] sm:$0xf]
        %v584 = vld [vmem:[#allocation8 + $0x20] sm:$0xf]
        %v585 = vld [vmem:[#allocation8 + $0x24] sm:$0xf]
        %v586 = vld [vmem:[#allocation8 + $0x28] sm:$0xf]
        %v587 = vld [vmem:[#allocation8 + $0x2c] sm:$0xf]
        %v588 = vld [vmem:[#allocation8 + $0x30] sm:$0xf]
        %v589 = vld [vmem:[#allocation8 + $0x34] sm:$0xf]
        %v590 = vld [vmem:[#allocation8 + $0x38] sm:$0xf]
        %v591 = vld [vmem:[#allocation8 + $0x3c] sm:$0xf]
        %v594 = vunpack.c.l.b16 %v572
        %v595 = vunpack.c.l.b16 %v573
        %v596 = vpack.c.b16 %v595, %v594
        %v614 = vunpack.c.l.b16 %v576
        %v615 = vunpack.c.l.b16 %v577
        %v616 = vunpack.c.l.b16 %v578
        %v617 = vunpack.c.l.b16 %v579
        %v618 = vunpack.c.l.b16 %v580
        %v619 = vunpack.c.l.b16 %v581
        %v620 = vunpack.c.l.b16 %v582
        %v621 = vunpack.c.l.b16 %v583
        %v622 = vunpack.c.l.b16 %v584
        %v623 = vunpack.c.l.b16 %v585
        %v624 = vunpack.c.l.b16 %v586
        %v625 = vunpack.c.l.b16 %v587
        %v626 = vunpack.c.l.b16 %v588
        %v627 = vunpack.c.l.b16 %v589
        %v628 = vunpack.c.l.b16 %v590
        %v629 = vunpack.c.l.b16 %v591
        %v630 = vpack.c.b16 %v615, %v614
        %v631 = vpack.c.b16 %v617, %v616
        %v632 = vpack.c.b16 %v619, %v618
        %v633 = vpack.c.b16 %v621, %v620
        %v634 = vpack.c.b16 %v623, %v622
        %v635 = vpack.c.b16 %v625, %v624
        %v636 = vpack.c.b16 %v627, %v626
        %v637 = vpack.c.b16 %v629, %v628
        %646 = vmatpush.bf16.msra.mxu0 %v637
        %647 = vmatpush.bf16.msra.mxu0 %v636
        %648 = vmatpush.bf16.msra.mxu0 %v635
        %649 = vmatpush.bf16.msra.mxu0 %v634
        %650 = vmatpush.bf16.msra.mxu0 %v633
        %651 = vmatpush.bf16.msra.mxu0 %v632
        %652 = vmatpush.bf16.msra.mxu0 %v631
        %653 = vmatpush.bf16.msra.mxu0 %v630
        %654 = vmatmul.bf16.gmra.mxu0 %v596
        %v655 = vpop.f32.mrf.mxu0
        %v656 = vadd.f32 0.0, %v655
        %v657 = vpop.f32.mrf.mxu0
        %v658 = vadd.f32 0.0, %v657
        %659 = vdwg.mxu0
        %v660 = vpack.c.bf16 %v656, %v656
        %v661 = vpack.c.bf16 %v658, %v658
        %662 = vst [vmem:[#allocation2] sm:$0xf] %v660
        %663 = vst [vmem:[#allocation2 + $0xc] sm:$0xf] %v661
        %v666 = vunpack.c.l.b16 %v574
        %v667 = vunpack.c.l.b16 %v575
        %v668 = vpack.c.b16 %v667, %v666
        %v671 = vunpack.c.l.b16 %v660
        %v672 = vunpack.c.l.b16 %v661
        %v673 = vpack.c.b16 %v672, %v671
        %vm675 = vcmask 130048
        %v677 = vsel %vm675, %v668, 0
        %679 = vmatpush.bf16.msra.mxu0 0
        %680 = vmatpush.bf16.msra.mxu0 0
        %681 = vmatpush.bf16.msra.mxu0 0
        %682 = vmatpush.bf16.msra.mxu0 0
        %683 = vmatpush.bf16.msra.mxu0 0
        %684 = vmatpush.bf16.msra.mxu0 0
        %685 = vmatpush.bf16.msra.mxu0 0
        %686 = vmatpush.bf16.msra.mxu0 %v673
        %687 = vmatmul.bf16.gmra.mxu0 %v677
        %v688 = vpop.f32.mrf.mxu0
        %v689 = vadd.f32 0.0, %v688
        %v690 = vpop.f32.mrf.mxu0
        %v691 = vadd.f32 0.0, %v690
        %692 = vdwg.mxu0
        %v693 = vpack.c.bf16 %v689, %v689
        %v694 = vpack.c.bf16 %v691, %v691
        %695 = vst [vmem:[#allocation2 + $0x4] sm:$0xf] %v693
        %696 = vst [vmem:[#allocation2 + $0x10] sm:$0xf] %v694
        %v699 = vunpack.c.l.b16 %v693
        %v700 = vunpack.c.l.b16 %v694
        %v701 = vpack.c.b16 %v700, %v699
        %703 = vmatpush.bf16.msra.mxu0 0
        %704 = vmatpush.bf16.msra.mxu0 0
        %705 = vmatpush.bf16.msra.mxu0 0
        %706 = vmatpush.bf16.msra.mxu0 0
        %707 = vmatpush.bf16.msra.mxu0 0
        %708 = vmatpush.bf16.msra.mxu0 0
        %709 = vmatpush.bf16.msra.mxu0 0
        %710 = vmatpush.bf16.msra.mxu0 %v701
        %711 = vmatmul.bf16.gmra.mxu0 %v677
        %v712 = vpop.f32.mrf.mxu0
        %v713 = vadd.f32 0.0, %v712
        %v714 = vpop.f32.mrf.mxu0
        %v715 = vadd.f32 0.0, %v714
        %716 = vdwg.mxu0
        %v717 = vmul.f32 %v713, 2.0
        %v718 = vmul.f32 %v715, 2.0
        %v719 = vsub.f32 %v717, %v656
        %v720 = vsub.f32 %v718, %v658
        %v721 = vpack.c.bf16 %v719, %v719
        %v722 = vpack.c.bf16 %v720, %v720
        %723 = vst [vmem:[#allocation2 + $0x8] sm:$0xf] %v721
        %724 = vst [vmem:[#allocation2 + $0x14] sm:$0xf] %v722
        %v725 = vld [vmem:[#allocation2] sm:$0xff]
        %v726 = vld [vmem:[#allocation2 + $0x8] sm:$0xf]
        %v727 = vld [vmem:[#allocation2 + $0xc] sm:$0xff]
        %v728 = vld [vmem:[#allocation2 + $0x14] sm:$0xf]
        %v729 = vld [vmem:[#allocation9] sm:$0xf]
        %v730 = vld [vmem:[#allocation9 + $0x4] sm:$0xf]
        %v731 = vld [vmem:[#allocation9 + $0x8] sm:$0xf]
        %v732 = vld [vmem:[#allocation9 + $0xc] sm:$0xf]
        %v733 = vld [vmem:[#allocation9 + $0x10] sm:$0xf]
        %v734 = vld [vmem:[#allocation9 + $0x14] sm:$0xf]
        %v735 = vld [vmem:[#allocation9 + $0x18] sm:$0xf]
        %v736 = vld [vmem:[#allocation9 + $0x1c] sm:$0xf]
        %v737 = vld [vmem:[#allocation9 + $0x20] sm:$0xf]
        %v738 = vld [vmem:[#allocation9 + $0x24] sm:$0xf]
        %v739 = vld [vmem:[#allocation9 + $0x28] sm:$0xf]
        %v740 = vld [vmem:[#allocation9 + $0x2c] sm:$0xf]
        %v741 = vld [vmem:[#allocation9 + $0x30] sm:$0xf]
        %v742 = vld [vmem:[#allocation9 + $0x34] sm:$0xf]
        %v743 = vld [vmem:[#allocation9 + $0x38] sm:$0xf]
        %v744 = vld [vmem:[#allocation9 + $0x3c] sm:$0xf]
        %v745 = vld [vmem:[#allocation9 + $0x40] sm:$0xf]
        %v746 = vld [vmem:[#allocation9 + $0x44] sm:$0xf]
        %v747 = vld [vmem:[#allocation9 + $0x48] sm:$0xf]
        %v748 = vld [vmem:[#allocation9 + $0x4c] sm:$0xf]
        %v749 = vld [vmem:[#allocation9 + $0x50] sm:$0xf]
        %v750 = vld [vmem:[#allocation9 + $0x54] sm:$0xf]
        %v751 = vld [vmem:[#allocation9 + $0x58] sm:$0xf]
        %v752 = vld [vmem:[#allocation9 + $0x5c] sm:$0xf]
        %v753 = vld [vmem:[#allocation9 + $0x60] sm:$0xf]
        %v754 = vld [vmem:[#allocation9 + $0x64] sm:$0xf]
        %v755 = vld [vmem:[#allocation9 + $0x68] sm:$0xf]
        %v756 = vld [vmem:[#allocation9 + $0x6c] sm:$0xf]
        %v757 = vld [vmem:[#allocation9 + $0x70] sm:$0xf]
        %v758 = vld [vmem:[#allocation9 + $0x74] sm:$0xf]
        %v759 = vld [vmem:[#allocation9 + $0x78] sm:$0xf]
        %v760 = vld [vmem:[#allocation9 + $0x7c] sm:$0xf]
        %v761 = vld [vmem:[#allocation9 + $0x80] sm:$0xf]
        %v762 = vld [vmem:[#allocation9 + $0x84] sm:$0xf]
        %v763 = vld [vmem:[#allocation9 + $0x88] sm:$0xf]
        %v764 = vld [vmem:[#allocation9 + $0x8c] sm:$0xf]
        %v765 = vld [vmem:[#allocation9 + $0x90] sm:$0xf]
        %v766 = vld [vmem:[#allocation9 + $0x94] sm:$0xf]
        %v767 = vld [vmem:[#allocation9 + $0x98] sm:$0xf]
        %v768 = vld [vmem:[#allocation9 + $0x9c] sm:$0xf]
        %v769 = vld [vmem:[#allocation9 + $0xa0] sm:$0xf]
        %v770 = vld [vmem:[#allocation9 + $0xa4] sm:$0xf]
        %v771 = vld [vmem:[#allocation9 + $0xa8] sm:$0xf]
        %v772 = vld [vmem:[#allocation9 + $0xac] sm:$0xf]
        %v773 = vld [vmem:[#allocation9 + $0xb0] sm:$0xf]
        %v774 = vld [vmem:[#allocation9 + $0xb4] sm:$0xf]
        %v775 = vld [vmem:[#allocation9 + $0xb8] sm:$0xf]
        %v776 = vld [vmem:[#allocation9 + $0xbc] sm:$0xf]
        %v781 = vunpack.c.l.b16 %v725
        %v782 = vunpack.c.h.b16 %v725
        %v783 = vunpack.c.l.b16 %v726
        %v784 = vunpack.c.l.b16 %v727
        %v785 = vunpack.c.h.b16 %v727
        %v786 = vunpack.c.l.b16 %v728
        %v787 = vpack.c.b16 %v784, %v781
        %v788 = vpack.c.b16 %v785, %v782
        %v789 = vpack.c.b16 %v786, %v783
        %v841 = vunpack.c.l.b16 %v729
        %v842 = vunpack.c.l.b16 %v730
        %v843 = vunpack.c.l.b16 %v731
        %v844 = vunpack.c.l.b16 %v732
        %v845 = vunpack.c.l.b16 %v733
        %v846 = vunpack.c.l.b16 %v734
        %v847 = vunpack.c.l.b16 %v735
        %v848 = vunpack.c.l.b16 %v736
        %v849 = vunpack.c.l.b16 %v737
        %v850 = vunpack.c.l.b16 %v738
        %v851 = vunpack.c.l.b16 %v739
        %v852 = vunpack.c.l.b16 %v740
        %v853 = vunpack.c.l.b16 %v741
        %v854 = vunpack.c.l.b16 %v742
        %v855 = vunpack.c.l.b16 %v743
        %v856 = vunpack.c.l.b16 %v744
        %v857 = vunpack.c.l.b16 %v745
        %v858 = vunpack.c.l.b16 %v746
        %v859 = vunpack.c.l.b16 %v747
        %v860 = vunpack.c.l.b16 %v748
        %v861 = vunpack.c.l.b16 %v749
        %v862 = vunpack.c.l.b16 %v750
        %v863 = vunpack.c.l.b16 %v751
        %v864 = vunpack.c.l.b16 %v752
        %v865 = vunpack.c.l.b16 %v753
        %v866 = vunpack.c.l.b16 %v754
        %v867 = vunpack.c.l.b16 %v755
        %v868 = vunpack.c.l.b16 %v756
        %v869 = vunpack.c.l.b16 %v757
        %v870 = vunpack.c.l.b16 %v758
        %v871 = vunpack.c.l.b16 %v759
        %v872 = vunpack.c.l.b16 %v760
        %v873 = vunpack.c.l.b16 %v761
        %v874 = vunpack.c.l.b16 %v762
        %v875 = vunpack.c.l.b16 %v763
        %v876 = vunpack.c.l.b16 %v764
        %v877 = vunpack.c.l.b16 %v765
        %v878 = vunpack.c.l.b16 %v766
        %v879 = vunpack.c.l.b16 %v767
        %v880 = vunpack.c.l.b16 %v768
        %v881 = vunpack.c.l.b16 %v769
        %v882 = vunpack.c.l.b16 %v770
        %v883 = vunpack.c.l.b16 %v771
        %v884 = vunpack.c.l.b16 %v772
        %v885 = vunpack.c.l.b16 %v773
        %v886 = vunpack.c.l.b16 %v774
        %v887 = vunpack.c.l.b16 %v775
        %v888 = vunpack.c.l.b16 %v776
        %v889 = vpack.c.b16 %v842, %v841
        %v890 = vpack.c.b16 %v844, %v843
        %v891 = vpack.c.b16 %v846, %v845
        %v892 = vpack.c.b16 %v848, %v847
        %v893 = vpack.c.b16 %v850, %v849
        %v894 = vpack.c.b16 %v852, %v851
        %v895 = vpack.c.b16 %v854, %v853
        %v896 = vpack.c.b16 %v856, %v855
        %v897 = vpack.c.b16 %v858, %v857
        %v898 = vpack.c.b16 %v860, %v859
        %v899 = vpack.c.b16 %v862, %v861
        %v900 = vpack.c.b16 %v864, %v863
        %v901 = vpack.c.b16 %v866, %v865
        %v902 = vpack.c.b16 %v868, %v867
        %v903 = vpack.c.b16 %v870, %v869
        %v904 = vpack.c.b16 %v872, %v871
        %v905 = vpack.c.b16 %v874, %v873
        %v906 = vpack.c.b16 %v876, %v875
        %v907 = vpack.c.b16 %v878, %v877
        %v908 = vpack.c.b16 %v880, %v879
        %v909 = vpack.c.b16 %v882, %v881
        %v910 = vpack.c.b16 %v884, %v883
        %v911 = vpack.c.b16 %v886, %v885
        %v912 = vpack.c.b16 %v888, %v887
        %937 = vmatpush.bf16.msra.mxu0 %v896
        %938 = vmatpush.bf16.msra.mxu0 %v895
        %939 = vmatpush.bf16.msra.mxu0 %v894
        %940 = vmatpush.bf16.msra.mxu0 %v893
        %941 = vmatpush.bf16.msra.mxu0 %v892
        %942 = vmatpush.bf16.msra.mxu0 %v891
        %943 = vmatpush.bf16.msra.mxu0 %v890
        %944 = vmatpush.bf16.msra.mxu0 %v889
        %945 = vmatmul.bf16.gmra.mxu0 %v787
        %v946 = vpop.f32.mrf.mxu0
        %v947 = vadd.f32 0.0, %v946
        %v948 = vpop.f32.mrf.mxu0
        %v949 = vadd.f32 0.0, %v948
        %950 = vdwg.mxu0
        %951 = vmatpush.bf16.msra.mxu0 %v904
        %952 = vmatpush.bf16.msra.mxu0 %v903
        %953 = vmatpush.bf16.msra.mxu0 %v902
        %954 = vmatpush.bf16.msra.mxu0 %v901
        %955 = vmatpush.bf16.msra.mxu0 %v900
        %956 = vmatpush.bf16.msra.mxu0 %v899
        %957 = vmatpush.bf16.msra.mxu0 %v898
        %958 = vmatpush.bf16.msra.mxu0 %v897
        %959 = vmatmul.bf16.gmra.mxu0 %v788
        %v960 = vpop.f32.mrf.mxu0
        %v961 = vadd.f32 %v947, %v960
        %v962 = vpop.f32.mrf.mxu0
        %v963 = vadd.f32 %v949, %v962
        %964 = vdwg.mxu0
        %965 = vmatpush.bf16.msra.mxu0 %v912
        %966 = vmatpush.bf16.msra.mxu0 %v911
        %967 = vmatpush.bf16.msra.mxu0 %v910
        %968 = vmatpush.bf16.msra.mxu0 %v909
        %969 = vmatpush.bf16.msra.mxu0 %v908
        %970 = vmatpush.bf16.msra.mxu0 %v907
        %971 = vmatpush.bf16.msra.mxu0 %v906
        %972 = vmatpush.bf16.msra.mxu0 %v905
        %973 = vmatmul.bf16.gmra.mxu0 %v789
        %v974 = vpop.f32.mrf.mxu0
        %v975 = vadd.f32 %v961, %v974
        %v976 = vpop.f32.mrf.mxu0
        %v977 = vadd.f32 %v963, %v976
        %978 = vdwg.mxu0
        %v979 = vmax.f32 %v975, 0.0
        %v980 = vmax.f32 %v977, 0.0
        %v981 = vpack.c.bf16 %v979, %v979
        %v982 = vpack.c.bf16 %v980, %v980
        %983 = vst [vmem:[#allocation2] sm:$0xf] %v981
        %984 = vst [vmem:[#allocation2 + $0xc] sm:$0xf] %v982
        %v987 = vunpack.c.l.b16 %v981
        %v988 = vunpack.c.l.b16 %v982
        %v989 = vpack.c.b16 %v988, %v987
        %991 = vmatpush.bf16.msra.mxu0 0
        %992 = vmatpush.bf16.msra.mxu0 0
        %993 = vmatpush.bf16.msra.mxu0 0
        %994 = vmatpush.bf16.msra.mxu0 0
        %995 = vmatpush.bf16.msra.mxu0 0
        %996 = vmatpush.bf16.msra.mxu0 0
        %997 = vmatpush.bf16.msra.mxu0 0
        %998 = vmatpush.bf16.msra.mxu0 %v989
        %999 = vmatmul.bf16.gmra.mxu0 %v677
        %v1000 = vpop.f32.mrf.mxu0
        %v1001 = vadd.f32 0.0, %v1000
        %v1002 = vpop.f32.mrf.mxu0
        %v1003 = vadd.f32 0.0, %v1002
        %1004 = vdwg.mxu0
        %v1005 = vpack.c.bf16 %v1001, %v1001
        %v1006 = vpack.c.bf16 %v1003, %v1003
        %1007 = vst [vmem:[#allocation2 + $0x4] sm:$0xf] %v1005
        %1008 = vst [vmem:[#allocation2 + $0x10] sm:$0xf] %v1006
        %v1011 = vunpack.c.l.b16 %v1005
        %v1012 = vunpack.c.l.b16 %v1006
        %v1013 = vpack.c.b16 %v1012, %v1011
        %1015 = vmatpush.bf16.msra.mxu0 0
        %1016 = vmatpush.bf16.msra.mxu0 0
        %1017 = vmatpush.bf16.msra.mxu0 0
        %1018 = vmatpush.bf16.msra.mxu0 0
        %1019 = vmatpush.bf16.msra.mxu0 0
        %1020 = vmatpush.bf16.msra.mxu0 0
        %1021 = vmatpush.bf16.msra.mxu0 0
        %1022 = vmatpush.bf16.msra.mxu0 %v1013
        %1023 = vmatmul.bf16.gmra.mxu0 %v677
        %v1024 = vpop.f32.mrf.mxu0
        %v1025 = vadd.f32 0.0, %v1024
        %v1026 = vpop.f32.mrf.mxu0
        %v1027 = vadd.f32 0.0, %v1026
        %1028 = vdwg.mxu0
        %v1029 = vmul.f32 %v1025, 2.0
        %v1030 = vmul.f32 %v1027, 2.0
        %v1031 = vsub.f32 %v1029, %v979
        %v1032 = vsub.f32 %v1030, %v980
        %v1033 = vpack.c.bf16 %v1031, %v1031
        %v1034 = vpack.c.bf16 %v1032, %v1032
        %1035 = vst [vmem:[#allocation2 + $0x8] sm:$0xf] %v1033
        %1036 = vst [vmem:[#allocation2 + $0x14] sm:$0xf] %v1034
        %v1037 = vld [vmem:[#allocation2] sm:$0xff]
        %v1038 = vld [vmem:[#allocation2 + $0x8] sm:$0xf]
        %v1039 = vld [vmem:[#allocation2 + $0xc] sm:$0xff]
        %v1040 = vld [vmem:[#allocation2 + $0x14] sm:$0xf]
        %v1041 = vld [vmem:[#allocation11] sm:$0xf]
        %v1042 = vld [vmem:[#allocation11 + $0x4] sm:$0xf]
        %v1043 = vld [vmem:[#allocation11 + $0x8] sm:$0xf]
        %v1044 = vld [vmem:[#allocation11 + $0xc] sm:$0xf]
        %v1045 = vld [vmem:[#allocation11 + $0x10] sm:$0xf]
        %v1046 = vld [vmem:[#allocation11 + $0x14] sm:$0xf]
        %v1047 = vld [vmem:[#allocation11 + $0x18] sm:$0xf]
        %v1048 = vld [vmem:[#allocation11 + $0x1c] sm:$0xf]
        %v1049 = vld [vmem:[#allocation11 + $0x20] sm:$0xf]
        %v1050 = vld [vmem:[#allocation11 + $0x24] sm:$0xf]
        %v1051 = vld [vmem:[#allocation11 + $0x28] sm:$0xf]
        %v1052 = vld [vmem:[#allocation11 + $0x2c] sm:$0xf]
        %v1053 = vld [vmem:[#allocation11 + $0x30] sm:$0xf]
        %v1054 = vld [vmem:[#allocation11 + $0x34] sm:$0xf]
        %v1055 = vld [vmem:[#allocation11 + $0x38] sm:$0xf]
        %v1056 = vld [vmem:[#allocation11 + $0x3c] sm:$0xf]
        %v1057 = vld [vmem:[#allocation11 + $0x40] sm:$0xf]
        %v1058 = vld [vmem:[#allocation11 + $0x44] sm:$0xf]
        %v1059 = vld [vmem:[#allocation11 + $0x48] sm:$0xf]
        %v1060 = vld [vmem:[#allocation11 + $0x4c] sm:$0xf]
        %v1061 = vld [vmem:[#allocation11 + $0x50] sm:$0xf]
        %v1062 = vld [vmem:[#allocation11 + $0x54] sm:$0xf]
        %v1063 = vld [vmem:[#allocation11 + $0x58] sm:$0xf]
        %v1064 = vld [vmem:[#allocation11 + $0x5c] sm:$0xf]
        %v1065 = vld [vmem:[#allocation11 + $0x60] sm:$0xf]
        %v1066 = vld [vmem:[#allocation11 + $0x64] sm:$0xf]
        %v1067 = vld [vmem:[#allocation11 + $0x68] sm:$0xf]
        %v1068 = vld [vmem:[#allocation11 + $0x6c] sm:$0xf]
        %v1069 = vld [vmem:[#allocation11 + $0x70] sm:$0xf]
        %v1070 = vld [vmem:[#allocation11 + $0x74] sm:$0xf]
        %v1071 = vld [vmem:[#allocation11 + $0x78] sm:$0xf]
        %v1072 = vld [vmem:[#allocation11 + $0x7c] sm:$0xf]
        %v1073 = vld [vmem:[#allocation11 + $0x80] sm:$0xf]
        %v1074 = vld [vmem:[#allocation11 + $0x84] sm:$0xf]
        %v1075 = vld [vmem:[#allocation11 + $0x88] sm:$0xf]
        %v1076 = vld [vmem:[#allocation11 + $0x8c] sm:$0xf]
        %v1077 = vld [vmem:[#allocation11 + $0x90] sm:$0xf]
        %v1078 = vld [vmem:[#allocation11 + $0x94] sm:$0xf]
        %v1079 = vld [vmem:[#allocation11 + $0x98] sm:$0xf]
        %v1080 = vld [vmem:[#allocation11 + $0x9c] sm:$0xf]
        %v1081 = vld [vmem:[#allocation11 + $0xa0] sm:$0xf]
        %v1082 = vld [vmem:[#allocation11 + $0xa4] sm:$0xf]
        %v1083 = vld [vmem:[#allocation11 + $0xa8] sm:$0xf]
        %v1084 = vld [vmem:[#allocation11 + $0xac] sm:$0xf]
        %v1085 = vld [vmem:[#allocation11 + $0xb0] sm:$0xf]
        %v1086 = vld [vmem:[#allocation11 + $0xb4] sm:$0xf]
        %v1087 = vld [vmem:[#allocation11 + $0xb8] sm:$0xf]
        %v1088 = vld [vmem:[#allocation11 + $0xbc] sm:$0xf]
        %v1093 = vunpack.c.l.b16 %v1037
        %v1094 = vunpack.c.h.b16 %v1037
        %v1095 = vunpack.c.l.b16 %v1038
        %v1096 = vunpack.c.l.b16 %v1039
        %v1097 = vunpack.c.h.b16 %v1039
        %v1098 = vunpack.c.l.b16 %v1040
        %v1099 = vpack.c.b16 %v1096, %v1093
        %v1100 = vpack.c.b16 %v1097, %v1094
        %v1101 = vpack.c.b16 %v1098, %v1095
        %v1153 = vunpack.c.l.b16 %v1041
        %v1154 = vunpack.c.l.b16 %v1042
        %v1155 = vunpack.c.l.b16 %v1043
        %v1156 = vunpack.c.l.b16 %v1044
        %v1157 = vunpack.c.l.b16 %v1045
        %v1158 = vunpack.c.l.b16 %v1046
        %v1159 = vunpack.c.l.b16 %v1047
        %v1160 = vunpack.c.l.b16 %v1048
        %v1161 = vunpack.c.l.b16 %v1049
        %v1162 = vunpack.c.l.b16 %v1050
        %v1163 = vunpack.c.l.b16 %v1051
        %v1164 = vunpack.c.l.b16 %v1052
        %v1165 = vunpack.c.l.b16 %v1053
        %v1166 = vunpack.c.l.b16 %v1054
        %v1167 = vunpack.c.l.b16 %v1055
        %v1168 = vunpack.c.l.b16 %v1056
        %v1169 = vunpack.c.l.b16 %v1057
        %v1170 = vunpack.c.l.b16 %v1058
        %v1171 = vunpack.c.l.b16 %v1059
        %v1172 = vunpack.c.l.b16 %v1060
        %v1173 = vunpack.c.l.b16 %v1061
        %v1174 = vunpack.c.l.b16 %v1062
        %v1175 = vunpack.c.l.b16 %v1063
        %v1176 = vunpack.c.l.b16 %v1064
        %v1177 = vunpack.c.l.b16 %v1065
        %v1178 = vunpack.c.l.b16 %v1066
        %v1179 = vunpack.c.l.b16 %v1067
        %v1180 = vunpack.c.l.b16 %v1068
        %v1181 = vunpack.c.l.b16 %v1069
        %v1182 = vunpack.c.l.b16 %v1070
        %v1183 = vunpack.c.l.b16 %v1071
        %v1184 = vunpack.c.l.b16 %v1072
        %v1185 = vunpack.c.l.b16 %v1073
        %v1186 = vunpack.c.l.b16 %v1074
        %v1187 = vunpack.c.l.b16 %v1075
        %v1188 = vunpack.c.l.b16 %v1076
        %v1189 = vunpack.c.l.b16 %v1077
        %v1190 = vunpack.c.l.b16 %v1078
        %v1191 = vunpack.c.l.b16 %v1079
        %v1192 = vunpack.c.l.b16 %v1080
        %v1193 = vunpack.c.l.b16 %v1081
        %v1194 = vunpack.c.l.b16 %v1082
        %v1195 = vunpack.c.l.b16 %v1083
        %v1196 = vunpack.c.l.b16 %v1084
        %v1197 = vunpack.c.l.b16 %v1085
        %v1198 = vunpack.c.l.b16 %v1086
        %v1199 = vunpack.c.l.b16 %v1087
        %v1200 = vunpack.c.l.b16 %v1088
        %v1201 = vpack.c.b16 %v1154, %v1153
        %v1202 = vpack.c.b16 %v1156, %v1155
        %v1203 = vpack.c.b16 %v1158, %v1157
        %v1204 = vpack.c.b16 %v1160, %v1159
        %v1205 = vpack.c.b16 %v1162, %v1161
        %v1206 = vpack.c.b16 %v1164, %v1163
        %v1207 = vpack.c.b16 %v1166, %v1165
        %v1208 = vpack.c.b16 %v1168, %v1167
        %v1209 = vpack.c.b16 %v1170, %v1169
        %v1210 = vpack.c.b16 %v1172, %v1171
        %v1211 = vpack.c.b16 %v1174, %v1173
        %v1212 = vpack.c.b16 %v1176, %v1175
        %v1213 = vpack.c.b16 %v1178, %v1177
        %v1214 = vpack.c.b16 %v1180, %v1179
        %v1215 = vpack.c.b16 %v1182, %v1181
        %v1216 = vpack.c.b16 %v1184, %v1183
        %v1217 = vpack.c.b16 %v1186, %v1185
        %v1218 = vpack.c.b16 %v1188, %v1187
        %v1219 = vpack.c.b16 %v1190, %v1189
        %v1220 = vpack.c.b16 %v1192, %v1191
        %v1221 = vpack.c.b16 %v1194, %v1193
        %v1222 = vpack.c.b16 %v1196, %v1195
        %v1223 = vpack.c.b16 %v1198, %v1197
        %v1224 = vpack.c.b16 %v1200, %v1199
        %1249 = vmatpush.bf16.msra.mxu0 %v1208
        %1250 = vmatpush.bf16.msra.mxu0 %v1207
        %1251 = vmatpush.bf16.msra.mxu0 %v1206
        %1252 = vmatpush.bf16.msra.mxu0 %v1205
        %1253 = vmatpush.bf16.msra.mxu0 %v1204
        %1254 = vmatpush.bf16.msra.mxu0 %v1203
        %1255 = vmatpush.bf16.msra.mxu0 %v1202
        %1256 = vmatpush.bf16.msra.mxu0 %v1201
        %1257 = vmatmul.bf16.gmra.mxu0 %v1099
        %v1258 = vpop.f32.mrf.mxu0
        %v1259 = vadd.f32 0.0, %v1258
        %v1260 = vpop.f32.mrf.mxu0
        %v1261 = vadd.f32 0.0, %v1260
        %1262 = vdwg.mxu0
        %1263 = vmatpush.bf16.msra.mxu0 %v1216
        %1264 = vmatpush.bf16.msra.mxu0 %v1215
        %1265 = vmatpush.bf16.msra.mxu0 %v1214
        %1266 = vmatpush.bf16.msra.mxu0 %v1213
        %1267 = vmatpush.bf16.msra.mxu0 %v1212
        %1268 = vmatpush.bf16.msra.mxu0 %v1211
        %1269 = vmatpush.bf16.msra.mxu0 %v1210
        %1270 = vmatpush.bf16.msra.mxu0 %v1209
        %1271 = vmatmul.bf16.gmra.mxu0 %v1100
        %v1272 = vpop.f32.mrf.mxu0
        %v1273 = vadd.f32 %v1259, %v1272
        %v1274 = vpop.f32.mrf.mxu0
        %v1275 = vadd.f32 %v1261, %v1274
        %1276 = vdwg.mxu0
        %1277 = vmatpush.bf16.msra.mxu0 %v1224
        %1278 = vmatpush.bf16.msra.mxu0 %v1223
        %1279 = vmatpush.bf16.msra.mxu0 %v1222
        %1280 = vmatpush.bf16.msra.mxu0 %v1221
        %1281 = vmatpush.bf16.msra.mxu0 %v1220
        %1282 = vmatpush.bf16.msra.mxu0 %v1219
        %1283 = vmatpush.bf16.msra.mxu0 %v1218
        %1284 = vmatpush.bf16.msra.mxu0 %v1217
        %1285 = vmatmul.bf16.gmra.mxu0 %v1101
        %v1286 = vpop.f32.mrf.mxu0
        %v1287 = vadd.f32 %v1273, %v1286
        %v1288 = vpop.f32.mrf.mxu0
        %v1289 = vadd.f32 %v1275, %v1288
        %1290 = vdwg.mxu0
        %v1291 = vmax.f32 %v1287, 0.0
        %v1292 = vmax.f32 %v1289, 0.0
        %v1293 = vpack.c.bf16 %v1291, %v1291
        %v1294 = vpack.c.bf16 %v1292, %v1292
        %1295 = vst [vmem:[#allocation2] sm:$0xf] %v1293
        %1296 = vst [vmem:[#allocation2 + $0xc] sm:$0xf] %v1294
        %v1299 = vunpack.c.l.b16 %v1293
        %v1300 = vunpack.c.l.b16 %v1294
        %v1301 = vpack.c.b16 %v1300, %v1299
        %1303 = vmatpush.bf16.msra.mxu0 0
        %1304 = vmatpush.bf16.msra.mxu0 0
        %1305 = vmatpush.bf16.msra.mxu0 0
        %1306 = vmatpush.bf16.msra.mxu0 0
        %1307 = vmatpush.bf16.msra.mxu0 0
        %1308 = vmatpush.bf16.msra.mxu0 0
        %1309 = vmatpush.bf16.msra.mxu0 0
        %1310 = vmatpush.bf16.msra.mxu0 %v1301
        %1311 = vmatmul.bf16.gmra.mxu0 %v677
        %v1312 = vpop.f32.mrf.mxu0
        %v1313 = vadd.f32 0.0, %v1312
        %v1314 = vpop.f32.mrf.mxu0
        %v1315 = vadd.f32 0.0, %v1314
        %1316 = vdwg.mxu0
        %v1317 = vpack.c.bf16 %v1313, %v1313
        %v1318 = vpack.c.bf16 %v1315, %v1315
        %1319 = vst [vmem:[#allocation2 + $0x4] sm:$0xf] %v1317
        %1320 = vst [vmem:[#allocation2 + $0x10] sm:$0xf] %v1318
        %v1323 = vunpack.c.l.b16 %v1317
        %v1324 = vunpack.c.l.b16 %v1318
        %v1325 = vpack.c.b16 %v1324, %v1323
        %1327 = vmatpush.bf16.msra.mxu0 0
        %1328 = vmatpush.bf16.msra.mxu0 0
        %1329 = vmatpush.bf16.msra.mxu0 0
        %1330 = vmatpush.bf16.msra.mxu0 0
        %1331 = vmatpush.bf16.msra.mxu0 0
        %1332 = vmatpush.bf16.msra.mxu0 0
        %1333 = vmatpush.bf16.msra.mxu0 0
        %1334 = vmatpush.bf16.msra.mxu0 %v1325
        %1335 = vmatmul.bf16.gmra.mxu0 %v677
        %v1336 = vpop.f32.mrf.mxu0
        %v1337 = vadd.f32 0.0, %v1336
        %v1338 = vpop.f32.mrf.mxu0
        %v1339 = vadd.f32 0.0, %v1338
        %1340 = vdwg.mxu0
        %v1341 = vmul.f32 %v1337, 2.0
        %v1342 = vmul.f32 %v1339, 2.0
        %v1343 = vsub.f32 %v1341, %v1291
        %v1344 = vsub.f32 %v1342, %v1292
        %v1345 = vpack.c.bf16 %v1343, %v1343
        %v1346 = vpack.c.bf16 %v1344, %v1344
        %1347 = vst [vmem:[#allocation2 + $0x8] sm:$0xf] %v1345
        %1348 = vst [vmem:[#allocation2 + $0x14] sm:$0xf] %v1346
        %v1349 = vld [vmem:[#allocation2] sm:$0xff]
        %v1350 = vld [vmem:[#allocation2 + $0x8] sm:$0xf]
        %v1351 = vld [vmem:[#allocation2 + $0xc] sm:$0xff]
        %v1352 = vld [vmem:[#allocation2 + $0x14] sm:$0xf]
        %v1353 = vld [vmem:[#allocation12] sm:$0xf]
        %v1354 = vld [vmem:[#allocation12 + $0x4] sm:$0xf]
        %v1355 = vld [vmem:[#allocation12 + $0x8] sm:$0xf]
        %v1356 = vld [vmem:[#allocation12 + $0xc] sm:$0xf]
        %v1357 = vld [vmem:[#allocation12 + $0x10] sm:$0xf]
        %v1358 = vld [vmem:[#allocation12 + $0x14] sm:$0xf]
        %v1359 = vld [vmem:[#allocation12 + $0x18] sm:$0xf]
        %v1360 = vld [vmem:[#allocation12 + $0x1c] sm:$0xf]
        %v1361 = vld [vmem:[#allocation12 + $0x20] sm:$0xf]
        %v1362 = vld [vmem:[#allocation12 + $0x24] sm:$0xf]
        %v1363 = vld [vmem:[#allocation12 + $0x28] sm:$0xf]
        %v1364 = vld [vmem:[#allocation12 + $0x2c] sm:$0xf]
        %v1365 = vld [vmem:[#allocation12 + $0x30] sm:$0xf]
        %v1366 = vld [vmem:[#allocation12 + $0x34] sm:$0xf]
        %v1367 = vld [vmem:[#allocation12 + $0x38] sm:$0xf]
        %v1368 = vld [vmem:[#allocation12 + $0x3c] sm:$0xf]
        %v1369 = vld [vmem:[#allocation12 + $0x40] sm:$0xf]
        %v1370 = vld [vmem:[#allocation12 + $0x44] sm:$0xf]
        %v1371 = vld [vmem:[#allocation12 + $0x48] sm:$0xf]
        %v1372 = vld [vmem:[#allocation12 + $0x4c] sm:$0xf]
        %v1373 = vld [vmem:[#allocation12 + $0x50] sm:$0xf]
        %v1374 = vld [vmem:[#allocation12 + $0x54] sm:$0xf]
        %v1375 = vld [vmem:[#allocation12 + $0x58] sm:$0xf]
        %v1376 = vld [vmem:[#allocation12 + $0x5c] sm:$0xf]
        %v1377 = vld [vmem:[#allocation12 + $0x60] sm:$0xf]
        %v1378 = vld [vmem:[#allocation12 + $0x64] sm:$0xf]
        %v1379 = vld [vmem:[#allocation12 + $0x68] sm:$0xf]
        %v1380 = vld [vmem:[#allocation12 + $0x6c] sm:$0xf]
        %v1381 = vld [vmem:[#allocation12 + $0x70] sm:$0xf]
        %v1382 = vld [vmem:[#allocation12 + $0x74] sm:$0xf]
        %v1383 = vld [vmem:[#allocation12 + $0x78] sm:$0xf]
        %v1384 = vld [vmem:[#allocation12 + $0x7c] sm:$0xf]
        %v1385 = vld [vmem:[#allocation12 + $0x80] sm:$0xf]
        %v1386 = vld [vmem:[#allocation12 + $0x84] sm:$0xf]
        %v1387 = vld [vmem:[#allocation12 + $0x88] sm:$0xf]
        %v1388 = vld [vmem:[#allocation12 + $0x8c] sm:$0xf]
        %v1389 = vld [vmem:[#allocation12 + $0x90] sm:$0xf]
        %v1390 = vld [vmem:[#allocation12 + $0x94] sm:$0xf]
        %v1391 = vld [vmem:[#allocation12 + $0x98] sm:$0xf]
        %v1392 = vld [vmem:[#allocation12 + $0x9c] sm:$0xf]
        %v1393 = vld [vmem:[#allocation12 + $0xa0] sm:$0xf]
        %v1394 = vld [vmem:[#allocation12 + $0xa4] sm:$0xf]
        %v1395 = vld [vmem:[#allocation12 + $0xa8] sm:$0xf]
        %v1396 = vld [vmem:[#allocation12 + $0xac] sm:$0xf]
        %v1397 = vld [vmem:[#allocation12 + $0xb0] sm:$0xf]
        %v1398 = vld [vmem:[#allocation12 + $0xb4] sm:$0xf]
        %v1399 = vld [vmem:[#allocation12 + $0xb8] sm:$0xf]
        %v1400 = vld [vmem:[#allocation12 + $0xbc] sm:$0xf]
        %v1405 = vunpack.c.l.b16 %v1349
        %v1406 = vunpack.c.h.b16 %v1349
        %v1407 = vunpack.c.l.b16 %v1350
        %v1408 = vunpack.c.l.b16 %v1351
        %v1409 = vunpack.c.h.b16 %v1351
        %v1410 = vunpack.c.l.b16 %v1352
        %v1411 = vpack.c.b16 %v1408, %v1405
        %v1412 = vpack.c.b16 %v1409, %v1406
        %v1413 = vpack.c.b16 %v1410, %v1407
        %v1465 = vunpack.c.l.b16 %v1353
        %v1466 = vunpack.c.l.b16 %v1354
        %v1467 = vunpack.c.l.b16 %v1355
        %v1468 = vunpack.c.l.b16 %v1356
        %v1469 = vunpack.c.l.b16 %v1357
        %v1470 = vunpack.c.l.b16 %v1358
        %v1471 = vunpack.c.l.b16 %v1359
        %v1472 = vunpack.c.l.b16 %v1360
        %v1473 = vunpack.c.l.b16 %v1361
        %v1474 = vunpack.c.l.b16 %v1362
        %v1475 = vunpack.c.l.b16 %v1363
        %v1476 = vunpack.c.l.b16 %v1364
        %v1477 = vunpack.c.l.b16 %v1365
        %v1478 = vunpack.c.l.b16 %v1366
        %v1479 = vunpack.c.l.b16 %v1367
        %v1480 = vunpack.c.l.b16 %v1368
        %v1481 = vunpack.c.l.b16 %v1369
        %v1482 = vunpack.c.l.b16 %v1370
        %v1483 = vunpack.c.l.b16 %v1371
        %v1484 = vunpack.c.l.b16 %v1372
        %v1485 = vunpack.c.l.b16 %v1373
        %v1486 = vunpack.c.l.b16 %v1374
        %v1487 = vunpack.c.l.b16 %v1375
        %v1488 = vunpack.c.l.b16 %v1376
        %v1489 = vunpack.c.l.b16 %v1377
        %v1490 = vunpack.c.l.b16 %v1378
        %v1491 = vunpack.c.l.b16 %v1379
        %v1492 = vunpack.c.l.b16 %v1380
        %v1493 = vunpack.c.l.b16 %v1381
        %v1494 = vunpack.c.l.b16 %v1382
        %v1495 = vunpack.c.l.b16 %v1383
        %v1496 = vunpack.c.l.b16 %v1384
        %v1497 = vunpack.c.l.b16 %v1385
        %v1498 = vunpack.c.l.b16 %v1386
        %v1499 = vunpack.c.l.b16 %v1387
        %v1500 = vunpack.c.l.b16 %v1388
        %v1501 = vunpack.c.l.b16 %v1389
        %v1502 = vunpack.c.l.b16 %v1390
        %v1503 = vunpack.c.l.b16 %v1391
        %v1504 = vunpack.c.l.b16 %v1392
        %v1505 = vunpack.c.l.b16 %v1393
        %v1506 = vunpack.c.l.b16 %v1394
        %v1507 = vunpack.c.l.b16 %v1395
        %v1508 = vunpack.c.l.b16 %v1396
        %v1509 = vunpack.c.l.b16 %v1397
        %v1510 = vunpack.c.l.b16 %v1398
        %v1511 = vunpack.c.l.b16 %v1399
        %v1512 = vunpack.c.l.b16 %v1400
        %v1513 = vpack.c.b16 %v1466, %v1465
        %v1514 = vpack.c.b16 %v1468, %v1467
        %v1515 = vpack.c.b16 %v1470, %v1469
        %v1516 = vpack.c.b16 %v1472, %v1471
        %v1517 = vpack.c.b16 %v1474, %v1473
        %v1518 = vpack.c.b16 %v1476, %v1475
        %v1519 = vpack.c.b16 %v1478, %v1477
        %v1520 = vpack.c.b16 %v1480, %v1479
        %v1521 = vpack.c.b16 %v1482, %v1481
        %v1522 = vpack.c.b16 %v1484, %v1483
        %v1523 = vpack.c.b16 %v1486, %v1485
        %v1524 = vpack.c.b16 %v1488, %v1487
        %v1525 = vpack.c.b16 %v1490, %v1489
        %v1526 = vpack.c.b16 %v1492, %v1491
        %v1527 = vpack.c.b16 %v1494, %v1493
        %v1528 = vpack.c.b16 %v1496, %v1495
        %v1529 = vpack.c.b16 %v1498, %v1497
        %v1530 = vpack.c.b16 %v1500, %v1499
        %v1531 = vpack.c.b16 %v1502, %v1501
        %v1532 = vpack.c.b16 %v1504, %v1503
        %v1533 = vpack.c.b16 %v1506, %v1505
        %v1534 = vpack.c.b16 %v1508, %v1507
        %v1535 = vpack.c.b16 %v1510, %v1509
        %v1536 = vpack.c.b16 %v1512, %v1511
        %1561 = vmatpush.bf16.msra.mxu0 %v1520
        %1562 = vmatpush.bf16.msra.mxu0 %v1519
        %1563 = vmatpush.bf16.msra.mxu0 %v1518
        %1564 = vmatpush.bf16.msra.mxu0 %v1517
        %1565 = vmatpush.bf16.msra.mxu0 %v1516
        %1566 = vmatpush.bf16.msra.mxu0 %v1515
        %1567 = vmatpush.bf16.msra.mxu0 %v1514
        %1568 = vmatpush.bf16.msra.mxu0 %v1513
        %1569 = vmatmul.bf16.gmra.mxu0 %v1411
        %v1570 = vpop.f32.mrf.mxu0
        %v1571 = vadd.f32 0.0, %v1570
        %v1572 = vpop.f32.mrf.mxu0
        %v1573 = vadd.f32 0.0, %v1572
        %1574 = vdwg.mxu0
        %1575 = vmatpush.bf16.msra.mxu0 %v1528
        %1576 = vmatpush.bf16.msra.mxu0 %v1527
        %1577 = vmatpush.bf16.msra.mxu0 %v1526
        %1578 = vmatpush.bf16.msra.mxu0 %v1525
        %1579 = vmatpush.bf16.msra.mxu0 %v1524
        %1580 = vmatpush.bf16.msra.mxu0 %v1523
        %1581 = vmatpush.bf16.msra.mxu0 %v1522
        %1582 = vmatpush.bf16.msra.mxu0 %v1521
        %1583 = vmatmul.bf16.gmra.mxu0 %v1412
        %v1584 = vpop.f32.mrf.mxu0
        %v1585 = vadd.f32 %v1571, %v1584
        %v1586 = vpop.f32.mrf.mxu0
        %v1587 = vadd.f32 %v1573, %v1586
        %1588 = vdwg.mxu0
        %1589 = vmatpush.bf16.msra.mxu0 %v1536
        %1590 = vmatpush.bf16.msra.mxu0 %v1535
        %1591 = vmatpush.bf16.msra.mxu0 %v1534
        %1592 = vmatpush.bf16.msra.mxu0 %v1533
        %1593 = vmatpush.bf16.msra.mxu0 %v1532
        %1594 = vmatpush.bf16.msra.mxu0 %v1531
        %1595 = vmatpush.bf16.msra.mxu0 %v1530
        %1596 = vmatpush.bf16.msra.mxu0 %v1529
        %1597 = vmatmul.bf16.gmra.mxu0 %v1413
        %v1598 = vpop.f32.mrf.mxu0
        %v1599 = vadd.f32 %v1585, %v1598
        %v1600 = vpop.f32.mrf.mxu0
        %v1601 = vadd.f32 %v1587, %v1600
        %1602 = vdwg.mxu0
        %v1603 = vmax.f32 %v1599, 0.0
        %v1604 = vmax.f32 %v1601, 0.0
        %v1605 = vpack.c.bf16 %v1603, %v1603
        %v1606 = vpack.c.bf16 %v1604, %v1604
        %1607 = vst [vmem:[#allocation2] sm:$0xf] %v1605
        %1608 = vst [vmem:[#allocation2 + $0xc] sm:$0xf] %v1606
        %v1611 = vunpack.c.l.b16 %v1605
        %v1612 = vunpack.c.l.b16 %v1606
        %v1613 = vpack.c.b16 %v1612, %v1611
        %1615 = vmatpush.bf16.msra.mxu0 0
        %1616 = vmatpush.bf16.msra.mxu0 0
        %1617 = vmatpush.bf16.msra.mxu0 0
        %1618 = vmatpush.bf16.msra.mxu0 0
        %1619 = vmatpush.bf16.msra.mxu0 0
        %1620 = vmatpush.bf16.msra.mxu0 0
        %1621 = vmatpush.bf16.msra.mxu0 0
        %1622 = vmatpush.bf16.msra.mxu0 %v1613
        %1623 = vmatmul.bf16.gmra.mxu0 %v677
        %v1624 = vpop.f32.mrf.mxu0
        %v1625 = vadd.f32 0.0, %v1624
        %v1626 = vpop.f32.mrf.mxu0
        %v1627 = vadd.f32 0.0, %v1626
        %1628 = vdwg.mxu0
        %v1629 = vpack.c.bf16 %v1625, %v1625
        %v1630 = vpack.c.bf16 %v1627, %v1627
        %1631 = vst [vmem:[#allocation2 + $0x4] sm:$0xf] %v1629
        %1632 = vst [vmem:[#allocation2 + $0x10] sm:$0xf] %v1630
        %v1635 = vunpack.c.l.b16 %v1629
        %v1636 = vunpack.c.l.b16 %v1630
        %v1637 = vpack.c.b16 %v1636, %v1635
        %1639 = vmatpush.bf16.msra.mxu0 0
        %1640 = vmatpush.bf16.msra.mxu0 0
        %1641 = vmatpush.bf16.msra.mxu0 0
        %1642 = vmatpush.bf16.msra.mxu0 0
        %1643 = vmatpush.bf16.msra.mxu0 0
        %1644 = vmatpush.bf16.msra.mxu0 0
        %1645 = vmatpush.bf16.msra.mxu0 0
        %1646 = vmatpush.bf16.msra.mxu0 %v1637
        %1647 = vmatmul.bf16.gmra.mxu0 %v677
        %v1648 = vpop.f32.mrf.mxu0
        %v1649 = vadd.f32 0.0, %v1648
        %v1650 = vpop.f32.mrf.mxu0
        %v1651 = vadd.f32 0.0, %v1650
        %1652 = vdwg.mxu0
        %v1653 = vmul.f32 %v1649, 2.0
        %v1654 = vmul.f32 %v1651, 2.0
        %v1655 = vsub.f32 %v1653, %v1603
        %v1656 = vsub.f32 %v1654, %v1604
        %v1657 = vpack.c.bf16 %v1655, %v1655
        %v1658 = vpack.c.bf16 %v1656, %v1656
        %1659 = vst [vmem:[#allocation2 + $0x8] sm:$0xf] %v1657
        %1660 = vst [vmem:[#allocation2 + $0x14] sm:$0xf] %v1658
        %v1661 = vld [vmem:[#allocation2] sm:$0xff]
        %v1662 = vld [vmem:[#allocation2 + $0x8] sm:$0xf]
        %v1663 = vld [vmem:[#allocation2 + $0xc] sm:$0xff]
        %v1664 = vld [vmem:[#allocation2 + $0x14] sm:$0xf]
        %v1665 = vld [vmem:[#allocation14] sm:$0xf]
        %v1666 = vld [vmem:[#allocation14 + $0x4] sm:$0xf]
        %v1667 = vld [vmem:[#allocation14 + $0x8] sm:$0xf]
        %v1668 = vld [vmem:[#allocation14 + $0xc] sm:$0xf]
        %v1669 = vld [vmem:[#allocation14 + $0x10] sm:$0xf]
        %v1670 = vld [vmem:[#allocation14 + $0x14] sm:$0xf]
        %v1671 = vld [vmem:[#allocation14 + $0x18] sm:$0xf]
        %v1672 = vld [vmem:[#allocation14 + $0x1c] sm:$0xf]
        %v1673 = vld [vmem:[#allocation14 + $0x20] sm:$0xf]
        %v1674 = vld [vmem:[#allocation14 + $0x24] sm:$0xf]
        %v1675 = vld [vmem:[#allocation14 + $0x28] sm:$0xf]
        %v1676 = vld [vmem:[#allocation14 + $0x2c] sm:$0xf]
        %v1677 = vld [vmem:[#allocation14 + $0x30] sm:$0xf]
        %v1678 = vld [vmem:[#allocation14 + $0x34] sm:$0xf]
        %v1679 = vld [vmem:[#allocation14 + $0x38] sm:$0xf]
        %v1680 = vld [vmem:[#allocation14 + $0x3c] sm:$0xf]
        %v1681 = vld [vmem:[#allocation14 + $0x40] sm:$0xf]
        %v1682 = vld [vmem:[#allocation14 + $0x44] sm:$0xf]
        %v1683 = vld [vmem:[#allocation14 + $0x48] sm:$0xf]
        %v1684 = vld [vmem:[#allocation14 + $0x4c] sm:$0xf]
        %v1685 = vld [vmem:[#allocation14 + $0x50] sm:$0xf]
        %v1686 = vld [vmem:[#allocation14 + $0x54] sm:$0xf]
        %v1687 = vld [vmem:[#allocation14 + $0x58] sm:$0xf]
        %v1688 = vld [vmem:[#allocation14 + $0x5c] sm:$0xf]
        %v1689 = vld [vmem:[#allocation14 + $0x60] sm:$0xf]
        %v1690 = vld [vmem:[#allocation14 + $0x64] sm:$0xf]
        %v1691 = vld [vmem:[#allocation14 + $0x68] sm:$0xf]
        %v1692 = vld [vmem:[#allocation14 + $0x6c] sm:$0xf]
        %v1693 = vld [vmem:[#allocation14 + $0x70] sm:$0xf]
        %v1694 = vld [vmem:[#allocation14 + $0x74] sm:$0xf]
        %v1695 = vld [vmem:[#allocation14 + $0x78] sm:$0xf]
        %v1696 = vld [vmem:[#allocation14 + $0x7c] sm:$0xf]
        %v1697 = vld [vmem:[#allocation14 + $0x80] sm:$0xf]
        %v1698 = vld [vmem:[#allocation14 + $0x84] sm:$0xf]
        %v1699 = vld [vmem:[#allocation14 + $0x88] sm:$0xf]
        %v1700 = vld [vmem:[#allocation14 + $0x8c] sm:$0xf]
        %v1701 = vld [vmem:[#allocation14 + $0x90] sm:$0xf]
        %v1702 = vld [vmem:[#allocation14 + $0x94] sm:$0xf]
        %v1703 = vld [vmem:[#allocation14 + $0x98] sm:$0xf]
        %v1704 = vld [vmem:[#allocation14 + $0x9c] sm:$0xf]
        %v1705 = vld [vmem:[#allocation14 + $0xa0] sm:$0xf]
        %v1706 = vld [vmem:[#allocation14 + $0xa4] sm:$0xf]
        %v1707 = vld [vmem:[#allocation14 + $0xa8] sm:$0xf]
        %v1708 = vld [vmem:[#allocation14 + $0xac] sm:$0xf]
        %v1709 = vld [vmem:[#allocation14 + $0xb0] sm:$0xf]
        %v1710 = vld [vmem:[#allocation14 + $0xb4] sm:$0xf]
        %v1711 = vld [vmem:[#allocation14 + $0xb8] sm:$0xf]
        %v1712 = vld [vmem:[#allocation14 + $0xbc] sm:$0xf]
        %v1717 = vunpack.c.l.b16 %v1661
        %v1718 = vunpack.c.h.b16 %v1661
        %v1719 = vunpack.c.l.b16 %v1662
        %v1720 = vunpack.c.l.b16 %v1663
        %v1721 = vunpack.c.h.b16 %v1663
        %v1722 = vunpack.c.l.b16 %v1664
        %v1723 = vpack.c.b16 %v1720, %v1717
        %v1724 = vpack.c.b16 %v1721, %v1718
        %v1725 = vpack.c.b16 %v1722, %v1719
        %v1777 = vunpack.c.l.b16 %v1665
        %v1778 = vunpack.c.l.b16 %v1666
        %v1779 = vunpack.c.l.b16 %v1667
        %v1780 = vunpack.c.l.b16 %v1668
        %v1781 = vunpack.c.l.b16 %v1669
        %v1782 = vunpack.c.l.b16 %v1670
        %v1783 = vunpack.c.l.b16 %v1671
        %v1784 = vunpack.c.l.b16 %v1672
        %v1785 = vunpack.c.l.b16 %v1673
        %v1786 = vunpack.c.l.b16 %v1674
        %v1787 = vunpack.c.l.b16 %v1675
        %v1788 = vunpack.c.l.b16 %v1676
        %v1789 = vunpack.c.l.b16 %v1677
        %v1790 = vunpack.c.l.b16 %v1678
        %v1791 = vunpack.c.l.b16 %v1679
        %v1792 = vunpack.c.l.b16 %v1680
        %v1793 = vunpack.c.l.b16 %v1681
        %v1794 = vunpack.c.l.b16 %v1682
        %v1795 = vunpack.c.l.b16 %v1683
        %v1796 = vunpack.c.l.b16 %v1684
        %v1797 = vunpack.c.l.b16 %v1685
        %v1798 = vunpack.c.l.b16 %v1686
        %v1799 = vunpack.c.l.b16 %v1687
        %v1800 = vunpack.c.l.b16 %v1688
        %v1801 = vunpack.c.l.b16 %v1689
        %v1802 = vunpack.c.l.b16 %v1690
        %v1803 = vunpack.c.l.b16 %v1691
        %v1804 = vunpack.c.l.b16 %v1692
        %v1805 = vunpack.c.l.b16 %v1693
        %v1806 = vunpack.c.l.b16 %v1694
        %v1807 = vunpack.c.l.b16 %v1695
        %v1808 = vunpack.c.l.b16 %v1696
        %v1809 = vunpack.c.l.b16 %v1697
        %v1810 = vunpack.c.l.b16 %v1698
        %v1811 = vunpack.c.l.b16 %v1699
        %v1812 = vunpack.c.l.b16 %v1700
        %v1813 = vunpack.c.l.b16 %v1701
        %v1814 = vunpack.c.l.b16 %v1702
        %v1815 = vunpack.c.l.b16 %v1703
        %v1816 = vunpack.c.l.b16 %v1704
        %v1817 = vunpack.c.l.b16 %v1705
        %v1818 = vunpack.c.l.b16 %v1706
        %v1819 = vunpack.c.l.b16 %v1707
        %v1820 = vunpack.c.l.b16 %v1708
        %v1821 = vunpack.c.l.b16 %v1709
        %v1822 = vunpack.c.l.b16 %v1710
        %v1823 = vunpack.c.l.b16 %v1711
        %v1824 = vunpack.c.l.b16 %v1712
        %v1825 = vpack.c.b16 %v1778, %v1777
        %v1826 = vpack.c.b16 %v1780, %v1779
        %v1827 = vpack.c.b16 %v1782, %v1781
        %v1828 = vpack.c.b16 %v1784, %v1783
        %v1829 = vpack.c.b16 %v1786, %v1785
        %v1830 = vpack.c.b16 %v1788, %v1787
        %v1831 = vpack.c.b16 %v1790, %v1789
        %v1832 = vpack.c.b16 %v1792, %v1791
        %v1833 = vpack.c.b16 %v1794, %v1793
        %v1834 = vpack.c.b16 %v1796, %v1795
        %v1835 = vpack.c.b16 %v1798, %v1797
        %v1836 = vpack.c.b16 %v1800, %v1799
        %v1837 = vpack.c.b16 %v1802, %v1801
        %v1838 = vpack.c.b16 %v1804, %v1803
        %v1839 = vpack.c.b16 %v1806, %v1805
        %v1840 = vpack.c.b16 %v1808, %v1807
        %v1841 = vpack.c.b16 %v1810, %v1809
        %v1842 = vpack.c.b16 %v1812, %v1811
        %v1843 = vpack.c.b16 %v1814, %v1813
        %v1844 = vpack.c.b16 %v1816, %v1815
        %v1845 = vpack.c.b16 %v1818, %v1817
        %v1846 = vpack.c.b16 %v1820, %v1819
        %v1847 = vpack.c.b16 %v1822, %v1821
        %v1848 = vpack.c.b16 %v1824, %v1823
        %1873 = vmatpush.bf16.msra.mxu0 %v1832
        %1874 = vmatpush.bf16.msra.mxu0 %v1831
        %1875 = vmatpush.bf16.msra.mxu0 %v1830
        %1876 = vmatpush.bf16.msra.mxu0 %v1829
        %1877 = vmatpush.bf16.msra.mxu0 %v1828
        %1878 = vmatpush.bf16.msra.mxu0 %v1827
        %1879 = vmatpush.bf16.msra.mxu0 %v1826
        %1880 = vmatpush.bf16.msra.mxu0 %v1825
        %1881 = vmatmul.bf16.gmra.mxu0 %v1723
        %v1882 = vpop.f32.mrf.mxu0
        %v1883 = vadd.f32 0.0, %v1882
        %v1884 = vpop.f32.mrf.mxu0
        %v1885 = vadd.f32 0.0, %v1884
        %1886 = vdwg.mxu0
        %1887 = vmatpush.bf16.msra.mxu0 %v1840
        %1888 = vmatpush.bf16.msra.mxu0 %v1839
        %1889 = vmatpush.bf16.msra.mxu0 %v1838
        %1890 = vmatpush.bf16.msra.mxu0 %v1837
        %1891 = vmatpush.bf16.msra.mxu0 %v1836
        %1892 = vmatpush.bf16.msra.mxu0 %v1835
        %1893 = vmatpush.bf16.msra.mxu0 %v1834
        %1894 = vmatpush.bf16.msra.mxu0 %v1833
        %1895 = vmatmul.bf16.gmra.mxu0 %v1724
        %v1896 = vpop.f32.mrf.mxu0
        %v1897 = vadd.f32 %v1883, %v1896
        %v1898 = vpop.f32.mrf.mxu0
        %v1899 = vadd.f32 %v1885, %v1898
        %1900 = vdwg.mxu0
        %1901 = vmatpush.bf16.msra.mxu0 %v1848
        %1902 = vmatpush.bf16.msra.mxu0 %v1847
        %1903 = vmatpush.bf16.msra.mxu0 %v1846
        %1904 = vmatpush.bf16.msra.mxu0 %v1845
        %1905 = vmatpush.bf16.msra.mxu0 %v1844
        %1906 = vmatpush.bf16.msra.mxu0 %v1843
        %1907 = vmatpush.bf16.msra.mxu0 %v1842
        %1908 = vmatpush.bf16.msra.mxu0 %v1841
        %1909 = vmatmul.bf16.gmra.mxu0 %v1725
        %v1910 = vpop.f32.mrf.mxu0
        %v1911 = vadd.f32 %v1897, %v1910
        %v1912 = vpop.f32.mrf.mxu0
        %v1913 = vadd.f32 %v1899, %v1912
        %1914 = vdwg.mxu0
        %v1915 = vmax.f32 %v1911, 0.0
        %v1916 = vmax.f32 %v1913, 0.0
        %v1917 = vpack.c.bf16 %v1916, %v1915
        %v1918 = vld [vmem:[#allocation15] sm:$0xf]
        %v1919 = vld [vmem:[#allocation15 + $0x4] sm:$0xf]
        %v1920 = vld [vmem:[#allocation15 + $0x8] sm:$0xf]
        %v1921 = vld [vmem:[#allocation15 + $0xc] sm:$0xf]
        %v1922 = vld [vmem:[#allocation15 + $0x10] sm:$0xf]
        %v1923 = vld [vmem:[#allocation15 + $0x14] sm:$0xf]
        %v1924 = vld [vmem:[#allocation15 + $0x18] sm:$0xf]
        %v1925 = vld [vmem:[#allocation15 + $0x1c] sm:$0xf]
        %v1926 = vld [vmem:[#allocation15 + $0x20] sm:$0xf]
        %v1927 = vld [vmem:[#allocation15 + $0x24] sm:$0xf]
        %v1928 = vld [vmem:[#allocation15 + $0x28] sm:$0xf]
        %v1929 = vld [vmem:[#allocation15 + $0x2c] sm:$0xf]
        %v1930 = vld [vmem:[#allocation15 + $0x30] sm:$0xf]
        %v1931 = vld [vmem:[#allocation15 + $0x34] sm:$0xf]
        %v1932 = vld [vmem:[#allocation15 + $0x38] sm:$0xf]
        %v1933 = vld [vmem:[#allocation15 + $0x3c] sm:$0xf]
        %v1950 = vunpack.c.l.b16 %v1918
        %v1951 = vunpack.c.l.b16 %v1919
        %v1952 = vunpack.c.l.b16 %v1920
        %v1953 = vunpack.c.l.b16 %v1921
        %v1954 = vunpack.c.l.b16 %v1922
        %v1955 = vunpack.c.l.b16 %v1923
        %v1956 = vunpack.c.l.b16 %v1924
        %v1957 = vunpack.c.l.b16 %v1925
        %v1958 = vunpack.c.l.b16 %v1926
        %v1959 = vunpack.c.l.b16 %v1927
        %v1960 = vunpack.c.l.b16 %v1928
        %v1961 = vunpack.c.l.b16 %v1929
        %v1962 = vunpack.c.l.b16 %v1930
        %v1963 = vunpack.c.l.b16 %v1931
        %v1964 = vunpack.c.l.b16 %v1932
        %v1965 = vunpack.c.l.b16 %v1933
        %v1966 = vpack.c.b16 %v1951, %v1950
        %v1967 = vpack.c.b16 %v1953, %v1952
        %v1968 = vpack.c.b16 %v1955, %v1954
        %v1969 = vpack.c.b16 %v1957, %v1956
        %v1970 = vpack.c.b16 %v1959, %v1958
        %v1971 = vpack.c.b16 %v1961, %v1960
        %v1972 = vpack.c.b16 %v1963, %v1962
        %v1973 = vpack.c.b16 %v1965, %v1964
        %1982 = vmatpush.bf16.msra.mxu0 %v1973
        %1983 = vmatpush.bf16.msra.mxu0 %v1972
        %1984 = vmatpush.bf16.msra.mxu0 %v1971
        %1985 = vmatpush.bf16.msra.mxu0 %v1970
        %1986 = vmatpush.bf16.msra.mxu0 %v1969
        %1987 = vmatpush.bf16.msra.mxu0 %v1968
        %1988 = vmatpush.bf16.msra.mxu0 %v1967
        %1989 = vmatpush.bf16.msra.mxu0 %v1966
        %1990 = vmatmul.bf16.gmra.mxu0 %v1917
        %v1991 = vpop.f32.mrf.mxu0
        %v1992 = vadd.f32 0.0, %v1991
        %v1993 = vpop.f32.mrf.mxu0
        %v1994 = vadd.f32 0.0, %v1993
        %1995 = vdwg.mxu0
        %1996 = vst [vmem:[%s563] sm:$0xff] %v1992
        %1997 = vst [vmem:[%s563 + $0x8] sm:$0xff] %v1994
        %v1998 = vpack.c.bf16 %v1994, %v1992
        %v1999 = vld [vmem:[%s518] sm:$0xf]
        %v2000 = vld [vmem:[%s518 + $0x4] sm:$0xf]
        %v2001 = vld [vmem:[%s518 + $0x8] sm:$0xf]
        %v2002 = vld [vmem:[%s518 + $0xc] sm:$0xf]
        %v2003 = vld [vmem:[%s518 + $0x10] sm:$0xf]
        %v2004 = vld [vmem:[%s518 + $0x14] sm:$0xf]
        %v2005 = vld [vmem:[%s518 + $0x18] sm:$0xf]
        %v2006 = vld [vmem:[%s518 + $0x1c] sm:$0xf]
        %v2007 = vld [vmem:[%s518 + $0x20] sm:$0xf]
        %v2008 = vld [vmem:[%s518 + $0x24] sm:$0xf]
        %v2009 = vld [vmem:[%s518 + $0x28] sm:$0xf]
        %v2010 = vld [vmem:[%s518 + $0x2c] sm:$0xf]
        %v2011 = vld [vmem:[%s518 + $0x30] sm:$0xf]
        %v2012 = vld [vmem:[%s518 + $0x34] sm:$0xf]
        %v2013 = vld [vmem:[%s518 + $0x38] sm:$0xf]
        %v2014 = vld [vmem:[%s518 + $0x3c] sm:$0xf]
        %v2031 = vunpack.c.l.b16 %v1999
        %v2032 = vunpack.c.l.b16 %v2000
        %v2033 = vunpack.c.l.b16 %v2001
        %v2034 = vunpack.c.l.b16 %v2002
        %v2035 = vunpack.c.l.b16 %v2003
        %v2036 = vunpack.c.l.b16 %v2004
        %v2037 = vunpack.c.l.b16 %v2005
        %v2038 = vunpack.c.l.b16 %v2006
        %v2039 = vunpack.c.l.b16 %v2007
        %v2040 = vunpack.c.l.b16 %v2008
        %v2041 = vunpack.c.l.b16 %v2009
        %v2042 = vunpack.c.l.b16 %v2010
        %v2043 = vunpack.c.l.b16 %v2011
        %v2044 = vunpack.c.l.b16 %v2012
        %v2045 = vunpack.c.l.b16 %v2013
        %v2046 = vunpack.c.l.b16 %v2014
        %v2047 = vpack.c.b16 %v2032, %v2031
        %v2048 = vpack.c.b16 %v2034, %v2033
        %v2049 = vpack.c.b16 %v2036, %v2035
        %v2050 = vpack.c.b16 %v2038, %v2037
        %v2051 = vpack.c.b16 %v2040, %v2039
        %v2052 = vpack.c.b16 %v2042, %v2041
        %v2053 = vpack.c.b16 %v2044, %v2043
        %v2054 = vpack.c.b16 %v2046, %v2045
        %2063 = vmatpush.bf16.msra.mxu0 %v2054
        %2064 = vmatpush.bf16.msra.mxu0 %v2053
        %2065 = vmatpush.bf16.msra.mxu0 %v2052
        %2066 = vmatpush.bf16.msra.mxu0 %v2051
        %2067 = vmatpush.bf16.msra.mxu0 %v2050
        %2068 = vmatpush.bf16.msra.mxu0 %v2049
        %2069 = vmatpush.bf16.msra.mxu0 %v2048
        %2070 = vmatpush.bf16.msra.mxu0 %v2047
        %2071 = vmatmul.bf16.gmra.mxu0 %v1998
        %v2072 = vpop.f32.mrf.mxu0
        %v2073 = vadd.f32 0.0, %v2072
        %v2074 = vpop.f32.mrf.mxu0
        %v2075 = vadd.f32 0.0, %v2074
        %2076 = vdwg.mxu0
        %2077 = vst [vmem:[%s570] sm:$0xff] %v2073
        %2078 = vst [vmem:[%s570 + $0x8] sm:$0xff] %v2075
        %s2079 = sand.u32 %s249, 1
        %s2080 = scalar_lea.sflag [#allocation5], %s2079
        %s2081 = sand.u32 %s249, 1
        %s2082 = smul.addr %s2081, 16
        %s2083 = scalar_lea.vmem [#allocation18], %s2082
        %s2084 = sand.u32 %s275, 1
        %s2085 = scalar_lea.sflag [#allocation20], %s2084
        %s2086 = sand.u32 %s275, 1
        %s2087 = smul.addr %s2086, 16
        %s2088 = scalar_lea.vmem [#allocation19], %s2087
        // Predicated region
        $region93: #{tpu_custom_call.1} parent=55 // pred_check
          %p2089 = pneg %p259
        $region94: #{tpu_custom_call.1} parent=55 // pred_check_branch
          %2091 = sbr.rel (%p2089) target = $region96
        $region95: #{tpu_custom_call.1} parent=55 // pred_region
          %2093 = vsyncadd %s2080, 0
          %s2094 = smul.addr %s37, 2
          %s2095 = smul.addr %s2094, 8
          %s2096 = scalar_lea.hbm %s9, %s2095
          %s2097 = sshll.u32 %s2083, 4
          %s2098 = int_to_ptr.vmem [resolvable:$true] %s2097
          %s2099 = sshll.u32 %s2096, 4
          %s2100 = int_to_ptr.hbm [resolvable:$true] %s2099
          %2105 = dma.vmem_to_hbm [thread:$0]  %s2098, 256, %s2100, %s2080, 128, 128, 8
        $region96: #{tpu_custom_call.1} parent=55 // pred_fallthru
          _
        // Predicated region
        $region97: #{tpu_custom_call.1} parent=55 // pred_check
          %p2106 = pneg %p285
        $region98: #{tpu_custom_call.1} parent=55 // pred_check_branch
          %2108 = sbr.rel (%p2106) target = $region100
        $region99: #{tpu_custom_call.1} parent=55 // pred_region
          %2110 = vsyncadd %s2085, 0
          %s2111 = smul.addr %s37, 2
          %s2112 = smul.addr %s2111, 8
          %s2113 = scalar_lea.hbm %s10, %s2112
          %s2114 = sshll.u32 %s2088, 4
          %s2115 = int_to_ptr.vmem [resolvable:$true] %s2114
          %s2116 = sshll.u32 %s2113, 4
          %s2117 = int_to_ptr.hbm [resolvable:$true] %s2116
          %2122 = dma.vmem_to_hbm [thread:$0]  %s2115, 256, %s2117, %s2085, 128, 128, 8
        $region100: #{tpu_custom_call.1} parent=55 // pred_fallthru
          _
      $region56: #{tpu_custom_call.1} parent=5 // pred_fallthru
        _
      %p2123 = scmp.le.s32.totalorder 2, %s32
      // Predicated region
      $region101: #{tpu_custom_call.1} parent=5 // pred_check
        %p2124 = pneg %p2123
      $region102: #{tpu_custom_call.1} parent=5 // pred_check_branch
        %2126 = sbr.rel (%p2124) target = $region104
      $region103: #{tpu_custom_call.1} parent=5 // pred_region
        %s2127 = ssub.s32 %s32, 2
        // Predicated region
        $region105: #{tpu_custom_call.1} parent=103 // pred_check
          %p2128 = pneg %p265
        $region106: #{tpu_custom_call.1} parent=103 // pred_check_branch
          %2130 = sbr.rel (%p2128) target = $region108
        $region107: #{tpu_custom_call.1} parent=103 // pred_region
          %s2131 = sand.u32 %s250, 1
          %s2132 = scalar_lea.sflag [#allocation5], %s2131
          %s2133 = sand.u32 %s250, 1
          %s2134 = smul.addr %s2133, 16
          %s2135 = scalar_lea.vmem [#allocation18], %s2134
          %2137 = dma.done %s2132, 256
        $region108: #{tpu_custom_call.1} parent=103 // pred_fallthru
          _
        // Predicated region
        $region109: #{tpu_custom_call.1} parent=103 // pred_check
          %p2138 = pneg %p291
        $region110: #{tpu_custom_call.1} parent=103 // pred_check_branch
          %2140 = sbr.rel (%p2138) target = $region112
        $region111: #{tpu_custom_call.1} parent=103 // pred_region
          %s2141 = sand.u32 %s276, 1
          %s2142 = scalar_lea.sflag [#allocation20], %s2141
          %s2143 = sand.u32 %s276, 1
          %s2144 = smul.addr %s2143, 16
          %s2145 = scalar_lea.vmem [#allocation19], %s2144
          %2147 = dma.done %s2142, 256
        $region112: #{tpu_custom_call.1} parent=103 // pred_fallthru
          _
      $region104: #{tpu_custom_call.1} parent=5 // pred_fallthru
        _
    $region6: #{tpu_custom_call.1} parent=1 // loop_footer
      %s36 = sadd.s32 1, %s32
    $region7: #{tpu_custom_call.1} parent=1 // loop_footer_branch
      %31 = sbr.rel target = $region3
    $region8: #{tpu_custom_call.1} parent=1 // loop_exit
      _
    %2148 = vsyncpa [#allocation4], 1
    %s2149 = scalar_lea.sflag [#allocation4], 1
    %2150 = vsyncpa %s2149, 1
    %2151 = vsyncpa [#allocation7], 1
    %s2152 = scalar_lea.sflag [#allocation7], 1
    %2153 = vsyncpa %s2152, 1
    %2154 = vsyncpa [#allocation10], 1
    %2155 = vsyncpa [#allocation13], 1
    %2156 = vsyncpa [#allocation16], 1
    %2157 = vsyncpa [#allocation5], 1
    %s2158 = scalar_lea.sflag [#allocation5], 1
    %2159 = vsyncpa %s2158, 1
    %2160 = vsyncpa [#allocation20], 1
    %s2161 = scalar_lea.sflag [#allocation20], 1
    %2162 = vsyncpa %s2161, 1

// kernel: tpu_custom_call.1
$region0: #{tpu_custom_call.1}
  #allocation0 [shape = 'u32[]', space=smem, size = 0x4, offset = 0x4, fixed_abs, tag = 'smem constant byte address 0x4 - core index']
  #allocation1 [shape = 'u32[72,128]{1,0:T(1,128)}', space=vmem, size = 0x9000, scoped, tag = 'internal scratch']
  #allocation2 [shape = 'bf16[16,384]{1,0:T(8,128)(2,1)}', space=vmem, size = 0x3000, scoped, tag = 'scratch operand']
  %s0 = inlined_call_operand.hbm [shape: bf16[2,16,128], index: 0, kind: input, shape index: {}]
  %s1 = inlined_call_operand.hbm [shape: bf16[2,16,16], index: 1, kind: input, shape index: {}]
  %s2 = inlined_call_operand.hbm [shape: bf16[128,128], index: 2, kind: input, shape index: {}]
  %s3 = inlined_call_operand.hbm [shape: bf16[384,128], index: 3, kind: input, shape index: {}]
  %s4 = inlined_call_operand.hbm [shape: bf16[384,128], index: 4, kind: input, shape index: {}]
  %s5 = inlined_call_operand.hbm [shape: bf16[384,128], index: 5, kind: input, shape index: {}]
  %s6 = inlined_call_operand.hbm [shape: bf16[384,128], index: 6, kind: input, shape index: {}]
  %s7 = inlined_call_operand.hbm [shape: bf16[128,128], index: 7, kind: input, shape index: {}]
  %s8 = inlined_call_operand.hbm [shape: bf16[2,128,128], index: 8, kind: input, shape index: {}]
  %s9 = inlined_call_operand.hbm [shape: f32[2,16,128], index: 9, kind: output, shape index: {0}]
  %s10 = inlined_call_operand.hbm [shape: f32[2,16,128], index: 10, kind: output, shape index: {1}]
  %11 = xla_tuple %s9, %s10
  %s12 = sld [smem:[#allocation0]]
  $region113: #{tpu_custom_call.1} parent=0
    _
  %s14 = ssub.s32 1, %s12
  %s15 = scalar_select 0, %s14, %s12
  $region1: #{tpu_custom_call.1} parent=0
    #allocation3 [shape = 'u8[8192]{0}', space=vmem, size = 0x2000, scoped, tag = 'input window, operand 0']
    #allocation4 [shape = 's32[2]{0}', space=sflag, size = 0x8, scoped, tag = 'scoped memory for tpu_custom_call.1']
    #allocation5 [shape = 's32[2]{0}', space=sflag, size = 0x8, scoped, tag = 'scoped memory for tpu_custom_call.1']
    #allocation6 [shape = 'u8[8192]{0}', space=vmem, size = 0x2000, scoped, tag = 'input window, operand 1']
    #allocation7 [shape = 's32[2]{0}', space=sflag, size = 0x8, scoped, tag = 'scoped memory for tpu_custom_call.1']
    #allocation8 [shape = 'u8[32768]{0}', space=vmem, size = 0x8000, scoped, tag = 'input window, operand 2, single buffered']
    #allocation9 [shape = 'u8[98304]{0}', space=vmem, size = 0x18000, scoped, tag = 'input window, operand 3, single buffered']
    #allocation10 [shape = 's32[1]{0}', space=sflag, size = 0x4, scoped, tag = 'scoped memory for tpu_custom_call.1']
    #allocation11 [shape = 'u8[98304]{0}', space=vmem, size = 0x18000, scoped, tag = 'input window, operand 4, single buffered']
    #allocation12 [shape = 'u8[98304]{0}', space=vmem, size = 0x18000, scoped, tag = 'input window, operand 5, single buffered']
    #allocation13 [shape = 's32[1]{0}', space=sflag, size = 0x4, scoped, tag = 'scoped memory for tpu_custom_call.1']
    #allocation14 [shape = 'u8[98304]{0}', space=vmem, size = 0x18000, scoped, tag = 'input window, operand 6, single buffered']
    #allocation15 [shape = 'u8[32768]{0}', space=vmem, size = 0x8000, scoped, tag = 'input window, operand 7, single buffered']
    #allocation16 [shape = 's32[1]{0}', space=sflag, size = 0x4, scoped, tag = 'scoped memory for tpu_custom_call.1']
    #allocation17 [shape = 'u8[65536]{0}', space=vmem, size = 0x10000, scoped, tag = 'input window, operand 8']
    #allocation18 [shape = 'u8[16384]{0}', space=vmem, size = 0x4000, scoped, tag = 'output window, operand 0']
    #allocation19 [shape = 'u8[16384]{0}', space=vmem, size = 0x4000, scoped, tag = 'output window, operand 1']
    #allocation20 [shape = 's32[2]{0}', space=sflag, size = 0x8, scoped, tag = 'scoped memory for tpu_custom_call.1']
    %16 = vsyncpa [#allocation4], 0
    %s17 = scalar_lea.sflag [#allocation4], 1
    %18 = vsyncpa %s17, 0
    %19 = vsyncpa [#allocation7], 0
    %s20 = scalar_lea.sflag [#allocation7], 1
    %21 = vsyncpa %s20, 0
    %22 = vsyncpa [#allocation10], 0
    %23 = vsyncpa [#allocation13], 0
    %24 = vsyncpa [#allocation16], 0
    %25 = vsyncpa [#allocation5], 0
    %s26 = scalar_lea.sflag [#allocation5], 1
    %27 = vsyncpa %s26, 0
    %28 = vsyncpa [#allocation20], 0
    %s29 = scalar_lea.sflag [#allocation20], 1
    %30 = vsyncpa %s29, 0
    loop: start=0, step=1, limit=4
    $region2: #{tpu_custom_call.1} parent=1 // loop_pre_header
      _
    $region3: #{tpu_custom_call.1} parent=1 // loop_header
      %s32 = sphi 0, %s36
      %p33 = scmp.ge.s32.totalorder %s32, 4
      %s42 = sphi 0, %s44
      %s45 = sphi 0, %s42
      %s46 = sphi 0, %s45
      %s62 = sphi 0, %s46
      %s68 = sphi 0, %s70
      %s71 = sphi 0, %s68
      %s72 = sphi 0, %s71
      %s88 = sphi 0, %s72
      %s92 = sphi 0, %s92
      %s94 = sphi 0, %s92
      %s95 = sphi 0, %s94
      %s109 = sphi 0, %s95
      %s113 = sphi 0, %s113
      %s115 = sphi 0, %s113
      %s116 = sphi 0, %s115
      %s130 = sphi 0, %s116
      %s134 = sphi 0, %s134
      %s136 = sphi 0, %s134
      %s137 = sphi 0, %s136
      %s151 = sphi 0, %s137
      %s155 = sphi 0, %s155
      %s157 = sphi 0, %s155
      %s158 = sphi 0, %s157
      %s172 = sphi 0, %s158
      %s176 = sphi 0, %s176
      %s178 = sphi 0, %s176
      %s179 = sphi 0, %s178
      %s193 = sphi 0, %s179
      %s197 = sphi 0, %s197
      %s199 = sphi 0, %s197
      %s200 = sphi 0, %s199
      %s214 = sphi 0, %s200
      %s220 = sphi 0, %s222
      %s223 = sphi 0, %s220
      %s224 = sphi 0, %s223
      %s240 = sphi 0, %s224
      %s246 = sphi 0, %s248
      %s249 = sphi 0, %s246
      %s250 = sphi 0, %s249
      %s266 = sphi 0, %s250
      %s272 = sphi 0, %s274
      %s275 = sphi 0, %s272
      %s276 = sphi 0, %s275
      %s292 = sphi 0, %s276
    $region4: #{tpu_custom_call.1} parent=1 // loop_header_branch
      %35 = sbr.rel (%p33) target = $region8
    $region5: #{tpu_custom_call.1} parent=1 // loop_body
      %s37 = ssub.s32 %s32, 1
      %s38 = ssub.s32 %s32, 2
      %s39 = sadd.s32 %s32, 1
      %s40 = ssub.s32 %s32, %s39
      %p41 = scmp.eq.s32.totalorder %s40, 0
      %s43 = sadd.s32 %s42, 1
      %s44 = scalar_select %p41, %s42, %s43
      %p47 = pneg %p41
      %p48 = scmp.eq.s32.totalorder %s32, 1
      %p49 = por %p47, %p48
      %p50 = scmp.ne.s32.totalorder %s42, %s45
      %p51 = scmp.eq.s32.totalorder %s32, 0
      %p52 = por %p50, %p51
      %p53 = scmp.ne.s32.totalorder %s42, %s45
      %p54 = scmp.eq.s32.totalorder %s37, 1
      %p55 = por %p53, %p54
      %p56 = scmp.ne.s32.totalorder %s45, %s46
      %p57 = scmp.eq.s32.totalorder %s37, 0
      %p58 = por %p56, %p57
      %p59 = scmp.ne.s32.totalorder %s45, %s46
      %p60 = scmp.eq.s32.totalorder %s38, 1
      %p61 = por %p59, %p60
      %p63 = scmp.ne.s32.totalorder %s46, %s62
      %p64 = scmp.eq.s32.totalorder %s38, 0
      %p65 = por %p63, %p64
      %s66 = ssub.s32 %s32, %s39
      %p67 = scmp.eq.s32.totalorder %s66, 0
      %s69 = sadd.s32 %s68, 1
      %s70 = scalar_select %p67, %s68, %s69
      %p73 = pneg %p67
      %p74 = scmp.eq.s32.totalorder %s32, 1
      %p75 = por %p73, %p74
      %p76 = scmp.ne.s32.totalorder %s68, %s71
      %p77 = scmp.eq.s32.totalorder %s32, 0
      %p78 = por %p76, %p77
      %p79 = scmp.ne.s32.totalorder %s68, %s71
      %p80 = scmp.eq.s32.totalorder %s37, 1
      %p81 = por %p79, %p80
      %p82 = scmp.ne.s32.totalorder %s71, %s72
      %p83 = scmp.eq.s32.totalorder %s37, 0
      %p84 = por %p82, %p83
      %p85 = scmp.ne.s32.totalorder %s71, %s72
      %p86 = scmp.eq.s32.totalorder %s38, 1
      %p87 = por %p85, %p86
      %p89 = scmp.ne.s32.totalorder %s72, %s88
      %p90 = scmp.eq.s32.totalorder %s38, 0
      %p91 = por %p89, %p90
      %s93 = sadd.s32 %s92, 1
      %p96 = scmp.eq.s32.totalorder %s32, 1
      %p97 = scmp.ne.s32.totalorder %s92, %s94
      %p98 = scmp.eq.s32.totalorder %s32, 0
      %p99 = por %p97, %p98
      %p100 = scmp.ne.s32.totalorder %s92, %s94
      %p101 = scmp.eq.s32.totalorder %s37, 1
      %p102 = por %p100, %p101
      %p103 = scmp.ne.s32.totalorder %s94, %s95
      %p104 = scmp.eq.s32.totalorder %s37, 0
      %p105 = por %p103, %p104
      %p106 = scmp.ne.s32.totalorder %s94, %s95
      %p107 = scmp.eq.s32.totalorder %s38, 1
      %p108 = por %p106, %p107
      %p110 = scmp.ne.s32.totalorder %s95, %s109
      %p111 = scmp.eq.s32.totalorder %s38, 0
      %p112 = por %p110, %p111
      %s114 = sadd.s32 %s113, 1
      %p117 = scmp.eq.s32.totalorder %s32, 1
      %p118 = scmp.ne.s32.totalorder %s113, %s115
      %p119 = scmp.eq.s32.totalorder %s32, 0
      %p120 = por %p118, %p119
      %p121 = scmp.ne.s32.totalorder %s113, %s115
      %p122 = scmp.eq.s32.totalorder %s37, 1
      %p123 = por %p121, %p122
      %p124 = scmp.ne.s32.totalorder %s115, %s116
      %p125 = scmp.eq.s32.totalorder %s37, 0
      %p126 = por %p124, %p125
      %p127 = scmp.ne.s32.totalorder %s115, %s116
      %p128 = scmp.eq.s32.totalorder %s38, 1
      %p129 = por %p127, %p128
      %p131 = scmp.ne.s32.totalorder %s116, %s130
      %p132 = scmp.eq.s32.totalorder %s38, 0
      %p133 = por %p131, %p132
      %s135 = sadd.s32 %s134, 1
      %p138 = scmp.eq.s32.totalorder %s32, 1
      %p139 = scmp.ne.s32.totalorder %s134, %s136
      %p140 = scmp.eq.s32.totalorder %s32, 0
      %p141 = por %p139, %p140
      %p142 = scmp.ne.s32.totalorder %s134, %s136
      %p143 = scmp.eq.s32.totalorder %s37, 1
      %p144 = por %p142, %p143
      %p145 = scmp.ne.s32.totalorder %s136, %s137
      %p146 = scmp.eq.s32.totalorder %s37, 0
      %p147 = por %p145, %p146
      %p148 = scmp.ne.s32.totalorder %s136, %s137
      %p149 = scmp.eq.s32.totalorder %s38, 1
      %p150 = por %p148, %p149
      %p152 = scmp.ne.s32.totalorder %s137, %s151
      %p153 = scmp.eq.s32.totalorder %s38, 0
      %p154 = por %p152, %p153
      %s156 = sadd.s32 %s155, 1
      %p159 = scmp.eq.s32.totalorder %s32, 1
      %p160 = scmp.ne.s32.totalorder %s155, %s157
      %p161 = scmp.eq.s32.totalorder %s32, 0
      %p162 = por %p160, %p161
      %p163 = scmp.ne.s32.totalorder %s155, %s157
      %p164 = scmp.eq.s32.totalorder %s37, 1
      %p165 = por %p163, %p164
      %p166 = scmp.ne.s32.totalorder %s157, %s158
      %p167 = scmp.eq.s32.totalorder %s37, 0
      %p168 = por %p166, %p167
      %p169 = scmp.ne.s32.totalorder %s157, %s158
      %p170 = scmp.eq.s32.totalorder %s38, 1
      %p171 = por %p169, %p170
      %p173 = scmp.ne.s32.totalorder %s158, %s172
      %p174 = scmp.eq.s32.totalorder %s38, 0
      %p175 = por %p173, %p174
      %s177 = sadd.s32 %s176, 1
      %p180 = scmp.eq.s32.totalorder %s32, 1
      %p181 = scmp.ne.s32.totalorder %s176, %s178
      %p182 = scmp.eq.s32.totalorder %s32, 0
      %p183 = por %p181, %p182
      %p184 = scmp.ne.s32.totalorder %s176, %s178
      %p185 = scmp.eq.s32.totalorder %s37, 1
      %p186 = por %p184, %p185
      %p187 = scmp.ne.s32.totalorder %s178, %s179
      %p188 = scmp.eq.s32.totalorder %s37, 0
      %p189 = por %p187, %p188
      %p190 = scmp.ne.s32.totalorder %s178, %s179
      %p191 = scmp.eq.s32.totalorder %s38, 1
      %p192 = por %p190, %p191
      %p194 = scmp.ne.s32.totalorder %s179, %s193
      %p195 = scmp.eq.s32.totalorder %s38, 0
      %p196 = por %p194, %p195
      %s198 = sadd.s32 %s197, 1
      %p201 = scmp.eq.s32.totalorder %s32, 1
      %p202 = scmp.ne.s32.totalorder %s197, %s199
      %p203 = scmp.eq.s32.totalorder %s32, 0
      %p204 = por %p202, %p203
      %p205 = scmp.ne.s32.totalorder %s197, %s199
      %p206 = scmp.eq.s32.totalorder %s37, 1
      %p207 = por %p205, %p206
      %p208 = scmp.ne.s32.totalorder %s199, %s200
      %p209 = scmp.eq.s32.totalorder %s37, 0
      %p210 = por %p208, %p209
      %p211 = scmp.ne.s32.totalorder %s199, %s200
      %p212 = scmp.eq.s32.totalorder %s38, 1
      %p213 = por %p211, %p212
      %p215 = scmp.ne.s32.totalorder %s200, %s214
      %p216 = scmp.eq.s32.totalorder %s38, 0
      %p217 = por %p215, %p216
      %s218 = ssub.s32 %s32, %s39
      %p219 = scmp.eq.s32.totalorder %s218, 0
      %s221 = sadd.s32 %s220, 1
      %s222 = scalar_select %p219, %s220, %s221
      %p225 = pneg %p219
      %p226 = scmp.eq.s32.totalorder %s32, 1
      %p227 = por %p225, %p226
      %p228 = scmp.ne.s32.totalorder %s220, %s223
      %p229 = scmp.eq.s32.totalorder %s32, 0
      %p230 = por %p228, %p229
      %p231 = scmp.ne.s32.totalorder %s220, %s223
      %p232 = scmp.eq.s32.totalorder %s37, 1
      %p233 = por %p231, %p232
      %p234 = scmp.ne.s32.totalorder %s223, %s224
      %p235 = scmp.eq.s32.totalorder %s37, 0
      %p236 = por %p234, %p235
      %p237 = scmp.ne.s32.totalorder %s223, %s224
      %p238 = scmp.eq.s32.totalorder %s38, 1
      %p239 = por %p237, %p238
      %p241 = scmp.ne.s32.totalorder %s224, %s240
      %p242 = scmp.eq.s32.totalorder %s38, 0
      %p243 = por %p241, %p242
      %s244 = ssub.s32 %s32, %s39
      %p245 = scmp.eq.s32.totalorder %s244, 0
      %s247 = sadd.s32 %s246, 1
      %s248 = scalar_select %p245, %s246, %s247
      %p251 = pneg %p245
      %p252 = scmp.eq.s32.totalorder %s32, 1
      %p253 = por %p251, %p252
      %p254 = scmp.ne.s32.totalorder %s246, %s249
      %p255 = scmp.eq.s32.totalorder %s32, 0
      %p256 = por %p254, %p255
      %p257 = scmp.ne.s32.totalorder %s246, %s249
      %p258 = scmp.eq.s32.totalorder %s37, 1
      %p259 = por %p257, %p258
      %p260 = scmp.ne.s32.totalorder %s249, %s250
      %p261 = scmp.eq.s32.totalorder %s37, 0
      %p262 = por %p260, %p261
      %p263 = scmp.ne.s32.totalorder %s249, %s250
      %p264 = scmp.eq.s32.totalorder %s38, 1
      %p265 = por %p263, %p264
      %p267 = scmp.ne.s32.totalorder %s250, %s266
      %p268 = scmp.eq.s32.totalorder %s38, 0
      %p269 = por %p267, %p268
      %s270 = ssub.s32 %s32, %s39
      %p271 = scmp.eq.s32.totalorder %s270, 0
      %s273 = sadd.s32 %s272, 1
      %s274 = scalar_select %p271, %s272, %s273
      %p277 = pneg %p271
      %p278 = scmp.eq.s32.totalorder %s32, 1
      %p279 = por %p277, %p278
      %p280 = scmp.ne.s32.totalorder %s272, %s275
      %p281 = scmp.eq.s32.totalorder %s32, 0
      %p282 = por %p280, %p281
      %p283 = scmp.ne.s32.totalorder %s272, %s275
      %p284 = scmp.eq.s32.totalorder %s37, 1
      %p285 = por %p283, %p284
      %p286 = scmp.ne.s32.totalorder %s275, %s276
      %p287 = scmp.eq.s32.totalorder %s37, 0
      %p288 = por %p286, %p287
      %p289 = scmp.ne.s32.totalorder %s275, %s276
      %p290 = scmp.eq.s32.totalorder %s38, 1
      %p291 = por %p289, %p290
      %p293 = scmp.ne.s32.totalorder %s276, %s292
      %p294 = scmp.eq.s32.totalorder %s38, 0
      %p295 = por %p293, %p294
      %p296 = scmp.le.s32.totalorder 1, %s32
      %p297 = scmp.lt.s32.totalorder %s32, 3
      %p298 = pnand %p296, %p297
      %p299 = pneg %p298
      // Predicated region
      $region9: #{tpu_custom_call.1} parent=5 // pred_check
        _
      $region10: #{tpu_custom_call.1} parent=5 // pred_check_branch
        %301 = sbr.rel (%p298) target = $region12
      $region11: #{tpu_custom_call.1} parent=5 // pred_region
        %s302 = ssub.s32 %s32, 1
        // Predicated region
        $region13: #{tpu_custom_call.1} parent=11 // pred_check
          %p303 = pneg %p105
        $region14: #{tpu_custom_call.1} parent=11 // pred_check_branch
          %305 = sbr.rel (%p303) target = $region16
        $region15: #{tpu_custom_call.1} parent=11 // pred_region
          %307 = vsyncadd [#allocation7], 0
          %s308 = sshll.u32 %s2, 4
          %s309 = int_to_ptr.hbm [resolvable:$true] %s308
          %s310 = sshll.u32 [#allocation8], 4
          %s311 = int_to_ptr.vmem [resolvable:$true] %s310
          %316 = dma.hbm_to_vmem [thread:$0]  %s309, 1024, %s311, [#allocation7], 64, 64, 4
        $region16: #{tpu_custom_call.1} parent=11 // pred_fallthru
          _
        // Predicated region
        $region17: #{tpu_custom_call.1} parent=11 // pred_check
          %p317 = pneg %p126
        $region18: #{tpu_custom_call.1} parent=11 // pred_check_branch
          %319 = sbr.rel (%p317) target = $region20
        $region19: #{tpu_custom_call.1} parent=11 // pred_region
          %321 = vsyncadd [#allocation10], 0
          %s322 = sshll.u32 %s3, 4
          %s323 = int_to_ptr.hbm [resolvable:$true] %s322
          %s324 = sshll.u32 [#allocation9], 4
          %s325 = int_to_ptr.vmem [resolvable:$true] %s324
          %330 = dma.hbm_to_vmem [thread:$0]  %s323, 3072, %s325, [#allocation10], 64, 64, 4
        $region20: #{tpu_custom_call.1} parent=11 // pred_fallthru
          _
        // Predicated region
        $region21: #{tpu_custom_call.1} parent=11 // pred_check
          %p331 = pneg %p147
        $region22: #{tpu_custom_call.1} parent=11 // pred_check_branch
          %333 = sbr.rel (%p331) target = $region24
        $region23: #{tpu_custom_call.1} parent=11 // pred_region
          %335 = vsyncadd [#allocation10], 0
          %s336 = sshll.u32 %s4, 4
          %s337 = int_to_ptr.hbm [resolvable:$true] %s336
          %s338 = sshll.u32 [#allocation11], 4
          %s339 = int_to_ptr.vmem [resolvable:$true] %s338
          %344 = dma.hbm_to_vmem [thread:$0]  %s337, 3072, %s339, [#allocation10], 64, 64, 4
        $region24: #{tpu_custom_call.1} parent=11 // pred_fallthru
          _
        // Predicated region
        $region25: #{tpu_custom_call.1} parent=11 // pred_check
          %p345 = pneg %p168
        $region26: #{tpu_custom_call.1} parent=11 // pred_check_branch
          %347 = sbr.rel (%p345) target = $region28
        $region27: #{tpu_custom_call.1} parent=11 // pred_region
          %349 = vsyncadd [#allocation13], 0
          %s350 = sshll.u32 %s5, 4
          %s351 = int_to_ptr.hbm [resolvable:$true] %s350
          %s352 = sshll.u32 [#allocation12], 4
          %s353 = int_to_ptr.vmem [resolvable:$true] %s352
          %358 = dma.hbm_to_vmem [thread:$0]  %s351, 3072, %s353, [#allocation13], 64, 64, 4
        $region28: #{tpu_custom_call.1} parent=11 // pred_fallthru
          _
        // Predicated region
        $region29: #{tpu_custom_call.1} parent=11 // pred_check
          %p359 = pneg %p189
        $region30: #{tpu_custom_call.1} parent=11 // pred_check_branch
          %361 = sbr.rel (%p359) target = $region32
        $region31: #{tpu_custom_call.1} parent=11 // pred_region
          %363 = vsyncadd [#allocation13], 0
          %s364 = sshll.u32 %s6, 4
          %s365 = int_to_ptr.hbm [resolvable:$true] %s364
          %s366 = sshll.u32 [#allocation14], 4
          %s367 = int_to_ptr.vmem [resolvable:$true] %s366
          %372 = dma.hbm_to_vmem [thread:$0]  %s365, 3072, %s367, [#allocation13], 64, 64, 4
        $region32: #{tpu_custom_call.1} parent=11 // pred_fallthru
          _
        // Predicated region
        $region33: #{tpu_custom_call.1} parent=11 // pred_check
          %p373 = pneg %p210
        $region34: #{tpu_custom_call.1} parent=11 // pred_check_branch
          %375 = sbr.rel (%p373) target = $region36
        $region35: #{tpu_custom_call.1} parent=11 // pred_region
          %377 = vsyncadd [#allocation16], 0
          %s378 = sshll.u32 %s7, 4
          %s379 = int_to_ptr.hbm [resolvable:$true] %s378
          %s380 = sshll.u32 [#allocation15], 4
          %s381 = int_to_ptr.vmem [resolvable:$true] %s380
          %386 = dma.hbm_to_vmem [thread:$0]  %s379, 1024, %s381, [#allocation16], 64, 64, 4
        $region36: #{tpu_custom_call.1} parent=11 // pred_fallthru
          _
      $region12: #{tpu_custom_call.1} parent=5 // pred_fallthru
        _
      %p387 = scmp.lt.s32.totalorder %s32, 2
      // Predicated region
      $region37: #{tpu_custom_call.1} parent=5 // pred_check
        %p388 = pneg %p387
      $region38: #{tpu_custom_call.1} parent=5 // pred_check_branch
        %390 = sbr.rel (%p388) target = $region40
      $region39: #{tpu_custom_call.1} parent=5 // pred_region
        // Predicated region
        $region41: #{tpu_custom_call.1} parent=39 // pred_check
          %p391 = pneg %p52
        $region42: #{tpu_custom_call.1} parent=39 // pred_check_branch
          %393 = sbr.rel (%p391) target = $region44
        $region43: #{tpu_custom_call.1} parent=39 // pred_region
          %s394 = sand.u32 %s32, 1
          %s395 = scalar_lea.sflag [#allocation4], %s394
          %s396 = sand.u32 %s42, 1
          %s397 = smul.addr %s396, 8
          %s398 = scalar_lea.vmem [#allocation3], %s397
          %400 = vsyncadd %s395, 0
          %s401 = smul.addr %s32, 2
          %s402 = smul.addr %s401, 4
          %s403 = scalar_lea.hbm %s0, %s402
          %s404 = sshll.u32 %s403, 4
          %s405 = int_to_ptr.hbm [resolvable:$true] %s404
          %s406 = sshll.u32 %s398, 4
          %s407 = int_to_ptr.vmem [resolvable:$true] %s406
          %412 = dma.hbm_to_vmem [thread:$0]  %s405, 128, %s407, %s395, 64, 64, 4
        $region44: #{tpu_custom_call.1} parent=39 // pred_fallthru
          _
        // Predicated region
        $region45: #{tpu_custom_call.1} parent=39 // pred_check
          %p413 = pneg %p78
        $region46: #{tpu_custom_call.1} parent=39 // pred_check_branch
          %415 = sbr.rel (%p413) target = $region48
        $region47: #{tpu_custom_call.1} parent=39 // pred_region
          %s416 = sand.u32 %s32, 1
          %s417 = scalar_lea.sflag [#allocation7], %s416
          %s418 = sand.u32 %s68, 1
          %s419 = smul.addr %s418, 8
          %s420 = scalar_lea.vmem [#allocation6], %s419
          %422 = vsyncadd %s417, 0
          %s423 = smul.addr %s32, 2
          %s424 = smul.addr %s423, 4
          %s425 = scalar_lea.hbm %s1, %s424
          %s426 = sshll.u32 %s425, 4
          %s427 = int_to_ptr.hbm [resolvable:$true] %s426
          %s428 = sshll.u32 %s420, 4
          %s429 = int_to_ptr.vmem [resolvable:$true] %s428
          %434 = dma.hbm_to_vmem [thread:$0]  %s427, 128, %s429, %s417, 64, 64, 4
        $region48: #{tpu_custom_call.1} parent=39 // pred_fallthru
          _
        // Predicated region
        $region49: #{tpu_custom_call.1} parent=39 // pred_check
          %p435 = pneg %p230
        $region50: #{tpu_custom_call.1} parent=39 // pred_check_branch
          %437 = sbr.rel (%p435) target = $region52
        $region51: #{tpu_custom_call.1} parent=39 // pred_region
          %s438 = sand.u32 %s32, 1
          %s439 = scalar_lea.sflag [#allocation4], %s438
          %s440 = sand.u32 %s220, 1
          %s441 = smul.addr %s440, 64
          %s442 = scalar_lea.vmem [#allocation17], %s441
          %444 = vsyncadd %s439, 0
          %s445 = smul.addr %s32, 16
          %s446 = smul.addr %s445, 4
          %s447 = scalar_lea.hbm %s8, %s446
          %s448 = sshll.u32 %s447, 4
          %s449 = int_to_ptr.hbm [resolvable:$true] %s448
          %s450 = sshll.u32 %s442, 4
          %s451 = int_to_ptr.vmem [resolvable:$true] %s450
          %456 = dma.hbm_to_vmem [thread:$0]  %s449, 1024, %s451, %s439, 64, 64, 4
        $region52: #{tpu_custom_call.1} parent=39 // pred_fallthru
          _
      $region40: #{tpu_custom_call.1} parent=5 // pred_fallthru
        _
      %p457 = scmp.le.s32.totalorder 1, %s32
      %p458 = scmp.lt.s32.totalorder %s32, 3
      %p459 = pnand %p457, %p458
      %p460 = pneg %p459
      // Predicated region
      $region53: #{tpu_custom_call.1} parent=5 // pred_check
        _
      $region54: #{tpu_custom_call.1} parent=5 // pred_check_branch
        %462 = sbr.rel (%p459) target = $region56
      $region55: #{tpu_custom_call.1} parent=5 // pred_region
        %s463 = ssub.s32 %s32, 1
        %s464 = sand.u32 %s37, 1
        %s465 = scalar_lea.sflag [#allocation4], %s464
        %s466 = sand.u32 %s45, 1
        %s467 = smul.addr %s466, 8
        %s468 = scalar_lea.vmem [#allocation3], %s467
        // Predicated region
        $region57: #{tpu_custom_call.1} parent=55 // pred_check
          %p469 = pneg %p58
        $region58: #{tpu_custom_call.1} parent=55 // pred_check_branch
          %471 = sbr.rel (%p469) target = $region60
        $region59: #{tpu_custom_call.1} parent=55 // pred_region
          %473 = dma.done %s465, 128
        $region60: #{tpu_custom_call.1} parent=55 // pred_fallthru
          _
        %s474 = sand.u32 %s37, 1
        %s475 = scalar_lea.sflag [#allocation7], %s474
        %s476 = sand.u32 %s71, 1
        %s477 = smul.addr %s476, 8
        %s478 = scalar_lea.vmem [#allocation6], %s477
        // Predicated region
        $region61: #{tpu_custom_call.1} parent=55 // pred_check
          %p479 = pneg %p84
        $region62: #{tpu_custom_call.1} parent=55 // pred_check_branch
          %481 = sbr.rel (%p479) target = $region64
        $region63: #{tpu_custom_call.1} parent=55 // pred_region
          %483 = dma.done %s475, 128
        $region64: #{tpu_custom_call.1} parent=55 // pred_fallthru
          _
        // Predicated region
        $region65: #{tpu_custom_call.1} parent=55 // pred_check
          %p484 = pneg %p105
        $region66: #{tpu_custom_call.1} parent=55 // pred_check_branch
          %486 = sbr.rel (%p484) target = $region68
        $region67: #{tpu_custom_call.1} parent=55 // pred_region
          %488 = dma.done [#allocation7], 1024
        $region68: #{tpu_custom_call.1} parent=55 // pred_fallthru
          _
        // Predicated region
        $region69: #{tpu_custom_call.1} parent=55 // pred_check
          %p489 = pneg %p126
        $region70: #{tpu_custom_call.1} parent=55 // pred_check_branch
          %491 = sbr.rel (%p489) target = $region72
        $region71: #{tpu_custom_call.1} parent=55 // pred_region
          %493 = dma.done [#allocation10], 3072
        $region72: #{tpu_custom_call.1} parent=55 // pred_fallthru
          _
        // Predicated region
        $region73: #{tpu_custom_call.1} parent=55 // pred_check
          %p494 = pneg %p147
        $region74: #{tpu_custom_call.1} parent=55 // pred_check_branch
          %496 = sbr.rel (%p494) target = $region76
        $region75: #{tpu_custom_call.1} parent=55 // pred_region
          %498 = dma.done [#allocation10], 3072
        $region76: #{tpu_custom_call.1} parent=55 // pred_fallthru
          _
        // Predicated region
        $region77: #{tpu_custom_call.1} parent=55 // pred_check
          %p499 = pneg %p168
        $region78: #{tpu_custom_call.1} parent=55 // pred_check_branch
          %501 = sbr.rel (%p499) target = $region80
        $region79: #{tpu_custom_call.1} parent=55 // pred_region
          %503 = dma.done [#allocation13], 3072
        $region80: #{tpu_custom_call.1} parent=55 // pred_fallthru
          _
        // Predicated region
        $region81: #{tpu_custom_call.1} parent=55 // pred_check
          %p504 = pneg %p189
        $region82: #{tpu_custom_call.1} parent=55 // pred_check_branch
          %506 = sbr.rel (%p504) target = $region84
        $region83: #{tpu_custom_call.1} parent=55 // pred_region
          %508 = dma.done [#allocation13], 3072
        $region84: #{tpu_custom_call.1} parent=55 // pred_fallthru
          _
        // Predicated region
        $region85: #{tpu_custom_call.1} parent=55 // pred_check
          %p509 = pneg %p210
        $region86: #{tpu_custom_call.1} parent=55 // pred_check_branch
          %511 = sbr.rel (%p509) target = $region88
        $region87: #{tpu_custom_call.1} parent=55 // pred_region
          %513 = dma.done [#allocation16], 1024
        $region88: #{tpu_custom_call.1} parent=55 // pred_fallthru
          _
        %s514 = sand.u32 %s37, 1
        %s515 = scalar_lea.sflag [#allocation4], %s514
        %s516 = sand.u32 %s223, 1
        %s517 = smul.addr %s516, 64
        %s518 = scalar_lea.vmem [#allocation17], %s517
        // Predicated region
        $region89: #{tpu_custom_call.1} parent=55 // pred_check
          %p519 = pneg %p236
        $region90: #{tpu_custom_call.1} parent=55 // pred_check_branch
          %521 = sbr.rel (%p519) target = $region92
        $region91: #{tpu_custom_call.1} parent=55 // pred_region
          %523 = dma.done %s515, 1024
        $region92: #{tpu_custom_call.1} parent=55 // pred_fallthru
          _
        %s524 = sand.u32 %s37, 1
        %s525 = scalar_lea.sflag [#allocation4], %s524
        %s526 = sand.u32 %s45, 1
        %s527 = smul.addr %s526, 8
        %s528 = scalar_lea.vmem [#allocation3], %s527
        %p529 = pneg %p58
        %p530 = pneg %p55
        %s531 = sand.u32 %s37, 1
        %s532 = scalar_lea.sflag [#allocation7], %s531
        %s533 = sand.u32 %s71, 1
        %s534 = smul.addr %s533, 8
        %s535 = scalar_lea.vmem [#allocation6], %s534
        %p536 = pneg %p84
        %p537 = pneg %p81
        %p538 = pneg %p105
        %p539 = pneg %p102
        %p540 = pneg %p126
        %p541 = pneg %p123
        %p542 = pneg %p147
        %p543 = pneg %p144
        %p544 = pneg %p168
        %p545 = pneg %p165
        %p546 = pneg %p189
        %p547 = pneg %p186
        %p548 = pneg %p210
        %p549 = pneg %p207
        %s550 = sand.u32 %s37, 1
        %s551 = scalar_lea.sflag [#allocation4], %s550
        %s552 = sand.u32 %s223, 1
        %s553 = smul.addr %s552, 64
        %s554 = scalar_lea.vmem [#allocation17], %s553
        %p555 = pneg %p236
        %p556 = pneg %p233
        %p557 = pneg %p262
        %p558 = pneg %p259
        %s559 = sand.u32 %s249, 1
        %s560 = scalar_lea.sflag [#allocation5], %s559
        %s561 = sand.u32 %s249, 1
        %s562 = smul.addr %s561, 16
        %s563 = scalar_lea.vmem [#allocation18], %s562
        %p564 = pneg %p288
        %p565 = pneg %p285
        %s566 = sand.u32 %s275, 1
        %s567 = scalar_lea.sflag [#allocation20], %s566
        %s568 = sand.u32 %s275, 1
        %s569 = smul.addr %s568, 16
        %s570 = scalar_lea.vmem [#allocation19], %s569
        %v572 = vld [vmem:[%s468] sm:$0xf]
        %v573 = vld [vmem:[%s468 + $0x4] sm:$0xf]
        %v574 = vld [vmem:[%s478] sm:$0xf]
        %v575 = vld [vmem:[%s478 + $0x4] sm:$0xf]
        %v576 = vld [vmem:[#allocation8] sm:$0xf]
        %v577 = vld [vmem:[#allocation8 + $0x4] sm:$0xf]
        %v578 = vld [vmem:[#allocation8 + $0x8] sm:$0xf]
        %v579 = vld [vmem:[#allocation8 + $0xc] sm:$0xf]
        %v580 = vld [vmem:[#allocation8 + $0x10] sm:$0xf]
        %v581 = vld [vmem:[#allocation8 + $0x14] sm:$0xf]
        %v582 = vld [vmem:[#allocation8 + $0x18] sm:$0xf]
        %v583 = vld [vmem:[#allocation8 + $0x1c] sm:$0xf]
        %v584 = vld [vmem:[#allocation8 + $0x20] sm:$0xf]
        %v585 = vld [vmem:[#allocation8 + $0x24] sm:$0xf]
        %v586 = vld [vmem:[#allocation8 + $0x28] sm:$0xf]
        %v587 = vld [vmem:[#allocation8 + $0x2c] sm:$0xf]
        %v588 = vld [vmem:[#allocation8 + $0x30] sm:$0xf]
        %v589 = vld [vmem:[#allocation8 + $0x34] sm:$0xf]
        %v590 = vld [vmem:[#allocation8 + $0x38] sm:$0xf]
        %v591 = vld [vmem:[#allocation8 + $0x3c] sm:$0xf]
        %v594 = vunpack.c.l.b16 %v572
        %v595 = vunpack.c.l.b16 %v573
        %v596 = vpack.c.b16 %v595, %v594
        %v614 = vunpack.c.l.b16 %v576
        %v615 = vunpack.c.l.b16 %v577
        %v616 = vunpack.c.l.b16 %v578
        %v617 = vunpack.c.l.b16 %v579
        %v618 = vunpack.c.l.b16 %v580
        %v619 = vunpack.c.l.b16 %v581
        %v620 = vunpack.c.l.b16 %v582
        %v621 = vunpack.c.l.b16 %v583
        %v622 = vunpack.c.l.b16 %v584
        %v623 = vunpack.c.l.b16 %v585
        %v624 = vunpack.c.l.b16 %v586
        %v625 = vunpack.c.l.b16 %v587
        %v626 = vunpack.c.l.b16 %v588
        %v627 = vunpack.c.l.b16 %v589
        %v628 = vunpack.c.l.b16 %v590
        %v629 = vunpack.c.l.b16 %v591
        %v630 = vpack.c.b16 %v615, %v614
        %v631 = vpack.c.b16 %v617, %v616
        %v632 = vpack.c.b16 %v619, %v618
        %v633 = vpack.c.b16 %v621, %v620
        %v634 = vpack.c.b16 %v623, %v622
        %v635 = vpack.c.b16 %v625, %v624
        %v636 = vpack.c.b16 %v627, %v626
        %v637 = vpack.c.b16 %v629, %v628
        %646 = vmatpush.bf16.msra.mxu0 %v637
        %647 = vmatpush.bf16.msra.mxu0 %v636
        %648 = vmatpush.bf16.msra.mxu0 %v635
        %649 = vmatpush.bf16.msra.mxu0 %v634
        %650 = vmatpush.bf16.msra.mxu0 %v633
        %651 = vmatpush.bf16.msra.mxu0 %v632
        %652 = vmatpush.bf16.msra.mxu0 %v631
        %653 = vmatpush.bf16.msra.mxu0 %v630
        %654 = vmatmul.bf16.gmra.mxu0 %v596
        %v655 = vpop.f32.mrf.mxu0
        %v656 = vadd.f32 0.0, %v655
        %v657 = vpop.f32.mrf.mxu0
        %v658 = vadd.f32 0.0, %v657
        %659 = vdwg.mxu0
        %v660 = vpack.c.bf16 %v656, %v656
        %v661 = vpack.c.bf16 %v658, %v658
        %662 = vst [vmem:[#allocation2] sm:$0xf] %v660
        %663 = vst [vmem:[#allocation2 + $0xc] sm:$0xf] %v661
        %v666 = vunpack.c.l.b16 %v574
        %v667 = vunpack.c.l.b16 %v575
        %v668 = vpack.c.b16 %v667, %v666
        %v671 = vunpack.c.l.b16 %v660
        %v672 = vunpack.c.l.b16 %v661
        %v673 = vpack.c.b16 %v672, %v671
        %vm675 = vcmask 130048
        %v677 = vsel %vm675, %v668, 0
        %679 = vmatpush.bf16.msra.mxu0 0
        %680 = vmatpush.bf16.msra.mxu0 0
        %681 = vmatpush.bf16.msra.mxu0 0
        %682 = vmatpush.bf16.msra.mxu0 0
        %683 = vmatpush.bf16.msra.mxu0 0
        %684 = vmatpush.bf16.msra.mxu0 0
        %685 = vmatpush.bf16.msra.mxu0 0
        %686 = vmatpush.bf16.msra.mxu0 %v673
        %687 = vmatmul.bf16.gmra.mxu0 %v677
        %v688 = vpop.f32.mrf.mxu0
        %v689 = vadd.f32 0.0, %v688
        %v690 = vpop.f32.mrf.mxu0
        %v691 = vadd.f32 0.0, %v690
        %692 = vdwg.mxu0
        %v693 = vpack.c.bf16 %v689, %v689
        %v694 = vpack.c.bf16 %v691, %v691
        %695 = vst [vmem:[#allocation2 + $0x4] sm:$0xf] %v693
        %696 = vst [vmem:[#allocation2 + $0x10] sm:$0xf] %v694
        %v699 = vunpack.c.l.b16 %v693
        %v700 = vunpack.c.l.b16 %v694
        %v701 = vpack.c.b16 %v700, %v699
        %703 = vmatpush.bf16.msra.mxu0 0
        %704 = vmatpush.bf16.msra.mxu0 0
        %705 = vmatpush.bf16.msra.mxu0 0
        %706 = vmatpush.bf16.msra.mxu0 0
        %707 = vmatpush.bf16.msra.mxu0 0
        %708 = vmatpush.bf16.msra.mxu0 0
        %709 = vmatpush.bf16.msra.mxu0 0
        %710 = vmatpush.bf16.msra.mxu0 %v701
        %711 = vmatmul.bf16.gmra.mxu0 %v677
        %v712 = vpop.f32.mrf.mxu0
        %v713 = vadd.f32 0.0, %v712
        %v714 = vpop.f32.mrf.mxu0
        %v715 = vadd.f32 0.0, %v714
        %716 = vdwg.mxu0
        %v717 = vmul.f32 %v713, 2.0
        %v718 = vmul.f32 %v715, 2.0
        %v719 = vsub.f32 %v717, %v656
        %v720 = vsub.f32 %v718, %v658
        %v721 = vpack.c.bf16 %v719, %v719
        %v722 = vpack.c.bf16 %v720, %v720
        %723 = vst [vmem:[#allocation2 + $0x8] sm:$0xf] %v721
        %724 = vst [vmem:[#allocation2 + $0x14] sm:$0xf] %v722
        %v725 = vld [vmem:[#allocation2] sm:$0xff]
        %v726 = vld [vmem:[#allocation2 + $0x8] sm:$0xf]
        %v727 = vld [vmem:[#allocation2 + $0xc] sm:$0xff]
        %v728 = vld [vmem:[#allocation2 + $0x14] sm:$0xf]
        %v729 = vld [vmem:[#allocation9] sm:$0xf]
        %v730 = vld [vmem:[#allocation9 + $0x4] sm:$0xf]
        %v731 = vld [vmem:[#allocation9 + $0x8] sm:$0xf]
        %v732 = vld [vmem:[#allocation9 + $0xc] sm:$0xf]
        %v733 = vld [vmem:[#allocation9 + $0x10] sm:$0xf]
        %v734 = vld [vmem:[#allocation9 + $0x14] sm:$0xf]
        %v735 = vld [vmem:[#allocation9 + $0x18] sm:$0xf]
        %v736 = vld [vmem:[#allocation9 + $0x1c] sm:$0xf]
        %v737 = vld [vmem:[#allocation9 + $0x20] sm:$0xf]
        %v738 = vld [vmem:[#allocation9 + $0x24] sm:$0xf]
        %v739 = vld [vmem:[#allocation9 + $0x28] sm:$0xf]
        %v740 = vld [vmem:[#allocation9 + $0x2c] sm:$0xf]
        %v741 = vld [vmem:[#allocation9 + $0x30] sm:$0xf]
        %v742 = vld [vmem:[#allocation9 + $0x34] sm:$0xf]
        %v743 = vld [vmem:[#allocation9 + $0x38] sm:$0xf]
        %v744 = vld [vmem:[#allocation9 + $0x3c] sm:$0xf]
        %v745 = vld [vmem:[#allocation9 + $0x40] sm:$0xf]
        %v746 = vld [vmem:[#allocation9 + $0x44] sm:$0xf]
        %v747 = vld [vmem:[#allocation9 + $0x48] sm:$0xf]
        %v748 = vld [vmem:[#allocation9 + $0x4c] sm:$0xf]
        %v749 = vld [vmem:[#allocation9 + $0x50] sm:$0xf]
        %v750 = vld [vmem:[#allocation9 + $0x54] sm:$0xf]
        %v751 = vld [vmem:[#allocation9 + $0x58] sm:$0xf]
        %v752 = vld [vmem:[#allocation9 + $0x5c] sm:$0xf]
        %v753 = vld [vmem:[#allocation9 + $0x60] sm:$0xf]
        %v754 = vld [vmem:[#allocation9 + $0x64] sm:$0xf]
        %v755 = vld [vmem:[#allocation9 + $0x68] sm:$0xf]
        %v756 = vld [vmem:[#allocation9 + $0x6c] sm:$0xf]
        %v757 = vld [vmem:[#allocation9 + $0x70] sm:$0xf]
        %v758 = vld [vmem:[#allocation9 + $0x74] sm:$0xf]
        %v759 = vld [vmem:[#allocation9 + $0x78] sm:$0xf]
        %v760 = vld [vmem:[#allocation9 + $0x7c] sm:$0xf]
        %v761 = vld [vmem:[#allocation9 + $0x80] sm:$0xf]
        %v762 = vld [vmem:[#allocation9 + $0x84] sm:$0xf]
        %v763 = vld [vmem:[#allocation9 + $0x88] sm:$0xf]
        %v764 = vld [vmem:[#allocation9 + $0x8c] sm:$0xf]
        %v765 = vld [vmem:[#allocation9 + $0x90] sm:$0xf]
        %v766 = vld [vmem:[#allocation9 + $0x94] sm:$0xf]
        %v767 = vld [vmem:[#allocation9 + $0x98] sm:$0xf]
        %v768 = vld [vmem:[#allocation9 + $0x9c] sm:$0xf]
        %v769 = vld [vmem:[#allocation9 + $0xa0] sm:$0xf]
        %v770 = vld [vmem:[#allocation9 + $0xa4] sm:$0xf]
        %v771 = vld [vmem:[#allocation9 + $0xa8] sm:$0xf]
        %v772 = vld [vmem:[#allocation9 + $0xac] sm:$0xf]
        %v773 = vld [vmem:[#allocation9 + $0xb0] sm:$0xf]
        %v774 = vld [vmem:[#allocation9 + $0xb4] sm:$0xf]
        %v775 = vld [vmem:[#allocation9 + $0xb8] sm:$0xf]
        %v776 = vld [vmem:[#allocation9 + $0xbc] sm:$0xf]
        %v781 = vunpack.c.l.b16 %v725
        %v782 = vunpack.c.h.b16 %v725
        %v783 = vunpack.c.l.b16 %v726
        %v784 = vunpack.c.l.b16 %v727
        %v785 = vunpack.c.h.b16 %v727
        %v786 = vunpack.c.l.b16 %v728
        %v787 = vpack.c.b16 %v784, %v781
        %v788 = vpack.c.b16 %v785, %v782
        %v789 = vpack.c.b16 %v786, %v783
        %v841 = vunpack.c.l.b16 %v729
        %v842 = vunpack.c.l.b16 %v730
        %v843 = vunpack.c.l.b16 %v731
        %v844 = vunpack.c.l.b16 %v732
        %v845 = vunpack.c.l.b16 %v733
        %v846 = vunpack.c.l.b16 %v734
        %v847 = vunpack.c.l.b16 %v735
        %v848 = vunpack.c.l.b16 %v736
        %v849 = vunpack.c.l.b16 %v737
        %v850 = vunpack.c.l.b16 %v738
        %v851 = vunpack.c.l.b16 %v739
        %v852 = vunpack.c.l.b16 %v740
        %v853 = vunpack.c.l.b16 %v741
        %v854 = vunpack.c.l.b16 %v742
        %v855 = vunpack.c.l.b16 %v743
        %v856 = vunpack.c.l.b16 %v744
        %v857 = vunpack.c.l.b16 %v745
        %v858 = vunpack.c.l.b16 %v746
        %v859 = vunpack.c.l.b16 %v747
        %v860 = vunpack.c.l.b16 %v748
        %v861 = vunpack.c.l.b16 %v749
        %v862 = vunpack.c.l.b16 %v750
        %v863 = vunpack.c.l.b16 %v751
        %v864 = vunpack.c.l.b16 %v752
        %v865 = vunpack.c.l.b16 %v753
        %v866 = vunpack.c.l.b16 %v754
        %v867 = vunpack.c.l.b16 %v755
        %v868 = vunpack.c.l.b16 %v756
        %v869 = vunpack.c.l.b16 %v757
        %v870 = vunpack.c.l.b16 %v758
        %v871 = vunpack.c.l.b16 %v759
        %v872 = vunpack.c.l.b16 %v760
        %v873 = vunpack.c.l.b16 %v761
        %v874 = vunpack.c.l.b16 %v762
        %v875 = vunpack.c.l.b16 %v763
        %v876 = vunpack.c.l.b16 %v764
        %v877 = vunpack.c.l.b16 %v765
        %v878 = vunpack.c.l.b16 %v766
        %v879 = vunpack.c.l.b16 %v767
        %v880 = vunpack.c.l.b16 %v768
        %v881 = vunpack.c.l.b16 %v769
        %v882 = vunpack.c.l.b16 %v770
        %v883 = vunpack.c.l.b16 %v771
        %v884 = vunpack.c.l.b16 %v772
        %v885 = vunpack.c.l.b16 %v773
        %v886 = vunpack.c.l.b16 %v774
        %v887 = vunpack.c.l.b16 %v775
        %v888 = vunpack.c.l.b16 %v776
        %v889 = vpack.c.b16 %v842, %v841
        %v890 = vpack.c.b16 %v844, %v843
        %v891 = vpack.c.b16 %v846, %v845
        %v892 = vpack.c.b16 %v848, %v847
        %v893 = vpack.c.b16 %v850, %v849
        %v894 = vpack.c.b16 %v852, %v851
        %v895 = vpack.c.b16 %v854, %v853
        %v896 = vpack.c.b16 %v856, %v855
        %v897 = vpack.c.b16 %v858, %v857
        %v898 = vpack.c.b16 %v860, %v859
        %v899 = vpack.c.b16 %v862, %v861
        %v900 = vpack.c.b16 %v864, %v863
        %v901 = vpack.c.b16 %v866, %v865
        %v902 = vpack.c.b16 %v868, %v867
        %v903 = vpack.c.b16 %v870, %v869
        %v904 = vpack.c.b16 %v872, %v871
        %v905 = vpack.c.b16 %v874, %v873
        %v906 = vpack.c.b16 %v876, %v875
        %v907 = vpack.c.b16 %v878, %v877
        %v908 = vpack.c.b16 %v880, %v879
        %v909 = vpack.c.b16 %v882, %v881
        %v910 = vpack.c.b16 %v884, %v883
        %v911 = vpack.c.b16 %v886, %v885
        %v912 = vpack.c.b16 %v888, %v887
        %937 = vmatpush.bf16.msra.mxu0 %v896
        %938 = vmatpush.bf16.msra.mxu0 %v895
        %939 = vmatpush.bf16.msra.mxu0 %v894
        %940 = vmatpush.bf16.msra.mxu0 %v893
        %941 = vmatpush.bf16.msra.mxu0 %v892
        %942 = vmatpush.bf16.msra.mxu0 %v891
        %943 = vmatpush.bf16.msra.mxu0 %v890
        %944 = vmatpush.bf16.msra.mxu0 %v889
        %945 = vmatmul.bf16.gmra.mxu0 %v787
        %v946 = vpop.f32.mrf.mxu0
        %v947 = vadd.f32 0.0, %v946
        %v948 = vpop.f32.mrf.mxu0
        %v949 = vadd.f32 0.0, %v948
        %950 = vdwg.mxu0
        %951 = vmatpush.bf16.msra.mxu0 %v904
        %952 = vmatpush.bf16.msra.mxu0 %v903
        %953 = vmatpush.bf16.msra.mxu0 %v902
        %954 = vmatpush.bf16.msra.mxu0 %v901
        %955 = vmatpush.bf16.msra.mxu0 %v900
        %956 = vmatpush.bf16.msra.mxu0 %v899
        %957 = vmatpush.bf16.msra.mxu0 %v898
        %958 = vmatpush.bf16.msra.mxu0 %v897
        %959 = vmatmul.bf16.gmra.mxu0 %v788
        %v960 = vpop.f32.mrf.mxu0
        %v961 = vadd.f32 %v947, %v960
        %v962 = vpop.f32.mrf.mxu0
        %v963 = vadd.f32 %v949, %v962
        %964 = vdwg.mxu0
        %965 = vmatpush.bf16.msra.mxu0 %v912
        %966 = vmatpush.bf16.msra.mxu0 %v911
        %967 = vmatpush.bf16.msra.mxu0 %v910
        %968 = vmatpush.bf16.msra.mxu0 %v909
        %969 = vmatpush.bf16.msra.mxu0 %v908
        %970 = vmatpush.bf16.msra.mxu0 %v907
        %971 = vmatpush.bf16.msra.mxu0 %v906
        %972 = vmatpush.bf16.msra.mxu0 %v905
        %973 = vmatmul.bf16.gmra.mxu0 %v789
        %v974 = vpop.f32.mrf.mxu0
        %v975 = vadd.f32 %v961, %v974
        %v976 = vpop.f32.mrf.mxu0
        %v977 = vadd.f32 %v963, %v976
        %978 = vdwg.mxu0
        %v979 = vmax.f32 %v975, 0.0
        %v980 = vmax.f32 %v977, 0.0
        %v981 = vpack.c.bf16 %v979, %v979
        %v982 = vpack.c.bf16 %v980, %v980
        %983 = vst [vmem:[#allocation2] sm:$0xf] %v981
        %984 = vst [vmem:[#allocation2 + $0xc] sm:$0xf] %v982
        %v987 = vunpack.c.l.b16 %v981
        %v988 = vunpack.c.l.b16 %v982
        %v989 = vpack.c.b16 %v988, %v987
        %991 = vmatpush.bf16.msra.mxu0 0
        %992 = vmatpush.bf16.msra.mxu0 0
        %993 = vmatpush.bf16.msra.mxu0 0
        %994 = vmatpush.bf16.msra.mxu0 0
        %995 = vmatpush.bf16.msra.mxu0 0
        %996 = vmatpush.bf16.msra.mxu0 0
        %997 = vmatpush.bf16.msra.mxu0 0
        %998 = vmatpush.bf16.msra.mxu0 %v989
        %999 = vmatmul.bf16.gmra.mxu0 %v677
        %v1000 = vpop.f32.mrf.mxu0
        %v1001 = vadd.f32 0.0, %v1000
        %v1002 = vpop.f32.mrf.mxu0
        %v1003 = vadd.f32 0.0, %v1002
        %1004 = vdwg.mxu0
        %v1005 = vpack.c.bf16 %v1001, %v1001
        %v1006 = vpack.c.bf16 %v1003, %v1003
        %1007 = vst [vmem:[#allocation2 + $0x4] sm:$0xf] %v1005
        %1008 = vst [vmem:[#allocation2 + $0x10] sm:$0xf] %v1006
        %v1011 = vunpack.c.l.b16 %v1005
        %v1012 = vunpack.c.l.b16 %v1006
        %v1013 = vpack.c.b16 %v1012, %v1011
        %1015 = vmatpush.bf16.msra.mxu0 0
        %1016 = vmatpush.bf16.msra.mxu0 0
        %1017 = vmatpush.bf16.msra.mxu0 0
        %1018 = vmatpush.bf16.msra.mxu0 0
        %1019 = vmatpush.bf16.msra.mxu0 0
        %1020 = vmatpush.bf16.msra.mxu0 0
        %1021 = vmatpush.bf16.msra.mxu0 0
        %1022 = vmatpush.bf16.msra.mxu0 %v1013
        %1023 = vmatmul.bf16.gmra.mxu0 %v677
        %v1024 = vpop.f32.mrf.mxu0
        %v1025 = vadd.f32 0.0, %v1024
        %v1026 = vpop.f32.mrf.mxu0
        %v1027 = vadd.f32 0.0, %v1026
        %1028 = vdwg.mxu0
        %v1029 = vmul.f32 %v1025, 2.0
        %v1030 = vmul.f32 %v1027, 2.0
        %v1031 = vsub.f32 %v1029, %v979
        %v1032 = vsub.f32 %v1030, %v980
        %v1033 = vpack.c.bf16 %v1031, %v1031
        %v1034 = vpack.c.bf16 %v1032, %v1032
        %1035 = vst [vmem:[#allocation2 + $0x8] sm:$0xf] %v1033
        %1036 = vst [vmem:[#allocation2 + $0x14] sm:$0xf] %v1034
        %v1037 = vld [vmem:[#allocation2] sm:$0xff]
        %v1038 = vld [vmem:[#allocation2 + $0x8] sm:$0xf]
        %v1039 = vld [vmem:[#allocation2 + $0xc] sm:$0xff]
        %v1040 = vld [vmem:[#allocation2 + $0x14] sm:$0xf]
        %v1041 = vld [vmem:[#allocation11] sm:$0xf]
        %v1042 = vld [vmem:[#allocation11 + $0x4] sm:$0xf]
        %v1043 = vld [vmem:[#allocation11 + $0x8] sm:$0xf]
        %v1044 = vld [vmem:[#allocation11 + $0xc] sm:$0xf]
        %v1045 = vld [vmem:[#allocation11 + $0x10] sm:$0xf]
        %v1046 = vld [vmem:[#allocation11 + $0x14] sm:$0xf]
        %v1047 = vld [vmem:[#allocation11 + $0x18] sm:$0xf]
        %v1048 = vld [vmem:[#allocation11 + $0x1c] sm:$0xf]
        %v1049 = vld [vmem:[#allocation11 + $0x20] sm:$0xf]
        %v1050 = vld [vmem:[#allocation11 + $0x24] sm:$0xf]
        %v1051 = vld [vmem:[#allocation11 + $0x28] sm:$0xf]
        %v1052 = vld [vmem:[#allocation11 + $0x2c] sm:$0xf]
        %v1053 = vld [vmem:[#allocation11 + $0x30] sm:$0xf]
        %v1054 = vld [vmem:[#allocation11 + $0x34] sm:$0xf]
        %v1055 = vld [vmem:[#allocation11 + $0x38] sm:$0xf]
        %v1056 = vld [vmem:[#allocation11 + $0x3c] sm:$0xf]
        %v1057 = vld [vmem:[#allocation11 + $0x40] sm:$0xf]
        %v1058 = vld [vmem:[#allocation11 + $0x44] sm:$0xf]
        %v1059 = vld [vmem:[#allocation11 + $0x48] sm:$0xf]
        %v1060 = vld [vmem:[#allocation11 + $0x4c] sm:$0xf]
        %v1061 = vld [vmem:[#allocation11 + $0x50] sm:$0xf]
        %v1062 = vld [vmem:[#allocation11 + $0x54] sm:$0xf]
        %v1063 = vld [vmem:[#allocation11 + $0x58] sm:$0xf]
        %v1064 = vld [vmem:[#allocation11 + $0x5c] sm:$0xf]
        %v1065 = vld [vmem:[#allocation11 + $0x60] sm:$0xf]
        %v1066 = vld [vmem:[#allocation11 + $0x64] sm:$0xf]
        %v1067 = vld [vmem:[#allocation11 + $0x68] sm:$0xf]
        %v1068 = vld [vmem:[#allocation11 + $0x6c] sm:$0xf]
        %v1069 = vld [vmem:[#allocation11 + $0x70] sm:$0xf]
        %v1070 = vld [vmem:[#allocation11 + $0x74] sm:$0xf]
        %v1071 = vld [vmem:[#allocation11 + $0x78] sm:$0xf]
        %v1072 = vld [vmem:[#allocation11 + $0x7c] sm:$0xf]
        %v1073 = vld [vmem:[#allocation11 + $0x80] sm:$0xf]
        %v1074 = vld [vmem:[#allocation11 + $0x84] sm:$0xf]
        %v1075 = vld [vmem:[#allocation11 + $0x88] sm:$0xf]
        %v1076 = vld [vmem:[#allocation11 + $0x8c] sm:$0xf]
        %v1077 = vld [vmem:[#allocation11 + $0x90] sm:$0xf]
        %v1078 = vld [vmem:[#allocation11 + $0x94] sm:$0xf]
        %v1079 = vld [vmem:[#allocation11 + $0x98] sm:$0xf]
        %v1080 = vld [vmem:[#allocation11 + $0x9c] sm:$0xf]
        %v1081 = vld [vmem:[#allocation11 + $0xa0] sm:$0xf]
        %v1082 = vld [vmem:[#allocation11 + $0xa4] sm:$0xf]
        %v1083 = vld [vmem:[#allocation11 + $0xa8] sm:$0xf]
        %v1084 = vld [vmem:[#allocation11 + $0xac] sm:$0xf]
        %v1085 = vld [vmem:[#allocation11 + $0xb0] sm:$0xf]
        %v1086 = vld [vmem:[#allocation11 + $0xb4] sm:$0xf]
        %v1087 = vld [vmem:[#allocation11 + $0xb8] sm:$0xf]
        %v1088 = vld [vmem:[#allocation11 + $0xbc] sm:$0xf]
        %v1093 = vunpack.c.l.b16 %v1037
        %v1094 = vunpack.c.h.b16 %v1037
        %v1095 = vunpack.c.l.b16 %v1038
        %v1096 = vunpack.c.l.b16 %v1039
        %v1097 = vunpack.c.h.b16 %v1039
        %v1098 = vunpack.c.l.b16 %v1040
        %v1099 = vpack.c.b16 %v1096, %v1093
        %v1100 = vpack.c.b16 %v1097, %v1094
        %v1101 = vpack.c.b16 %v1098, %v1095
        %v1153 = vunpack.c.l.b16 %v1041
        %v1154 = vunpack.c.l.b16 %v1042
        %v1155 = vunpack.c.l.b16 %v1043
        %v1156 = vunpack.c.l.b16 %v1044
        %v1157 = vunpack.c.l.b16 %v1045
        %v1158 = vunpack.c.l.b16 %v1046
        %v1159 = vunpack.c.l.b16 %v1047
        %v1160 = vunpack.c.l.b16 %v1048
        %v1161 = vunpack.c.l.b16 %v1049
        %v1162 = vunpack.c.l.b16 %v1050
        %v1163 = vunpack.c.l.b16 %v1051
        %v1164 = vunpack.c.l.b16 %v1052
        %v1165 = vunpack.c.l.b16 %v1053
        %v1166 = vunpack.c.l.b16 %v1054
        %v1167 = vunpack.c.l.b16 %v1055
        %v1168 = vunpack.c.l.b16 %v1056
        %v1169 = vunpack.c.l.b16 %v1057
        %v1170 = vunpack.c.l.b16 %v1058
        %v1171 = vunpack.c.l.b16 %v1059
        %v1172 = vunpack.c.l.b16 %v1060
        %v1173 = vunpack.c.l.b16 %v1061
        %v1174 = vunpack.c.l.b16 %v1062
        %v1175 = vunpack.c.l.b16 %v1063
        %v1176 = vunpack.c.l.b16 %v1064
        %v1177 = vunpack.c.l.b16 %v1065
        %v1178 = vunpack.c.l.b16 %v1066
        %v1179 = vunpack.c.l.b16 %v1067
        %v1180 = vunpack.c.l.b16 %v1068
        %v1181 = vunpack.c.l.b16 %v1069
        %v1182 = vunpack.c.l.b16 %v1070
        %v1183 = vunpack.c.l.b16 %v1071
        %v1184 = vunpack.c.l.b16 %v1072
        %v1185 = vunpack.c.l.b16 %v1073
        %v1186 = vunpack.c.l.b16 %v1074
        %v1187 = vunpack.c.l.b16 %v1075
        %v1188 = vunpack.c.l.b16 %v1076
        %v1189 = vunpack.c.l.b16 %v1077
        %v1190 = vunpack.c.l.b16 %v1078
        %v1191 = vunpack.c.l.b16 %v1079
        %v1192 = vunpack.c.l.b16 %v1080
        %v1193 = vunpack.c.l.b16 %v1081
        %v1194 = vunpack.c.l.b16 %v1082
        %v1195 = vunpack.c.l.b16 %v1083
        %v1196 = vunpack.c.l.b16 %v1084
        %v1197 = vunpack.c.l.b16 %v1085
        %v1198 = vunpack.c.l.b16 %v1086
        %v1199 = vunpack.c.l.b16 %v1087
        %v1200 = vunpack.c.l.b16 %v1088
        %v1201 = vpack.c.b16 %v1154, %v1153
        %v1202 = vpack.c.b16 %v1156, %v1155
        %v1203 = vpack.c.b16 %v1158, %v1157
        %v1204 = vpack.c.b16 %v1160, %v1159
        %v1205 = vpack.c.b16 %v1162, %v1161
        %v1206 = vpack.c.b16 %v1164, %v1163
        %v1207 = vpack.c.b16 %v1166, %v1165
        %v1208 = vpack.c.b16 %v1168, %v1167
        %v1209 = vpack.c.b16 %v1170, %v1169
        %v1210 = vpack.c.b16 %v1172, %v1171
        %v1211 = vpack.c.b16 %v1174, %v1173
        %v1212 = vpack.c.b16 %v1176, %v1175
        %v1213 = vpack.c.b16 %v1178, %v1177
        %v1214 = vpack.c.b16 %v1180, %v1179
        %v1215 = vpack.c.b16 %v1182, %v1181
        %v1216 = vpack.c.b16 %v1184, %v1183
        %v1217 = vpack.c.b16 %v1186, %v1185
        %v1218 = vpack.c.b16 %v1188, %v1187
        %v1219 = vpack.c.b16 %v1190, %v1189
        %v1220 = vpack.c.b16 %v1192, %v1191
        %v1221 = vpack.c.b16 %v1194, %v1193
        %v1222 = vpack.c.b16 %v1196, %v1195
        %v1223 = vpack.c.b16 %v1198, %v1197
        %v1224 = vpack.c.b16 %v1200, %v1199
        %1249 = vmatpush.bf16.msra.mxu0 %v1208
        %1250 = vmatpush.bf16.msra.mxu0 %v1207
        %1251 = vmatpush.bf16.msra.mxu0 %v1206
        %1252 = vmatpush.bf16.msra.mxu0 %v1205
        %1253 = vmatpush.bf16.msra.mxu0 %v1204
        %1254 = vmatpush.bf16.msra.mxu0 %v1203
        %1255 = vmatpush.bf16.msra.mxu0 %v1202
        %1256 = vmatpush.bf16.msra.mxu0 %v1201
        %1257 = vmatmul.bf16.gmra.mxu0 %v1099
        %v1258 = vpop.f32.mrf.mxu0
        %v1259 = vadd.f32 0.0, %v1258
        %v1260 = vpop.f32.mrf.mxu0
        %v1261 = vadd.f32 0.0, %v1260
        %1262 = vdwg.mxu0
        %1263 = vmatpush.bf16.msra.mxu0 %v1216
        %1264 = vmatpush.bf16.msra.mxu0 %v1215
        %1265 = vmatpush.bf16.msra.mxu0 %v1214
        %1266 = vmatpush.bf16.msra.mxu0 %v1213
        %1267 = vmatpush.bf16.msra.mxu0 %v1212
        %1268 = vmatpush.bf16.msra.mxu0 %v1211
        %1269 = vmatpush.bf16.msra.mxu0 %v1210
        %1270 = vmatpush.bf16.msra.mxu0 %v1209
        %1271 = vmatmul.bf16.gmra.mxu0 %v1100
        %v1272 = vpop.f32.mrf.mxu0
        %v1273 = vadd.f32 %v1259, %v1272
        %v1274 = vpop.f32.mrf.mxu0
        %v1275 = vadd.f32 %v1261, %v1274
        %1276 = vdwg.mxu0
        %1277 = vmatpush.bf16.msra.mxu0 %v1224
        %1278 = vmatpush.bf16.msra.mxu0 %v1223
        %1279 = vmatpush.bf16.msra.mxu0 %v1222
        %1280 = vmatpush.bf16.msra.mxu0 %v1221
        %1281 = vmatpush.bf16.msra.mxu0 %v1220
        %1282 = vmatpush.bf16.msra.mxu0 %v1219
        %1283 = vmatpush.bf16.msra.mxu0 %v1218
        %1284 = vmatpush.bf16.msra.mxu0 %v1217
        %1285 = vmatmul.bf16.gmra.mxu0 %v1101
        %v1286 = vpop.f32.mrf.mxu0
        %v1287 = vadd.f32 %v1273, %v1286
        %v1288 = vpop.f32.mrf.mxu0
        %v1289 = vadd.f32 %v1275, %v1288
        %1290 = vdwg.mxu0
        %v1291 = vmax.f32 %v1287, 0.0
        %v1292 = vmax.f32 %v1289, 0.0
        %v1293 = vpack.c.bf16 %v1291, %v1291
        %v1294 = vpack.c.bf16 %v1292, %v1292
        %1295 = vst [vmem:[#allocation2] sm:$0xf] %v1293
        %1296 = vst [vmem:[#allocation2 + $0xc] sm:$0xf] %v1294
        %v1299 = vunpack.c.l.b16 %v1293
        %v1300 = vunpack.c.l.b16 %v1294
        %v1301 = vpack.c.b16 %v1300, %v1299
        %1303 = vmatpush.bf16.msra.mxu0 0
        %1304 = vmatpush.bf16.msra.mxu0 0
        %1305 = vmatpush.bf16.msra.mxu0 0
        %1306 = vmatpush.bf16.msra.mxu0 0
        %1307 = vmatpush.bf16.msra.mxu0 0
        %1308 = vmatpush.bf16.msra.mxu0 0
        %1309 = vmatpush.bf16.msra.mxu0 0
        %1310 = vmatpush.bf16.msra.mxu0 %v1301
        %1311 = vmatmul.bf16.gmra.mxu0 %v677
        %v1312 = vpop.f32.mrf.mxu0
        %v1313 = vadd.f32 0.0, %v1312
        %v1314 = vpop.f32.mrf.mxu0
        %v1315 = vadd.f32 0.0, %v1314
        %1316 = vdwg.mxu0
        %v1317 = vpack.c.bf16 %v1313, %v1313
        %v1318 = vpack.c.bf16 %v1315, %v1315
        %1319 = vst [vmem:[#allocation2 + $0x4] sm:$0xf] %v1317
        %1320 = vst [vmem:[#allocation2 + $0x10] sm:$0xf] %v1318
        %v1323 = vunpack.c.l.b16 %v1317
        %v1324 = vunpack.c.l.b16 %v1318
        %v1325 = vpack.c.b16 %v1324, %v1323
        %1327 = vmatpush.bf16.msra.mxu0 0
        %1328 = vmatpush.bf16.msra.mxu0 0
        %1329 = vmatpush.bf16.msra.mxu0 0
        %1330 = vmatpush.bf16.msra.mxu0 0
        %1331 = vmatpush.bf16.msra.mxu0 0
        %1332 = vmatpush.bf16.msra.mxu0 0
        %1333 = vmatpush.bf16.msra.mxu0 0
        %1334 = vmatpush.bf16.msra.mxu0 %v1325
        %1335 = vmatmul.bf16.gmra.mxu0 %v677
        %v1336 = vpop.f32.mrf.mxu0
        %v1337 = vadd.f32 0.0, %v1336
        %v1338 = vpop.f32.mrf.mxu0
        %v1339 = vadd.f32 0.0, %v1338
        %1340 = vdwg.mxu0
        %v1341 = vmul.f32 %v1337, 2.0
        %v1342 = vmul.f32 %v1339, 2.0
        %v1343 = vsub.f32 %v1341, %v1291
        %v1344 = vsub.f32 %v1342, %v1292
        %v1345 = vpack.c.bf16 %v1343, %v1343
        %v1346 = vpack.c.bf16 %v1344, %v1344
        %1347 = vst [vmem:[#allocation2 + $0x8] sm:$0xf] %v1345
        %1348 = vst [vmem:[#allocation2 + $0x14] sm:$0xf] %v1346
        %v1349 = vld [vmem:[#allocation2] sm:$0xff]
        %v1350 = vld [vmem:[#allocation2 + $0x8] sm:$0xf]
        %v1351 = vld [vmem:[#allocation2 + $0xc] sm:$0xff]
        %v1352 = vld [vmem:[#allocation2 + $0x14] sm:$0xf]
        %v1353 = vld [vmem:[#allocation12] sm:$0xf]
        %v1354 = vld [vmem:[#allocation12 + $0x4] sm:$0xf]
        %v1355 = vld [vmem:[#allocation12 + $0x8] sm:$0xf]
        %v1356 = vld [vmem:[#allocation12 + $0xc] sm:$0xf]
        %v1357 = vld [vmem:[#allocation12 + $0x10] sm:$0xf]
        %v1358 = vld [vmem:[#allocation12 + $0x14] sm:$0xf]
        %v1359 = vld [vmem:[#allocation12 + $0x18] sm:$0xf]
        %v1360 = vld [vmem:[#allocation12 + $0x1c] sm:$0xf]
        %v1361 = vld [vmem:[#allocation12 + $0x20] sm:$0xf]
        %v1362 = vld [vmem:[#allocation12 + $0x24] sm:$0xf]
        %v1363 = vld [vmem:[#allocation12 + $0x28] sm:$0xf]
        %v1364 = vld [vmem:[#allocation12 + $0x2c] sm:$0xf]
        %v1365 = vld [vmem:[#allocation12 + $0x30] sm:$0xf]
        %v1366 = vld [vmem:[#allocation12 + $0x34] sm:$0xf]
        %v1367 = vld [vmem:[#allocation12 + $0x38] sm:$0xf]
        %v1368 = vld [vmem:[#allocation12 + $0x3c] sm:$0xf]
        %v1369 = vld [vmem:[#allocation12 + $0x40] sm:$0xf]
        %v1370 = vld [vmem:[#allocation12 + $0x44] sm:$0xf]
        %v1371 = vld [vmem:[#allocation12 + $0x48] sm:$0xf]
        %v1372 = vld [vmem:[#allocation12 + $0x4c] sm:$0xf]
        %v1373 = vld [vmem:[#allocation12 + $0x50] sm:$0xf]
        %v1374 = vld [vmem:[#allocation12 + $0x54] sm:$0xf]
        %v1375 = vld [vmem:[#allocation12 + $0x58] sm:$0xf]
        %v1376 = vld [vmem:[#allocation12 + $0x5c] sm:$0xf]
        %v1377 = vld [vmem:[#allocation12 + $0x60] sm:$0xf]
        %v1378 = vld [vmem:[#allocation12 + $0x64] sm:$0xf]
        %v1379 = vld [vmem:[#allocation12 + $0x68] sm:$0xf]
        %v1380 = vld [vmem:[#allocation12 + $0x6c] sm:$0xf]
        %v1381 = vld [vmem:[#allocation12 + $0x70] sm:$0xf]
        %v1382 = vld [vmem:[#allocation12 + $0x74] sm:$0xf]
        %v1383 = vld [vmem:[#allocation12 + $0x78] sm:$0xf]
        %v1384 = vld [vmem:[#allocation12 + $0x7c] sm:$0xf]
        %v1385 = vld [vmem:[#allocation12 + $0x80] sm:$0xf]
        %v1386 = vld [vmem:[#allocation12 + $0x84] sm:$0xf]
        %v1387 = vld [vmem:[#allocation12 + $0x88] sm:$0xf]
        %v1388 = vld [vmem:[#allocation12 + $0x8c] sm:$0xf]
        %v1389 = vld [vmem:[#allocation12 + $0x90] sm:$0xf]
        %v1390 = vld [vmem:[#allocation12 + $0x94] sm:$0xf]
        %v1391 = vld [vmem:[#allocation12 + $0x98] sm:$0xf]
        %v1392 = vld [vmem:[#allocation12 + $0x9c] sm:$0xf]
        %v1393 = vld [vmem:[#allocation12 + $0xa0] sm:$0xf]
        %v1394 = vld [vmem:[#allocation12 + $0xa4] sm:$0xf]
        %v1395 = vld [vmem:[#allocation12 + $0xa8] sm:$0xf]
        %v1396 = vld [vmem:[#allocation12 + $0xac] sm:$0xf]
        %v1397 = vld [vmem:[#allocation12 + $0xb0] sm:$0xf]
        %v1398 = vld [vmem:[#allocation12 + $0xb4] sm:$0xf]
        %v1399 = vld [vmem:[#allocation12 + $0xb8] sm:$0xf]
        %v1400 = vld [vmem:[#allocation12 + $0xbc] sm:$0xf]
        %v1405 = vunpack.c.l.b16 %v1349
        %v1406 = vunpack.c.h.b16 %v1349
        %v1407 = vunpack.c.l.b16 %v1350
        %v1408 = vunpack.c.l.b16 %v1351
        %v1409 = vunpack.c.h.b16 %v1351
        %v1410 = vunpack.c.l.b16 %v1352
        %v1411 = vpack.c.b16 %v1408, %v1405
        %v1412 = vpack.c.b16 %v1409, %v1406
        %v1413 = vpack.c.b16 %v1410, %v1407
        %v1465 = vunpack.c.l.b16 %v1353
        %v1466 = vunpack.c.l.b16 %v1354
        %v1467 = vunpack.c.l.b16 %v1355
        %v1468 = vunpack.c.l.b16 %v1356
        %v1469 = vunpack.c.l.b16 %v1357
        %v1470 = vunpack.c.l.b16 %v1358
        %v1471 = vunpack.c.l.b16 %v1359
        %v1472 = vunpack.c.l.b16 %v1360
        %v1473 = vunpack.c.l.b16 %v1361
        %v1474 = vunpack.c.l.b16 %v1362
        %v1475 = vunpack.c.l.b16 %v1363
        %v1476 = vunpack.c.l.b16 %v1364
        %v1477 = vunpack.c.l.b16 %v1365
        %v1478 = vunpack.c.l.b16 %v1366
        %v1479 = vunpack.c.l.b16 %v1367
        %v1480 = vunpack.c.l.b16 %v1368
        %v1481 = vunpack.c.l.b16 %v1369
        %v1482 = vunpack.c.l.b16 %v1370
        %v1483 = vunpack.c.l.b16 %v1371
        %v1484 = vunpack.c.l.b16 %v1372
        %v1485 = vunpack.c.l.b16 %v1373
        %v1486 = vunpack.c.l.b16 %v1374
        %v1487 = vunpack.c.l.b16 %v1375
        %v1488 = vunpack.c.l.b16 %v1376
        %v1489 = vunpack.c.l.b16 %v1377
        %v1490 = vunpack.c.l.b16 %v1378
        %v1491 = vunpack.c.l.b16 %v1379
        %v1492 = vunpack.c.l.b16 %v1380
        %v1493 = vunpack.c.l.b16 %v1381
        %v1494 = vunpack.c.l.b16 %v1382
        %v1495 = vunpack.c.l.b16 %v1383
        %v1496 = vunpack.c.l.b16 %v1384
        %v1497 = vunpack.c.l.b16 %v1385
        %v1498 = vunpack.c.l.b16 %v1386
        %v1499 = vunpack.c.l.b16 %v1387
        %v1500 = vunpack.c.l.b16 %v1388
        %v1501 = vunpack.c.l.b16 %v1389
        %v1502 = vunpack.c.l.b16 %v1390
        %v1503 = vunpack.c.l.b16 %v1391
        %v1504 = vunpack.c.l.b16 %v1392
        %v1505 = vunpack.c.l.b16 %v1393
        %v1506 = vunpack.c.l.b16 %v1394
        %v1507 = vunpack.c.l.b16 %v1395
        %v1508 = vunpack.c.l.b16 %v1396
        %v1509 = vunpack.c.l.b16 %v1397
        %v1510 = vunpack.c.l.b16 %v1398
        %v1511 = vunpack.c.l.b16 %v1399
        %v1512 = vunpack.c.l.b16 %v1400
        %v1513 = vpack.c.b16 %v1466, %v1465
        %v1514 = vpack.c.b16 %v1468, %v1467
        %v1515 = vpack.c.b16 %v1470, %v1469
        %v1516 = vpack.c.b16 %v1472, %v1471
        %v1517 = vpack.c.b16 %v1474, %v1473
        %v1518 = vpack.c.b16 %v1476, %v1475
        %v1519 = vpack.c.b16 %v1478, %v1477
        %v1520 = vpack.c.b16 %v1480, %v1479
        %v1521 = vpack.c.b16 %v1482, %v1481
        %v1522 = vpack.c.b16 %v1484, %v1483
        %v1523 = vpack.c.b16 %v1486, %v1485
        %v1524 = vpack.c.b16 %v1488, %v1487
        %v1525 = vpack.c.b16 %v1490, %v1489
        %v1526 = vpack.c.b16 %v1492, %v1491
        %v1527 = vpack.c.b16 %v1494, %v1493
        %v1528 = vpack.c.b16 %v1496, %v1495
        %v1529 = vpack.c.b16 %v1498, %v1497
        %v1530 = vpack.c.b16 %v1500, %v1499
        %v1531 = vpack.c.b16 %v1502, %v1501
        %v1532 = vpack.c.b16 %v1504, %v1503
        %v1533 = vpack.c.b16 %v1506, %v1505
        %v1534 = vpack.c.b16 %v1508, %v1507
        %v1535 = vpack.c.b16 %v1510, %v1509
        %v1536 = vpack.c.b16 %v1512, %v1511
        %1561 = vmatpush.bf16.msra.mxu0 %v1520
        %1562 = vmatpush.bf16.msra.mxu0 %v1519
        %1563 = vmatpush.bf16.msra.mxu0 %v1518
        %1564 = vmatpush.bf16.msra.mxu0 %v1517
        %1565 = vmatpush.bf16.msra.mxu0 %v1516
        %1566 = vmatpush.bf16.msra.mxu0 %v1515
        %1567 = vmatpush.bf16.msra.mxu0 %v1514
        %1568 = vmatpush.bf16.msra.mxu0 %v1513
        %1569 = vmatmul.bf16.gmra.mxu0 %v1411
        %v1570 = vpop.f32.mrf.mxu0
        %v1571 = vadd.f32 0.0, %v1570
        %v1572 = vpop.f32.mrf.mxu0
        %v1573 = vadd.f32 0.0, %v1572
        %1574 = vdwg.mxu0
        %1575 = vmatpush.bf16.msra.mxu0 %v1528
        %1576 = vmatpush.bf16.msra.mxu0 %v1527
        %1577 = vmatpush.bf16.msra.mxu0 %v1526
        %1578 = vmatpush.bf16.msra.mxu0 %v1525
        %1579 = vmatpush.bf16.msra.mxu0 %v1524
        %1580 = vmatpush.bf16.msra.mxu0 %v1523
        %1581 = vmatpush.bf16.msra.mxu0 %v1522
        %1582 = vmatpush.bf16.msra.mxu0 %v1521
        %1583 = vmatmul.bf16.gmra.mxu0 %v1412
        %v1584 = vpop.f32.mrf.mxu0
        %v1585 = vadd.f32 %v1571, %v1584
        %v1586 = vpop.f32.mrf.mxu0
        %v1587 = vadd.f32 %v1573, %v1586
        %1588 = vdwg.mxu0
        %1589 = vmatpush.bf16.msra.mxu0 %v1536
        %1590 = vmatpush.bf16.msra.mxu0 %v1535
        %1591 = vmatpush.bf16.msra.mxu0 %v1534
        %1592 = vmatpush.bf16.msra.mxu0 %v1533
        %1593 = vmatpush.bf16.msra.mxu0 %v1532
        %1594 = vmatpush.bf16.msra.mxu0 %v1531
        %1595 = vmatpush.bf16.msra.mxu0 %v1530
        %1596 = vmatpush.bf16.msra.mxu0 %v1529
        %1597 = vmatmul.bf16.gmra.mxu0 %v1413
        %v1598 = vpop.f32.mrf.mxu0
        %v1599 = vadd.f32 %v1585, %v1598
        %v1600 = vpop.f32.mrf.mxu0
        %v1601 = vadd.f32 %v1587, %v1600
        %1602 = vdwg.mxu0
        %v1603 = vmax.f32 %v1599, 0.0
        %v1604 = vmax.f32 %v1601, 0.0
        %v1605 = vpack.c.bf16 %v1603, %v1603
        %v1606 = vpack.c.bf16 %v1604, %v1604
        %1607 = vst [vmem:[#allocation2] sm:$0xf] %v1605
        %1608 = vst [vmem:[#allocation2 + $0xc] sm:$0xf] %v1606
        %v1611 = vunpack.c.l.b16 %v1605
        %v1612 = vunpack.c.l.b16 %v1606
        %v1613 = vpack.c.b16 %v1612, %v1611
        %1615 = vmatpush.bf16.msra.mxu0 0
        %1616 = vmatpush.bf16.msra.mxu0 0
        %1617 = vmatpush.bf16.msra.mxu0 0
        %1618 = vmatpush.bf16.msra.mxu0 0
        %1619 = vmatpush.bf16.msra.mxu0 0
        %1620 = vmatpush.bf16.msra.mxu0 0
        %1621 = vmatpush.bf16.msra.mxu0 0
        %1622 = vmatpush.bf16.msra.mxu0 %v1613
        %1623 = vmatmul.bf16.gmra.mxu0 %v677
        %v1624 = vpop.f32.mrf.mxu0
        %v1625 = vadd.f32 0.0, %v1624
        %v1626 = vpop.f32.mrf.mxu0
        %v1627 = vadd.f32 0.0, %v1626
        %1628 = vdwg.mxu0
        %v1629 = vpack.c.bf16 %v1625, %v1625
        %v1630 = vpack.c.bf16 %v1627, %v1627
        %1631 = vst [vmem:[#allocation2 + $0x4] sm:$0xf] %v1629
        %1632 = vst [vmem:[#allocation2 + $0x10] sm:$0xf] %v1630
        %v1635 = vunpack.c.l.b16 %v1629
        %v1636 = vunpack.c.l.b16 %v1630
        %v1637 = vpack.c.b16 %v1636, %v1635
        %1639 = vmatpush.bf16.msra.mxu0 0
        %1640 = vmatpush.bf16.msra.mxu0 0
        %1641 = vmatpush.bf16.msra.mxu0 0
        %1642 = vmatpush.bf16.msra.mxu0 0
        %1643 = vmatpush.bf16.msra.mxu0 0
        %1644 = vmatpush.bf16.msra.mxu0 0
        %1645 = vmatpush.bf16.msra.mxu0 0
        %1646 = vmatpush.bf16.msra.mxu0 %v1637
        %1647 = vmatmul.bf16.gmra.mxu0 %v677
        %v1648 = vpop.f32.mrf.mxu0
        %v1649 = vadd.f32 0.0, %v1648
        %v1650 = vpop.f32.mrf.mxu0
        %v1651 = vadd.f32 0.0, %v1650
        %1652 = vdwg.mxu0
        %v1653 = vmul.f32 %v1649, 2.0
        %v1654 = vmul.f32 %v1651, 2.0
        %v1655 = vsub.f32 %v1653, %v1603
        %v1656 = vsub.f32 %v1654, %v1604
        %v1657 = vpack.c.bf16 %v1655, %v1655
        %v1658 = vpack.c.bf16 %v1656, %v1656
        %1659 = vst [vmem:[#allocation2 + $0x8] sm:$0xf] %v1657
        %1660 = vst [vmem:[#allocation2 + $0x14] sm:$0xf] %v1658
        %v1661 = vld [vmem:[#allocation2] sm:$0xff]
        %v1662 = vld [vmem:[#allocation2 + $0x8] sm:$0xf]
        %v1663 = vld [vmem:[#allocation2 + $0xc] sm:$0xff]
        %v1664 = vld [vmem:[#allocation2 + $0x14] sm:$0xf]
        %v1665 = vld [vmem:[#allocation14] sm:$0xf]
        %v1666 = vld [vmem:[#allocation14 + $0x4] sm:$0xf]
        %v1667 = vld [vmem:[#allocation14 + $0x8] sm:$0xf]
        %v1668 = vld [vmem:[#allocation14 + $0xc] sm:$0xf]
        %v1669 = vld [vmem:[#allocation14 + $0x10] sm:$0xf]
        %v1670 = vld [vmem:[#allocation14 + $0x14] sm:$0xf]
        %v1671 = vld [vmem:[#allocation14 + $0x18] sm:$0xf]
        %v1672 = vld [vmem:[#allocation14 + $0x1c] sm:$0xf]
        %v1673 = vld [vmem:[#allocation14 + $0x20] sm:$0xf]
        %v1674 = vld [vmem:[#allocation14 + $0x24] sm:$0xf]
        %v1675 = vld [vmem:[#allocation14 + $0x28] sm:$0xf]
        %v1676 = vld [vmem:[#allocation14 + $0x2c] sm:$0xf]
        %v1677 = vld [vmem:[#allocation14 + $0x30] sm:$0xf]
        %v1678 = vld [vmem:[#allocation14 + $0x34] sm:$0xf]
        %v1679 = vld [vmem:[#allocation14 + $0x38] sm:$0xf]
        %v1680 = vld [vmem:[#allocation14 + $0x3c] sm:$0xf]
        %v1681 = vld [vmem:[#allocation14 + $0x40] sm:$0xf]
        %v1682 = vld [vmem:[#allocation14 + $0x44] sm:$0xf]
        %v1683 = vld [vmem:[#allocation14 + $0x48] sm:$0xf]
        %v1684 = vld [vmem:[#allocation14 + $0x4c] sm:$0xf]
        %v1685 = vld [vmem:[#allocation14 + $0x50] sm:$0xf]
        %v1686 = vld [vmem:[#allocation14 + $0x54] sm:$0xf]
        %v1687 = vld [vmem:[#allocation14 + $0x58] sm:$0xf]
        %v1688 = vld [vmem:[#allocation14 + $0x5c] sm:$0xf]
        %v1689 = vld [vmem:[#allocation14 + $0x60] sm:$0xf]
        %v1690 = vld [vmem:[#allocation14 + $0x64] sm:$0xf]
        %v1691 = vld [vmem:[#allocation14 + $0x68] sm:$0xf]
        %v1692 = vld [vmem:[#allocation14 + $0x6c] sm:$0xf]
        %v1693 = vld [vmem:[#allocation14 + $0x70] sm:$0xf]
        %v1694 = vld [vmem:[#allocation14 + $0x74] sm:$0xf]
        %v1695 = vld [vmem:[#allocation14 + $0x78] sm:$0xf]
        %v1696 = vld [vmem:[#allocation14 + $0x7c] sm:$0xf]
        %v1697 = vld [vmem:[#allocation14 + $0x80] sm:$0xf]
        %v1698 = vld [vmem:[#allocation14 + $0x84] sm:$0xf]
        %v1699 = vld [vmem:[#allocation14 + $0x88] sm:$0xf]
        %v1700 = vld [vmem:[#allocation14 + $0x8c] sm:$0xf]
        %v1701 = vld [vmem:[#allocation14 + $0x90] sm:$0xf]
        %v1702 = vld [vmem:[#allocation14 + $0x94] sm:$0xf]
        %v1703 = vld [vmem:[#allocation14 + $0x98] sm:$0xf]
        %v1704 = vld [vmem:[#allocation14 + $0x9c] sm:$0xf]
        %v1705 = vld [vmem:[#allocation14 + $0xa0] sm:$0xf]
        %v1706 = vld [vmem:[#allocation14 + $0xa4] sm:$0xf]
        %v1707 = vld [vmem:[#allocation14 + $0xa8] sm:$0xf]
        %v1708 = vld [vmem:[#allocation14 + $0xac] sm:$0xf]
        %v1709 = vld [vmem:[#allocation14 + $0xb0] sm:$0xf]
        %v1710 = vld [vmem:[#allocation14 + $0xb4] sm:$0xf]
        %v1711 = vld [vmem:[#allocation14 + $0xb8] sm:$0xf]
        %v1712 = vld [vmem:[#allocation14 + $0xbc] sm:$0xf]
        %v1717 = vunpack.c.l.b16 %v1661
        %v1718 = vunpack.c.h.b16 %v1661
        %v1719 = vunpack.c.l.b16 %v1662
        %v1720 = vunpack.c.l.b16 %v1663
        %v1721 = vunpack.c.h.b16 %v1663
        %v1722 = vunpack.c.l.b16 %v1664
        %v1723 = vpack.c.b16 %v1720, %v1717
        %v1724 = vpack.c.b16 %v1721, %v1718
        %v1725 = vpack.c.b16 %v1722, %v1719
        %v1777 = vunpack.c.l.b16 %v1665
        %v1778 = vunpack.c.l.b16 %v1666
        %v1779 = vunpack.c.l.b16 %v1667
        %v1780 = vunpack.c.l.b16 %v1668
        %v1781 = vunpack.c.l.b16 %v1669
        %v1782 = vunpack.c.l.b16 %v1670
        %v1783 = vunpack.c.l.b16 %v1671
        %v1784 = vunpack.c.l.b16 %v1672
        %v1785 = vunpack.c.l.b16 %v1673
        %v1786 = vunpack.c.l.b16 %v1674
        %v1787 = vunpack.c.l.b16 %v1675
        %v1788 = vunpack.c.l.b16 %v1676
        %v1789 = vunpack.c.l.b16 %v1677
        %v1790 = vunpack.c.l.b16 %v1678
        %v1791 = vunpack.c.l.b16 %v1679
        %v1792 = vunpack.c.l.b16 %v1680
        %v1793 = vunpack.c.l.b16 %v1681
        %v1794 = vunpack.c.l.b16 %v1682
        %v1795 = vunpack.c.l.b16 %v1683
        %v1796 = vunpack.c.l.b16 %v1684
        %v1797 = vunpack.c.l.b16 %v1685
        %v1798 = vunpack.c.l.b16 %v1686
        %v1799 = vunpack.c.l.b16 %v1687
        %v1800 = vunpack.c.l.b16 %v1688
        %v1801 = vunpack.c.l.b16 %v1689
        %v1802 = vunpack.c.l.b16 %v1690
        %v1803 = vunpack.c.l.b16 %v1691
        %v1804 = vunpack.c.l.b16 %v1692
        %v1805 = vunpack.c.l.b16 %v1693
        %v1806 = vunpack.c.l.b16 %v1694
        %v1807 = vunpack.c.l.b16 %v1695
        %v1808 = vunpack.c.l.b16 %v1696
        %v1809 = vunpack.c.l.b16 %v1697
        %v1810 = vunpack.c.l.b16 %v1698
        %v1811 = vunpack.c.l.b16 %v1699
        %v1812 = vunpack.c.l.b16 %v1700
        %v1813 = vunpack.c.l.b16 %v1701
        %v1814 = vunpack.c.l.b16 %v1702
        %v1815 = vunpack.c.l.b16 %v1703
        %v1816 = vunpack.c.l.b16 %v1704
        %v1817 = vunpack.c.l.b16 %v1705
        %v1818 = vunpack.c.l.b16 %v1706
        %v1819 = vunpack.c.l.b16 %v1707
        %v1820 = vunpack.c.l.b16 %v1708
        %v1821 = vunpack.c.l.b16 %v1709
        %v1822 = vunpack.c.l.b16 %v1710
        %v1823 = vunpack.c.l.b16 %v1711
        %v1824 = vunpack.c.l.b16 %v1712
        %v1825 = vpack.c.b16 %v1778, %v1777
        %v1826 = vpack.c.b16 %v1780, %v1779
        %v1827 = vpack.c.b16 %v1782, %v1781
        %v1828 = vpack.c.b16 %v1784, %v1783
        %v1829 = vpack.c.b16 %v1786, %v1785
        %v1830 = vpack.c.b16 %v1788, %v1787
        %v1831 = vpack.c.b16 %v1790, %v1789
        %v1832 = vpack.c.b16 %v1792, %v1791
        %v1833 = vpack.c.b16 %v1794, %v1793
        %v1834 = vpack.c.b16 %v1796, %v1795
        %v1835 = vpack.c.b16 %v1798, %v1797
        %v1836 = vpack.c.b16 %v1800, %v1799
        %v1837 = vpack.c.b16 %v1802, %v1801
        %v1838 = vpack.c.b16 %v1804, %v1803
        %v1839 = vpack.c.b16 %v1806, %v1805
        %v1840 = vpack.c.b16 %v1808, %v1807
        %v1841 = vpack.c.b16 %v1810, %v1809
        %v1842 = vpack.c.b16 %v1812, %v1811
        %v1843 = vpack.c.b16 %v1814, %v1813
        %v1844 = vpack.c.b16 %v1816, %v1815
        %v1845 = vpack.c.b16 %v1818, %v1817
        %v1846 = vpack.c.b16 %v1820, %v1819
        %v1847 = vpack.c.b16 %v1822, %v1821
        %v1848 = vpack.c.b16 %v1824, %v1823
        %1873 = vmatpush.bf16.msra.mxu0 %v1832
        %1874 = vmatpush.bf16.msra.mxu0 %v1831
        %1875 = vmatpush.bf16.msra.mxu0 %v1830
        %1876 = vmatpush.bf16.msra.mxu0 %v1829
        %1877 = vmatpush.bf16.msra.mxu0 %v1828
        %1878 = vmatpush.bf16.msra.mxu0 %v1827
        %1879 = vmatpush.bf16.msra.mxu0 %v1826
        %1880 = vmatpush.bf16.msra.mxu0 %v1825
        %1881 = vmatmul.bf16.gmra.mxu0 %v1723
        %v1882 = vpop.f32.mrf.mxu0
        %v1883 = vadd.f32 0.0, %v1882
        %v1884 = vpop.f32.mrf.mxu0
        %v1885 = vadd.f32 0.0, %v1884
        %1886 = vdwg.mxu0
        %1887 = vmatpush.bf16.msra.mxu0 %v1840
        %1888 = vmatpush.bf16.msra.mxu0 %v1839
        %1889 = vmatpush.bf16.msra.mxu0 %v1838
        %1890 = vmatpush.bf16.msra.mxu0 %v1837
        %1891 = vmatpush.bf16.msra.mxu0 %v1836
        %1892 = vmatpush.bf16.msra.mxu0 %v1835
        %1893 = vmatpush.bf16.msra.mxu0 %v1834
        %1894 = vmatpush.bf16.msra.mxu0 %v1833
        %1895 = vmatmul.bf16.gmra.mxu0 %v1724
        %v1896 = vpop.f32.mrf.mxu0
        %v1897 = vadd.f32 %v1883, %v1896
        %v1898 = vpop.f32.mrf.mxu0
        %v1899 = vadd.f32 %v1885, %v1898
        %1900 = vdwg.mxu0
        %1901 = vmatpush.bf16.msra.mxu0 %v1848
        %1902 = vmatpush.bf16.msra.mxu0 %v1847
        %1903 = vmatpush.bf16.msra.mxu0 %v1846
        %1904 = vmatpush.bf16.msra.mxu0 %v1845
        %1905 = vmatpush.bf16.msra.mxu0 %v1844
        %1906 = vmatpush.bf16.msra.mxu0 %v1843
        %1907 = vmatpush.bf16.msra.mxu0 %v1842
        %1908 = vmatpush.bf16.msra.mxu0 %v1841
        %1909 = vmatmul.bf16.gmra.mxu0 %v1725
        %v1910 = vpop.f32.mrf.mxu0
        %v1911 = vadd.f32 %v1897, %v1910
        %v1912 = vpop.f32.mrf.mxu0
        %v1913 = vadd.f32 %v1899, %v1912
        %1914 = vdwg.mxu0
        %v1915 = vmax.f32 %v1911, 0.0
        %v1916 = vmax.f32 %v1913, 0.0
        %v1917 = vpack.c.bf16 %v1916, %v1915
        %v1918 = vld [vmem:[#allocation15] sm:$0xf]
        %v1919 = vld [vmem:[#allocation15 + $0x4] sm:$0xf]
        %v1920 = vld [vmem:[#allocation15 + $0x8] sm:$0xf]
        %v1921 = vld [vmem:[#allocation15 + $0xc] sm:$0xf]
        %v1922 = vld [vmem:[#allocation15 + $0x10] sm:$0xf]
        %v1923 = vld [vmem:[#allocation15 + $0x14] sm:$0xf]
        %v1924 = vld [vmem:[#allocation15 + $0x18] sm:$0xf]
        %v1925 = vld [vmem:[#allocation15 + $0x1c] sm:$0xf]
        %v1926 = vld [vmem:[#allocation15 + $0x20] sm:$0xf]
        %v1927 = vld [vmem:[#allocation15 + $0x24] sm:$0xf]
        %v1928 = vld [vmem:[#allocation15 + $0x28] sm:$0xf]
        %v1929 = vld [vmem:[#allocation15 + $0x2c] sm:$0xf]
        %v1930 = vld [vmem:[#allocation15 + $0x30] sm:$0xf]
        %v1931 = vld [vmem:[#allocation15 + $0x34] sm:$0xf]
        %v1932 = vld [vmem:[#allocation15 + $0x38] sm:$0xf]
        %v1933 = vld [vmem:[#allocation15 + $0x3c] sm:$0xf]
        %v1950 = vunpack.c.l.b16 %v1918
        %v1951 = vunpack.c.l.b16 %v1919
        %v1952 = vunpack.c.l.b16 %v1920
        %v1953 = vunpack.c.l.b16 %v1921
        %v1954 = vunpack.c.l.b16 %v1922
        %v1955 = vunpack.c.l.b16 %v1923
        %v1956 = vunpack.c.l.b16 %v1924
        %v1957 = vunpack.c.l.b16 %v1925
        %v1958 = vunpack.c.l.b16 %v1926
        %v1959 = vunpack.c.l.b16 %v1927
        %v1960 = vunpack.c.l.b16 %v1928
        %v1961 = vunpack.c.l.b16 %v1929
        %v1962 = vunpack.c.l.b16 %v1930
        %v1963 = vunpack.c.l.b16 %v1931
        %v1964 = vunpack.c.l.b16 %v1932
        %v1965 = vunpack.c.l.b16 %v1933
        %v1966 = vpack.c.b16 %v1951, %v1950
        %v1967 = vpack.c.b16 %v1953, %v1952
        %v1968 = vpack.c.b16 %v1955, %v1954
        %v1969 = vpack.c.b16 %v1957, %v1956
        %v1970 = vpack.c.b16 %v1959, %v1958
        %v1971 = vpack.c.b16 %v1961, %v1960
        %v1972 = vpack.c.b16 %v1963, %v1962
        %v1973 = vpack.c.b16 %v1965, %v1964
        %1982 = vmatpush.bf16.msra.mxu0 %v1973
        %1983 = vmatpush.bf16.msra.mxu0 %v1972
        %1984 = vmatpush.bf16.msra.mxu0 %v1971
        %1985 = vmatpush.bf16.msra.mxu0 %v1970
        %1986 = vmatpush.bf16.msra.mxu0 %v1969
        %1987 = vmatpush.bf16.msra.mxu0 %v1968
        %1988 = vmatpush.bf16.msra.mxu0 %v1967
        %1989 = vmatpush.bf16.msra.mxu0 %v1966
        %1990 = vmatmul.bf16.gmra.mxu0 %v1917
        %v1991 = vpop.f32.mrf.mxu0
        %v1992 = vadd.f32 0.0, %v1991
        %v1993 = vpop.f32.mrf.mxu0
        %v1994 = vadd.f32 0.0, %v1993
        %1995 = vdwg.mxu0
        %1996 = vst [vmem:[%s563] sm:$0xff] %v1992
        %1997 = vst [vmem:[%s563 + $0x8] sm:$0xff] %v1994
        %v1998 = vpack.c.bf16 %v1994, %v1992
        %v1999 = vld [vmem:[%s518] sm:$0xf]
        %v2000 = vld [vmem:[%s518 + $0x4] sm:$0xf]
        %v2001 = vld [vmem:[%s518 + $0x8] sm:$0xf]
        %v2002 = vld [vmem:[%s518 + $0xc] sm:$0xf]
        %v2003 = vld [vmem:[%s518 + $0x10] sm:$0xf]
        %v2004 = vld [vmem:[%s518 + $0x14] sm:$0xf]
        %v2005 = vld [vmem:[%s518 + $0x18] sm:$0xf]
        %v2006 = vld [vmem:[%s518 + $0x1c] sm:$0xf]
        %v2007 = vld [vmem:[%s518 + $0x20] sm:$0xf]
        %v2008 = vld [vmem:[%s518 + $0x24] sm:$0xf]
        %v2009 = vld [vmem:[%s518 + $0x28] sm:$0xf]
        %v2010 = vld [vmem:[%s518 + $0x2c] sm:$0xf]
        %v2011 = vld [vmem:[%s518 + $0x30] sm:$0xf]
        %v2012 = vld [vmem:[%s518 + $0x34] sm:$0xf]
        %v2013 = vld [vmem:[%s518 + $0x38] sm:$0xf]
        %v2014 = vld [vmem:[%s518 + $0x3c] sm:$0xf]
        %v2031 = vunpack.c.l.b16 %v1999
        %v2032 = vunpack.c.l.b16 %v2000
        %v2033 = vunpack.c.l.b16 %v2001
        %v2034 = vunpack.c.l.b16 %v2002
        %v2035 = vunpack.c.l.b16 %v2003
        %v2036 = vunpack.c.l.b16 %v2004
        %v2037 = vunpack.c.l.b16 %v2005
        %v2038 = vunpack.c.l.b16 %v2006
        %v2039 = vunpack.c.l.b16 %v2007
        %v2040 = vunpack.c.l.b16 %v2008
        %v2041 = vunpack.c.l.b16 %v2009
        %v2042 = vunpack.c.l.b16 %v2010
        %v2043 = vunpack.c.l.b16 %v2011
        %v2044 = vunpack.c.l.b16 %v2012
        %v2045 = vunpack.c.l.b16 %v2013
        %v2046 = vunpack.c.l.b16 %v2014
        %v2047 = vpack.c.b16 %v2032, %v2031
        %v2048 = vpack.c.b16 %v2034, %v2033
        %v2049 = vpack.c.b16 %v2036, %v2035
        %v2050 = vpack.c.b16 %v2038, %v2037
        %v2051 = vpack.c.b16 %v2040, %v2039
        %v2052 = vpack.c.b16 %v2042, %v2041
        %v2053 = vpack.c.b16 %v2044, %v2043
        %v2054 = vpack.c.b16 %v2046, %v2045
        %2063 = vmatpush.bf16.msra.mxu0 %v2054
        %2064 = vmatpush.bf16.msra.mxu0 %v2053
        %2065 = vmatpush.bf16.msra.mxu0 %v2052
        %2066 = vmatpush.bf16.msra.mxu0 %v2051
        %2067 = vmatpush.bf16.msra.mxu0 %v2050
        %2068 = vmatpush.bf16.msra.mxu0 %v2049
        %2069 = vmatpush.bf16.msra.mxu0 %v2048
        %2070 = vmatpush.bf16.msra.mxu0 %v2047
        %2071 = vmatmul.bf16.gmra.mxu0 %v1998
        %v2072 = vpop.f32.mrf.mxu0
        %v2073 = vadd.f32 0.0, %v2072
        %v2074 = vpop.f32.mrf.mxu0
        %v2075 = vadd.f32 0.0, %v2074
        %2076 = vdwg.mxu0
        %2077 = vst [vmem:[%s570] sm:$0xff] %v2073
        %2078 = vst [vmem:[%s570 + $0x8] sm:$0xff] %v2075
        %s2079 = sand.u32 %s249, 1
        %s2080 = scalar_lea.sflag [#allocation5], %s2079
        %s2081 = sand.u32 %s249, 1
        %s2082 = smul.addr %s2081, 16
        %s2083 = scalar_lea.vmem [#allocation18], %s2082
        %s2084 = sand.u32 %s275, 1
        %s2085 = scalar_lea.sflag [#allocation20], %s2084
        %s2086 = sand.u32 %s275, 1
        %s2087 = smul.addr %s2086, 16
        %s2088 = scalar_lea.vmem [#allocation19], %s2087
        // Predicated region
        $region93: #{tpu_custom_call.1} parent=55 // pred_check
          %p2089 = pneg %p259
        $region94: #{tpu_custom_call.1} parent=55 // pred_check_branch
          %2091 = sbr.rel (%p2089) target = $region96
        $region95: #{tpu_custom_call.1} parent=55 // pred_region
          %2093 = vsyncadd %s2080, 0
          %s2094 = smul.addr %s37, 2
          %s2095 = smul.addr %s2094, 8
          %s2096 = scalar_lea.hbm %s9, %s2095
          %s2097 = sshll.u32 %s2083, 4
          %s2098 = int_to_ptr.vmem [resolvable:$true] %s2097
          %s2099 = sshll.u32 %s2096, 4
          %s2100 = int_to_ptr.hbm [resolvable:$true] %s2099
          %2105 = dma.vmem_to_hbm [thread:$0]  %s2098, 256, %s2100, %s2080, 128, 128, 8
        $region96: #{tpu_custom_call.1} parent=55 // pred_fallthru
          _
        // Predicated region
        $region97: #{tpu_custom_call.1} parent=55 // pred_check
          %p2106 = pneg %p285
        $region98: #{tpu_custom_call.1} parent=55 // pred_check_branch
          %2108 = sbr.rel (%p2106) target = $region100
        $region99: #{tpu_custom_call.1} parent=55 // pred_region
          %2110 = vsyncadd %s2085, 0
          %s2111 = smul.addr %s37, 2
          %s2112 = smul.addr %s2111, 8
          %s2113 = scalar_lea.hbm %s10, %s2112
          %s2114 = sshll.u32 %s2088, 4
          %s2115 = int_to_ptr.vmem [resolvable:$true] %s2114
          %s2116 = sshll.u32 %s2113, 4
          %s2117 = int_to_ptr.hbm [resolvable:$true] %s2116
          %2122 = dma.vmem_to_hbm [thread:$0]  %s2115, 256, %s2117, %s2085, 128, 128, 8
        $region100: #{tpu_custom_call.1} parent=55 // pred_fallthru
          _
      $region56: #{tpu_custom_call.1} parent=5 // pred_fallthru
        _
      %p2123 = scmp.le.s32.totalorder 2, %s32
      // Predicated region
      $region101: #{tpu_custom_call.1} parent=5 // pred_check
        %p2124 = pneg %p2123
      $region102: #{tpu_custom_call.1} parent=5 // pred_check_branch
        %2126 = sbr.rel (%p2124) target = $region104
      $region103: #{tpu_custom_call.1} parent=5 // pred_region
        %s2127 = ssub.s32 %s32, 2
        // Predicated region
        $region105: #{tpu_custom_call.1} parent=103 // pred_check
          %p2128 = pneg %p265
        $region106: #{tpu_custom_call.1} parent=103 // pred_check_branch
          %2130 = sbr.rel (%p2128) target = $region108
        $region107: #{tpu_custom_call.1} parent=103 // pred_region
          %s2131 = sand.u32 %s250, 1
          %s2132 = scalar_lea.sflag [#allocation5], %s2131
          %s2133 = sand.u32 %s250, 1
          %s2134 = smul.addr %s2133, 16
          %s2135 = scalar_lea.vmem [#allocation18], %s2134
          %2137 = dma.done %s2132, 256
        $region108: #{tpu_custom_call.1} parent=103 // pred_fallthru
          _
        // Predicated region
        $region109: #{tpu_custom_call.1} parent=103 // pred_check
          %p2138 = pneg %p291
        $region110: #{tpu_custom_call.1} parent=103 // pred_check_branch
          %2140 = sbr.rel (%p2138) target = $region112
        $region111: #{tpu_custom_call.1} parent=103 // pred_region
          %s2141 = sand.u32 %s276, 1
          %s2142 = scalar_lea.sflag [#allocation20], %s2141
          %s2143 = sand.u32 %s276, 1
          %s2144 = smul.addr %s2143, 16
          %s2145 = scalar_lea.vmem [#allocation19], %s2144
          %2147 = dma.done %s2142, 256
        $region112: #{tpu_custom_call.1} parent=103 // pred_fallthru
          _
      $region104: #{tpu_custom_call.1} parent=5 // pred_fallthru
        _
    $region6: #{tpu_custom_call.1} parent=1 // loop_footer
      %s36 = sadd.s32 1, %s32
    $region7: #{tpu_custom_call.1} parent=1 // loop_footer_branch
      %31 = sbr.rel target = $region3
    $region8: #{tpu_custom_call.1} parent=1 // loop_exit
      _
    %2148 = vsyncpa [#allocation4], 1
    %s2149 = scalar_lea.sflag [#allocation4], 1
    %2150 = vsyncpa %s2149, 1
    %2151 = vsyncpa [#allocation7], 1
    %s2152 = scalar_lea.sflag [#allocation7], 1
    %2153 = vsyncpa %s2152, 1
    %2154 = vsyncpa [#allocation10], 1
    %2155 = vsyncpa [#allocation13], 1
    %2156 = vsyncpa [#allocation16], 1
    %2157 = vsyncpa [#allocation5], 1
    %s2158 = scalar_lea.sflag [#allocation5], 1
    %2159 = vsyncpa %s2158, 1
    %2160 = vsyncpa [#allocation20], 1
    %s2161 = scalar_lea.sflag [#allocation20], 1
    %2162 = vsyncpa %s2161, 1

</llo_original>
